<compile_context>
chip_gen: v7x
topology: tpu7x:2x2x1
jax: 0.10.0
libtpu: 0.0.40
codegen_flags: <defaults>
</compile_context>

<pallas_src>
import jax
import jax.numpy as jnp
from jax.experimental import pallas as pl
from jax.experimental.pallas import tpu as pltpu


# ----------------------------------------------------------------------------
# Fused kernel: the WHOLE batch in one grid step.
#   layer 1: 3x3 conv, stride 2, pad 1, in_ch -> in_ch, + bias
#   layer 2: 3x3 conv, stride 1, pad 1, in_ch -> out_ch, folded BN, ReLU
#   layer 3: 3x3 conv, stride 1, pad 1, out_ch -> out_ch, folded BN, ReLU
# ----------------------------------------------------------------------------
def _down_fused_kernel(x_ref, w1_ref, b1_ref, w2_ref, s2_ref, bb2_ref,
                       w3t_ref, s3_ref, bb3_ref, o_ref, xe, xo, xp2, xp3):
    # x_ref:   (N, H, W, Cin)        whole batch, NHWC (channels on lanes)
    # w1_ref:  (9, Cin, Cin)         per-tap HWIO weights, tap t = 3*ky + kx
    # w2_ref:  (9, Cin, Cout)
    # w3t_ref: (9, Cout, Cout)       per-tap weights PRE-TRANSPOSED (Cout, Cin_of_layer)
    # b1/s2/bb2: (1, C);  s3/bb3: (Cout, 1)
    # o_ref:   (Cout, N*Ho*Wo)       lane-dense output slab
    # xe/xo:   (N, H+2, Wo+1, Cin)   even / odd padded-W columns (layer-1 deinterleave)
    # xp2/xp3: (N, Ho+2, Wo+2, C)    zero-padded inputs of layers 2 / 3
    f32 = jnp.float32
    n, H, W, cin = x_ref.shape
    cout = o_ref.shape[0]
    cmid = w2_ref.shape[2]
    Hp = H + 2
    Ho = (H - 1) // 2 + 1
    Wo = (W - 1) // 2 + 1
    M = n * Ho * Wo

    # ---------------- Layer 1: stride-2 conv (no BN / ReLU) ----------------
    # Deinterleave padded W columns once (even -> xe, odd -> xo) so the nine
    # stride-2 tap reads become unit-stride sublane slices.
    #   xe col j <-> padded col 2j   (col 0  = left  zero pad)
    #   xo col j <-> padded col 2j+1 (col Wo = right zero pad)
    We = Wo + 1
    z_row1 = jnp.zeros((n, 1, We, cin), f32)
    z_col1 = jnp.zeros((n, Hp, 1, cin), f32)
    for buf, pad_col in ((xe, 0), (xo, Wo)):          # zero ONLY the halo ring
        buf[:, pl.ds(0, 1), :, :] = z_row1
        buf[:, pl.ds(Hp - 1, 1), :, :] = z_row1
        buf[:, :, pl.ds(pad_col, 1), :] = z_col1
    # Interior: one strided gather each, instead of 9 strided tap reads.
    xe[:, pl.ds(1, H), pl.ds(1, Wo), :] = x_ref[:, :, pl.ds(1, Wo, 2), :]   # x cols 1,3,...
    xo[:, pl.ds(1, H), pl.ds(0, Wo), :] = x_ref[:, :, pl.ds(0, Wo, 2), :]   # x cols 0,2,...

    def l1_patch(ky, kx):
        # padded col = 2*ox + kx ; padded row = 2*oy + ky (cheap leading-dim stride)
        if kx == 0:
            return xe[:, pl.ds(ky, Ho, 2), pl.ds(0, Wo), :]
        if kx == 1:
            return xo[:, pl.ds(ky, Ho, 2), pl.ds(0, Wo), :]
        return xe[:, pl.ds(ky, Ho, 2), pl.ds(1, Wo), :]

    acc1 = jnp.broadcast_to(b1_ref[...], (M, cin)).astype(f32)
    for ky in range(3):
        for kx in range(3):
            t = 3 * ky + kx
            p = l1_patch(ky, kx).reshape(M, cin)
            acc1 = acc1 + jnp.dot(p, w1_ref[t], preferred_element_type=f32)
    h1 = acc1                                                     # (M, Cin)

    # ---------------- Layer 2: conv -> BN (folded) -> ReLU -----------------
    z_row2 = jnp.zeros((n, 1, Wo + 2, cin), f32)
    z_col2 = jnp.zeros((n, Ho + 2, 1, cin), f32)
    xp2[:, pl.ds(0, 1), :, :] = z_row2
    xp2[:, pl.ds(Ho + 1, 1), :, :] = z_row2
    xp2[:, :, pl.ds(0, 1), :] = z_col2
    xp2[:, :, pl.ds(Wo + 1, 1), :] = z_col2
    xp2[:, pl.ds(1, Ho), pl.ds(1, Wo), :] = h1.reshape(n, Ho, Wo, cin)

    acc2 = jnp.zeros((M, cmid), f32)
    for ky in range(3):
        for kx in range(3):
            t = 3 * ky + kx
            p = xp2[:, pl.ds(ky, Ho), pl.ds(kx, Wo), :].reshape(M, cin)
            acc2 = acc2 + jnp.dot(p, w2_ref[t], preferred_element_type=f32)
    h2 = jnp.maximum(acc2 * s2_ref[...] + bb2_ref[...], 0.0)      # (M, Cmid)

    # ---------------- Layer 3: conv -> BN (folded) -> ReLU -----------------
    # Accumulated directly as (Cout, M): acc3 += W_t^T @ patch_t^T via a
    # q·k^T-style contraction with pre-transposed weights -> lane-dense store.
    z_row3 = jnp.zeros((n, 1, Wo + 2, cmid), f32)
    z_col3 = jnp.zeros((n, Ho + 2, 1, cmid), f32)
    xp3[:, pl.ds(0, 1), :, :] = z_row3
    xp3[:, pl.ds(Ho + 1, 1), :, :] = z_row3
    xp3[:, :, pl.ds(0, 1), :] = z_col3
    xp3[:, :, pl.ds(Wo + 1, 1), :] = z_col3
    xp3[:, pl.ds(1, Ho), pl.ds(1, Wo), :] = h2.reshape(n, Ho, Wo, cmid)

    acc3 = jnp.zeros((cout, M), f32)
    dims = (((1,), (1,)), ((), ()))                                # contract both dim-1
    for ky in range(3):
        for kx in range(3):
            t = 3 * ky + kx
            p = xp3[:, pl.ds(ky, Ho), pl.ds(kx, Wo), :].reshape(M, cmid)
            acc3 = acc3 + jax.lax.dot_general(w3t_ref[t], p, dims,
                                              preferred_element_type=f32)
    o_ref[...] = jnp.maximum(acc3 * s3_ref[...] + bb3_ref[...], 0.0).astype(o_ref.dtype)


def down_fused(x_nhwc, w1, b1, w2, s2, bb2, w3t, s3, bb3):
    """Single pallas_call for the whole Down block (NHWC in, (Cout, N*Ho*Wo) out)."""
    n, h, w, cin = x_nhwc.shape
    cmid = w2.shape[2]
    cout = w3t.shape[1]
    ho = (h - 1) // 2 + 1          # PyTorch: floor((H + 2*1 - 3)/2) + 1
    wo = (w - 1) // 2 + 1
    m = n * ho * wo

    def full_spec(shape):
        nd = len(shape)
        return pl.BlockSpec(shape, lambda i, nd=nd: (0,) * nd)

    return pl.pallas_call(
        _down_fused_kernel,
        out_shape=jax.ShapeDtypeStruct((cout, m), jnp.float32),
        grid=(1,),                      # batch folded into the matmul M dimension
        in_specs=[
            full_spec((n, h, w, cin)),
            full_spec((9, cin, cin)),
            full_spec((1, cin)),
            full_spec((9, cin, cmid)),
            full_spec((1, cmid)),
            full_spec((1, cmid)),
            full_spec((9, cout, cmid)),
            full_spec((cout, 1)),
            full_spec((cout, 1)),
        ],
        out_specs=full_spec((cout, m)),
        scratch_shapes=[
            pltpu.VMEM((n, h + 2, wo + 1, cin), jnp.float32),    # even padded cols
            pltpu.VMEM((n, h + 2, wo + 1, cin), jnp.float32),    # odd padded cols
            pltpu.VMEM((n, ho + 2, wo + 2, cin), jnp.float32),   # padded layer-2 input
            pltpu.VMEM((n, ho + 2, wo + 2, cmid), jnp.float32),  # padded layer-3 input
        ],
        # Single step at toy size (megacore buys nothing); at real sizes make an
        # H-strip grid axis the "parallel" one instead.
        compiler_params=pltpu.CompilerParams(dimension_semantics=("arbitrary",)),
    )(x_nhwc, w1, b1, w2, s2, bb2, w3t, s3, bb3)


# ----------------------------------------------------------------------------
# Parameters (deterministic synthetic init; HWIO layout (3, 3, Cin, Cout)).
# ----------------------------------------------------------------------------
_BN_EPS = 1e-5


def init_down_params(in_ch, out_ch, key):
    ks = jax.random.split(key, 6)
    return {
        "w1": 0.1 * jax.random.normal(ks[0], (3, 3, in_ch, in_ch), jnp.float32),
        "b1": 0.1 * jax.random.normal(ks[1], (in_ch,), jnp.float32),
        "w2": 0.1 * jax.random.normal(ks[2], (3, 3, in_ch, out_ch), jnp.float32),
        "b2": 0.1 * jax.random.normal(ks[3], (out_ch,), jnp.float32),
        "bn2_gamma": jnp.ones((out_ch,), jnp.float32),
        "bn2_beta": jnp.zeros((out_ch,), jnp.float32),
        "bn2_mean": jnp.zeros((out_ch,), jnp.float32),
        "bn2_var": jnp.ones((out_ch,), jnp.float32),
        "w3": 0.1 * jax.random.normal(ks[4], (3, 3, out_ch, out_ch), jnp.float32),
        "b3": 0.1 * jax.random.normal(ks[5], (out_ch,), jnp.float32),
        "bn3_gamma": jnp.ones((out_ch,), jnp.float32),
        "bn3_beta": jnp.zeros((out_ch,), jnp.float32),
        "bn3_mean": jnp.zeros((out_ch,), jnp.float32),
        "bn3_var": jnp.ones((out_ch,), jnp.float32),
    }


def _fold_bn(conv_bias, gamma, beta, mean, var):
    scale = gamma / jnp.sqrt(var + _BN_EPS)
    bias = (conv_bias - mean) * scale + beta
    return scale, bias


# ----------------------------------------------------------------------------
# Down.forward (NCHW in / NCHW out, like PyTorch). Input transpose and the
# (Cout, N*Ho*Wo) -> NCHW reshape/transpose are XLA-side layout plumbing.
# ----------------------------------------------------------------------------
@jax.jit
def down_forward(x_nchw, params):
    n, _, h, w = x_nchw.shape
    x = jnp.transpose(x_nchw, (0, 2, 3, 1)).astype(jnp.float32)   # NCHW -> NHWC

    in_ch = params["w1"].shape[2]
    out_ch = params["w2"].shape[3]

    w1 = params["w1"].reshape(9, in_ch, in_ch)                    # tap t = 3*ky + kx
    b1 = params["b1"].reshape(1, in_ch)

    s2, b2 = _fold_bn(params["b2"], params["bn2_gamma"], params["bn2_beta"],
                      params["bn2_mean"], params["bn2_var"])
    w2 = params["w2"].reshape(9, in_ch, out_ch)

    s3, b3 = _fold_bn(params["b3"], params["bn3_gamma"], params["bn3_beta"],
                      params["bn3_mean"], params["bn3_var"])
    # Pre-transposed per-tap layer-3 weights: (3,3,cmid,cout) -> (9, cout, cmid)
    w3t = jnp.transpose(params["w3"], (0, 1, 3, 2)).reshape(9, out_ch, out_ch)

    y = down_fused(x, w1, b1,
                   w2, s2.reshape(1, out_ch), b2.reshape(1, out_ch),
                   w3t, s3.reshape(out_ch, 1), b3.reshape(out_ch, 1))

    ho, wo = (h - 1) // 2 + 1, (w - 1) // 2 + 1
    return y.reshape(out_ch, n, ho, wo).transpose(1, 0, 2, 3)     # -> NCHW


# ----------------------------------------------------------------------------
# Pure-JAX reference (lax.conv) for the correctness check.
# ----------------------------------------------------------------------------
def down_reference(x_nchw, params):
    dn = ("NHWC", "HWIO", "NHWC")
    x = jnp.transpose(x_nchw, (0, 2, 3, 1)).astype(jnp.float32)

    def conv(x, w, stride):
        return jax.lax.conv_general_dilated(
            x, w, window_strides=(stride, stride), padding=((1, 1), (1, 1)),
            dimension_numbers=dn)

    y = conv(x, params["w1"], 2) + params["b1"]
    s2, b2 = _fold_bn(params["b2"], params["bn2_gamma"], params["bn2_beta"],
                      params["bn2_mean"], params["bn2_var"])
    y = jnp.maximum(conv(y, params["w2"], 1) * s2 + b2, 0.0)
    s3, b3 = _fold_bn(params["b3"], params["bn3_gamma"], params["bn3_beta"],
                      params["bn3_mean"], params["bn3_var"])
    y = jnp.maximum(conv(y, params["w3"], 1) * s3 + b3, 0.0)
    return jnp.transpose(y, (0, 3, 1, 2))


if __name__ == "__main__":
    in_channels, out_channels = 4, 8
    batch, height, width = 2, 16, 16

    key = jax.random.PRNGKey(0)
    k_x, k_p = jax.random.split(key)
    x = jax.random.normal(k_x, (batch, in_channels, height, width), jnp.float32)
    params = init_down_params(in_channels, out_channels, k_p)

    out = jax.block_until_ready(down_forward(x, params))
    assert out.shape == (batch, out_channels, height // 2, width // 2), out.shape

    ref = down_reference(x, params)
    assert jnp.allclose(out, ref, rtol=1e-3, atol=1e-3), "mismatch vs reference"

    print("KERNEL_OK")
</pallas_src>

<mosaic_0001>
module attributes {stable_mosaic.version = 11 : i64} {
  func.func @_down_fused_kernel(%arg0: i32, %arg1: memref<2x16x16x4xf32, #tpu.memory_space<vmem>>, %arg2: memref<9x4x4xf32, #tpu.memory_space<vmem>>, %arg3: memref<1x4xf32, #tpu.memory_space<vmem>>, %arg4: memref<9x4x8xf32, #tpu.memory_space<vmem>>, %arg5: memref<1x8xf32, #tpu.memory_space<vmem>>, %arg6: memref<1x8xf32, #tpu.memory_space<vmem>>, %arg7: memref<9x8x8xf32, #tpu.memory_space<vmem>>, %arg8: memref<8x1xf32, #tpu.memory_space<vmem>>, %arg9: memref<8x1xf32, #tpu.memory_space<vmem>>, %arg10: memref<8x128xf32, #tpu.memory_space<vmem>>, %arg11: memref<2x18x9x4xf32, #tpu.memory_space<vmem>>, %arg12: memref<2x18x9x4xf32, #tpu.memory_space<vmem>>, %arg13: memref<2x10x10x4xf32, #tpu.memory_space<vmem>>, %arg14: memref<2x10x10x8xf32, #tpu.memory_space<vmem>>) attributes {dimension_semantics = [#tpu.dimension_semantics<arbitrary>], iteration_bounds = array<i64: 1>, scalar_prefetch = 0 : i64, scratch_operands = 4 : i64, tpu.core_type = #tpu.core_type<tc>, window_params = [{pipeline_mode = #tpu.pipeline_mode<synchronous>, transform_indices = @transform_0, window_bounds = array<i64: 2, 16, 16, 4>}, {pipeline_mode = #tpu.pipeline_mode<synchronous>, transform_indices = @transform_1, window_bounds = array<i64: 9, 4, 4>}, {pipeline_mode = #tpu.pipeline_mode<synchronous>, transform_indices = @transform_2, window_bounds = array<i64: 1, 4>}, {pipeline_mode = #tpu.pipeline_mode<synchronous>, transform_indices = @transform_3, window_bounds = array<i64: 9, 4, 8>}, {pipeline_mode = #tpu.pipeline_mode<synchronous>, transform_indices = @transform_4, window_bounds = array<i64: 1, 8>}, {pipeline_mode = #tpu.pipeline_mode<synchronous>, transform_indices = @transform_5, window_bounds = array<i64: 1, 8>}, {pipeline_mode = #tpu.pipeline_mode<synchronous>, transform_indices = @transform_6, window_bounds = array<i64: 9, 8, 8>}, {pipeline_mode = #tpu.pipeline_mode<synchronous>, transform_indices = @transform_7, window_bounds = array<i64: 8, 1>}, {pipeline_mode = #tpu.pipeline_mode<synchronous>, transform_indices = @transform_8, window_bounds = array<i64: 8, 1>}, {pipeline_mode = #tpu.pipeline_mode<synchronous>, transform_indices = @transform_9, window_bounds = array<i64: 8, 128>}]} {
    %cst = arith.constant 0.000000e+00 : f32
    %0 = vector.broadcast %cst : f32 to vector<2x1x9x4xf32>
    %cst_0 = arith.constant 0.000000e+00 : f32
    %1 = vector.broadcast %cst_0 : f32 to vector<2x18x1x4xf32>
    %c0 = arith.constant 0 : index
    %c0_1 = arith.constant 0 : index
    %c0_2 = arith.constant 0 : index
    %c0_3 = arith.constant 0 : index
    %2 = vector.load %arg11[%c0, %c0_1, %c0_2, %c0_3] : memref<2x18x9x4xf32, #tpu.memory_space<vmem>>, vector<2x1x9x4xf32>
    tpu.vector_store %arg11[%c0, %c0_1, %c0_2, %c0_3], %0 {strides = array<i32>} : memref<2x18x9x4xf32, #tpu.memory_space<vmem>>, vector<2x1x9x4xf32>,
    %c0_4 = arith.constant 0 : index
    %c17 = arith.constant 17 : index
    %c0_5 = arith.constant 0 : index
    %c0_6 = arith.constant 0 : index
    %3 = vector.load %arg11[%c0_4, %c17, %c0_5, %c0_6] : memref<2x18x9x4xf32, #tpu.memory_space<vmem>>, vector<2x1x9x4xf32>
    tpu.vector_store %arg11[%c0_4, %c17, %c0_5, %c0_6], %0 {strides = array<i32>} : memref<2x18x9x4xf32, #tpu.memory_space<vmem>>, vector<2x1x9x4xf32>,
    %c0_7 = arith.constant 0 : index
    %c0_8 = arith.constant 0 : index
    %c0_9 = arith.constant 0 : index
    %c0_10 = arith.constant 0 : index
    %4 = vector.load %arg11[%c0_7, %c0_8, %c0_9, %c0_10] : memref<2x18x9x4xf32, #tpu.memory_space<vmem>>, vector<2x18x1x4xf32>
    tpu.vector_store %arg11[%c0_7, %c0_8, %c0_9, %c0_10], %1 {strides = array<i32>} : memref<2x18x9x4xf32, #tpu.memory_space<vmem>>, vector<2x18x1x4xf32>,
    %c0_11 = arith.constant 0 : index
    %c0_12 = arith.constant 0 : index
    %c0_13 = arith.constant 0 : index
    %c0_14 = arith.constant 0 : index
    %5 = vector.load %arg12[%c0_11, %c0_12, %c0_13, %c0_14] : memref<2x18x9x4xf32, #tpu.memory_space<vmem>>, vector<2x1x9x4xf32>
    tpu.vector_store %arg12[%c0_11, %c0_12, %c0_13, %c0_14], %0 {strides = array<i32>} : memref<2x18x9x4xf32, #tpu.memory_space<vmem>>, vector<2x1x9x4xf32>,
    %c0_15 = arith.constant 0 : index
    %c17_16 = arith.constant 17 : index
    %c0_17 = arith.constant 0 : index
    %c0_18 = arith.constant 0 : index
    %6 = vector.load %arg12[%c0_15, %c17_16, %c0_17, %c0_18] : memref<2x18x9x4xf32, #tpu.memory_space<vmem>>, vector<2x1x9x4xf32>
    tpu.vector_store %arg12[%c0_15, %c17_16, %c0_17, %c0_18], %0 {strides = array<i32>} : memref<2x18x9x4xf32, #tpu.memory_space<vmem>>, vector<2x1x9x4xf32>,
    %c0_19 = arith.constant 0 : index
    %c0_20 = arith.constant 0 : index
    %c8 = arith.constant 8 : index
    %c0_21 = arith.constant 0 : index
    %7 = vector.load %arg12[%c0_19, %c0_20, %c8, %c0_21] : memref<2x18x9x4xf32, #tpu.memory_space<vmem>>, vector<2x18x1x4xf32>
    tpu.vector_store %arg12[%c0_19, %c0_20, %c8, %c0_21], %1 {strides = array<i32>} : memref<2x18x9x4xf32, #tpu.memory_space<vmem>>, vector<2x18x1x4xf32>,
    %c0_22 = arith.constant 0 : index
    %c0_23 = arith.constant 0 : index
    %c1 = arith.constant 1 : index
    %c0_24 = arith.constant 0 : index
    %8 = tpu.strided_load %arg1[%c0_22, %c0_23, %c1, %c0_24] {strides = array<i32: 1, 1, 2, 1>} : memref<2x16x16x4xf32, #tpu.memory_space<vmem>>, vector<2x16x8x4xf32>
    %c0_25 = arith.constant 0 : index
    %c1_26 = arith.constant 1 : index
    %c1_27 = arith.constant 1 : index
    %c0_28 = arith.constant 0 : index
    %9 = vector.load %arg11[%c0_25, %c1_26, %c1_27, %c0_28] : memref<2x18x9x4xf32, #tpu.memory_space<vmem>>, vector<2x16x8x4xf32>
    tpu.vector_store %arg11[%c0_25, %c1_26, %c1_27, %c0_28], %8 {strides = array<i32>} : memref<2x18x9x4xf32, #tpu.memory_space<vmem>>, vector<2x16x8x4xf32>,
    %c0_29 = arith.constant 0 : index
    %c0_30 = arith.constant 0 : index
    %c0_31 = arith.constant 0 : index
    %c0_32 = arith.constant 0 : index
    %10 = tpu.strided_load %arg1[%c0_29, %c0_30, %c0_31, %c0_32] {strides = array<i32: 1, 1, 2, 1>} : memref<2x16x16x4xf32, #tpu.memory_space<vmem>>, vector<2x16x8x4xf32>
    %c0_33 = arith.constant 0 : index
    %c1_34 = arith.constant 1 : index
    %c0_35 = arith.constant 0 : index
    %c0_36 = arith.constant 0 : index
    %11 = vector.load %arg12[%c0_33, %c1_34, %c0_35, %c0_36] : memref<2x18x9x4xf32, #tpu.memory_space<vmem>>, vector<2x16x8x4xf32>
    tpu.vector_store %arg12[%c0_33, %c1_34, %c0_35, %c0_36], %10 {strides = array<i32>} : memref<2x18x9x4xf32, #tpu.memory_space<vmem>>, vector<2x16x8x4xf32>,
    %c0_37 = arith.constant 0 : index
    %c0_38 = arith.constant 0 : index
    %12 = vector.load %arg3[%c0_37, %c0_38] : memref<1x4xf32, #tpu.memory_space<vmem>>, vector<1x4xf32>
    %13 = vector.shape_cast %12 : vector<1x4xf32> to vector<1x4xf32>
    %14 = vector.broadcast %13 : vector<1x4xf32> to vector<128x4xf32>
    %c0_39 = arith.constant 0 : index
    %c0_40 = arith.constant 0 : index
    %c0_41 = arith.constant 0 : index
    %c0_42 = arith.constant 0 : index
    %15 = tpu.strided_load %arg11[%c0_39, %c0_40, %c0_41, %c0_42] {strides = array<i32: 1, 2, 1, 1>} : memref<2x18x9x4xf32, #tpu.memory_space<vmem>>, vector<2x8x8x4xf32>
    %16 = vector.shape_cast %15 : vector<2x8x8x4xf32> to vector<128x4xf32>
    %c0_43 = arith.constant 0 : index
    %c0_44 = arith.constant 0 : index
    %c0_45 = arith.constant 0 : index
    %17 = vector.load %arg2[%c0_43, %c0_44, %c0_45] : memref<9x4x4xf32, #tpu.memory_space<vmem>>, vector<1x4x4xf32>
    %18 = vector.shape_cast %17 : vector<1x4x4xf32> to vector<4x4xf32>
    %cst_46 = arith.constant dense<0.000000e+00> : vector<128x4xf32>
    %19 = tpu.matmul %16, %18, %cst_46 {dimension_numbers = #tpu.dot_dimension_numbers<[1], [0], [0], [1], [0, 0, 1, 1], [], []>} : vector<128x4xf32>, vector<4x4xf32>, vector<128x4xf32> -> vector<128x4xf32>
    %20 = arith.addf %14, %19 : vector<128x4xf32>
    %c0_47 = arith.constant 0 : index
    %c0_48 = arith.constant 0 : index
    %c0_49 = arith.constant 0 : index
    %c0_50 = arith.constant 0 : index
    %21 = tpu.strided_load %arg12[%c0_47, %c0_48, %c0_49, %c0_50] {strides = array<i32: 1, 2, 1, 1>} : memref<2x18x9x4xf32, #tpu.memory_space<vmem>>, vector<2x8x8x4xf32>
    %22 = vector.shape_cast %21 : vector<2x8x8x4xf32> to vector<128x4xf32>
    %c1_51 = arith.constant 1 : index
    %c0_52 = arith.constant 0 : index
    %c0_53 = arith.constant 0 : index
    %23 = vector.load %arg2[%c1_51, %c0_52, %c0_53] : memref<9x4x4xf32, #tpu.memory_space<vmem>>, vector<1x4x4xf32>
    %24 = vector.shape_cast %23 : vector<1x4x4xf32> to vector<4x4xf32>
    %cst_54 = arith.constant dense<0.000000e+00> : vector<128x4xf32>
    %25 = tpu.matmul %22, %24, %cst_54 {dimension_numbers = #tpu.dot_dimension_numbers<[1], [0], [0], [1], [0, 0, 1, 1], [], []>} : vector<128x4xf32>, vector<4x4xf32>, vector<128x4xf32> -> vector<128x4xf32>
    %26 = arith.addf %20, %25 : vector<128x4xf32>
    %c0_55 = arith.constant 0 : index
    %c0_56 = arith.constant 0 : index
    %c1_57 = arith.constant 1 : index
    %c0_58 = arith.constant 0 : index
    %27 = tpu.strided_load %arg11[%c0_55, %c0_56, %c1_57, %c0_58] {strides = array<i32: 1, 2, 1, 1>} : memref<2x18x9x4xf32, #tpu.memory_space<vmem>>, vector<2x8x8x4xf32>
    %28 = vector.shape_cast %27 : vector<2x8x8x4xf32> to vector<128x4xf32>
    %c2 = arith.constant 2 : index
    %c0_59 = arith.constant 0 : index
    %c0_60 = arith.constant 0 : index
    %29 = vector.load %arg2[%c2, %c0_59, %c0_60] : memref<9x4x4xf32, #tpu.memory_space<vmem>>, vector<1x4x4xf32>
    %30 = vector.shape_cast %29 : vector<1x4x4xf32> to vector<4x4xf32>
    %cst_61 = arith.constant dense<0.000000e+00> : vector<128x4xf32>
    %31 = tpu.matmul %28, %30, %cst_61 {dimension_numbers = #tpu.dot_dimension_numbers<[1], [0], [0], [1], [0, 0, 1, 1], [], []>} : vector<128x4xf32>, vector<4x4xf32>, vector<128x4xf32> -> vector<128x4xf32>
    %32 = arith.addf %26, %31 : vector<128x4xf32>
    %c0_62 = arith.constant 0 : index
    %c1_63 = arith.constant 1 : index
    %c0_64 = arith.constant 0 : index
    %c0_65 = arith.constant 0 : index
    %33 = tpu.strided_load %arg11[%c0_62, %c1_63, %c0_64, %c0_65] {strides = array<i32: 1, 2, 1, 1>} : memref<2x18x9x4xf32, #tpu.memory_space<vmem>>, vector<2x8x8x4xf32>
    %34 = vector.shape_cast %33 : vector<2x8x8x4xf32> to vector<128x4xf32>
    %c3 = arith.constant 3 : index
    %c0_66 = arith.constant 0 : index
    %c0_67 = arith.constant 0 : index
    %35 = vector.load %arg2[%c3, %c0_66, %c0_67] : memref<9x4x4xf32, #tpu.memory_space<vmem>>, vector<1x4x4xf32>
    %36 = vector.shape_cast %35 : vector<1x4x4xf32> to vector<4x4xf32>
    %cst_68 = arith.constant dense<0.000000e+00> : vector<128x4xf32>
    %37 = tpu.matmul %34, %36, %cst_68 {dimension_numbers = #tpu.dot_dimension_numbers<[1], [0], [0], [1], [0, 0, 1, 1], [], []>} : vector<128x4xf32>, vector<4x4xf32>, vector<128x4xf32> -> vector<128x4xf32>
    %38 = arith.addf %32, %37 : vector<128x4xf32>
    %c0_69 = arith.constant 0 : index
    %c1_70 = arith.constant 1 : index
    %c0_71 = arith.constant 0 : index
    %c0_72 = arith.constant 0 : index
    %39 = tpu.strided_load %arg12[%c0_69, %c1_70, %c0_71, %c0_72] {strides = array<i32: 1, 2, 1, 1>} : memref<2x18x9x4xf32, #tpu.memory_space<vmem>>, vector<2x8x8x4xf32>
    %40 = vector.shape_cast %39 : vector<2x8x8x4xf32> to vector<128x4xf32>
    %c4 = arith.constant 4 : index
    %c0_73 = arith.constant 0 : index
    %c0_74 = arith.constant 0 : index
    %41 = vector.load %arg2[%c4, %c0_73, %c0_74] : memref<9x4x4xf32, #tpu.memory_space<vmem>>, vector<1x4x4xf32>
    %42 = vector.shape_cast %41 : vector<1x4x4xf32> to vector<4x4xf32>
    %cst_75 = arith.constant dense<0.000000e+00> : vector<128x4xf32>
    %43 = tpu.matmul %40, %42, %cst_75 {dimension_numbers = #tpu.dot_dimension_numbers<[1], [0], [0], [1], [0, 0, 1, 1], [], []>} : vector<128x4xf32>, vector<4x4xf32>, vector<128x4xf32> -> vector<128x4xf32>
    %44 = arith.addf %38, %43 : vector<128x4xf32>
    %c0_76 = arith.constant 0 : index
    %c1_77 = arith.constant 1 : index
    %c1_78 = arith.constant 1 : index
    %c0_79 = arith.constant 0 : index
    %45 = tpu.strided_load %arg11[%c0_76, %c1_77, %c1_78, %c0_79] {strides = array<i32: 1, 2, 1, 1>} : memref<2x18x9x4xf32, #tpu.memory_space<vmem>>, vector<2x8x8x4xf32>
    %46 = vector.shape_cast %45 : vector<2x8x8x4xf32> to vector<128x4xf32>
    %c5 = arith.constant 5 : index
    %c0_80 = arith.constant 0 : index
    %c0_81 = arith.constant 0 : index
    %47 = vector.load %arg2[%c5, %c0_80, %c0_81] : memref<9x4x4xf32, #tpu.memory_space<vmem>>, vector<1x4x4xf32>
    %48 = vector.shape_cast %47 : vector<1x4x4xf32> to vector<4x4xf32>
    %cst_82 = arith.constant dense<0.000000e+00> : vector<128x4xf32>
    %49 = tpu.matmul %46, %48, %cst_82 {dimension_numbers = #tpu.dot_dimension_numbers<[1], [0], [0], [1], [0, 0, 1, 1], [], []>} : vector<128x4xf32>, vector<4x4xf32>, vector<128x4xf32> -> vector<128x4xf32>
    %50 = arith.addf %44, %49 : vector<128x4xf32>
    %c0_83 = arith.constant 0 : index
    %c2_84 = arith.constant 2 : index
    %c0_85 = arith.constant 0 : index
    %c0_86 = arith.constant 0 : index
    %51 = tpu.strided_load %arg11[%c0_83, %c2_84, %c0_85, %c0_86] {strides = array<i32: 1, 2, 1, 1>} : memref<2x18x9x4xf32, #tpu.memory_space<vmem>>, vector<2x8x8x4xf32>
    %52 = vector.shape_cast %51 : vector<2x8x8x4xf32> to vector<128x4xf32>
    %c6 = arith.constant 6 : index
    %c0_87 = arith.constant 0 : index
    %c0_88 = arith.constant 0 : index
    %53 = vector.load %arg2[%c6, %c0_87, %c0_88] : memref<9x4x4xf32, #tpu.memory_space<vmem>>, vector<1x4x4xf32>
    %54 = vector.shape_cast %53 : vector<1x4x4xf32> to vector<4x4xf32>
    %cst_89 = arith.constant dense<0.000000e+00> : vector<128x4xf32>
    %55 = tpu.matmul %52, %54, %cst_89 {dimension_numbers = #tpu.dot_dimension_numbers<[1], [0], [0], [1], [0, 0, 1, 1], [], []>} : vector<128x4xf32>, vector<4x4xf32>, vector<128x4xf32> -> vector<128x4xf32>
    %56 = arith.addf %50, %55 : vector<128x4xf32>
    %c0_90 = arith.constant 0 : index
    %c2_91 = arith.constant 2 : index
    %c0_92 = arith.constant 0 : index
    %c0_93 = arith.constant 0 : index
    %57 = tpu.strided_load %arg12[%c0_90, %c2_91, %c0_92, %c0_93] {strides = array<i32: 1, 2, 1, 1>} : memref<2x18x9x4xf32, #tpu.memory_space<vmem>>, vector<2x8x8x4xf32>
    %58 = vector.shape_cast %57 : vector<2x8x8x4xf32> to vector<128x4xf32>
    %c7 = arith.constant 7 : index
    %c0_94 = arith.constant 0 : index
    %c0_95 = arith.constant 0 : index
    %59 = vector.load %arg2[%c7, %c0_94, %c0_95] : memref<9x4x4xf32, #tpu.memory_space<vmem>>, vector<1x4x4xf32>
    %60 = vector.shape_cast %59 : vector<1x4x4xf32> to vector<4x4xf32>
    %cst_96 = arith.constant dense<0.000000e+00> : vector<128x4xf32>
    %61 = tpu.matmul %58, %60, %cst_96 {dimension_numbers = #tpu.dot_dimension_numbers<[1], [0], [0], [1], [0, 0, 1, 1], [], []>} : vector<128x4xf32>, vector<4x4xf32>, vector<128x4xf32> -> vector<128x4xf32>
    %62 = arith.addf %56, %61 : vector<128x4xf32>
    %c0_97 = arith.constant 0 : index
    %c2_98 = arith.constant 2 : index
    %c1_99 = arith.constant 1 : index
    %c0_100 = arith.constant 0 : index
    %63 = tpu.strided_load %arg11[%c0_97, %c2_98, %c1_99, %c0_100] {strides = array<i32: 1, 2, 1, 1>} : memref<2x18x9x4xf32, #tpu.memory_space<vmem>>, vector<2x8x8x4xf32>
    %64 = vector.shape_cast %63 : vector<2x8x8x4xf32> to vector<128x4xf32>
    %c8_101 = arith.constant 8 : index
    %c0_102 = arith.constant 0 : index
    %c0_103 = arith.constant 0 : index
    %65 = vector.load %arg2[%c8_101, %c0_102, %c0_103] : memref<9x4x4xf32, #tpu.memory_space<vmem>>, vector<1x4x4xf32>
    %66 = vector.shape_cast %65 : vector<1x4x4xf32> to vector<4x4xf32>
    %cst_104 = arith.constant dense<0.000000e+00> : vector<128x4xf32>
    %67 = tpu.matmul %64, %66, %cst_104 {dimension_numbers = #tpu.dot_dimension_numbers<[1], [0], [0], [1], [0, 0, 1, 1], [], []>} : vector<128x4xf32>, vector<4x4xf32>, vector<128x4xf32> -> vector<128x4xf32>
    %68 = arith.addf %62, %67 : vector<128x4xf32>
    %cst_105 = arith.constant 0.000000e+00 : f32
    %69 = vector.broadcast %cst_105 : f32 to vector<2x1x10x4xf32>
    %cst_106 = arith.constant 0.000000e+00 : f32
    %70 = vector.broadcast %cst_106 : f32 to vector<2x10x1x4xf32>
    %c0_107 = arith.constant 0 : index
    %c0_108 = arith.constant 0 : index
    %c0_109 = arith.constant 0 : index
    %c0_110 = arith.constant 0 : index
    %71 = vector.load %arg13[%c0_107, %c0_108, %c0_109, %c0_110] : memref<2x10x10x4xf32, #tpu.memory_space<vmem>>, vector<2x1x10x4xf32>
    tpu.vector_store %arg13[%c0_107, %c0_108, %c0_109, %c0_110], %69 {strides = array<i32>} : memref<2x10x10x4xf32, #tpu.memory_space<vmem>>, vector<2x1x10x4xf32>,
    %c0_111 = arith.constant 0 : index
    %c9 = arith.constant 9 : index
    %c0_112 = arith.constant 0 : index
    %c0_113 = arith.constant 0 : index
    %72 = vector.load %arg13[%c0_111, %c9, %c0_112, %c0_113] : memref<2x10x10x4xf32, #tpu.memory_space<vmem>>, vector<2x1x10x4xf32>
    tpu.vector_store %arg13[%c0_111, %c9, %c0_112, %c0_113], %69 {strides = array<i32>} : memref<2x10x10x4xf32, #tpu.memory_space<vmem>>, vector<2x1x10x4xf32>,
    %c0_114 = arith.constant 0 : index
    %c0_115 = arith.constant 0 : index
    %c0_116 = arith.constant 0 : index
    %c0_117 = arith.constant 0 : index
    %73 = vector.load %arg13[%c0_114, %c0_115, %c0_116, %c0_117] : memref<2x10x10x4xf32, #tpu.memory_space<vmem>>, vector<2x10x1x4xf32>
    tpu.vector_store %arg13[%c0_114, %c0_115, %c0_116, %c0_117], %70 {strides = array<i32>} : memref<2x10x10x4xf32, #tpu.memory_space<vmem>>, vector<2x10x1x4xf32>,
    %c0_118 = arith.constant 0 : index
    %c0_119 = arith.constant 0 : index
    %c9_120 = arith.constant 9 : index
    %c0_121 = arith.constant 0 : index
    %74 = vector.load %arg13[%c0_118, %c0_119, %c9_120, %c0_121] : memref<2x10x10x4xf32, #tpu.memory_space<vmem>>, vector<2x10x1x4xf32>
    tpu.vector_store %arg13[%c0_118, %c0_119, %c9_120, %c0_121], %70 {strides = array<i32>} : memref<2x10x10x4xf32, #tpu.memory_space<vmem>>, vector<2x10x1x4xf32>,
    %75 = vector.shape_cast %68 : vector<128x4xf32> to vector<2x8x8x4xf32>
    %c0_122 = arith.constant 0 : index
    %c1_123 = arith.constant 1 : index
    %c1_124 = arith.constant 1 : index
    %c0_125 = arith.constant 0 : index
    %76 = vector.load %arg13[%c0_122, %c1_123, %c1_124, %c0_125] : memref<2x10x10x4xf32, #tpu.memory_space<vmem>>, vector<2x8x8x4xf32>
    tpu.vector_store %arg13[%c0_122, %c1_123, %c1_124, %c0_125], %75 {strides = array<i32>} : memref<2x10x10x4xf32, #tpu.memory_space<vmem>>, vector<2x8x8x4xf32>,
    %cst_126 = arith.constant 0.000000e+00 : f32
    %77 = vector.broadcast %cst_126 : f32 to vector<128x8xf32>
    %c0_127 = arith.constant 0 : index
    %c0_128 = arith.constant 0 : index
    %c0_129 = arith.constant 0 : index
    %c0_130 = arith.constant 0 : index
    %78 = vector.load %arg13[%c0_127, %c0_128, %c0_129, %c0_130] : memref<2x10x10x4xf32, #tpu.memory_space<vmem>>, vector<2x8x8x4xf32>
    %79 = vector.shape_cast %78 : vector<2x8x8x4xf32> to vector<128x4xf32>
    %c0_131 = arith.constant 0 : index
    %c0_132 = arith.constant 0 : index
    %c0_133 = arith.constant 0 : index
    %80 = vector.load %arg4[%c0_131, %c0_132, %c0_133] : memref<9x4x8xf32, #tpu.memory_space<vmem>>, vector<1x4x8xf32>
    %81 = vector.shape_cast %80 : vector<1x4x8xf32> to vector<4x8xf32>
    %cst_134 = arith.constant dense<0.000000e+00> : vector<128x8xf32>
    %82 = tpu.matmul %79, %81, %cst_134 {dimension_numbers = #tpu.dot_dimension_numbers<[1], [0], [0], [1], [0, 0, 1, 1], [], []>} : vector<128x4xf32>, vector<4x8xf32>, vector<128x8xf32> -> vector<128x8xf32>
    %83 = arith.addf %77, %82 : vector<128x8xf32>
    %c0_135 = arith.constant 0 : index
    %c0_136 = arith.constant 0 : index
    %c1_137 = arith.constant 1 : index
    %c0_138 = arith.constant 0 : index
    %84 = vector.load %arg13[%c0_135, %c0_136, %c1_137, %c0_138] : memref<2x10x10x4xf32, #tpu.memory_space<vmem>>, vector<2x8x8x4xf32>
    %85 = vector.shape_cast %84 : vector<2x8x8x4xf32> to vector<128x4xf32>
    %c1_139 = arith.constant 1 : index
    %c0_140 = arith.constant 0 : index
    %c0_141 = arith.constant 0 : index
    %86 = vector.load %arg4[%c1_139, %c0_140, %c0_141] : memref<9x4x8xf32, #tpu.memory_space<vmem>>, vector<1x4x8xf32>
    %87 = vector.shape_cast %86 : vector<1x4x8xf32> to vector<4x8xf32>
    %cst_142 = arith.constant dense<0.000000e+00> : vector<128x8xf32>
    %88 = tpu.matmul %85, %87, %cst_142 {dimension_numbers = #tpu.dot_dimension_numbers<[1], [0], [0], [1], [0, 0, 1, 1], [], []>} : vector<128x4xf32>, vector<4x8xf32>, vector<128x8xf32> -> vector<128x8xf32>
    %89 = arith.addf %83, %88 : vector<128x8xf32>
    %c0_143 = arith.constant 0 : index
    %c0_144 = arith.constant 0 : index
    %c2_145 = arith.constant 2 : index
    %c0_146 = arith.constant 0 : index
    %90 = vector.load %arg13[%c0_143, %c0_144, %c2_145, %c0_146] : memref<2x10x10x4xf32, #tpu.memory_space<vmem>>, vector<2x8x8x4xf32>
    %91 = vector.shape_cast %90 : vector<2x8x8x4xf32> to vector<128x4xf32>
    %c2_147 = arith.constant 2 : index
    %c0_148 = arith.constant 0 : index
    %c0_149 = arith.constant 0 : index
    %92 = vector.load %arg4[%c2_147, %c0_148, %c0_149] : memref<9x4x8xf32, #tpu.memory_space<vmem>>, vector<1x4x8xf32>
    %93 = vector.shape_cast %92 : vector<1x4x8xf32> to vector<4x8xf32>
    %cst_150 = arith.constant dense<0.000000e+00> : vector<128x8xf32>
    %94 = tpu.matmul %91, %93, %cst_150 {dimension_numbers = #tpu.dot_dimension_numbers<[1], [0], [0], [1], [0, 0, 1, 1], [], []>} : vector<128x4xf32>, vector<4x8xf32>, vector<128x8xf32> -> vector<128x8xf32>
    %95 = arith.addf %89, %94 : vector<128x8xf32>
    %c0_151 = arith.constant 0 : index
    %c1_152 = arith.constant 1 : index
    %c0_153 = arith.constant 0 : index
    %c0_154 = arith.constant 0 : index
    %96 = vector.load %arg13[%c0_151, %c1_152, %c0_153, %c0_154] : memref<2x10x10x4xf32, #tpu.memory_space<vmem>>, vector<2x8x8x4xf32>
    %97 = vector.shape_cast %96 : vector<2x8x8x4xf32> to vector<128x4xf32>
    %c3_155 = arith.constant 3 : index
    %c0_156 = arith.constant 0 : index
    %c0_157 = arith.constant 0 : index
    %98 = vector.load %arg4[%c3_155, %c0_156, %c0_157] : memref<9x4x8xf32, #tpu.memory_space<vmem>>, vector<1x4x8xf32>
    %99 = vector.shape_cast %98 : vector<1x4x8xf32> to vector<4x8xf32>
    %cst_158 = arith.constant dense<0.000000e+00> : vector<128x8xf32>
    %100 = tpu.matmul %97, %99, %cst_158 {dimension_numbers = #tpu.dot_dimension_numbers<[1], [0], [0], [1], [0, 0, 1, 1], [], []>} : vector<128x4xf32>, vector<4x8xf32>, vector<128x8xf32> -> vector<128x8xf32>
    %101 = arith.addf %95, %100 : vector<128x8xf32>
    %c0_159 = arith.constant 0 : index
    %c1_160 = arith.constant 1 : index
    %c1_161 = arith.constant 1 : index
    %c0_162 = arith.constant 0 : index
    %102 = vector.load %arg13[%c0_159, %c1_160, %c1_161, %c0_162] : memref<2x10x10x4xf32, #tpu.memory_space<vmem>>, vector<2x8x8x4xf32>
    %103 = vector.shape_cast %102 : vector<2x8x8x4xf32> to vector<128x4xf32>
    %c4_163 = arith.constant 4 : index
    %c0_164 = arith.constant 0 : index
    %c0_165 = arith.constant 0 : index
    %104 = vector.load %arg4[%c4_163, %c0_164, %c0_165] : memref<9x4x8xf32, #tpu.memory_space<vmem>>, vector<1x4x8xf32>
    %105 = vector.shape_cast %104 : vector<1x4x8xf32> to vector<4x8xf32>
    %cst_166 = arith.constant dense<0.000000e+00> : vector<128x8xf32>
    %106 = tpu.matmul %103, %105, %cst_166 {dimension_numbers = #tpu.dot_dimension_numbers<[1], [0], [0], [1], [0, 0, 1, 1], [], []>} : vector<128x4xf32>, vector<4x8xf32>, vector<128x8xf32> -> vector<128x8xf32>
    %107 = arith.addf %101, %106 : vector<128x8xf32>
    %c0_167 = arith.constant 0 : index
    %c1_168 = arith.constant 1 : index
    %c2_169 = arith.constant 2 : index
    %c0_170 = arith.constant 0 : index
    %108 = vector.load %arg13[%c0_167, %c1_168, %c2_169, %c0_170] : memref<2x10x10x4xf32, #tpu.memory_space<vmem>>, vector<2x8x8x4xf32>
    %109 = vector.shape_cast %108 : vector<2x8x8x4xf32> to vector<128x4xf32>
    %c5_171 = arith.constant 5 : index
    %c0_172 = arith.constant 0 : index
    %c0_173 = arith.constant 0 : index
    %110 = vector.load %arg4[%c5_171, %c0_172, %c0_173] : memref<9x4x8xf32, #tpu.memory_space<vmem>>, vector<1x4x8xf32>
    %111 = vector.shape_cast %110 : vector<1x4x8xf32> to vector<4x8xf32>
    %cst_174 = arith.constant dense<0.000000e+00> : vector<128x8xf32>
    %112 = tpu.matmul %109, %111, %cst_174 {dimension_numbers = #tpu.dot_dimension_numbers<[1], [0], [0], [1], [0, 0, 1, 1], [], []>} : vector<128x4xf32>, vector<4x8xf32>, vector<128x8xf32> -> vector<128x8xf32>
    %113 = arith.addf %107, %112 : vector<128x8xf32>
    %c0_175 = arith.constant 0 : index
    %c2_176 = arith.constant 2 : index
    %c0_177 = arith.constant 0 : index
    %c0_178 = arith.constant 0 : index
    %114 = vector.load %arg13[%c0_175, %c2_176, %c0_177, %c0_178] : memref<2x10x10x4xf32, #tpu.memory_space<vmem>>, vector<2x8x8x4xf32>
    %115 = vector.shape_cast %114 : vector<2x8x8x4xf32> to vector<128x4xf32>
    %c6_179 = arith.constant 6 : index
    %c0_180 = arith.constant 0 : index
    %c0_181 = arith.constant 0 : index
    %116 = vector.load %arg4[%c6_179, %c0_180, %c0_181] : memref<9x4x8xf32, #tpu.memory_space<vmem>>, vector<1x4x8xf32>
    %117 = vector.shape_cast %116 : vector<1x4x8xf32> to vector<4x8xf32>
    %cst_182 = arith.constant dense<0.000000e+00> : vector<128x8xf32>
    %118 = tpu.matmul %115, %117, %cst_182 {dimension_numbers = #tpu.dot_dimension_numbers<[1], [0], [0], [1], [0, 0, 1, 1], [], []>} : vector<128x4xf32>, vector<4x8xf32>, vector<128x8xf32> -> vector<128x8xf32>
    %119 = arith.addf %113, %118 : vector<128x8xf32>
    %c0_183 = arith.constant 0 : index
    %c2_184 = arith.constant 2 : index
    %c1_185 = arith.constant 1 : index
    %c0_186 = arith.constant 0 : index
    %120 = vector.load %arg13[%c0_183, %c2_184, %c1_185, %c0_186] : memref<2x10x10x4xf32, #tpu.memory_space<vmem>>, vector<2x8x8x4xf32>
    %121 = vector.shape_cast %120 : vector<2x8x8x4xf32> to vector<128x4xf32>
    %c7_187 = arith.constant 7 : index
    %c0_188 = arith.constant 0 : index
    %c0_189 = arith.constant 0 : index
    %122 = vector.load %arg4[%c7_187, %c0_188, %c0_189] : memref<9x4x8xf32, #tpu.memory_space<vmem>>, vector<1x4x8xf32>
    %123 = vector.shape_cast %122 : vector<1x4x8xf32> to vector<4x8xf32>
    %cst_190 = arith.constant dense<0.000000e+00> : vector<128x8xf32>
    %124 = tpu.matmul %121, %123, %cst_190 {dimension_numbers = #tpu.dot_dimension_numbers<[1], [0], [0], [1], [0, 0, 1, 1], [], []>} : vector<128x4xf32>, vector<4x8xf32>, vector<128x8xf32> -> vector<128x8xf32>
    %125 = arith.addf %119, %124 : vector<128x8xf32>
    %c0_191 = arith.constant 0 : index
    %c2_192 = arith.constant 2 : index
    %c2_193 = arith.constant 2 : index
    %c0_194 = arith.constant 0 : index
    %126 = vector.load %arg13[%c0_191, %c2_192, %c2_193, %c0_194] : memref<2x10x10x4xf32, #tpu.memory_space<vmem>>, vector<2x8x8x4xf32>
    %127 = vector.shape_cast %126 : vector<2x8x8x4xf32> to vector<128x4xf32>
    %c8_195 = arith.constant 8 : index
    %c0_196 = arith.constant 0 : index
    %c0_197 = arith.constant 0 : index
    %128 = vector.load %arg4[%c8_195, %c0_196, %c0_197] : memref<9x4x8xf32, #tpu.memory_space<vmem>>, vector<1x4x8xf32>
    %129 = vector.shape_cast %128 : vector<1x4x8xf32> to vector<4x8xf32>
    %cst_198 = arith.constant dense<0.000000e+00> : vector<128x8xf32>
    %130 = tpu.matmul %127, %129, %cst_198 {dimension_numbers = #tpu.dot_dimension_numbers<[1], [0], [0], [1], [0, 0, 1, 1], [], []>} : vector<128x4xf32>, vector<4x8xf32>, vector<128x8xf32> -> vector<128x8xf32>
    %131 = arith.addf %125, %130 : vector<128x8xf32>
    %c0_199 = arith.constant 0 : index
    %c0_200 = arith.constant 0 : index
    %132 = vector.load %arg5[%c0_199, %c0_200] : memref<1x8xf32, #tpu.memory_space<vmem>>, vector<1x8xf32>
    %133 = vector.broadcast %132 : vector<1x8xf32> to vector<128x8xf32>
    %134 = arith.mulf %131, %133 : vector<128x8xf32>
    %c0_201 = arith.constant 0 : index
    %c0_202 = arith.constant 0 : index
    %135 = vector.load %arg6[%c0_201, %c0_202] : memref<1x8xf32, #tpu.memory_space<vmem>>, vector<1x8xf32>
    %136 = vector.broadcast %135 : vector<1x8xf32> to vector<128x8xf32>
    %137 = arith.addf %134, %136 : vector<128x8xf32>
    %cst_203 = arith.constant 0.000000e+00 : f32
    %138 = vector.broadcast %cst_203 : f32 to vector<128x8xf32>
    %139 = arith.maximumf %137, %138 : vector<128x8xf32>
    %cst_204 = arith.constant 0.000000e+00 : f32
    %140 = vector.broadcast %cst_204 : f32 to vector<2x1x10x8xf32>
    %cst_205 = arith.constant 0.000000e+00 : f32
    %141 = vector.broadcast %cst_205 : f32 to vector<2x10x1x8xf32>
    %c0_206 = arith.constant 0 : index
    %c0_207 = arith.constant 0 : index
    %c0_208 = arith.constant 0 : index
    %c0_209 = arith.constant 0 : index
    %142 = vector.load %arg14[%c0_206, %c0_207, %c0_208, %c0_209] : memref<2x10x10x8xf32, #tpu.memory_space<vmem>>, vector<2x1x10x8xf32>
    tpu.vector_store %arg14[%c0_206, %c0_207, %c0_208, %c0_209], %140 {strides = array<i32>} : memref<2x10x10x8xf32, #tpu.memory_space<vmem>>, vector<2x1x10x8xf32>,
    %c0_210 = arith.constant 0 : index
    %c9_211 = arith.constant 9 : index
    %c0_212 = arith.constant 0 : index
    %c0_213 = arith.constant 0 : index
    %143 = vector.load %arg14[%c0_210, %c9_211, %c0_212, %c0_213] : memref<2x10x10x8xf32, #tpu.memory_space<vmem>>, vector<2x1x10x8xf32>
    tpu.vector_store %arg14[%c0_210, %c9_211, %c0_212, %c0_213], %140 {strides = array<i32>} : memref<2x10x10x8xf32, #tpu.memory_space<vmem>>, vector<2x1x10x8xf32>,
    %c0_214 = arith.constant 0 : index
    %c0_215 = arith.constant 0 : index
    %c0_216 = arith.constant 0 : index
    %c0_217 = arith.constant 0 : index
    %144 = vector.load %arg14[%c0_214, %c0_215, %c0_216, %c0_217] : memref<2x10x10x8xf32, #tpu.memory_space<vmem>>, vector<2x10x1x8xf32>
    tpu.vector_store %arg14[%c0_214, %c0_215, %c0_216, %c0_217], %141 {strides = array<i32>} : memref<2x10x10x8xf32, #tpu.memory_space<vmem>>, vector<2x10x1x8xf32>,
    %c0_218 = arith.constant 0 : index
    %c0_219 = arith.constant 0 : index
    %c9_220 = arith.constant 9 : index
    %c0_221 = arith.constant 0 : index
    %145 = vector.load %arg14[%c0_218, %c0_219, %c9_220, %c0_221] : memref<2x10x10x8xf32, #tpu.memory_space<vmem>>, vector<2x10x1x8xf32>
    tpu.vector_store %arg14[%c0_218, %c0_219, %c9_220, %c0_221], %141 {strides = array<i32>} : memref<2x10x10x8xf32, #tpu.memory_space<vmem>>, vector<2x10x1x8xf32>,
    %146 = vector.shape_cast %139 : vector<128x8xf32> to vector<2x8x8x8xf32>
    %c0_222 = arith.constant 0 : index
    %c1_223 = arith.constant 1 : index
    %c1_224 = arith.constant 1 : index
    %c0_225 = arith.constant 0 : index
    %147 = vector.load %arg14[%c0_222, %c1_223, %c1_224, %c0_225] : memref<2x10x10x8xf32, #tpu.memory_space<vmem>>, vector<2x8x8x8xf32>
    tpu.vector_store %arg14[%c0_222, %c1_223, %c1_224, %c0_225], %146 {strides = array<i32>} : memref<2x10x10x8xf32, #tpu.memory_space<vmem>>, vector<2x8x8x8xf32>,
    %cst_226 = arith.constant 0.000000e+00 : f32
    %148 = vector.broadcast %cst_226 : f32 to vector<8x128xf32>
    %c0_227 = arith.constant 0 : index
    %c0_228 = arith.constant 0 : index
    %c0_229 = arith.constant 0 : index
    %c0_230 = arith.constant 0 : index
    %149 = vector.load %arg14[%c0_227, %c0_228, %c0_229, %c0_230] : memref<2x10x10x8xf32, #tpu.memory_space<vmem>>, vector<2x8x8x8xf32>
    %150 = vector.shape_cast %149 : vector<2x8x8x8xf32> to vector<128x8xf32>
    %c0_231 = arith.constant 0 : index
    %c0_232 = arith.constant 0 : index
    %c0_233 = arith.constant 0 : index
    %151 = vector.load %arg7[%c0_231, %c0_232, %c0_233] : memref<9x8x8xf32, #tpu.memory_space<vmem>>, vector<1x8x8xf32>
    %152 = vector.shape_cast %151 : vector<1x8x8xf32> to vector<8x8xf32>
    %cst_234 = arith.constant dense<0.000000e+00> : vector<8x128xf32>
    %153 = tpu.matmul %152, %150, %cst_234 {dimension_numbers = #tpu.dot_dimension_numbers<[1], [1], [0], [0], [0, 0, 1, 0], [], []>} : vector<8x8xf32>, vector<128x8xf32>, vector<8x128xf32> -> vector<8x128xf32>
    %154 = arith.addf %148, %153 : vector<8x128xf32>
    %c0_235 = arith.constant 0 : index
    %c0_236 = arith.constant 0 : index
    %c1_237 = arith.constant 1 : index
    %c0_238 = arith.constant 0 : index
    %155 = vector.load %arg14[%c0_235, %c0_236, %c1_237, %c0_238] : memref<2x10x10x8xf32, #tpu.memory_space<vmem>>, vector<2x8x8x8xf32>
    %156 = vector.shape_cast %155 : vector<2x8x8x8xf32> to vector<128x8xf32>
    %c1_239 = arith.constant 1 : index
    %c0_240 = arith.constant 0 : index
    %c0_241 = arith.constant 0 : index
    %157 = vector.load %arg7[%c1_239, %c0_240, %c0_241] : memref<9x8x8xf32, #tpu.memory_space<vmem>>, vector<1x8x8xf32>
    %158 = vector.shape_cast %157 : vector<1x8x8xf32> to vector<8x8xf32>
    %cst_242 = arith.constant dense<0.000000e+00> : vector<8x128xf32>
    %159 = tpu.matmul %158, %156, %cst_242 {dimension_numbers = #tpu.dot_dimension_numbers<[1], [1], [0], [0], [0, 0, 1, 0], [], []>} : vector<8x8xf32>, vector<128x8xf32>, vector<8x128xf32> -> vector<8x128xf32>
    %160 = arith.addf %154, %159 : vector<8x128xf32>
    %c0_243 = arith.constant 0 : index
    %c0_244 = arith.constant 0 : index
    %c2_245 = arith.constant 2 : index
    %c0_246 = arith.constant 0 : index
    %161 = vector.load %arg14[%c0_243, %c0_244, %c2_245, %c0_246] : memref<2x10x10x8xf32, #tpu.memory_space<vmem>>, vector<2x8x8x8xf32>
    %162 = vector.shape_cast %161 : vector<2x8x8x8xf32> to vector<128x8xf32>
    %c2_247 = arith.constant 2 : index
    %c0_248 = arith.constant 0 : index
    %c0_249 = arith.constant 0 : index
    %163 = vector.load %arg7[%c2_247, %c0_248, %c0_249] : memref<9x8x8xf32, #tpu.memory_space<vmem>>, vector<1x8x8xf32>
    %164 = vector.shape_cast %163 : vector<1x8x8xf32> to vector<8x8xf32>
    %cst_250 = arith.constant dense<0.000000e+00> : vector<8x128xf32>
    %165 = tpu.matmul %164, %162, %cst_250 {dimension_numbers = #tpu.dot_dimension_numbers<[1], [1], [0], [0], [0, 0, 1, 0], [], []>} : vector<8x8xf32>, vector<128x8xf32>, vector<8x128xf32> -> vector<8x128xf32>
    %166 = arith.addf %160, %165 : vector<8x128xf32>
    %c0_251 = arith.constant 0 : index
    %c1_252 = arith.constant 1 : index
    %c0_253 = arith.constant 0 : index
    %c0_254 = arith.constant 0 : index
    %167 = vector.load %arg14[%c0_251, %c1_252, %c0_253, %c0_254] : memref<2x10x10x8xf32, #tpu.memory_space<vmem>>, vector<2x8x8x8xf32>
    %168 = vector.shape_cast %167 : vector<2x8x8x8xf32> to vector<128x8xf32>
    %c3_255 = arith.constant 3 : index
    %c0_256 = arith.constant 0 : index
    %c0_257 = arith.constant 0 : index
    %169 = vector.load %arg7[%c3_255, %c0_256, %c0_257] : memref<9x8x8xf32, #tpu.memory_space<vmem>>, vector<1x8x8xf32>
    %170 = vector.shape_cast %169 : vector<1x8x8xf32> to vector<8x8xf32>
    %cst_258 = arith.constant dense<0.000000e+00> : vector<8x128xf32>
    %171 = tpu.matmul %170, %168, %cst_258 {dimension_numbers = #tpu.dot_dimension_numbers<[1], [1], [0], [0], [0, 0, 1, 0], [], []>} : vector<8x8xf32>, vector<128x8xf32>, vector<8x128xf32> -> vector<8x128xf32>
    %172 = arith.addf %166, %171 : vector<8x128xf32>
    %c0_259 = arith.constant 0 : index
    %c1_260 = arith.constant 1 : index
    %c1_261 = arith.constant 1 : index
    %c0_262 = arith.constant 0 : index
    %173 = vector.load %arg14[%c0_259, %c1_260, %c1_261, %c0_262] : memref<2x10x10x8xf32, #tpu.memory_space<vmem>>, vector<2x8x8x8xf32>
    %174 = vector.shape_cast %173 : vector<2x8x8x8xf32> to vector<128x8xf32>
    %c4_263 = arith.constant 4 : index
    %c0_264 = arith.constant 0 : index
    %c0_265 = arith.constant 0 : index
    %175 = vector.load %arg7[%c4_263, %c0_264, %c0_265] : memref<9x8x8xf32, #tpu.memory_space<vmem>>, vector<1x8x8xf32>
    %176 = vector.shape_cast %175 : vector<1x8x8xf32> to vector<8x8xf32>
    %cst_266 = arith.constant dense<0.000000e+00> : vector<8x128xf32>
    %177 = tpu.matmul %176, %174, %cst_266 {dimension_numbers = #tpu.dot_dimension_numbers<[1], [1], [0], [0], [0, 0, 1, 0], [], []>} : vector<8x8xf32>, vector<128x8xf32>, vector<8x128xf32> -> vector<8x128xf32>
    %178 = arith.addf %172, %177 : vector<8x128xf32>
    %c0_267 = arith.constant 0 : index
    %c1_268 = arith.constant 1 : index
    %c2_269 = arith.constant 2 : index
    %c0_270 = arith.constant 0 : index
    %179 = vector.load %arg14[%c0_267, %c1_268, %c2_269, %c0_270] : memref<2x10x10x8xf32, #tpu.memory_space<vmem>>, vector<2x8x8x8xf32>
    %180 = vector.shape_cast %179 : vector<2x8x8x8xf32> to vector<128x8xf32>
    %c5_271 = arith.constant 5 : index
    %c0_272 = arith.constant 0 : index
    %c0_273 = arith.constant 0 : index
    %181 = vector.load %arg7[%c5_271, %c0_272, %c0_273] : memref<9x8x8xf32, #tpu.memory_space<vmem>>, vector<1x8x8xf32>
    %182 = vector.shape_cast %181 : vector<1x8x8xf32> to vector<8x8xf32>
    %cst_274 = arith.constant dense<0.000000e+00> : vector<8x128xf32>
    %183 = tpu.matmul %182, %180, %cst_274 {dimension_numbers = #tpu.dot_dimension_numbers<[1], [1], [0], [0], [0, 0, 1, 0], [], []>} : vector<8x8xf32>, vector<128x8xf32>, vector<8x128xf32> -> vector<8x128xf32>
    %184 = arith.addf %178, %183 : vector<8x128xf32>
    %c0_275 = arith.constant 0 : index
    %c2_276 = arith.constant 2 : index
    %c0_277 = arith.constant 0 : index
    %c0_278 = arith.constant 0 : index
    %185 = vector.load %arg14[%c0_275, %c2_276, %c0_277, %c0_278] : memref<2x10x10x8xf32, #tpu.memory_space<vmem>>, vector<2x8x8x8xf32>
    %186 = vector.shape_cast %185 : vector<2x8x8x8xf32> to vector<128x8xf32>
    %c6_279 = arith.constant 6 : index
    %c0_280 = arith.constant 0 : index
    %c0_281 = arith.constant 0 : index
    %187 = vector.load %arg7[%c6_279, %c0_280, %c0_281] : memref<9x8x8xf32, #tpu.memory_space<vmem>>, vector<1x8x8xf32>
    %188 = vector.shape_cast %187 : vector<1x8x8xf32> to vector<8x8xf32>
    %cst_282 = arith.constant dense<0.000000e+00> : vector<8x128xf32>
    %189 = tpu.matmul %188, %186, %cst_282 {dimension_numbers = #tpu.dot_dimension_numbers<[1], [1], [0], [0], [0, 0, 1, 0], [], []>} : vector<8x8xf32>, vector<128x8xf32>, vector<8x128xf32> -> vector<8x128xf32>
    %190 = arith.addf %184, %189 : vector<8x128xf32>
    %c0_283 = arith.constant 0 : index
    %c2_284 = arith.constant 2 : index
    %c1_285 = arith.constant 1 : index
    %c0_286 = arith.constant 0 : index
    %191 = vector.load %arg14[%c0_283, %c2_284, %c1_285, %c0_286] : memref<2x10x10x8xf32, #tpu.memory_space<vmem>>, vector<2x8x8x8xf32>
    %192 = vector.shape_cast %191 : vector<2x8x8x8xf32> to vector<128x8xf32>
    %c7_287 = arith.constant 7 : index
    %c0_288 = arith.constant 0 : index
    %c0_289 = arith.constant 0 : index
    %193 = vector.load %arg7[%c7_287, %c0_288, %c0_289] : memref<9x8x8xf32, #tpu.memory_space<vmem>>, vector<1x8x8xf32>
    %194 = vector.shape_cast %193 : vector<1x8x8xf32> to vector<8x8xf32>
    %cst_290 = arith.constant dense<0.000000e+00> : vector<8x128xf32>
    %195 = tpu.matmul %194, %192, %cst_290 {dimension_numbers = #tpu.dot_dimension_numbers<[1], [1], [0], [0], [0, 0, 1, 0], [], []>} : vector<8x8xf32>, vector<128x8xf32>, vector<8x128xf32> -> vector<8x128xf32>
    %196 = arith.addf %190, %195 : vector<8x128xf32>
    %c0_291 = arith.constant 0 : index
    %c2_292 = arith.constant 2 : index
    %c2_293 = arith.constant 2 : index
    %c0_294 = arith.constant 0 : index
    %197 = vector.load %arg14[%c0_291, %c2_292, %c2_293, %c0_294] : memref<2x10x10x8xf32, #tpu.memory_space<vmem>>, vector<2x8x8x8xf32>
    %198 = vector.shape_cast %197 : vector<2x8x8x8xf32> to vector<128x8xf32>
    %c8_295 = arith.constant 8 : index
    %c0_296 = arith.constant 0 : index
    %c0_297 = arith.constant 0 : index
    %199 = vector.load %arg7[%c8_295, %c0_296, %c0_297] : memref<9x8x8xf32, #tpu.memory_space<vmem>>, vector<1x8x8xf32>
    %200 = vector.shape_cast %199 : vector<1x8x8xf32> to vector<8x8xf32>
    %cst_298 = arith.constant dense<0.000000e+00> : vector<8x128xf32>
    %201 = tpu.matmul %200, %198, %cst_298 {dimension_numbers = #tpu.dot_dimension_numbers<[1], [1], [0], [0], [0, 0, 1, 0], [], []>} : vector<8x8xf32>, vector<128x8xf32>, vector<8x128xf32> -> vector<8x128xf32>
    %202 = arith.addf %196, %201 : vector<8x128xf32>
    %c0_299 = arith.constant 0 : index
    %c0_300 = arith.constant 0 : index
    %203 = vector.load %arg8[%c0_299, %c0_300] : memref<8x1xf32, #tpu.memory_space<vmem>>, vector<8x1xf32>
    %204 = vector.broadcast %203 : vector<8x1xf32> to vector<8x128xf32>
    %205 = arith.mulf %202, %204 : vector<8x128xf32>
    %c0_301 = arith.constant 0 : index
    %c0_302 = arith.constant 0 : index
    %206 = vector.load %arg9[%c0_301, %c0_302] : memref<8x1xf32, #tpu.memory_space<vmem>>, vector<8x1xf32>
    %207 = vector.broadcast %206 : vector<8x1xf32> to vector<8x128xf32>
    %208 = arith.addf %205, %207 : vector<8x128xf32>
    %cst_303 = arith.constant 0.000000e+00 : f32
    %209 = vector.broadcast %cst_303 : f32 to vector<8x128xf32>
    %210 = arith.maximumf %208, %209 : vector<8x128xf32>
    %c0_304 = arith.constant 0 : index
    %c0_305 = arith.constant 0 : index
    %211 = vector.load %arg10[%c0_304, %c0_305] : memref<8x128xf32, #tpu.memory_space<vmem>>, vector<8x128xf32>
    tpu.vector_store %arg10[%c0_304, %c0_305], %210 {strides = array<i32>} : memref<8x128xf32, #tpu.memory_space<vmem>>, vector<8x128xf32>,
    return
  }
  func.func @transform_0(%arg0: i32) -> (i32, i32, i32, i32) {
    %c0_i32 = arith.constant 0 : i32
    %c0_i32_0 = arith.constant 0 : i32
    %c0_i32_1 = arith.constant 0 : i32
    %c0_i32_2 = arith.constant 0 : i32
    %c0_i32_3 = arith.constant 0 : i32
    return %c0_i32, %c0_i32_0, %c0_i32_1, %c0_i32_2 : i32, i32, i32, i32
  }
  func.func @transform_1(%arg0: i32) -> (i32, i32, i32) {
    %c0_i32 = arith.constant 0 : i32
    %c0_i32_0 = arith.constant 0 : i32
    %c0_i32_1 = arith.constant 0 : i32
    %c0_i32_2 = arith.constant 0 : i32
    return %c0_i32, %c0_i32_0, %c0_i32_1 : i32, i32, i32
  }
  func.func @transform_2(%arg0: i32) -> (i32, i32) {
    %c0_i32 = arith.constant 0 : i32
    %c0_i32_0 = arith.constant 0 : i32
    %c0_i32_1 = arith.constant 0 : i32
    return %c0_i32, %c0_i32_0 : i32, i32
  }
  func.func @transform_3(%arg0: i32) -> (i32, i32, i32) {
    %c0_i32 = arith.constant 0 : i32
    %c0_i32_0 = arith.constant 0 : i32
    %c0_i32_1 = arith.constant 0 : i32
    %c0_i32_2 = arith.constant 0 : i32
    return %c0_i32, %c0_i32_0, %c0_i32_1 : i32, i32, i32
  }
  func.func @transform_4(%arg0: i32) -> (i32, i32) {
    %c0_i32 = arith.constant 0 : i32
    %c0_i32_0 = arith.constant 0 : i32
    %c0_i32_1 = arith.constant 0 : i32
    return %c0_i32, %c0_i32_0 : i32, i32
  }
  func.func @transform_5(%arg0: i32) -> (i32, i32) {
    %c0_i32 = arith.constant 0 : i32
    %c0_i32_0 = arith.constant 0 : i32
    %c0_i32_1 = arith.constant 0 : i32
    return %c0_i32, %c0_i32_0 : i32, i32
  }
  func.func @transform_6(%arg0: i32) -> (i32, i32, i32) {
    %c0_i32 = arith.constant 0 : i32
    %c0_i32_0 = arith.constant 0 : i32
    %c0_i32_1 = arith.constant 0 : i32
    %c0_i32_2 = arith.constant 0 : i32
    return %c0_i32, %c0_i32_0, %c0_i32_1 : i32, i32, i32
  }
  func.func @transform_7(%arg0: i32) -> (i32, i32) {
    %c0_i32 = arith.constant 0 : i32
    %c0_i32_0 = arith.constant 0 : i32
    %c0_i32_1 = arith.constant 0 : i32
    return %c0_i32, %c0_i32_0 : i32, i32
  }
  func.func @transform_8(%arg0: i32) -> (i32, i32) {
    %c0_i32 = arith.constant 0 : i32
    %c0_i32_0 = arith.constant 0 : i32
    %c0_i32_1 = arith.constant 0 : i32
    return %c0_i32, %c0_i32_0 : i32, i32
  }
  func.func @transform_9(%arg0: i32) -> (i32, i32) {
    %c0_i32 = arith.constant 0 : i32
    %c0_i32_0 = arith.constant 0 : i32
    %c0_i32_1 = arith.constant 0 : i32
    return %c0_i32, %c0_i32_0 : i32, i32
  }
}

</mosaic_0001>

<llo_original>
// kernel: down_forward.1
$region0: #{down_forward.1}
  #allocation0 [shape = 'u32[]', space=smem, size = 0x4, offset = 0x4, fixed_abs, tag = 'smem constant byte address 0x4 - core index']
  #allocation1 [shape = 'u32[144,128]{1,0:T(1,128)}', space=vmem, size = 0x12000, scoped, tag = 'internal scratch']
  #allocation2 [shape = 'f32[2,18,9,4]{3,2,1,0:T(8,128)}', space=vmem, size = 0x48000, scoped, tag = 'scratch operand']
  #allocation3 [shape = 'f32[2,18,9,4]{3,2,1,0:T(8,128)}', space=vmem, size = 0x48000, scoped, tag = 'scratch operand']
  #allocation4 [shape = 'f32[2,10,10,4]{3,2,1,0:T(8,128)}', space=vmem, size = 0x28000, scoped, tag = 'scratch operand']
  #allocation5 [shape = 'f32[2,10,10,8]{3,2,1,0:T(8,128)}', space=vmem, size = 0x28000, scoped, tag = 'scratch operand']
  %s0 = inlined_call_operand.vmem [shape: f32[2,16,16,4], index: 0, kind: input, shape index: {}]
  %s1 = inlined_call_operand.vmem [shape: f32[9,4,4], index: 1, kind: input, shape index: {}]
  %s2 = inlined_call_operand.vmem [shape: f32[1,4], index: 2, kind: input, shape index: {}]
  %s3 = inlined_call_operand.vmem [shape: f32[9,4,8], index: 3, kind: input, shape index: {}]
  %s4 = inlined_call_operand.vmem [shape: f32[1,8], index: 4, kind: input, shape index: {}]
  %s5 = inlined_call_operand.vmem [shape: f32[1,8], index: 5, kind: input, shape index: {}]
  %s6 = inlined_call_operand.vmem [shape: f32[9,8,8], index: 6, kind: input, shape index: {}]
  %s7 = inlined_call_operand.vmem [shape: f32[8,1], index: 7, kind: input, shape index: {}]
  %s8 = inlined_call_operand.vmem [shape: f32[8,1], index: 8, kind: input, shape index: {}]
  %s9 = inlined_call_operand.vmem [shape: f32[8,128], index: 9, kind: output, shape index: {}]
  %s10 = sld [smem:[#allocation0]]
  $region46: #{down_forward.1} parent=0
    _
  %s12 = ssub.s32 1, %s10
  %s13 = scalar_select 0, %s12, %s10
  // Predicated region
  $region2: #{down_forward.1} parent=0 // pred_check
    _
  $region3: #{down_forward.1} parent=0 // pred_check_branch
    %15 = sbr.rel (0) target = $region5
  $region4: #{down_forward.1} parent=0 // pred_region
    _
  $region5: #{down_forward.1} parent=0 // pred_fallthru
    _
  // Predicated region
  $region6: #{down_forward.1} parent=0 // pred_check
    _
  $region7: #{down_forward.1} parent=0 // pred_check_branch
    %17 = sbr.rel (0) target = $region9
  $region8: #{down_forward.1} parent=0 // pred_region
    _
  $region9: #{down_forward.1} parent=0 // pred_fallthru
    _
  // Predicated region
  $region10: #{down_forward.1} parent=0 // pred_check
    _
  $region11: #{down_forward.1} parent=0 // pred_check_branch
    %19 = sbr.rel (0) target = $region13
  $region12: #{down_forward.1} parent=0 // pred_region
    _
  $region13: #{down_forward.1} parent=0 // pred_fallthru
    _
  // Predicated region
  $region14: #{down_forward.1} parent=0 // pred_check
    _
  $region15: #{down_forward.1} parent=0 // pred_check_branch
    %21 = sbr.rel (0) target = $region17
  $region16: #{down_forward.1} parent=0 // pred_region
    _
  $region17: #{down_forward.1} parent=0 // pred_fallthru
    _
  // Predicated region
  $region18: #{down_forward.1} parent=0 // pred_check
    _
  $region19: #{down_forward.1} parent=0 // pred_check_branch
    %23 = sbr.rel (0) target = $region21
  $region20: #{down_forward.1} parent=0 // pred_region
    _
  $region21: #{down_forward.1} parent=0 // pred_fallthru
    _
  // Predicated region
  $region22: #{down_forward.1} parent=0 // pred_check
    _
  $region23: #{down_forward.1} parent=0 // pred_check_branch
    %25 = sbr.rel (0) target = $region25
  $region24: #{down_forward.1} parent=0 // pred_region
    _
  $region25: #{down_forward.1} parent=0 // pred_fallthru
    _
  // Predicated region
  $region26: #{down_forward.1} parent=0 // pred_check
    _
  $region27: #{down_forward.1} parent=0 // pred_check_branch
    %27 = sbr.rel (0) target = $region29
  $region28: #{down_forward.1} parent=0 // pred_region
    _
  $region29: #{down_forward.1} parent=0 // pred_fallthru
    _
  // Predicated region
  $region30: #{down_forward.1} parent=0 // pred_check
    _
  $region31: #{down_forward.1} parent=0 // pred_check_branch
    %29 = sbr.rel (0) target = $region33
  $region32: #{down_forward.1} parent=0 // pred_region
    _
  $region33: #{down_forward.1} parent=0 // pred_fallthru
    _
  // Predicated region
  $region34: #{down_forward.1} parent=0 // pred_check
    _
  $region35: #{down_forward.1} parent=0 // pred_check_branch
    %31 = sbr.rel (0) target = $region37
  $region36: #{down_forward.1} parent=0 // pred_region
    _
  $region37: #{down_forward.1} parent=0 // pred_fallthru
    _
  %vm32 = vcmask 31744
  %33 = vst.msk [vmem:[#allocation2] sm:$0xff] %vm32, 0.0
  %vm34 = vcmask 24576
  %35 = vst.msk [vmem:[#allocation2 + $0x8] sm:$0x1] %vm34, 0.0
  %36 = vst.msk [vmem:[#allocation2 + $0x120] sm:$0xff] %vm32, 0.0
  %37 = vst.msk [vmem:[#allocation2 + $0x128] sm:$0x1] %vm34, 0.0
  %s38 = scalar_lea.vmem [#allocation2], 272
  %39 = vst.msk [vmem:[%s38] sm:$0xff] %vm32, 0.0
  %40 = vst.msk [vmem:[%s38 + $0x8] sm:$0x1] %vm34, 0.0
  %41 = vst.msk [vmem:[%s38 + $0x120] sm:$0xff] %vm32, 0.0
  %42 = vst.msk [vmem:[%s38 + $0x128] sm:$0x1] %vm34, 0.0
  %43 = vst.msk [vmem:[#allocation2] sm:$0x1] %vm34, 0.0
  %44 = vst.msk [vmem:[#allocation2 + $0x10] sm:$0x1] %vm34, 0.0
  %45 = vst.msk [vmem:[#allocation2 + $0x20] sm:$0x1] %vm34, 0.0
  %46 = vst.msk [vmem:[#allocation2 + $0x30] sm:$0x1] %vm34, 0.0
  %47 = vst.msk [vmem:[#allocation2 + $0x40] sm:$0x1] %vm34, 0.0
  %48 = vst.msk [vmem:[#allocation2 + $0x50] sm:$0x1] %vm34, 0.0
  %49 = vst.msk [vmem:[#allocation2 + $0x60] sm:$0x1] %vm34, 0.0
  %50 = vst.msk [vmem:[#allocation2 + $0x70] sm:$0x1] %vm34, 0.0
  %51 = vst.msk [vmem:[#allocation2 + $0x80] sm:$0x1] %vm34, 0.0
  %52 = vst.msk [vmem:[#allocation2 + $0x90] sm:$0x1] %vm34, 0.0
  %53 = vst.msk [vmem:[#allocation2 + $0xa0] sm:$0x1] %vm34, 0.0
  %54 = vst.msk [vmem:[#allocation2 + $0xb0] sm:$0x1] %vm34, 0.0
  %55 = vst.msk [vmem:[#allocation2 + $0xc0] sm:$0x1] %vm34, 0.0
  %56 = vst.msk [vmem:[#allocation2 + $0xd0] sm:$0x1] %vm34, 0.0
  %57 = vst.msk [vmem:[#allocation2 + $0xe0] sm:$0x1] %vm34, 0.0
  %58 = vst.msk [vmem:[#allocation2 + $0xf0] sm:$0x1] %vm34, 0.0
  %59 = vst.msk [vmem:[#allocation2 + $0x100] sm:$0x1] %vm34, 0.0
  %60 = vst.msk [vmem:[#allocation2 + $0x110] sm:$0x1] %vm34, 0.0
  %61 = vst.msk [vmem:[#allocation2 + $0x120] sm:$0x1] %vm34, 0.0
  %62 = vst.msk [vmem:[#allocation2 + $0x130] sm:$0x1] %vm34, 0.0
  %63 = vst.msk [vmem:[#allocation2 + $0x140] sm:$0x1] %vm34, 0.0
  %64 = vst.msk [vmem:[#allocation2 + $0x150] sm:$0x1] %vm34, 0.0
  %65 = vst.msk [vmem:[#allocation2 + $0x160] sm:$0x1] %vm34, 0.0
  %66 = vst.msk [vmem:[#allocation2 + $0x170] sm:$0x1] %vm34, 0.0
  %67 = vst.msk [vmem:[#allocation2 + $0x180] sm:$0x1] %vm34, 0.0
  %68 = vst.msk [vmem:[#allocation2 + $0x190] sm:$0x1] %vm34, 0.0
  %69 = vst.msk [vmem:[#allocation2 + $0x1a0] sm:$0x1] %vm34, 0.0
  %70 = vst.msk [vmem:[#allocation2 + $0x1b0] sm:$0x1] %vm34, 0.0
  %71 = vst.msk [vmem:[#allocation2 + $0x1c0] sm:$0x1] %vm34, 0.0
  %72 = vst.msk [vmem:[#allocation2 + $0x1d0] sm:$0x1] %vm34, 0.0
  %73 = vst.msk [vmem:[#allocation2 + $0x1e0] sm:$0x1] %vm34, 0.0
  %74 = vst.msk [vmem:[#allocation2 + $0x1f0] sm:$0x1] %vm34, 0.0
  %75 = vst.msk [vmem:[#allocation2 + $0x200] sm:$0x1] %vm34, 0.0
  %76 = vst.msk [vmem:[#allocation2 + $0x210] sm:$0x1] %vm34, 0.0
  %77 = vst.msk [vmem:[#allocation2 + $0x220] sm:$0x1] %vm34, 0.0
  %78 = vst.msk [vmem:[#allocation2 + $0x230] sm:$0x1] %vm34, 0.0
  %79 = vst.msk [vmem:[#allocation3] sm:$0xff] %vm32, 0.0
  %80 = vst.msk [vmem:[#allocation3 + $0x8] sm:$0x1] %vm34, 0.0
  %81 = vst.msk [vmem:[#allocation3 + $0x120] sm:$0xff] %vm32, 0.0
  %82 = vst.msk [vmem:[#allocation3 + $0x128] sm:$0x1] %vm34, 0.0
  %s83 = scalar_lea.vmem [#allocation3], 272
  %84 = vst.msk [vmem:[%s83] sm:$0xff] %vm32, 0.0
  %85 = vst.msk [vmem:[%s83 + $0x8] sm:$0x1] %vm34, 0.0
  %86 = vst.msk [vmem:[%s83 + $0x120] sm:$0xff] %vm32, 0.0
  %87 = vst.msk [vmem:[%s83 + $0x128] sm:$0x1] %vm34, 0.0
  %88 = vst.msk [vmem:[#allocation3 + $0x8] sm:$0x1] %vm34, 0.0
  %89 = vst.msk [vmem:[#allocation3 + $0x18] sm:$0x1] %vm34, 0.0
  %90 = vst.msk [vmem:[#allocation3 + $0x28] sm:$0x1] %vm34, 0.0
  %91 = vst.msk [vmem:[#allocation3 + $0x38] sm:$0x1] %vm34, 0.0
  %92 = vst.msk [vmem:[#allocation3 + $0x48] sm:$0x1] %vm34, 0.0
  %93 = vst.msk [vmem:[#allocation3 + $0x58] sm:$0x1] %vm34, 0.0
  %94 = vst.msk [vmem:[#allocation3 + $0x68] sm:$0x1] %vm34, 0.0
  %95 = vst.msk [vmem:[#allocation3 + $0x78] sm:$0x1] %vm34, 0.0
  %96 = vst.msk [vmem:[#allocation3 + $0x88] sm:$0x1] %vm34, 0.0
  %97 = vst.msk [vmem:[#allocation3 + $0x98] sm:$0x1] %vm34, 0.0
  %98 = vst.msk [vmem:[#allocation3 + $0xa8] sm:$0x1] %vm34, 0.0
  %99 = vst.msk [vmem:[#allocation3 + $0xb8] sm:$0x1] %vm34, 0.0
  %100 = vst.msk [vmem:[#allocation3 + $0xc8] sm:$0x1] %vm34, 0.0
  %101 = vst.msk [vmem:[#allocation3 + $0xd8] sm:$0x1] %vm34, 0.0
  %102 = vst.msk [vmem:[#allocation3 + $0xe8] sm:$0x1] %vm34, 0.0
  %103 = vst.msk [vmem:[#allocation3 + $0xf8] sm:$0x1] %vm34, 0.0
  %104 = vst.msk [vmem:[#allocation3 + $0x108] sm:$0x1] %vm34, 0.0
  %105 = vst.msk [vmem:[#allocation3 + $0x118] sm:$0x1] %vm34, 0.0
  %106 = vst.msk [vmem:[#allocation3 + $0x128] sm:$0x1] %vm34, 0.0
  %107 = vst.msk [vmem:[#allocation3 + $0x138] sm:$0x1] %vm34, 0.0
  %108 = vst.msk [vmem:[#allocation3 + $0x148] sm:$0x1] %vm34, 0.0
  %109 = vst.msk [vmem:[#allocation3 + $0x158] sm:$0x1] %vm34, 0.0
  %110 = vst.msk [vmem:[#allocation3 + $0x168] sm:$0x1] %vm34, 0.0
  %111 = vst.msk [vmem:[#allocation3 + $0x178] sm:$0x1] %vm34, 0.0
  %112 = vst.msk [vmem:[#allocation3 + $0x188] sm:$0x1] %vm34, 0.0
  %113 = vst.msk [vmem:[#allocation3 + $0x198] sm:$0x1] %vm34, 0.0
  %114 = vst.msk [vmem:[#allocation3 + $0x1a8] sm:$0x1] %vm34, 0.0
  %115 = vst.msk [vmem:[#allocation3 + $0x1b8] sm:$0x1] %vm34, 0.0
  %116 = vst.msk [vmem:[#allocation3 + $0x1c8] sm:$0x1] %vm34, 0.0
  %117 = vst.msk [vmem:[#allocation3 + $0x1d8] sm:$0x1] %vm34, 0.0
  %118 = vst.msk [vmem:[#allocation3 + $0x1e8] sm:$0x1] %vm34, 0.0
  %119 = vst.msk [vmem:[#allocation3 + $0x1f8] sm:$0x1] %vm34, 0.0
  %120 = vst.msk [vmem:[#allocation3 + $0x208] sm:$0x1] %vm34, 0.0
  %121 = vst.msk [vmem:[#allocation3 + $0x218] sm:$0x1] %vm34, 0.0
  %122 = vst.msk [vmem:[#allocation3 + $0x228] sm:$0x1] %vm34, 0.0
  %123 = vst.msk [vmem:[#allocation3 + $0x238] sm:$0x1] %vm34, 0.0
  %s124 = scalar_lea.vmem %s0, 1
  %v125 = vld [vmem:[%s124] ss:$2 sm:$0xff]
  %s126 = scalar_lea.vmem %s0, 17
  %v127 = vld [vmem:[%s126] ss:$2 sm:$0xff]
  %s128 = scalar_lea.vmem %s0, 33
  %v129 = vld [vmem:[%s128] ss:$2 sm:$0xff]
  %s130 = scalar_lea.vmem %s0, 49
  %v131 = vld [vmem:[%s130] ss:$2 sm:$0xff]
  %s132 = scalar_lea.vmem %s0, 65
  %v133 = vld [vmem:[%s132] ss:$2 sm:$0xff]
  %s134 = scalar_lea.vmem %s0, 81
  %v135 = vld [vmem:[%s134] ss:$2 sm:$0xff]
  %s136 = scalar_lea.vmem %s0, 97
  %v137 = vld [vmem:[%s136] ss:$2 sm:$0xff]
  %s138 = scalar_lea.vmem %s0, 113
  %v139 = vld [vmem:[%s138] ss:$2 sm:$0xff]
  %s140 = scalar_lea.vmem %s0, 129
  %v141 = vld [vmem:[%s140] ss:$2 sm:$0xff]
  %s142 = scalar_lea.vmem %s0, 145
  %v143 = vld [vmem:[%s142] ss:$2 sm:$0xff]
  %s144 = scalar_lea.vmem %s0, 161
  %v145 = vld [vmem:[%s144] ss:$2 sm:$0xff]
  %s146 = scalar_lea.vmem %s0, 177
  %v147 = vld [vmem:[%s146] ss:$2 sm:$0xff]
  %s148 = scalar_lea.vmem %s0, 193
  %v149 = vld [vmem:[%s148] ss:$2 sm:$0xff]
  %s150 = scalar_lea.vmem %s0, 209
  %v151 = vld [vmem:[%s150] ss:$2 sm:$0xff]
  %s152 = scalar_lea.vmem %s0, 225
  %v153 = vld [vmem:[%s152] ss:$2 sm:$0xff]
  %s154 = scalar_lea.vmem %s0, 241
  %v155 = vld [vmem:[%s154] ss:$2 sm:$0xff]
  %s156 = scalar_lea.vmem %s0, 257
  %v157 = vld [vmem:[%s156] ss:$2 sm:$0xff]
  %s158 = scalar_lea.vmem %s0, 273
  %v159 = vld [vmem:[%s158] ss:$2 sm:$0xff]
  %s160 = scalar_lea.vmem %s0, 289
  %v161 = vld [vmem:[%s160] ss:$2 sm:$0xff]
  %s162 = scalar_lea.vmem %s0, 305
  %v163 = vld [vmem:[%s162] ss:$2 sm:$0xff]
  %s164 = scalar_lea.vmem %s0, 321
  %v165 = vld [vmem:[%s164] ss:$2 sm:$0xff]
  %s166 = scalar_lea.vmem %s0, 337
  %v167 = vld [vmem:[%s166] ss:$2 sm:$0xff]
  %s168 = scalar_lea.vmem %s0, 353
  %v169 = vld [vmem:[%s168] ss:$2 sm:$0xff]
  %s170 = scalar_lea.vmem %s0, 369
  %v171 = vld [vmem:[%s170] ss:$2 sm:$0xff]
  %s172 = scalar_lea.vmem %s0, 385
  %v173 = vld [vmem:[%s172] ss:$2 sm:$0xff]
  %s174 = scalar_lea.vmem %s0, 401
  %v175 = vld [vmem:[%s174] ss:$2 sm:$0xff]
  %s176 = scalar_lea.vmem %s0, 417
  %v177 = vld [vmem:[%s176] ss:$2 sm:$0xff]
  %s178 = scalar_lea.vmem %s0, 433
  %v179 = vld [vmem:[%s178] ss:$2 sm:$0xff]
  %s180 = scalar_lea.vmem %s0, 449
  %v181 = vld [vmem:[%s180] ss:$2 sm:$0xff]
  %s182 = scalar_lea.vmem %s0, 465
  %v183 = vld [vmem:[%s182] ss:$2 sm:$0xff]
  %s184 = scalar_lea.vmem %s0, 481
  %v185 = vld [vmem:[%s184] ss:$2 sm:$0xff]
  %s186 = scalar_lea.vmem %s0, 497
  %v187 = vld [vmem:[%s186] ss:$2 sm:$0xff]
  %s188 = scalar_lea.vmem [#allocation2], 16
  %189 = vst.msk [vmem:[%s188 + $0x1] sm:$0xff] %vm32, %v125
  %190 = vst.msk [vmem:[%s188 + $0x11] sm:$0xff] %vm32, %v127
  %191 = vst.msk [vmem:[%s188 + $0x21] sm:$0xff] %vm32, %v129
  %192 = vst.msk [vmem:[%s188 + $0x31] sm:$0xff] %vm32, %v131
  %193 = vst.msk [vmem:[%s188 + $0x41] sm:$0xff] %vm32, %v133
  %194 = vst.msk [vmem:[%s188 + $0x51] sm:$0xff] %vm32, %v135
  %195 = vst.msk [vmem:[%s188 + $0x61] sm:$0xff] %vm32, %v137
  %196 = vst.msk [vmem:[%s188 + $0x71] sm:$0xff] %vm32, %v139
  %197 = vst.msk [vmem:[%s188 + $0x81] sm:$0xff] %vm32, %v141
  %198 = vst.msk [vmem:[%s188 + $0x91] sm:$0xff] %vm32, %v143
  %199 = vst.msk [vmem:[%s188 + $0xa1] sm:$0xff] %vm32, %v145
  %200 = vst.msk [vmem:[%s188 + $0xb1] sm:$0xff] %vm32, %v147
  %201 = vst.msk [vmem:[%s188 + $0xc1] sm:$0xff] %vm32, %v149
  %202 = vst.msk [vmem:[%s188 + $0xd1] sm:$0xff] %vm32, %v151
  %203 = vst.msk [vmem:[%s188 + $0xe1] sm:$0xff] %vm32, %v153
  %204 = vst.msk [vmem:[%s188 + $0xf1] sm:$0xff] %vm32, %v155
  %205 = vst.msk [vmem:[%s188 + $0x121] sm:$0xff] %vm32, %v157
  %206 = vst.msk [vmem:[%s188 + $0x131] sm:$0xff] %vm32, %v159
  %207 = vst.msk [vmem:[%s188 + $0x141] sm:$0xff] %vm32, %v161
  %208 = vst.msk [vmem:[%s188 + $0x151] sm:$0xff] %vm32, %v163
  %209 = vst.msk [vmem:[%s188 + $0x161] sm:$0xff] %vm32, %v165
  %210 = vst.msk [vmem:[%s188 + $0x171] sm:$0xff] %vm32, %v167
  %211 = vst.msk [vmem:[%s188 + $0x181] sm:$0xff] %vm32, %v169
  %212 = vst.msk [vmem:[%s188 + $0x191] sm:$0xff] %vm32, %v171
  %213 = vst.msk [vmem:[%s188 + $0x1a1] sm:$0xff] %vm32, %v173
  %214 = vst.msk [vmem:[%s188 + $0x1b1] sm:$0xff] %vm32, %v175
  %215 = vst.msk [vmem:[%s188 + $0x1c1] sm:$0xff] %vm32, %v177
  %216 = vst.msk [vmem:[%s188 + $0x1d1] sm:$0xff] %vm32, %v179
  %217 = vst.msk [vmem:[%s188 + $0x1e1] sm:$0xff] %vm32, %v181
  %218 = vst.msk [vmem:[%s188 + $0x1f1] sm:$0xff] %vm32, %v183
  %219 = vst.msk [vmem:[%s188 + $0x201] sm:$0xff] %vm32, %v185
  %220 = vst.msk [vmem:[%s188 + $0x211] sm:$0xff] %vm32, %v187
  %v221 = vld [vmem:[%s0] ss:$2 sm:$0xff]
  %s222 = scalar_lea.vmem %s0, 16
  %v223 = vld [vmem:[%s222] ss:$2 sm:$0xff]
  %s224 = scalar_lea.vmem %s0, 32
  %v225 = vld [vmem:[%s224] ss:$2 sm:$0xff]
  %s226 = scalar_lea.vmem %s0, 48
  %v227 = vld [vmem:[%s226] ss:$2 sm:$0xff]
  %s228 = scalar_lea.vmem %s0, 64
  %v229 = vld [vmem:[%s228] ss:$2 sm:$0xff]
  %s230 = scalar_lea.vmem %s0, 80
  %v231 = vld [vmem:[%s230] ss:$2 sm:$0xff]
  %s232 = scalar_lea.vmem %s0, 96
  %v233 = vld [vmem:[%s232] ss:$2 sm:$0xff]
  %s234 = scalar_lea.vmem %s0, 112
  %v235 = vld [vmem:[%s234] ss:$2 sm:$0xff]
  %s236 = scalar_lea.vmem %s0, 128
  %v237 = vld [vmem:[%s236] ss:$2 sm:$0xff]
  %s238 = scalar_lea.vmem %s0, 144
  %v239 = vld [vmem:[%s238] ss:$2 sm:$0xff]
  %s240 = scalar_lea.vmem %s0, 160
  %v241 = vld [vmem:[%s240] ss:$2 sm:$0xff]
  %s242 = scalar_lea.vmem %s0, 176
  %v243 = vld [vmem:[%s242] ss:$2 sm:$0xff]
  %s244 = scalar_lea.vmem %s0, 192
  %v245 = vld [vmem:[%s244] ss:$2 sm:$0xff]
  %s246 = scalar_lea.vmem %s0, 208
  %v247 = vld [vmem:[%s246] ss:$2 sm:$0xff]
  %s248 = scalar_lea.vmem %s0, 224
  %v249 = vld [vmem:[%s248] ss:$2 sm:$0xff]
  %s250 = scalar_lea.vmem %s0, 240
  %v251 = vld [vmem:[%s250] ss:$2 sm:$0xff]
  %s252 = scalar_lea.vmem %s0, 256
  %v253 = vld [vmem:[%s252] ss:$2 sm:$0xff]
  %s254 = scalar_lea.vmem %s0, 272
  %v255 = vld [vmem:[%s254] ss:$2 sm:$0xff]
  %s256 = scalar_lea.vmem %s0, 288
  %v257 = vld [vmem:[%s256] ss:$2 sm:$0xff]
  %s258 = scalar_lea.vmem %s0, 304
  %v259 = vld [vmem:[%s258] ss:$2 sm:$0xff]
  %s260 = scalar_lea.vmem %s0, 320
  %v261 = vld [vmem:[%s260] ss:$2 sm:$0xff]
  %s262 = scalar_lea.vmem %s0, 336
  %v263 = vld [vmem:[%s262] ss:$2 sm:$0xff]
  %s264 = scalar_lea.vmem %s0, 352
  %v265 = vld [vmem:[%s264] ss:$2 sm:$0xff]
  %s266 = scalar_lea.vmem %s0, 368
  %v267 = vld [vmem:[%s266] ss:$2 sm:$0xff]
  %s268 = scalar_lea.vmem %s0, 384
  %v269 = vld [vmem:[%s268] ss:$2 sm:$0xff]
  %s270 = scalar_lea.vmem %s0, 400
  %v271 = vld [vmem:[%s270] ss:$2 sm:$0xff]
  %s272 = scalar_lea.vmem %s0, 416
  %v273 = vld [vmem:[%s272] ss:$2 sm:$0xff]
  %s274 = scalar_lea.vmem %s0, 432
  %v275 = vld [vmem:[%s274] ss:$2 sm:$0xff]
  %s276 = scalar_lea.vmem %s0, 448
  %v277 = vld [vmem:[%s276] ss:$2 sm:$0xff]
  %s278 = scalar_lea.vmem %s0, 464
  %v279 = vld [vmem:[%s278] ss:$2 sm:$0xff]
  %s280 = scalar_lea.vmem %s0, 480
  %v281 = vld [vmem:[%s280] ss:$2 sm:$0xff]
  %s282 = scalar_lea.vmem %s0, 496
  %v283 = vld [vmem:[%s282] ss:$2 sm:$0xff]
  %s284 = scalar_lea.vmem [#allocation3], 16
  %285 = vst.msk [vmem:[%s284] sm:$0xff] %vm32, %v221
  %286 = vst.msk [vmem:[%s284 + $0x10] sm:$0xff] %vm32, %v223
  %287 = vst.msk [vmem:[%s284 + $0x20] sm:$0xff] %vm32, %v225
  %288 = vst.msk [vmem:[%s284 + $0x30] sm:$0xff] %vm32, %v227
  %289 = vst.msk [vmem:[%s284 + $0x40] sm:$0xff] %vm32, %v229
  %290 = vst.msk [vmem:[%s284 + $0x50] sm:$0xff] %vm32, %v231
  %291 = vst.msk [vmem:[%s284 + $0x60] sm:$0xff] %vm32, %v233
  %292 = vst.msk [vmem:[%s284 + $0x70] sm:$0xff] %vm32, %v235
  %293 = vst.msk [vmem:[%s284 + $0x80] sm:$0xff] %vm32, %v237
  %294 = vst.msk [vmem:[%s284 + $0x90] sm:$0xff] %vm32, %v239
  %295 = vst.msk [vmem:[%s284 + $0xa0] sm:$0xff] %vm32, %v241
  %296 = vst.msk [vmem:[%s284 + $0xb0] sm:$0xff] %vm32, %v243
  %297 = vst.msk [vmem:[%s284 + $0xc0] sm:$0xff] %vm32, %v245
  %298 = vst.msk [vmem:[%s284 + $0xd0] sm:$0xff] %vm32, %v247
  %299 = vst.msk [vmem:[%s284 + $0xe0] sm:$0xff] %vm32, %v249
  %300 = vst.msk [vmem:[%s284 + $0xf0] sm:$0xff] %vm32, %v251
  %301 = vst.msk [vmem:[%s284 + $0x120] sm:$0xff] %vm32, %v253
  %302 = vst.msk [vmem:[%s284 + $0x130] sm:$0xff] %vm32, %v255
  %303 = vst.msk [vmem:[%s284 + $0x140] sm:$0xff] %vm32, %v257
  %304 = vst.msk [vmem:[%s284 + $0x150] sm:$0xff] %vm32, %v259
  %305 = vst.msk [vmem:[%s284 + $0x160] sm:$0xff] %vm32, %v261
  %306 = vst.msk [vmem:[%s284 + $0x170] sm:$0xff] %vm32, %v263
  %307 = vst.msk [vmem:[%s284 + $0x180] sm:$0xff] %vm32, %v265
  %308 = vst.msk [vmem:[%s284 + $0x190] sm:$0xff] %vm32, %v267
  %309 = vst.msk [vmem:[%s284 + $0x1a0] sm:$0xff] %vm32, %v269
  %310 = vst.msk [vmem:[%s284 + $0x1b0] sm:$0xff] %vm32, %v271
  %311 = vst.msk [vmem:[%s284 + $0x1c0] sm:$0xff] %vm32, %v273
  %312 = vst.msk [vmem:[%s284 + $0x1d0] sm:$0xff] %vm32, %v275
  %313 = vst.msk [vmem:[%s284 + $0x1e0] sm:$0xff] %vm32, %v277
  %314 = vst.msk [vmem:[%s284 + $0x1f0] sm:$0xff] %vm32, %v279
  %315 = vst.msk [vmem:[%s284 + $0x200] sm:$0xff] %vm32, %v281
  %316 = vst.msk [vmem:[%s284 + $0x210] sm:$0xff] %vm32, %v283
  %v317 = vld [vmem:[%s2] sm:$0x1]
  %v319 = vlaneseq
  %v320 = vshrl.u32 %v319, 7
  %v321 = vsub.s32 0, %v320
  %v322 = vrot.slane %v317, %v321
  %v324 = vld [vmem:[#allocation2] sm:$0xff]
  %v325 = vld [vmem:[#allocation2 + $0x20] sm:$0xff]
  %v326 = vld [vmem:[#allocation2 + $0x40] sm:$0xff]
  %v327 = vld [vmem:[#allocation2 + $0x60] sm:$0xff]
  %v328 = vld [vmem:[#allocation2 + $0x80] sm:$0xff]
  %v329 = vld [vmem:[#allocation2 + $0xa0] sm:$0xff]
  %v330 = vld [vmem:[#allocation2 + $0xc0] sm:$0xff]
  %v331 = vld [vmem:[#allocation2 + $0xe0] sm:$0xff]
  %v332 = vld [vmem:[#allocation2 + $0x120] sm:$0xff]
  %v333 = vld [vmem:[#allocation2 + $0x140] sm:$0xff]
  %v334 = vld [vmem:[#allocation2 + $0x160] sm:$0xff]
  %v335 = vld [vmem:[#allocation2 + $0x180] sm:$0xff]
  %v336 = vld [vmem:[#allocation2 + $0x1a0] sm:$0xff]
  %v337 = vld [vmem:[#allocation2 + $0x1c0] sm:$0xff]
  %v338 = vld [vmem:[#allocation2 + $0x1e0] sm:$0xff]
  %v339 = vld [vmem:[#allocation2 + $0x200] sm:$0xff]
  %v340 = vld [vmem:[%s1] sm:$0xf]
  %v342 = vsel %vm32, %v324, 0
  %v345 = vsel %vm32, %v325, 0
  %v348 = vsel %vm32, %v326, 0
  %v351 = vsel %vm32, %v327, 0
  %v354 = vsel %vm32, %v328, 0
  %v357 = vsel %vm32, %v329, 0
  %v360 = vsel %vm32, %v330, 0
  %v363 = vsel %vm32, %v331, 0
  %v366 = vsel %vm32, %v332, 0
  %v369 = vsel %vm32, %v333, 0
  %v372 = vsel %vm32, %v334, 0
  %v375 = vsel %vm32, %v335, 0
  %v378 = vsel %vm32, %v336, 0
  %v381 = vsel %vm32, %v337, 0
  %v384 = vsel %vm32, %v338, 0
  %v387 = vsel %vm32, %v339, 0
  %vm389 = vcmask 1043456
  %v391 = vsel %vm389, %v340, 0
  %393 = vmatprep.subr.mxu0 0.0
  %394 = vmatpush1.msra.mxu0 %v391
  %395 = vmatprep.subr.mxu0 0.0
  %396 = vmatpush1.msra.mxu0 0.0
  %397 = vmatprep.subr.mxu0 0.0
  %398 = vmatpush1.msra.mxu0 0.0
  %399 = vmatprep.subr.mxu0 0.0
  %400 = vmatpush1.msra.mxu0 0.0
  %401 = vmatprep.subr.mxu0 0.0
  %402 = vmatpush1.msra.mxu0 0.0
  %403 = vmatprep.subr.mxu0 0.0
  %404 = vmatpush1.msra.mxu0 0.0
  %405 = vmatprep.subr.mxu0 0.0
  %406 = vmatpush1.msra.mxu0 0.0
  %407 = vmatprep.subr.mxu0 0.0
  %408 = vmatpush1.msra.mxu0 0.0
  %409 = vmatprep.subr.mxu0 0.0
  %410 = vmatpush1.msra.mxu0 0.0
  %411 = vmatprep.subr.mxu0 0.0
  %412 = vmatpush1.msra.mxu0 0.0
  %413 = vmatprep.subr.mxu0 0.0
  %414 = vmatpush1.msra.mxu0 0.0
  %415 = vmatprep.subr.mxu0 0.0
  %416 = vmatpush1.msra.mxu0 0.0
  %417 = vmatprep.subr.mxu0 0.0
  %418 = vmatpush1.msra.mxu0 0.0
  %419 = vmatprep.subr.mxu0 0.0
  %420 = vmatpush1.msra.mxu0 0.0
  %421 = vmatprep.subr.mxu0 0.0
  %422 = vmatpush1.msra.mxu0 0.0
  %423 = vmatprep.subr.mxu0 0.0
  %424 = vmatpush1.msra.mxu0 0.0
  %425 = vmatprep.subr.mxu0 0.0
  %426 = vmatpush1.msra.mxu0 0.0
  %427 = vmatprep.subr.mxu0 0.0
  %428 = vmatpush1.msra.mxu0 0.0
  %429 = vmatprep.subr.mxu0 0.0
  %430 = vmatpush1.msra.mxu0 0.0
  %431 = vmatprep.subr.mxu0 0.0
  %432 = vmatpush1.msra.mxu0 0.0
  %433 = vmatprep.subr.mxu0 0.0
  %434 = vmatpush1.msra.mxu0 0.0
  %435 = vmatprep.subr.mxu0 0.0
  %436 = vmatpush1.msra.mxu0 0.0
  %437 = vmatprep.subr.mxu0 0.0
  %438 = vmatpush1.msra.mxu0 0.0
  %439 = vmatprep.subr.mxu0 0.0
  %440 = vmatpush1.msra.mxu0 0.0
  %441 = vmatprep.subr.mxu0 0.0
  %442 = vmatpush1.msra.mxu0 0.0
  %443 = vmatprep.subr.mxu0 0.0
  %444 = vmatpush1.msra.mxu0 0.0
  %445 = vmatprep.subr.mxu0 0.0
  %446 = vmatpush1.msra.mxu0 0.0
  %447 = vmatprep.subr.mxu0 0.0
  %448 = vmatpush1.msra.mxu0 0.0
  %449 = vmatprep.subr.mxu0 0.0
  %450 = vmatpush1.msra.mxu0 0.0
  %451 = vmatprep.subr.mxu0 0.0
  %452 = vmatpush1.msra.mxu0 0.0
  %453 = vmatprep.subr.mxu0 0.0
  %454 = vmatpush1.msra.mxu0 0.0
  %455 = vmatprep.subr.mxu0 0.0
  %456 = vmatpush1.msra.mxu0 0.0
  %457 = vmatprep.mubr.f32.mxu0 0.0
  %458 = vmatmul.mubr.f32.gmra.mrb[0].mxu0 %v342
  %v459 = vpop.f32.mrb[0].mxu0
  %v460 = vadd.f32 0.0, %v459
  %v461 = vpop.f32.mrb[0].mxu0
  %462 = vmatprep.mubr.f32.mxu0 0.0
  %463 = vmatmul.mubr.f32.gmra.mrb[0].mxu0 %v345
  %v464 = vpop.f32.mrb[0].mxu0
  %v465 = vadd.f32 0.0, %v464
  %v466 = vpop.f32.mrb[0].mxu0
  %467 = vmatprep.mubr.f32.mxu0 0.0
  %468 = vmatmul.mubr.f32.gmra.mrb[0].mxu0 %v348
  %v469 = vpop.f32.mrb[0].mxu0
  %v470 = vadd.f32 0.0, %v469
  %v471 = vpop.f32.mrb[0].mxu0
  %472 = vmatprep.mubr.f32.mxu0 0.0
  %473 = vmatmul.mubr.f32.gmra.mrb[0].mxu0 %v351
  %v474 = vpop.f32.mrb[0].mxu0
  %v475 = vadd.f32 0.0, %v474
  %v476 = vpop.f32.mrb[0].mxu0
  %477 = vmatprep.mubr.f32.mxu0 0.0
  %478 = vmatmul.mubr.f32.gmra.mrb[0].mxu0 %v354
  %v479 = vpop.f32.mrb[0].mxu0
  %v480 = vadd.f32 0.0, %v479
  %v481 = vpop.f32.mrb[0].mxu0
  %482 = vmatprep.mubr.f32.mxu0 0.0
  %483 = vmatmul.mubr.f32.gmra.mrb[0].mxu0 %v357
  %v484 = vpop.f32.mrb[0].mxu0
  %v485 = vadd.f32 0.0, %v484
  %v486 = vpop.f32.mrb[0].mxu0
  %487 = vmatprep.mubr.f32.mxu0 0.0
  %488 = vmatmul.mubr.f32.gmra.mrb[0].mxu0 %v360
  %v489 = vpop.f32.mrb[0].mxu0
  %v490 = vadd.f32 0.0, %v489
  %v491 = vpop.f32.mrb[0].mxu0
  %492 = vmatprep.mubr.f32.mxu0 0.0
  %493 = vmatmul.mubr.f32.gmra.mrb[0].mxu0 %v363
  %v494 = vpop.f32.mrb[0].mxu0
  %v495 = vadd.f32 0.0, %v494
  %v496 = vpop.f32.mrb[0].mxu0
  %497 = vmatprep.mubr.f32.mxu0 0.0
  %498 = vmatmul.mubr.f32.gmra.mrb[0].mxu0 %v366
  %v499 = vpop.f32.mrb[0].mxu0
  %v500 = vadd.f32 0.0, %v499
  %v501 = vpop.f32.mrb[0].mxu0
  %502 = vmatprep.mubr.f32.mxu0 0.0
  %503 = vmatmul.mubr.f32.gmra.mrb[0].mxu0 %v369
  %v504 = vpop.f32.mrb[0].mxu0
  %v505 = vadd.f32 0.0, %v504
  %v506 = vpop.f32.mrb[0].mxu0
  %507 = vmatprep.mubr.f32.mxu0 0.0
  %508 = vmatmul.mubr.f32.gmra.mrb[0].mxu0 %v372
  %v509 = vpop.f32.mrb[0].mxu0
  %v510 = vadd.f32 0.0, %v509
  %v511 = vpop.f32.mrb[0].mxu0
  %512 = vmatprep.mubr.f32.mxu0 0.0
  %513 = vmatmul.mubr.f32.gmra.mrb[0].mxu0 %v375
  %v514 = vpop.f32.mrb[0].mxu0
  %v515 = vadd.f32 0.0, %v514
  %v516 = vpop.f32.mrb[0].mxu0
  %517 = vmatprep.mubr.f32.mxu0 0.0
  %518 = vmatmul.mubr.f32.gmra.mrb[0].mxu0 %v378
  %v519 = vpop.f32.mrb[0].mxu0
  %v520 = vadd.f32 0.0, %v519
  %v521 = vpop.f32.mrb[0].mxu0
  %522 = vmatprep.mubr.f32.mxu0 0.0
  %523 = vmatmul.mubr.f32.gmra.mrb[0].mxu0 %v381
  %v524 = vpop.f32.mrb[0].mxu0
  %v525 = vadd.f32 0.0, %v524
  %v526 = vpop.f32.mrb[0].mxu0
  %527 = vmatprep.mubr.f32.mxu0 0.0
  %528 = vmatmul.mubr.f32.gmra.mrb[0].mxu0 %v384
  %v529 = vpop.f32.mrb[0].mxu0
  %v530 = vadd.f32 0.0, %v529
  %v531 = vpop.f32.mrb[0].mxu0
  %532 = vmatprep.mubr.f32.mxu0 0.0
  %533 = vmatmul.mubr.f32.gmra.mrb[0].mxu0 %v387
  %v534 = vpop.f32.mrb[0].mxu0
  %v535 = vadd.f32 0.0, %v534
  %v536 = vpop.f32.mrb[0].mxu0
  %537 = vdwg.mxu0
  %v538 = vadd.f32 %v322, %v460
  %v539 = vadd.f32 %v322, %v465
  %v540 = vadd.f32 %v322, %v470
  %v541 = vadd.f32 %v322, %v475
  %v542 = vadd.f32 %v322, %v480
  %v543 = vadd.f32 %v322, %v485
  %v544 = vadd.f32 %v322, %v490
  %v545 = vadd.f32 %v322, %v495
  %v546 = vadd.f32 %v322, %v500
  %v547 = vadd.f32 %v322, %v505
  %v548 = vadd.f32 %v322, %v510
  %v549 = vadd.f32 %v322, %v515
  %v550 = vadd.f32 %v322, %v520
  %v551 = vadd.f32 %v322, %v525
  %v552 = vadd.f32 %v322, %v530
  %v553 = vadd.f32 %v322, %v535
  %v554 = vld [vmem:[#allocation3] sm:$0xff]
  %v555 = vld [vmem:[#allocation3 + $0x20] sm:$0xff]
  %v556 = vld [vmem:[#allocation3 + $0x40] sm:$0xff]
  %v557 = vld [vmem:[#allocation3 + $0x60] sm:$0xff]
  %v558 = vld [vmem:[#allocation3 + $0x80] sm:$0xff]
  %v559 = vld [vmem:[#allocation3 + $0xa0] sm:$0xff]
  %v560 = vld [vmem:[#allocation3 + $0xc0] sm:$0xff]
  %v561 = vld [vmem:[#allocation3 + $0xe0] sm:$0xff]
  %v562 = vld [vmem:[#allocation3 + $0x120] sm:$0xff]
  %v563 = vld [vmem:[#allocation3 + $0x140] sm:$0xff]
  %v564 = vld [vmem:[#allocation3 + $0x160] sm:$0xff]
  %v565 = vld [vmem:[#allocation3 + $0x180] sm:$0xff]
  %v566 = vld [vmem:[#allocation3 + $0x1a0] sm:$0xff]
  %v567 = vld [vmem:[#allocation3 + $0x1c0] sm:$0xff]
  %v568 = vld [vmem:[#allocation3 + $0x1e0] sm:$0xff]
  %v569 = vld [vmem:[#allocation3 + $0x200] sm:$0xff]
  %s570 = scalar_lea.vmem %s1, 4
  %v571 = vld [vmem:[%s570] sm:$0xf]
  %v573 = vsel %vm32, %v554, 0
  %v576 = vsel %vm32, %v555, 0
  %v579 = vsel %vm32, %v556, 0
  %v582 = vsel %vm32, %v557, 0
  %v585 = vsel %vm32, %v558, 0
  %v588 = vsel %vm32, %v559, 0
  %v591 = vsel %vm32, %v560, 0
  %v594 = vsel %vm32, %v561, 0
  %v597 = vsel %vm32, %v562, 0
  %v600 = vsel %vm32, %v563, 0
  %v603 = vsel %vm32, %v564, 0
  %v606 = vsel %vm32, %v565, 0
  %v609 = vsel %vm32, %v566, 0
  %v612 = vsel %vm32, %v567, 0
  %v615 = vsel %vm32, %v568, 0
  %v618 = vsel %vm32, %v569, 0
  %v621 = vsel %vm389, %v571, 0
  %623 = vmatprep.subr.mxu0 0.0
  %624 = vmatpush1.msra.mxu0 %v621
  %625 = vmatprep.subr.mxu0 0.0
  %626 = vmatpush1.msra.mxu0 0.0
  %627 = vmatprep.subr.mxu0 0.0
  %628 = vmatpush1.msra.mxu0 0.0
  %629 = vmatprep.subr.mxu0 0.0
  %630 = vmatpush1.msra.mxu0 0.0
  %631 = vmatprep.subr.mxu0 0.0
  %632 = vmatpush1.msra.mxu0 0.0
  %633 = vmatprep.subr.mxu0 0.0
  %634 = vmatpush1.msra.mxu0 0.0
  %635 = vmatprep.subr.mxu0 0.0
  %636 = vmatpush1.msra.mxu0 0.0
  %637 = vmatprep.subr.mxu0 0.0
  %638 = vmatpush1.msra.mxu0 0.0
  %639 = vmatprep.subr.mxu0 0.0
  %640 = vmatpush1.msra.mxu0 0.0
  %641 = vmatprep.subr.mxu0 0.0
  %642 = vmatpush1.msra.mxu0 0.0
  %643 = vmatprep.subr.mxu0 0.0
  %644 = vmatpush1.msra.mxu0 0.0
  %645 = vmatprep.subr.mxu0 0.0
  %646 = vmatpush1.msra.mxu0 0.0
  %647 = vmatprep.subr.mxu0 0.0
  %648 = vmatpush1.msra.mxu0 0.0
  %649 = vmatprep.subr.mxu0 0.0
  %650 = vmatpush1.msra.mxu0 0.0
  %651 = vmatprep.subr.mxu0 0.0
  %652 = vmatpush1.msra.mxu0 0.0
  %653 = vmatprep.subr.mxu0 0.0
  %654 = vmatpush1.msra.mxu0 0.0
  %655 = vmatprep.subr.mxu0 0.0
  %656 = vmatpush1.msra.mxu0 0.0
  %657 = vmatprep.subr.mxu0 0.0
  %658 = vmatpush1.msra.mxu0 0.0
  %659 = vmatprep.subr.mxu0 0.0
  %660 = vmatpush1.msra.mxu0 0.0
  %661 = vmatprep.subr.mxu0 0.0
  %662 = vmatpush1.msra.mxu0 0.0
  %663 = vmatprep.subr.mxu0 0.0
  %664 = vmatpush1.msra.mxu0 0.0
  %665 = vmatprep.subr.mxu0 0.0
  %666 = vmatpush1.msra.mxu0 0.0
  %667 = vmatprep.subr.mxu0 0.0
  %668 = vmatpush1.msra.mxu0 0.0
  %669 = vmatprep.subr.mxu0 0.0
  %670 = vmatpush1.msra.mxu0 0.0
  %671 = vmatprep.subr.mxu0 0.0
  %672 = vmatpush1.msra.mxu0 0.0
  %673 = vmatprep.subr.mxu0 0.0
  %674 = vmatpush1.msra.mxu0 0.0
  %675 = vmatprep.subr.mxu0 0.0
  %676 = vmatpush1.msra.mxu0 0.0
  %677 = vmatprep.subr.mxu0 0.0
  %678 = vmatpush1.msra.mxu0 0.0
  %679 = vmatprep.subr.mxu0 0.0
  %680 = vmatpush1.msra.mxu0 0.0
  %681 = vmatprep.subr.mxu0 0.0
  %682 = vmatpush1.msra.mxu0 0.0
  %683 = vmatprep.subr.mxu0 0.0
  %684 = vmatpush1.msra.mxu0 0.0
  %685 = vmatprep.subr.mxu0 0.0
  %686 = vmatpush1.msra.mxu0 0.0
  %687 = vmatprep.mubr.f32.mxu0 0.0
  %688 = vmatmul.mubr.f32.gmra.mrb[0].mxu0 %v573
  %v689 = vpop.f32.mrb[0].mxu0
  %v690 = vadd.f32 0.0, %v689
  %v691 = vpop.f32.mrb[0].mxu0
  %692 = vmatprep.mubr.f32.mxu0 0.0
  %693 = vmatmul.mubr.f32.gmra.mrb[0].mxu0 %v576
  %v694 = vpop.f32.mrb[0].mxu0
  %v695 = vadd.f32 0.0, %v694
  %v696 = vpop.f32.mrb[0].mxu0
  %697 = vmatprep.mubr.f32.mxu0 0.0
  %698 = vmatmul.mubr.f32.gmra.mrb[0].mxu0 %v579
  %v699 = vpop.f32.mrb[0].mxu0
  %v700 = vadd.f32 0.0, %v699
  %v701 = vpop.f32.mrb[0].mxu0
  %702 = vmatprep.mubr.f32.mxu0 0.0
  %703 = vmatmul.mubr.f32.gmra.mrb[0].mxu0 %v582
  %v704 = vpop.f32.mrb[0].mxu0
  %v705 = vadd.f32 0.0, %v704
  %v706 = vpop.f32.mrb[0].mxu0
  %707 = vmatprep.mubr.f32.mxu0 0.0
  %708 = vmatmul.mubr.f32.gmra.mrb[0].mxu0 %v585
  %v709 = vpop.f32.mrb[0].mxu0
  %v710 = vadd.f32 0.0, %v709
  %v711 = vpop.f32.mrb[0].mxu0
  %712 = vmatprep.mubr.f32.mxu0 0.0
  %713 = vmatmul.mubr.f32.gmra.mrb[0].mxu0 %v588
  %v714 = vpop.f32.mrb[0].mxu0
  %v715 = vadd.f32 0.0, %v714
  %v716 = vpop.f32.mrb[0].mxu0
  %717 = vmatprep.mubr.f32.mxu0 0.0
  %718 = vmatmul.mubr.f32.gmra.mrb[0].mxu0 %v591
  %v719 = vpop.f32.mrb[0].mxu0
  %v720 = vadd.f32 0.0, %v719
  %v721 = vpop.f32.mrb[0].mxu0
  %722 = vmatprep.mubr.f32.mxu0 0.0
  %723 = vmatmul.mubr.f32.gmra.mrb[0].mxu0 %v594
  %v724 = vpop.f32.mrb[0].mxu0
  %v725 = vadd.f32 0.0, %v724
  %v726 = vpop.f32.mrb[0].mxu0
  %727 = vmatprep.mubr.f32.mxu0 0.0
  %728 = vmatmul.mubr.f32.gmra.mrb[0].mxu0 %v597
  %v729 = vpop.f32.mrb[0].mxu0
  %v730 = vadd.f32 0.0, %v729
  %v731 = vpop.f32.mrb[0].mxu0
  %732 = vmatprep.mubr.f32.mxu0 0.0
  %733 = vmatmul.mubr.f32.gmra.mrb[0].mxu0 %v600
  %v734 = vpop.f32.mrb[0].mxu0
  %v735 = vadd.f32 0.0, %v734
  %v736 = vpop.f32.mrb[0].mxu0
  %737 = vmatprep.mubr.f32.mxu0 0.0
  %738 = vmatmul.mubr.f32.gmra.mrb[0].mxu0 %v603
  %v739 = vpop.f32.mrb[0].mxu0
  %v740 = vadd.f32 0.0, %v739
  %v741 = vpop.f32.mrb[0].mxu0
  %742 = vmatprep.mubr.f32.mxu0 0.0
  %743 = vmatmul.mubr.f32.gmra.mrb[0].mxu0 %v606
  %v744 = vpop.f32.mrb[0].mxu0
  %v745 = vadd.f32 0.0, %v744
  %v746 = vpop.f32.mrb[0].mxu0
  %747 = vmatprep.mubr.f32.mxu0 0.0
  %748 = vmatmul.mubr.f32.gmra.mrb[0].mxu0 %v609
  %v749 = vpop.f32.mrb[0].mxu0
  %v750 = vadd.f32 0.0, %v749
  %v751 = vpop.f32.mrb[0].mxu0
  %752 = vmatprep.mubr.f32.mxu0 0.0
  %753 = vmatmul.mubr.f32.gmra.mrb[0].mxu0 %v612
  %v754 = vpop.f32.mrb[0].mxu0
  %v755 = vadd.f32 0.0, %v754
  %v756 = vpop.f32.mrb[0].mxu0
  %757 = vmatprep.mubr.f32.mxu0 0.0
  %758 = vmatmul.mubr.f32.gmra.mrb[0].mxu0 %v615
  %v759 = vpop.f32.mrb[0].mxu0
  %v760 = vadd.f32 0.0, %v759
  %v761 = vpop.f32.mrb[0].mxu0
  %762 = vmatprep.mubr.f32.mxu0 0.0
  %763 = vmatmul.mubr.f32.gmra.mrb[0].mxu0 %v618
  %v764 = vpop.f32.mrb[0].mxu0
  %v765 = vadd.f32 0.0, %v764
  %v766 = vpop.f32.mrb[0].mxu0
  %767 = vdwg.mxu0
  %v768 = vadd.f32 %v538, %v690
  %v769 = vadd.f32 %v539, %v695
  %v770 = vadd.f32 %v540, %v700
  %v771 = vadd.f32 %v541, %v705
  %v772 = vadd.f32 %v542, %v710
  %v773 = vadd.f32 %v543, %v715
  %v774 = vadd.f32 %v544, %v720
  %v775 = vadd.f32 %v545, %v725
  %v776 = vadd.f32 %v546, %v730
  %v777 = vadd.f32 %v547, %v735
  %v778 = vadd.f32 %v548, %v740
  %v779 = vadd.f32 %v549, %v745
  %v780 = vadd.f32 %v550, %v750
  %v781 = vadd.f32 %v551, %v755
  %v782 = vadd.f32 %v552, %v760
  %v783 = vadd.f32 %v553, %v765
  %v784 = vld [vmem:[#allocation2 + $0x1] sm:$0xff]
  %v785 = vld [vmem:[#allocation2 + $0x21] sm:$0xff]
  %v786 = vld [vmem:[#allocation2 + $0x41] sm:$0xff]
  %v787 = vld [vmem:[#allocation2 + $0x61] sm:$0xff]
  %v788 = vld [vmem:[#allocation2 + $0x81] sm:$0xff]
  %v789 = vld [vmem:[#allocation2 + $0xa1] sm:$0xff]
  %v790 = vld [vmem:[#allocation2 + $0xc1] sm:$0xff]
  %v791 = vld [vmem:[#allocation2 + $0xe1] sm:$0xff]
  %v792 = vld [vmem:[#allocation2 + $0x121] sm:$0xff]
  %v793 = vld [vmem:[#allocation2 + $0x141] sm:$0xff]
  %v794 = vld [vmem:[#allocation2 + $0x161] sm:$0xff]
  %v795 = vld [vmem:[#allocation2 + $0x181] sm:$0xff]
  %v796 = vld [vmem:[#allocation2 + $0x1a1] sm:$0xff]
  %v797 = vld [vmem:[#allocation2 + $0x1c1] sm:$0xff]
  %v798 = vld [vmem:[#allocation2 + $0x1e1] sm:$0xff]
  %v799 = vld [vmem:[#allocation2 + $0x201] sm:$0xff]
  %s800 = scalar_lea.vmem %s1, 8
  %v801 = vld [vmem:[%s800] sm:$0xf]
  %v803 = vsel %vm32, %v784, 0
  %v806 = vsel %vm32, %v785, 0
  %v809 = vsel %vm32, %v786, 0
  %v812 = vsel %vm32, %v787, 0
  %v815 = vsel %vm32, %v788, 0
  %v818 = vsel %vm32, %v789, 0
  %v821 = vsel %vm32, %v790, 0
  %v824 = vsel %vm32, %v791, 0
  %v827 = vsel %vm32, %v792, 0
  %v830 = vsel %vm32, %v793, 0
  %v833 = vsel %vm32, %v794, 0
  %v836 = vsel %vm32, %v795, 0
  %v839 = vsel %vm32, %v796, 0
  %v842 = vsel %vm32, %v797, 0
  %v845 = vsel %vm32, %v798, 0
  %v848 = vsel %vm32, %v799, 0
  %v851 = vsel %vm389, %v801, 0
  %853 = vmatprep.subr.mxu0 0.0
  %854 = vmatpush1.msra.mxu0 %v851
  %855 = vmatprep.subr.mxu0 0.0
  %856 = vmatpush1.msra.mxu0 0.0
  %857 = vmatprep.subr.mxu0 0.0
  %858 = vmatpush1.msra.mxu0 0.0
  %859 = vmatprep.subr.mxu0 0.0
  %860 = vmatpush1.msra.mxu0 0.0
  %861 = vmatprep.subr.mxu0 0.0
  %862 = vmatpush1.msra.mxu0 0.0
  %863 = vmatprep.subr.mxu0 0.0
  %864 = vmatpush1.msra.mxu0 0.0
  %865 = vmatprep.subr.mxu0 0.0
  %866 = vmatpush1.msra.mxu0 0.0
  %867 = vmatprep.subr.mxu0 0.0
  %868 = vmatpush1.msra.mxu0 0.0
  %869 = vmatprep.subr.mxu0 0.0
  %870 = vmatpush1.msra.mxu0 0.0
  %871 = vmatprep.subr.mxu0 0.0
  %872 = vmatpush1.msra.mxu0 0.0
  %873 = vmatprep.subr.mxu0 0.0
  %874 = vmatpush1.msra.mxu0 0.0
  %875 = vmatprep.subr.mxu0 0.0
  %876 = vmatpush1.msra.mxu0 0.0
  %877 = vmatprep.subr.mxu0 0.0
  %878 = vmatpush1.msra.mxu0 0.0
  %879 = vmatprep.subr.mxu0 0.0
  %880 = vmatpush1.msra.mxu0 0.0
  %881 = vmatprep.subr.mxu0 0.0
  %882 = vmatpush1.msra.mxu0 0.0
  %883 = vmatprep.subr.mxu0 0.0
  %884 = vmatpush1.msra.mxu0 0.0
  %885 = vmatprep.subr.mxu0 0.0
  %886 = vmatpush1.msra.mxu0 0.0
  %887 = vmatprep.subr.mxu0 0.0
  %888 = vmatpush1.msra.mxu0 0.0
  %889 = vmatprep.subr.mxu0 0.0
  %890 = vmatpush1.msra.mxu0 0.0
  %891 = vmatprep.subr.mxu0 0.0
  %892 = vmatpush1.msra.mxu0 0.0
  %893 = vmatprep.subr.mxu0 0.0
  %894 = vmatpush1.msra.mxu0 0.0
  %895 = vmatprep.subr.mxu0 0.0
  %896 = vmatpush1.msra.mxu0 0.0
  %897 = vmatprep.subr.mxu0 0.0
  %898 = vmatpush1.msra.mxu0 0.0
  %899 = vmatprep.subr.mxu0 0.0
  %900 = vmatpush1.msra.mxu0 0.0
  %901 = vmatprep.subr.mxu0 0.0
  %902 = vmatpush1.msra.mxu0 0.0
  %903 = vmatprep.subr.mxu0 0.0
  %904 = vmatpush1.msra.mxu0 0.0
  %905 = vmatprep.subr.mxu0 0.0
  %906 = vmatpush1.msra.mxu0 0.0
  %907 = vmatprep.subr.mxu0 0.0
  %908 = vmatpush1.msra.mxu0 0.0
  %909 = vmatprep.subr.mxu0 0.0
  %910 = vmatpush1.msra.mxu0 0.0
  %911 = vmatprep.subr.mxu0 0.0
  %912 = vmatpush1.msra.mxu0 0.0
  %913 = vmatprep.subr.mxu0 0.0
  %914 = vmatpush1.msra.mxu0 0.0
  %915 = vmatprep.subr.mxu0 0.0
  %916 = vmatpush1.msra.mxu0 0.0
  %917 = vmatprep.mubr.f32.mxu0 0.0
  %918 = vmatmul.mubr.f32.gmra.mrb[0].mxu0 %v803
  %v919 = vpop.f32.mrb[0].mxu0
  %v920 = vadd.f32 0.0, %v919
  %v921 = vpop.f32.mrb[0].mxu0
  %922 = vmatprep.mubr.f32.mxu0 0.0
  %923 = vmatmul.mubr.f32.gmra.mrb[0].mxu0 %v806
  %v924 = vpop.f32.mrb[0].mxu0
  %v925 = vadd.f32 0.0, %v924
  %v926 = vpop.f32.mrb[0].mxu0
  %927 = vmatprep.mubr.f32.mxu0 0.0
  %928 = vmatmul.mubr.f32.gmra.mrb[0].mxu0 %v809
  %v929 = vpop.f32.mrb[0].mxu0
  %v930 = vadd.f32 0.0, %v929
  %v931 = vpop.f32.mrb[0].mxu0
  %932 = vmatprep.mubr.f32.mxu0 0.0
  %933 = vmatmul.mubr.f32.gmra.mrb[0].mxu0 %v812
  %v934 = vpop.f32.mrb[0].mxu0
  %v935 = vadd.f32 0.0, %v934
  %v936 = vpop.f32.mrb[0].mxu0
  %937 = vmatprep.mubr.f32.mxu0 0.0
  %938 = vmatmul.mubr.f32.gmra.mrb[0].mxu0 %v815
  %v939 = vpop.f32.mrb[0].mxu0
  %v940 = vadd.f32 0.0, %v939
  %v941 = vpop.f32.mrb[0].mxu0
  %942 = vmatprep.mubr.f32.mxu0 0.0
  %943 = vmatmul.mubr.f32.gmra.mrb[0].mxu0 %v818
  %v944 = vpop.f32.mrb[0].mxu0
  %v945 = vadd.f32 0.0, %v944
  %v946 = vpop.f32.mrb[0].mxu0
  %947 = vmatprep.mubr.f32.mxu0 0.0
  %948 = vmatmul.mubr.f32.gmra.mrb[0].mxu0 %v821
  %v949 = vpop.f32.mrb[0].mxu0
  %v950 = vadd.f32 0.0, %v949
  %v951 = vpop.f32.mrb[0].mxu0
  %952 = vmatprep.mubr.f32.mxu0 0.0
  %953 = vmatmul.mubr.f32.gmra.mrb[0].mxu0 %v824
  %v954 = vpop.f32.mrb[0].mxu0
  %v955 = vadd.f32 0.0, %v954
  %v956 = vpop.f32.mrb[0].mxu0
  %957 = vmatprep.mubr.f32.mxu0 0.0
  %958 = vmatmul.mubr.f32.gmra.mrb[0].mxu0 %v827
  %v959 = vpop.f32.mrb[0].mxu0
  %v960 = vadd.f32 0.0, %v959
  %v961 = vpop.f32.mrb[0].mxu0
  %962 = vmatprep.mubr.f32.mxu0 0.0
  %963 = vmatmul.mubr.f32.gmra.mrb[0].mxu0 %v830
  %v964 = vpop.f32.mrb[0].mxu0
  %v965 = vadd.f32 0.0, %v964
  %v966 = vpop.f32.mrb[0].mxu0
  %967 = vmatprep.mubr.f32.mxu0 0.0
  %968 = vmatmul.mubr.f32.gmra.mrb[0].mxu0 %v833
  %v969 = vpop.f32.mrb[0].mxu0
  %v970 = vadd.f32 0.0, %v969
  %v971 = vpop.f32.mrb[0].mxu0
  %972 = vmatprep.mubr.f32.mxu0 0.0
  %973 = vmatmul.mubr.f32.gmra.mrb[0].mxu0 %v836
  %v974 = vpop.f32.mrb[0].mxu0
  %v975 = vadd.f32 0.0, %v974
  %v976 = vpop.f32.mrb[0].mxu0
  %977 = vmatprep.mubr.f32.mxu0 0.0
  %978 = vmatmul.mubr.f32.gmra.mrb[0].mxu0 %v839
  %v979 = vpop.f32.mrb[0].mxu0
  %v980 = vadd.f32 0.0, %v979
  %v981 = vpop.f32.mrb[0].mxu0
  %982 = vmatprep.mubr.f32.mxu0 0.0
  %983 = vmatmul.mubr.f32.gmra.mrb[0].mxu0 %v842
  %v984 = vpop.f32.mrb[0].mxu0
  %v985 = vadd.f32 0.0, %v984
  %v986 = vpop.f32.mrb[0].mxu0
  %987 = vmatprep.mubr.f32.mxu0 0.0
  %988 = vmatmul.mubr.f32.gmra.mrb[0].mxu0 %v845
  %v989 = vpop.f32.mrb[0].mxu0
  %v990 = vadd.f32 0.0, %v989
  %v991 = vpop.f32.mrb[0].mxu0
  %992 = vmatprep.mubr.f32.mxu0 0.0
  %993 = vmatmul.mubr.f32.gmra.mrb[0].mxu0 %v848
  %v994 = vpop.f32.mrb[0].mxu0
  %v995 = vadd.f32 0.0, %v994
  %v996 = vpop.f32.mrb[0].mxu0
  %997 = vdwg.mxu0
  %v998 = vadd.f32 %v768, %v920
  %v999 = vadd.f32 %v769, %v925
  %v1000 = vadd.f32 %v770, %v930
  %v1001 = vadd.f32 %v771, %v935
  %v1002 = vadd.f32 %v772, %v940
  %v1003 = vadd.f32 %v773, %v945
  %v1004 = vadd.f32 %v774, %v950
  %v1005 = vadd.f32 %v775, %v955
  %v1006 = vadd.f32 %v776, %v960
  %v1007 = vadd.f32 %v777, %v965
  %v1008 = vadd.f32 %v778, %v970
  %v1009 = vadd.f32 %v779, %v975
  %v1010 = vadd.f32 %v780, %v980
  %v1011 = vadd.f32 %v781, %v985
  %v1012 = vadd.f32 %v782, %v990
  %v1013 = vadd.f32 %v783, %v995
  %v1014 = vld [vmem:[%s188] sm:$0xff]
  %v1015 = vld [vmem:[%s188 + $0x20] sm:$0xff]
  %v1016 = vld [vmem:[%s188 + $0x40] sm:$0xff]
  %v1017 = vld [vmem:[%s188 + $0x60] sm:$0xff]
  %v1018 = vld [vmem:[%s188 + $0x80] sm:$0xff]
  %v1019 = vld [vmem:[%s188 + $0xa0] sm:$0xff]
  %v1020 = vld [vmem:[%s188 + $0xc0] sm:$0xff]
  %v1021 = vld [vmem:[%s188 + $0xe0] sm:$0xff]
  %v1022 = vld [vmem:[%s188 + $0x120] sm:$0xff]
  %v1023 = vld [vmem:[%s188 + $0x140] sm:$0xff]
  %v1024 = vld [vmem:[%s188 + $0x160] sm:$0xff]
  %v1025 = vld [vmem:[%s188 + $0x180] sm:$0xff]
  %v1026 = vld [vmem:[%s188 + $0x1a0] sm:$0xff]
  %v1027 = vld [vmem:[%s188 + $0x1c0] sm:$0xff]
  %v1028 = vld [vmem:[%s188 + $0x1e0] sm:$0xff]
  %v1029 = vld [vmem:[%s188 + $0x200] sm:$0xff]
  %s1030 = scalar_lea.vmem %s1, 12
  %v1031 = vld [vmem:[%s1030] sm:$0xf]
  %v1033 = vsel %vm32, %v1014, 0
  %v1036 = vsel %vm32, %v1015, 0
  %v1039 = vsel %vm32, %v1016, 0
  %v1042 = vsel %vm32, %v1017, 0
  %v1045 = vsel %vm32, %v1018, 0
  %v1048 = vsel %vm32, %v1019, 0
  %v1051 = vsel %vm32, %v1020, 0
  %v1054 = vsel %vm32, %v1021, 0
  %v1057 = vsel %vm32, %v1022, 0
  %v1060 = vsel %vm32, %v1023, 0
  %v1063 = vsel %vm32, %v1024, 0
  %v1066 = vsel %vm32, %v1025, 0
  %v1069 = vsel %vm32, %v1026, 0
  %v1072 = vsel %vm32, %v1027, 0
  %v1075 = vsel %vm32, %v1028, 0
  %v1078 = vsel %vm32, %v1029, 0
  %v1081 = vsel %vm389, %v1031, 0
  %1083 = vmatprep.subr.mxu0 0.0
  %1084 = vmatpush1.msra.mxu0 %v1081
  %1085 = vmatprep.subr.mxu0 0.0
  %1086 = vmatpush1.msra.mxu0 0.0
  %1087 = vmatprep.subr.mxu0 0.0
  %1088 = vmatpush1.msra.mxu0 0.0
  %1089 = vmatprep.subr.mxu0 0.0
  %1090 = vmatpush1.msra.mxu0 0.0
  %1091 = vmatprep.subr.mxu0 0.0
  %1092 = vmatpush1.msra.mxu0 0.0
  %1093 = vmatprep.subr.mxu0 0.0
  %1094 = vmatpush1.msra.mxu0 0.0
  %1095 = vmatprep.subr.mxu0 0.0
  %1096 = vmatpush1.msra.mxu0 0.0
  %1097 = vmatprep.subr.mxu0 0.0
  %1098 = vmatpush1.msra.mxu0 0.0
  %1099 = vmatprep.subr.mxu0 0.0
  %1100 = vmatpush1.msra.mxu0 0.0
  %1101 = vmatprep.subr.mxu0 0.0
  %1102 = vmatpush1.msra.mxu0 0.0
  %1103 = vmatprep.subr.mxu0 0.0
  %1104 = vmatpush1.msra.mxu0 0.0
  %1105 = vmatprep.subr.mxu0 0.0
  %1106 = vmatpush1.msra.mxu0 0.0
  %1107 = vmatprep.subr.mxu0 0.0
  %1108 = vmatpush1.msra.mxu0 0.0
  %1109 = vmatprep.subr.mxu0 0.0
  %1110 = vmatpush1.msra.mxu0 0.0
  %1111 = vmatprep.subr.mxu0 0.0
  %1112 = vmatpush1.msra.mxu0 0.0
  %1113 = vmatprep.subr.mxu0 0.0
  %1114 = vmatpush1.msra.mxu0 0.0
  %1115 = vmatprep.subr.mxu0 0.0
  %1116 = vmatpush1.msra.mxu0 0.0
  %1117 = vmatprep.subr.mxu0 0.0
  %1118 = vmatpush1.msra.mxu0 0.0
  %1119 = vmatprep.subr.mxu0 0.0
  %1120 = vmatpush1.msra.mxu0 0.0
  %1121 = vmatprep.subr.mxu0 0.0
  %1122 = vmatpush1.msra.mxu0 0.0
  %1123 = vmatprep.subr.mxu0 0.0
  %1124 = vmatpush1.msra.mxu0 0.0
  %1125 = vmatprep.subr.mxu0 0.0
  %1126 = vmatpush1.msra.mxu0 0.0
  %1127 = vmatprep.subr.mxu0 0.0
  %1128 = vmatpush1.msra.mxu0 0.0
  %1129 = vmatprep.subr.mxu0 0.0
  %1130 = vmatpush1.msra.mxu0 0.0
  %1131 = vmatprep.subr.mxu0 0.0
  %1132 = vmatpush1.msra.mxu0 0.0
  %1133 = vmatprep.subr.mxu0 0.0
  %1134 = vmatpush1.msra.mxu0 0.0
  %1135 = vmatprep.subr.mxu0 0.0
  %1136 = vmatpush1.msra.mxu0 0.0
  %1137 = vmatprep.subr.mxu0 0.0
  %1138 = vmatpush1.msra.mxu0 0.0
  %1139 = vmatprep.subr.mxu0 0.0
  %1140 = vmatpush1.msra.mxu0 0.0
  %1141 = vmatprep.subr.mxu0 0.0
  %1142 = vmatpush1.msra.mxu0 0.0
  %1143 = vmatprep.subr.mxu0 0.0
  %1144 = vmatpush1.msra.mxu0 0.0
  %1145 = vmatprep.subr.mxu0 0.0
  %1146 = vmatpush1.msra.mxu0 0.0
  %1147 = vmatprep.mubr.f32.mxu0 0.0
  %1148 = vmatmul.mubr.f32.gmra.mrb[0].mxu0 %v1033
  %v1149 = vpop.f32.mrb[0].mxu0
  %v1150 = vadd.f32 0.0, %v1149
  %v1151 = vpop.f32.mrb[0].mxu0
  %1152 = vmatprep.mubr.f32.mxu0 0.0
  %1153 = vmatmul.mubr.f32.gmra.mrb[0].mxu0 %v1036
  %v1154 = vpop.f32.mrb[0].mxu0
  %v1155 = vadd.f32 0.0, %v1154
  %v1156 = vpop.f32.mrb[0].mxu0
  %1157 = vmatprep.mubr.f32.mxu0 0.0
  %1158 = vmatmul.mubr.f32.gmra.mrb[0].mxu0 %v1039
  %v1159 = vpop.f32.mrb[0].mxu0
  %v1160 = vadd.f32 0.0, %v1159
  %v1161 = vpop.f32.mrb[0].mxu0
  %1162 = vmatprep.mubr.f32.mxu0 0.0
  %1163 = vmatmul.mubr.f32.gmra.mrb[0].mxu0 %v1042
  %v1164 = vpop.f32.mrb[0].mxu0
  %v1165 = vadd.f32 0.0, %v1164
  %v1166 = vpop.f32.mrb[0].mxu0
  %1167 = vmatprep.mubr.f32.mxu0 0.0
  %1168 = vmatmul.mubr.f32.gmra.mrb[0].mxu0 %v1045
  %v1169 = vpop.f32.mrb[0].mxu0
  %v1170 = vadd.f32 0.0, %v1169
  %v1171 = vpop.f32.mrb[0].mxu0
  %1172 = vmatprep.mubr.f32.mxu0 0.0
  %1173 = vmatmul.mubr.f32.gmra.mrb[0].mxu0 %v1048
  %v1174 = vpop.f32.mrb[0].mxu0
  %v1175 = vadd.f32 0.0, %v1174
  %v1176 = vpop.f32.mrb[0].mxu0
  %1177 = vmatprep.mubr.f32.mxu0 0.0
  %1178 = vmatmul.mubr.f32.gmra.mrb[0].mxu0 %v1051
  %v1179 = vpop.f32.mrb[0].mxu0
  %v1180 = vadd.f32 0.0, %v1179
  %v1181 = vpop.f32.mrb[0].mxu0
  %1182 = vmatprep.mubr.f32.mxu0 0.0
  %1183 = vmatmul.mubr.f32.gmra.mrb[0].mxu0 %v1054
  %v1184 = vpop.f32.mrb[0].mxu0
  %v1185 = vadd.f32 0.0, %v1184
  %v1186 = vpop.f32.mrb[0].mxu0
  %1187 = vmatprep.mubr.f32.mxu0 0.0
  %1188 = vmatmul.mubr.f32.gmra.mrb[0].mxu0 %v1057
  %v1189 = vpop.f32.mrb[0].mxu0
  %v1190 = vadd.f32 0.0, %v1189
  %v1191 = vpop.f32.mrb[0].mxu0
  %1192 = vmatprep.mubr.f32.mxu0 0.0
  %1193 = vmatmul.mubr.f32.gmra.mrb[0].mxu0 %v1060
  %v1194 = vpop.f32.mrb[0].mxu0
  %v1195 = vadd.f32 0.0, %v1194
  %v1196 = vpop.f32.mrb[0].mxu0
  %1197 = vmatprep.mubr.f32.mxu0 0.0
  %1198 = vmatmul.mubr.f32.gmra.mrb[0].mxu0 %v1063
  %v1199 = vpop.f32.mrb[0].mxu0
  %v1200 = vadd.f32 0.0, %v1199
  %v1201 = vpop.f32.mrb[0].mxu0
  %1202 = vmatprep.mubr.f32.mxu0 0.0
  %1203 = vmatmul.mubr.f32.gmra.mrb[0].mxu0 %v1066
  %v1204 = vpop.f32.mrb[0].mxu0
  %v1205 = vadd.f32 0.0, %v1204
  %v1206 = vpop.f32.mrb[0].mxu0
  %1207 = vmatprep.mubr.f32.mxu0 0.0
  %1208 = vmatmul.mubr.f32.gmra.mrb[0].mxu0 %v1069
  %v1209 = vpop.f32.mrb[0].mxu0
  %v1210 = vadd.f32 0.0, %v1209
  %v1211 = vpop.f32.mrb[0].mxu0
  %1212 = vmatprep.mubr.f32.mxu0 0.0
  %1213 = vmatmul.mubr.f32.gmra.mrb[0].mxu0 %v1072
  %v1214 = vpop.f32.mrb[0].mxu0
  %v1215 = vadd.f32 0.0, %v1214
  %v1216 = vpop.f32.mrb[0].mxu0
  %1217 = vmatprep.mubr.f32.mxu0 0.0
  %1218 = vmatmul.mubr.f32.gmra.mrb[0].mxu0 %v1075
  %v1219 = vpop.f32.mrb[0].mxu0
  %v1220 = vadd.f32 0.0, %v1219
  %v1221 = vpop.f32.mrb[0].mxu0
  %1222 = vmatprep.mubr.f32.mxu0 0.0
  %1223 = vmatmul.mubr.f32.gmra.mrb[0].mxu0 %v1078
  %v1224 = vpop.f32.mrb[0].mxu0
  %v1225 = vadd.f32 0.0, %v1224
  %v1226 = vpop.f32.mrb[0].mxu0
  %1227 = vdwg.mxu0
  %v1228 = vadd.f32 %v998, %v1150
  %v1229 = vadd.f32 %v999, %v1155
  %v1230 = vadd.f32 %v1000, %v1160
  %v1231 = vadd.f32 %v1001, %v1165
  %v1232 = vadd.f32 %v1002, %v1170
  %v1233 = vadd.f32 %v1003, %v1175
  %v1234 = vadd.f32 %v1004, %v1180
  %v1235 = vadd.f32 %v1005, %v1185
  %v1236 = vadd.f32 %v1006, %v1190
  %v1237 = vadd.f32 %v1007, %v1195
  %v1238 = vadd.f32 %v1008, %v1200
  %v1239 = vadd.f32 %v1009, %v1205
  %v1240 = vadd.f32 %v1010, %v1210
  %v1241 = vadd.f32 %v1011, %v1215
  %v1242 = vadd.f32 %v1012, %v1220
  %v1243 = vadd.f32 %v1013, %v1225
  %v1244 = vld [vmem:[%s284] sm:$0xff]
  %v1245 = vld [vmem:[%s284 + $0x20] sm:$0xff]
  %v1246 = vld [vmem:[%s284 + $0x40] sm:$0xff]
  %v1247 = vld [vmem:[%s284 + $0x60] sm:$0xff]
  %v1248 = vld [vmem:[%s284 + $0x80] sm:$0xff]
  %v1249 = vld [vmem:[%s284 + $0xa0] sm:$0xff]
  %v1250 = vld [vmem:[%s284 + $0xc0] sm:$0xff]
  %v1251 = vld [vmem:[%s284 + $0xe0] sm:$0xff]
  %v1252 = vld [vmem:[%s284 + $0x120] sm:$0xff]
  %v1253 = vld [vmem:[%s284 + $0x140] sm:$0xff]
  %v1254 = vld [vmem:[%s284 + $0x160] sm:$0xff]
  %v1255 = vld [vmem:[%s284 + $0x180] sm:$0xff]
  %v1256 = vld [vmem:[%s284 + $0x1a0] sm:$0xff]
  %v1257 = vld [vmem:[%s284 + $0x1c0] sm:$0xff]
  %v1258 = vld [vmem:[%s284 + $0x1e0] sm:$0xff]
  %v1259 = vld [vmem:[%s284 + $0x200] sm:$0xff]
  %s1260 = scalar_lea.vmem %s1, 16
  %v1261 = vld [vmem:[%s1260] sm:$0xf]
  %v1263 = vsel %vm32, %v1244, 0
  %v1266 = vsel %vm32, %v1245, 0
  %v1269 = vsel %vm32, %v1246, 0
  %v1272 = vsel %vm32, %v1247, 0
  %v1275 = vsel %vm32, %v1248, 0
  %v1278 = vsel %vm32, %v1249, 0
  %v1281 = vsel %vm32, %v1250, 0
  %v1284 = vsel %vm32, %v1251, 0
  %v1287 = vsel %vm32, %v1252, 0
  %v1290 = vsel %vm32, %v1253, 0
  %v1293 = vsel %vm32, %v1254, 0
  %v1296 = vsel %vm32, %v1255, 0
  %v1299 = vsel %vm32, %v1256, 0
  %v1302 = vsel %vm32, %v1257, 0
  %v1305 = vsel %vm32, %v1258, 0
  %v1308 = vsel %vm32, %v1259, 0
  %v1311 = vsel %vm389, %v1261, 0
  %1313 = vmatprep.subr.mxu0 0.0
  %1314 = vmatpush1.msra.mxu0 %v1311
  %1315 = vmatprep.subr.mxu0 0.0
  %1316 = vmatpush1.msra.mxu0 0.0
  %1317 = vmatprep.subr.mxu0 0.0
  %1318 = vmatpush1.msra.mxu0 0.0
  %1319 = vmatprep.subr.mxu0 0.0
  %1320 = vmatpush1.msra.mxu0 0.0
  %1321 = vmatprep.subr.mxu0 0.0
  %1322 = vmatpush1.msra.mxu0 0.0
  %1323 = vmatprep.subr.mxu0 0.0
  %1324 = vmatpush1.msra.mxu0 0.0
  %1325 = vmatprep.subr.mxu0 0.0
  %1326 = vmatpush1.msra.mxu0 0.0
  %1327 = vmatprep.subr.mxu0 0.0
  %1328 = vmatpush1.msra.mxu0 0.0
  %1329 = vmatprep.subr.mxu0 0.0
  %1330 = vmatpush1.msra.mxu0 0.0
  %1331 = vmatprep.subr.mxu0 0.0
  %1332 = vmatpush1.msra.mxu0 0.0
  %1333 = vmatprep.subr.mxu0 0.0
  %1334 = vmatpush1.msra.mxu0 0.0
  %1335 = vmatprep.subr.mxu0 0.0
  %1336 = vmatpush1.msra.mxu0 0.0
  %1337 = vmatprep.subr.mxu0 0.0
  %1338 = vmatpush1.msra.mxu0 0.0
  %1339 = vmatprep.subr.mxu0 0.0
  %1340 = vmatpush1.msra.mxu0 0.0
  %1341 = vmatprep.subr.mxu0 0.0
  %1342 = vmatpush1.msra.mxu0 0.0
  %1343 = vmatprep.subr.mxu0 0.0
  %1344 = vmatpush1.msra.mxu0 0.0
  %1345 = vmatprep.subr.mxu0 0.0
  %1346 = vmatpush1.msra.mxu0 0.0
  %1347 = vmatprep.subr.mxu0 0.0
  %1348 = vmatpush1.msra.mxu0 0.0
  %1349 = vmatprep.subr.mxu0 0.0
  %1350 = vmatpush1.msra.mxu0 0.0
  %1351 = vmatprep.subr.mxu0 0.0
  %1352 = vmatpush1.msra.mxu0 0.0
  %1353 = vmatprep.subr.mxu0 0.0
  %1354 = vmatpush1.msra.mxu0 0.0
  %1355 = vmatprep.subr.mxu0 0.0
  %1356 = vmatpush1.msra.mxu0 0.0
  %1357 = vmatprep.subr.mxu0 0.0
  %1358 = vmatpush1.msra.mxu0 0.0
  %1359 = vmatprep.subr.mxu0 0.0
  %1360 = vmatpush1.msra.mxu0 0.0
  %1361 = vmatprep.subr.mxu0 0.0
  %1362 = vmatpush1.msra.mxu0 0.0
  %1363 = vmatprep.subr.mxu0 0.0
  %1364 = vmatpush1.msra.mxu0 0.0
  %1365 = vmatprep.subr.mxu0 0.0
  %1366 = vmatpush1.msra.mxu0 0.0
  %1367 = vmatprep.subr.mxu0 0.0
  %1368 = vmatpush1.msra.mxu0 0.0
  %1369 = vmatprep.subr.mxu0 0.0
  %1370 = vmatpush1.msra.mxu0 0.0
  %1371 = vmatprep.subr.mxu0 0.0
  %1372 = vmatpush1.msra.mxu0 0.0
  %1373 = vmatprep.subr.mxu0 0.0
  %1374 = vmatpush1.msra.mxu0 0.0
  %1375 = vmatprep.subr.mxu0 0.0
  %1376 = vmatpush1.msra.mxu0 0.0
  %1377 = vmatprep.mubr.f32.mxu0 0.0
  %1378 = vmatmul.mubr.f32.gmra.mrb[0].mxu0 %v1263
  %v1379 = vpop.f32.mrb[0].mxu0
  %v1380 = vadd.f32 0.0, %v1379
  %v1381 = vpop.f32.mrb[0].mxu0
  %1382 = vmatprep.mubr.f32.mxu0 0.0
  %1383 = vmatmul.mubr.f32.gmra.mrb[0].mxu0 %v1266
  %v1384 = vpop.f32.mrb[0].mxu0
  %v1385 = vadd.f32 0.0, %v1384
  %v1386 = vpop.f32.mrb[0].mxu0
  %1387 = vmatprep.mubr.f32.mxu0 0.0
  %1388 = vmatmul.mubr.f32.gmra.mrb[0].mxu0 %v1269
  %v1389 = vpop.f32.mrb[0].mxu0
  %v1390 = vadd.f32 0.0, %v1389
  %v1391 = vpop.f32.mrb[0].mxu0
  %1392 = vmatprep.mubr.f32.mxu0 0.0
  %1393 = vmatmul.mubr.f32.gmra.mrb[0].mxu0 %v1272
  %v1394 = vpop.f32.mrb[0].mxu0
  %v1395 = vadd.f32 0.0, %v1394
  %v1396 = vpop.f32.mrb[0].mxu0
  %1397 = vmatprep.mubr.f32.mxu0 0.0
  %1398 = vmatmul.mubr.f32.gmra.mrb[0].mxu0 %v1275
  %v1399 = vpop.f32.mrb[0].mxu0
  %v1400 = vadd.f32 0.0, %v1399
  %v1401 = vpop.f32.mrb[0].mxu0
  %1402 = vmatprep.mubr.f32.mxu0 0.0
  %1403 = vmatmul.mubr.f32.gmra.mrb[0].mxu0 %v1278
  %v1404 = vpop.f32.mrb[0].mxu0
  %v1405 = vadd.f32 0.0, %v1404
  %v1406 = vpop.f32.mrb[0].mxu0
  %1407 = vmatprep.mubr.f32.mxu0 0.0
  %1408 = vmatmul.mubr.f32.gmra.mrb[0].mxu0 %v1281
  %v1409 = vpop.f32.mrb[0].mxu0
  %v1410 = vadd.f32 0.0, %v1409
  %v1411 = vpop.f32.mrb[0].mxu0
  %1412 = vmatprep.mubr.f32.mxu0 0.0
  %1413 = vmatmul.mubr.f32.gmra.mrb[0].mxu0 %v1284
  %v1414 = vpop.f32.mrb[0].mxu0
  %v1415 = vadd.f32 0.0, %v1414
  %v1416 = vpop.f32.mrb[0].mxu0
  %1417 = vmatprep.mubr.f32.mxu0 0.0
  %1418 = vmatmul.mubr.f32.gmra.mrb[0].mxu0 %v1287
  %v1419 = vpop.f32.mrb[0].mxu0
  %v1420 = vadd.f32 0.0, %v1419
  %v1421 = vpop.f32.mrb[0].mxu0
  %1422 = vmatprep.mubr.f32.mxu0 0.0
  %1423 = vmatmul.mubr.f32.gmra.mrb[0].mxu0 %v1290
  %v1424 = vpop.f32.mrb[0].mxu0
  %v1425 = vadd.f32 0.0, %v1424
  %v1426 = vpop.f32.mrb[0].mxu0
  %1427 = vmatprep.mubr.f32.mxu0 0.0
  %1428 = vmatmul.mubr.f32.gmra.mrb[0].mxu0 %v1293
  %v1429 = vpop.f32.mrb[0].mxu0
  %v1430 = vadd.f32 0.0, %v1429
  %v1431 = vpop.f32.mrb[0].mxu0
  %1432 = vmatprep.mubr.f32.mxu0 0.0
  %1433 = vmatmul.mubr.f32.gmra.mrb[0].mxu0 %v1296
  %v1434 = vpop.f32.mrb[0].mxu0
  %v1435 = vadd.f32 0.0, %v1434
  %v1436 = vpop.f32.mrb[0].mxu0
  %1437 = vmatprep.mubr.f32.mxu0 0.0
  %1438 = vmatmul.mubr.f32.gmra.mrb[0].mxu0 %v1299
  %v1439 = vpop.f32.mrb[0].mxu0
  %v1440 = vadd.f32 0.0, %v1439
  %v1441 = vpop.f32.mrb[0].mxu0
  %1442 = vmatprep.mubr.f32.mxu0 0.0
  %1443 = vmatmul.mubr.f32.gmra.mrb[0].mxu0 %v1302
  %v1444 = vpop.f32.mrb[0].mxu0
  %v1445 = vadd.f32 0.0, %v1444
  %v1446 = vpop.f32.mrb[0].mxu0
  %1447 = vmatprep.mubr.f32.mxu0 0.0
  %1448 = vmatmul.mubr.f32.gmra.mrb[0].mxu0 %v1305
  %v1449 = vpop.f32.mrb[0].mxu0
  %v1450 = vadd.f32 0.0, %v1449
  %v1451 = vpop.f32.mrb[0].mxu0
  %1452 = vmatprep.mubr.f32.mxu0 0.0
  %1453 = vmatmul.mubr.f32.gmra.mrb[0].mxu0 %v1308
  %v1454 = vpop.f32.mrb[0].mxu0
  %v1455 = vadd.f32 0.0, %v1454
  %v1456 = vpop.f32.mrb[0].mxu0
  %1457 = vdwg.mxu0
  %v1458 = vadd.f32 %v1228, %v1380
  %v1459 = vadd.f32 %v1229, %v1385
  %v1460 = vadd.f32 %v1230, %v1390
  %v1461 = vadd.f32 %v1231, %v1395
  %v1462 = vadd.f32 %v1232, %v1400
  %v1463 = vadd.f32 %v1233, %v1405
  %v1464 = vadd.f32 %v1234, %v1410
  %v1465 = vadd.f32 %v1235, %v1415
  %v1466 = vadd.f32 %v1236, %v1420
  %v1467 = vadd.f32 %v1237, %v1425
  %v1468 = vadd.f32 %v1238, %v1430
  %v1469 = vadd.f32 %v1239, %v1435
  %v1470 = vadd.f32 %v1240, %v1440
  %v1471 = vadd.f32 %v1241, %v1445
  %v1472 = vadd.f32 %v1242, %v1450
  %v1473 = vadd.f32 %v1243, %v1455
  %v1474 = vld [vmem:[%s188 + $0x1] sm:$0xff]
  %v1475 = vld [vmem:[%s188 + $0x21] sm:$0xff]
  %v1476 = vld [vmem:[%s188 + $0x41] sm:$0xff]
  %v1477 = vld [vmem:[%s188 + $0x61] sm:$0xff]
  %v1478 = vld [vmem:[%s188 + $0x81] sm:$0xff]
  %v1479 = vld [vmem:[%s188 + $0xa1] sm:$0xff]
  %v1480 = vld [vmem:[%s188 + $0xc1] sm:$0xff]
  %v1481 = vld [vmem:[%s188 + $0xe1] sm:$0xff]
  %v1482 = vld [vmem:[%s188 + $0x121] sm:$0xff]
  %v1483 = vld [vmem:[%s188 + $0x141] sm:$0xff]
  %v1484 = vld [vmem:[%s188 + $0x161] sm:$0xff]
  %v1485 = vld [vmem:[%s188 + $0x181] sm:$0xff]
  %v1486 = vld [vmem:[%s188 + $0x1a1] sm:$0xff]
  %v1487 = vld [vmem:[%s188 + $0x1c1] sm:$0xff]
  %v1488 = vld [vmem:[%s188 + $0x1e1] sm:$0xff]
  %v1489 = vld [vmem:[%s188 + $0x201] sm:$0xff]
  %s1490 = scalar_lea.vmem %s1, 20
  %v1491 = vld [vmem:[%s1490] sm:$0xf]
  %v1493 = vsel %vm32, %v1474, 0
  %v1496 = vsel %vm32, %v1475, 0
  %v1499 = vsel %vm32, %v1476, 0
  %v1502 = vsel %vm32, %v1477, 0
  %v1505 = vsel %vm32, %v1478, 0
  %v1508 = vsel %vm32, %v1479, 0
  %v1511 = vsel %vm32, %v1480, 0
  %v1514 = vsel %vm32, %v1481, 0
  %v1517 = vsel %vm32, %v1482, 0
  %v1520 = vsel %vm32, %v1483, 0
  %v1523 = vsel %vm32, %v1484, 0
  %v1526 = vsel %vm32, %v1485, 0
  %v1529 = vsel %vm32, %v1486, 0
  %v1532 = vsel %vm32, %v1487, 0
  %v1535 = vsel %vm32, %v1488, 0
  %v1538 = vsel %vm32, %v1489, 0
  %v1541 = vsel %vm389, %v1491, 0
  %1543 = vmatprep.subr.mxu0 0.0
  %1544 = vmatpush1.msra.mxu0 %v1541
  %1545 = vmatprep.subr.mxu0 0.0
  %1546 = vmatpush1.msra.mxu0 0.0
  %1547 = vmatprep.subr.mxu0 0.0
  %1548 = vmatpush1.msra.mxu0 0.0
  %1549 = vmatprep.subr.mxu0 0.0
  %1550 = vmatpush1.msra.mxu0 0.0
  %1551 = vmatprep.subr.mxu0 0.0
  %1552 = vmatpush1.msra.mxu0 0.0
  %1553 = vmatprep.subr.mxu0 0.0
  %1554 = vmatpush1.msra.mxu0 0.0
  %1555 = vmatprep.subr.mxu0 0.0
  %1556 = vmatpush1.msra.mxu0 0.0
  %1557 = vmatprep.subr.mxu0 0.0
  %1558 = vmatpush1.msra.mxu0 0.0
  %1559 = vmatprep.subr.mxu0 0.0
  %1560 = vmatpush1.msra.mxu0 0.0
  %1561 = vmatprep.subr.mxu0 0.0
  %1562 = vmatpush1.msra.mxu0 0.0
  %1563 = vmatprep.subr.mxu0 0.0
  %1564 = vmatpush1.msra.mxu0 0.0
  %1565 = vmatprep.subr.mxu0 0.0
  %1566 = vmatpush1.msra.mxu0 0.0
  %1567 = vmatprep.subr.mxu0 0.0
  %1568 = vmatpush1.msra.mxu0 0.0
  %1569 = vmatprep.subr.mxu0 0.0
  %1570 = vmatpush1.msra.mxu0 0.0
  %1571 = vmatprep.subr.mxu0 0.0
  %1572 = vmatpush1.msra.mxu0 0.0
  %1573 = vmatprep.subr.mxu0 0.0
  %1574 = vmatpush1.msra.mxu0 0.0
  %1575 = vmatprep.subr.mxu0 0.0
  %1576 = vmatpush1.msra.mxu0 0.0
  %1577 = vmatprep.subr.mxu0 0.0
  %1578 = vmatpush1.msra.mxu0 0.0
  %1579 = vmatprep.subr.mxu0 0.0
  %1580 = vmatpush1.msra.mxu0 0.0
  %1581 = vmatprep.subr.mxu0 0.0
  %1582 = vmatpush1.msra.mxu0 0.0
  %1583 = vmatprep.subr.mxu0 0.0
  %1584 = vmatpush1.msra.mxu0 0.0
  %1585 = vmatprep.subr.mxu0 0.0
  %1586 = vmatpush1.msra.mxu0 0.0
  %1587 = vmatprep.subr.mxu0 0.0
  %1588 = vmatpush1.msra.mxu0 0.0
  %1589 = vmatprep.subr.mxu0 0.0
  %1590 = vmatpush1.msra.mxu0 0.0
  %1591 = vmatprep.subr.mxu0 0.0
  %1592 = vmatpush1.msra.mxu0 0.0
  %1593 = vmatprep.subr.mxu0 0.0
  %1594 = vmatpush1.msra.mxu0 0.0
  %1595 = vmatprep.subr.mxu0 0.0
  %1596 = vmatpush1.msra.mxu0 0.0
  %1597 = vmatprep.subr.mxu0 0.0
  %1598 = vmatpush1.msra.mxu0 0.0
  %1599 = vmatprep.subr.mxu0 0.0
  %1600 = vmatpush1.msra.mxu0 0.0
  %1601 = vmatprep.subr.mxu0 0.0
  %1602 = vmatpush1.msra.mxu0 0.0
  %1603 = vmatprep.subr.mxu0 0.0
  %1604 = vmatpush1.msra.mxu0 0.0
  %1605 = vmatprep.subr.mxu0 0.0
  %1606 = vmatpush1.msra.mxu0 0.0
  %1607 = vmatprep.mubr.f32.mxu0 0.0
  %1608 = vmatmul.mubr.f32.gmra.mrb[0].mxu0 %v1493
  %v1609 = vpop.f32.mrb[0].mxu0
  %v1610 = vadd.f32 0.0, %v1609
  %v1611 = vpop.f32.mrb[0].mxu0
  %1612 = vmatprep.mubr.f32.mxu0 0.0
  %1613 = vmatmul.mubr.f32.gmra.mrb[0].mxu0 %v1496
  %v1614 = vpop.f32.mrb[0].mxu0
  %v1615 = vadd.f32 0.0, %v1614
  %v1616 = vpop.f32.mrb[0].mxu0
  %1617 = vmatprep.mubr.f32.mxu0 0.0
  %1618 = vmatmul.mubr.f32.gmra.mrb[0].mxu0 %v1499
  %v1619 = vpop.f32.mrb[0].mxu0
  %v1620 = vadd.f32 0.0, %v1619
  %v1621 = vpop.f32.mrb[0].mxu0
  %1622 = vmatprep.mubr.f32.mxu0 0.0
  %1623 = vmatmul.mubr.f32.gmra.mrb[0].mxu0 %v1502
  %v1624 = vpop.f32.mrb[0].mxu0
  %v1625 = vadd.f32 0.0, %v1624
  %v1626 = vpop.f32.mrb[0].mxu0
  %1627 = vmatprep.mubr.f32.mxu0 0.0
  %1628 = vmatmul.mubr.f32.gmra.mrb[0].mxu0 %v1505
  %v1629 = vpop.f32.mrb[0].mxu0
  %v1630 = vadd.f32 0.0, %v1629
  %v1631 = vpop.f32.mrb[0].mxu0
  %1632 = vmatprep.mubr.f32.mxu0 0.0
  %1633 = vmatmul.mubr.f32.gmra.mrb[0].mxu0 %v1508
  %v1634 = vpop.f32.mrb[0].mxu0
  %v1635 = vadd.f32 0.0, %v1634
  %v1636 = vpop.f32.mrb[0].mxu0
  %1637 = vmatprep.mubr.f32.mxu0 0.0
  %1638 = vmatmul.mubr.f32.gmra.mrb[0].mxu0 %v1511
  %v1639 = vpop.f32.mrb[0].mxu0
  %v1640 = vadd.f32 0.0, %v1639
  %v1641 = vpop.f32.mrb[0].mxu0
  %1642 = vmatprep.mubr.f32.mxu0 0.0
  %1643 = vmatmul.mubr.f32.gmra.mrb[0].mxu0 %v1514
  %v1644 = vpop.f32.mrb[0].mxu0
  %v1645 = vadd.f32 0.0, %v1644
  %v1646 = vpop.f32.mrb[0].mxu0
  %1647 = vmatprep.mubr.f32.mxu0 0.0
  %1648 = vmatmul.mubr.f32.gmra.mrb[0].mxu0 %v1517
  %v1649 = vpop.f32.mrb[0].mxu0
  %v1650 = vadd.f32 0.0, %v1649
  %v1651 = vpop.f32.mrb[0].mxu0
  %1652 = vmatprep.mubr.f32.mxu0 0.0
  %1653 = vmatmul.mubr.f32.gmra.mrb[0].mxu0 %v1520
  %v1654 = vpop.f32.mrb[0].mxu0
  %v1655 = vadd.f32 0.0, %v1654
  %v1656 = vpop.f32.mrb[0].mxu0
  %1657 = vmatprep.mubr.f32.mxu0 0.0
  %1658 = vmatmul.mubr.f32.gmra.mrb[0].mxu0 %v1523
  %v1659 = vpop.f32.mrb[0].mxu0
  %v1660 = vadd.f32 0.0, %v1659
  %v1661 = vpop.f32.mrb[0].mxu0
  %1662 = vmatprep.mubr.f32.mxu0 0.0
  %1663 = vmatmul.mubr.f32.gmra.mrb[0].mxu0 %v1526
  %v1664 = vpop.f32.mrb[0].mxu0
  %v1665 = vadd.f32 0.0, %v1664
  %v1666 = vpop.f32.mrb[0].mxu0
  %1667 = vmatprep.mubr.f32.mxu0 0.0
  %1668 = vmatmul.mubr.f32.gmra.mrb[0].mxu0 %v1529
  %v1669 = vpop.f32.mrb[0].mxu0
  %v1670 = vadd.f32 0.0, %v1669
  %v1671 = vpop.f32.mrb[0].mxu0
  %1672 = vmatprep.mubr.f32.mxu0 0.0
  %1673 = vmatmul.mubr.f32.gmra.mrb[0].mxu0 %v1532
  %v1674 = vpop.f32.mrb[0].mxu0
  %v1675 = vadd.f32 0.0, %v1674
  %v1676 = vpop.f32.mrb[0].mxu0
  %1677 = vmatprep.mubr.f32.mxu0 0.0
  %1678 = vmatmul.mubr.f32.gmra.mrb[0].mxu0 %v1535
  %v1679 = vpop.f32.mrb[0].mxu0
  %v1680 = vadd.f32 0.0, %v1679
  %v1681 = vpop.f32.mrb[0].mxu0
  %1682 = vmatprep.mubr.f32.mxu0 0.0
  %1683 = vmatmul.mubr.f32.gmra.mrb[0].mxu0 %v1538
  %v1684 = vpop.f32.mrb[0].mxu0
  %v1685 = vadd.f32 0.0, %v1684
  %v1686 = vpop.f32.mrb[0].mxu0
  %1687 = vdwg.mxu0
  %v1688 = vadd.f32 %v1458, %v1610
  %v1689 = vadd.f32 %v1459, %v1615
  %v1690 = vadd.f32 %v1460, %v1620
  %v1691 = vadd.f32 %v1461, %v1625
  %v1692 = vadd.f32 %v1462, %v1630
  %v1693 = vadd.f32 %v1463, %v1635
  %v1694 = vadd.f32 %v1464, %v1640
  %v1695 = vadd.f32 %v1465, %v1645
  %v1696 = vadd.f32 %v1466, %v1650
  %v1697 = vadd.f32 %v1467, %v1655
  %v1698 = vadd.f32 %v1468, %v1660
  %v1699 = vadd.f32 %v1469, %v1665
  %v1700 = vadd.f32 %v1470, %v1670
  %v1701 = vadd.f32 %v1471, %v1675
  %v1702 = vadd.f32 %v1472, %v1680
  %v1703 = vadd.f32 %v1473, %v1685
  %s1704 = scalar_lea.vmem [#allocation2], 32
  %v1705 = vld [vmem:[%s1704] sm:$0xff]
  %v1706 = vld [vmem:[%s1704 + $0x20] sm:$0xff]
  %v1707 = vld [vmem:[%s1704 + $0x40] sm:$0xff]
  %v1708 = vld [vmem:[%s1704 + $0x60] sm:$0xff]
  %v1709 = vld [vmem:[%s1704 + $0x80] sm:$0xff]
  %v1710 = vld [vmem:[%s1704 + $0xa0] sm:$0xff]
  %v1711 = vld [vmem:[%s1704 + $0xc0] sm:$0xff]
  %v1712 = vld [vmem:[%s1704 + $0xe0] sm:$0xff]
  %v1713 = vld [vmem:[%s1704 + $0x120] sm:$0xff]
  %v1714 = vld [vmem:[%s1704 + $0x140] sm:$0xff]
  %v1715 = vld [vmem:[%s1704 + $0x160] sm:$0xff]
  %v1716 = vld [vmem:[%s1704 + $0x180] sm:$0xff]
  %v1717 = vld [vmem:[%s1704 + $0x1a0] sm:$0xff]
  %v1718 = vld [vmem:[%s1704 + $0x1c0] sm:$0xff]
  %v1719 = vld [vmem:[%s1704 + $0x1e0] sm:$0xff]
  %v1720 = vld [vmem:[%s1704 + $0x200] sm:$0xff]
  %s1721 = scalar_lea.vmem %s1, 24
  %v1722 = vld [vmem:[%s1721] sm:$0xf]
  %v1724 = vsel %vm32, %v1705, 0
  %v1727 = vsel %vm32, %v1706, 0
  %v1730 = vsel %vm32, %v1707, 0
  %v1733 = vsel %vm32, %v1708, 0
  %v1736 = vsel %vm32, %v1709, 0
  %v1739 = vsel %vm32, %v1710, 0
  %v1742 = vsel %vm32, %v1711, 0
  %v1745 = vsel %vm32, %v1712, 0
  %v1748 = vsel %vm32, %v1713, 0
  %v1751 = vsel %vm32, %v1714, 0
  %v1754 = vsel %vm32, %v1715, 0
  %v1757 = vsel %vm32, %v1716, 0
  %v1760 = vsel %vm32, %v1717, 0
  %v1763 = vsel %vm32, %v1718, 0
  %v1766 = vsel %vm32, %v1719, 0
  %v1769 = vsel %vm32, %v1720, 0
  %v1772 = vsel %vm389, %v1722, 0
  %1774 = vmatprep.subr.mxu0 0.0
  %1775 = vmatpush1.msra.mxu0 %v1772
  %1776 = vmatprep.subr.mxu0 0.0
  %1777 = vmatpush1.msra.mxu0 0.0
  %1778 = vmatprep.subr.mxu0 0.0
  %1779 = vmatpush1.msra.mxu0 0.0
  %1780 = vmatprep.subr.mxu0 0.0
  %1781 = vmatpush1.msra.mxu0 0.0
  %1782 = vmatprep.subr.mxu0 0.0
  %1783 = vmatpush1.msra.mxu0 0.0
  %1784 = vmatprep.subr.mxu0 0.0
  %1785 = vmatpush1.msra.mxu0 0.0
  %1786 = vmatprep.subr.mxu0 0.0
  %1787 = vmatpush1.msra.mxu0 0.0
  %1788 = vmatprep.subr.mxu0 0.0
  %1789 = vmatpush1.msra.mxu0 0.0
  %1790 = vmatprep.subr.mxu0 0.0
  %1791 = vmatpush1.msra.mxu0 0.0
  %1792 = vmatprep.subr.mxu0 0.0
  %1793 = vmatpush1.msra.mxu0 0.0
  %1794 = vmatprep.subr.mxu0 0.0
  %1795 = vmatpush1.msra.mxu0 0.0
  %1796 = vmatprep.subr.mxu0 0.0
  %1797 = vmatpush1.msra.mxu0 0.0
  %1798 = vmatprep.subr.mxu0 0.0
  %1799 = vmatpush1.msra.mxu0 0.0
  %1800 = vmatprep.subr.mxu0 0.0
  %1801 = vmatpush1.msra.mxu0 0.0
  %1802 = vmatprep.subr.mxu0 0.0
  %1803 = vmatpush1.msra.mxu0 0.0
  %1804 = vmatprep.subr.mxu0 0.0
  %1805 = vmatpush1.msra.mxu0 0.0
  %1806 = vmatprep.subr.mxu0 0.0
  %1807 = vmatpush1.msra.mxu0 0.0
  %1808 = vmatprep.subr.mxu0 0.0
  %1809 = vmatpush1.msra.mxu0 0.0
  %1810 = vmatprep.subr.mxu0 0.0
  %1811 = vmatpush1.msra.mxu0 0.0
  %1812 = vmatprep.subr.mxu0 0.0
  %1813 = vmatpush1.msra.mxu0 0.0
  %1814 = vmatprep.subr.mxu0 0.0
  %1815 = vmatpush1.msra.mxu0 0.0
  %1816 = vmatprep.subr.mxu0 0.0
  %1817 = vmatpush1.msra.mxu0 0.0
  %1818 = vmatprep.subr.mxu0 0.0
  %1819 = vmatpush1.msra.mxu0 0.0
  %1820 = vmatprep.subr.mxu0 0.0
  %1821 = vmatpush1.msra.mxu0 0.0
  %1822 = vmatprep.subr.mxu0 0.0
  %1823 = vmatpush1.msra.mxu0 0.0
  %1824 = vmatprep.subr.mxu0 0.0
  %1825 = vmatpush1.msra.mxu0 0.0
  %1826 = vmatprep.subr.mxu0 0.0
  %1827 = vmatpush1.msra.mxu0 0.0
  %1828 = vmatprep.subr.mxu0 0.0
  %1829 = vmatpush1.msra.mxu0 0.0
  %1830 = vmatprep.subr.mxu0 0.0
  %1831 = vmatpush1.msra.mxu0 0.0
  %1832 = vmatprep.subr.mxu0 0.0
  %1833 = vmatpush1.msra.mxu0 0.0
  %1834 = vmatprep.subr.mxu0 0.0
  %1835 = vmatpush1.msra.mxu0 0.0
  %1836 = vmatprep.subr.mxu0 0.0
  %1837 = vmatpush1.msra.mxu0 0.0
  %1838 = vmatprep.mubr.f32.mxu0 0.0
  %1839 = vmatmul.mubr.f32.gmra.mrb[0].mxu0 %v1724
  %v1840 = vpop.f32.mrb[0].mxu0
  %v1841 = vadd.f32 0.0, %v1840
  %v1842 = vpop.f32.mrb[0].mxu0
  %1843 = vmatprep.mubr.f32.mxu0 0.0
  %1844 = vmatmul.mubr.f32.gmra.mrb[0].mxu0 %v1727
  %v1845 = vpop.f32.mrb[0].mxu0
  %v1846 = vadd.f32 0.0, %v1845
  %v1847 = vpop.f32.mrb[0].mxu0
  %1848 = vmatprep.mubr.f32.mxu0 0.0
  %1849 = vmatmul.mubr.f32.gmra.mrb[0].mxu0 %v1730
  %v1850 = vpop.f32.mrb[0].mxu0
  %v1851 = vadd.f32 0.0, %v1850
  %v1852 = vpop.f32.mrb[0].mxu0
  %1853 = vmatprep.mubr.f32.mxu0 0.0
  %1854 = vmatmul.mubr.f32.gmra.mrb[0].mxu0 %v1733
  %v1855 = vpop.f32.mrb[0].mxu0
  %v1856 = vadd.f32 0.0, %v1855
  %v1857 = vpop.f32.mrb[0].mxu0
  %1858 = vmatprep.mubr.f32.mxu0 0.0
  %1859 = vmatmul.mubr.f32.gmra.mrb[0].mxu0 %v1736
  %v1860 = vpop.f32.mrb[0].mxu0
  %v1861 = vadd.f32 0.0, %v1860
  %v1862 = vpop.f32.mrb[0].mxu0
  %1863 = vmatprep.mubr.f32.mxu0 0.0
  %1864 = vmatmul.mubr.f32.gmra.mrb[0].mxu0 %v1739
  %v1865 = vpop.f32.mrb[0].mxu0
  %v1866 = vadd.f32 0.0, %v1865
  %v1867 = vpop.f32.mrb[0].mxu0
  %1868 = vmatprep.mubr.f32.mxu0 0.0
  %1869 = vmatmul.mubr.f32.gmra.mrb[0].mxu0 %v1742
  %v1870 = vpop.f32.mrb[0].mxu0
  %v1871 = vadd.f32 0.0, %v1870
  %v1872 = vpop.f32.mrb[0].mxu0
  %1873 = vmatprep.mubr.f32.mxu0 0.0
  %1874 = vmatmul.mubr.f32.gmra.mrb[0].mxu0 %v1745
  %v1875 = vpop.f32.mrb[0].mxu0
  %v1876 = vadd.f32 0.0, %v1875
  %v1877 = vpop.f32.mrb[0].mxu0
  %1878 = vmatprep.mubr.f32.mxu0 0.0
  %1879 = vmatmul.mubr.f32.gmra.mrb[0].mxu0 %v1748
  %v1880 = vpop.f32.mrb[0].mxu0
  %v1881 = vadd.f32 0.0, %v1880
  %v1882 = vpop.f32.mrb[0].mxu0
  %1883 = vmatprep.mubr.f32.mxu0 0.0
  %1884 = vmatmul.mubr.f32.gmra.mrb[0].mxu0 %v1751
  %v1885 = vpop.f32.mrb[0].mxu0
  %v1886 = vadd.f32 0.0, %v1885
  %v1887 = vpop.f32.mrb[0].mxu0
  %1888 = vmatprep.mubr.f32.mxu0 0.0
  %1889 = vmatmul.mubr.f32.gmra.mrb[0].mxu0 %v1754
  %v1890 = vpop.f32.mrb[0].mxu0
  %v1891 = vadd.f32 0.0, %v1890
  %v1892 = vpop.f32.mrb[0].mxu0
  %1893 = vmatprep.mubr.f32.mxu0 0.0
  %1894 = vmatmul.mubr.f32.gmra.mrb[0].mxu0 %v1757
  %v1895 = vpop.f32.mrb[0].mxu0
  %v1896 = vadd.f32 0.0, %v1895
  %v1897 = vpop.f32.mrb[0].mxu0
  %1898 = vmatprep.mubr.f32.mxu0 0.0
  %1899 = vmatmul.mubr.f32.gmra.mrb[0].mxu0 %v1760
  %v1900 = vpop.f32.mrb[0].mxu0
  %v1901 = vadd.f32 0.0, %v1900
  %v1902 = vpop.f32.mrb[0].mxu0
  %1903 = vmatprep.mubr.f32.mxu0 0.0
  %1904 = vmatmul.mubr.f32.gmra.mrb[0].mxu0 %v1763
  %v1905 = vpop.f32.mrb[0].mxu0
  %v1906 = vadd.f32 0.0, %v1905
  %v1907 = vpop.f32.mrb[0].mxu0
  %1908 = vmatprep.mubr.f32.mxu0 0.0
  %1909 = vmatmul.mubr.f32.gmra.mrb[0].mxu0 %v1766
  %v1910 = vpop.f32.mrb[0].mxu0
  %v1911 = vadd.f32 0.0, %v1910
  %v1912 = vpop.f32.mrb[0].mxu0
  %1913 = vmatprep.mubr.f32.mxu0 0.0
  %1914 = vmatmul.mubr.f32.gmra.mrb[0].mxu0 %v1769
  %v1915 = vpop.f32.mrb[0].mxu0
  %v1916 = vadd.f32 0.0, %v1915
  %v1917 = vpop.f32.mrb[0].mxu0
  %1918 = vdwg.mxu0
  %v1919 = vadd.f32 %v1688, %v1841
  %v1920 = vadd.f32 %v1689, %v1846
  %v1921 = vadd.f32 %v1690, %v1851
  %v1922 = vadd.f32 %v1691, %v1856
  %v1923 = vadd.f32 %v1692, %v1861
  %v1924 = vadd.f32 %v1693, %v1866
  %v1925 = vadd.f32 %v1694, %v1871
  %v1926 = vadd.f32 %v1695, %v1876
  %v1927 = vadd.f32 %v1696, %v1881
  %v1928 = vadd.f32 %v1697, %v1886
  %v1929 = vadd.f32 %v1698, %v1891
  %v1930 = vadd.f32 %v1699, %v1896
  %v1931 = vadd.f32 %v1700, %v1901
  %v1932 = vadd.f32 %v1701, %v1906
  %v1933 = vadd.f32 %v1702, %v1911
  %v1934 = vadd.f32 %v1703, %v1916
  %s1935 = scalar_lea.vmem [#allocation3], 32
  %v1936 = vld [vmem:[%s1935] sm:$0xff]
  %v1937 = vld [vmem:[%s1935 + $0x20] sm:$0xff]
  %v1938 = vld [vmem:[%s1935 + $0x40] sm:$0xff]
  %v1939 = vld [vmem:[%s1935 + $0x60] sm:$0xff]
  %v1940 = vld [vmem:[%s1935 + $0x80] sm:$0xff]
  %v1941 = vld [vmem:[%s1935 + $0xa0] sm:$0xff]
  %v1942 = vld [vmem:[%s1935 + $0xc0] sm:$0xff]
  %v1943 = vld [vmem:[%s1935 + $0xe0] sm:$0xff]
  %v1944 = vld [vmem:[%s1935 + $0x120] sm:$0xff]
  %v1945 = vld [vmem:[%s1935 + $0x140] sm:$0xff]
  %v1946 = vld [vmem:[%s1935 + $0x160] sm:$0xff]
  %v1947 = vld [vmem:[%s1935 + $0x180] sm:$0xff]
  %v1948 = vld [vmem:[%s1935 + $0x1a0] sm:$0xff]
  %v1949 = vld [vmem:[%s1935 + $0x1c0] sm:$0xff]
  %v1950 = vld [vmem:[%s1935 + $0x1e0] sm:$0xff]
  %v1951 = vld [vmem:[%s1935 + $0x200] sm:$0xff]
  %s1952 = scalar_lea.vmem %s1, 28
  %v1953 = vld [vmem:[%s1952] sm:$0xf]
  %v1955 = vsel %vm32, %v1936, 0
  %v1958 = vsel %vm32, %v1937, 0
  %v1961 = vsel %vm32, %v1938, 0
  %v1964 = vsel %vm32, %v1939, 0
  %v1967 = vsel %vm32, %v1940, 0
  %v1970 = vsel %vm32, %v1941, 0
  %v1973 = vsel %vm32, %v1942, 0
  %v1976 = vsel %vm32, %v1943, 0
  %v1979 = vsel %vm32, %v1944, 0
  %v1982 = vsel %vm32, %v1945, 0
  %v1985 = vsel %vm32, %v1946, 0
  %v1988 = vsel %vm32, %v1947, 0
  %v1991 = vsel %vm32, %v1948, 0
  %v1994 = vsel %vm32, %v1949, 0
  %v1997 = vsel %vm32, %v1950, 0
  %v2000 = vsel %vm32, %v1951, 0
  %v2003 = vsel %vm389, %v1953, 0
  %2005 = vmatprep.subr.mxu0 0.0
  %2006 = vmatpush1.msra.mxu0 %v2003
  %2007 = vmatprep.subr.mxu0 0.0
  %2008 = vmatpush1.msra.mxu0 0.0
  %2009 = vmatprep.subr.mxu0 0.0
  %2010 = vmatpush1.msra.mxu0 0.0
  %2011 = vmatprep.subr.mxu0 0.0
  %2012 = vmatpush1.msra.mxu0 0.0
  %2013 = vmatprep.subr.mxu0 0.0
  %2014 = vmatpush1.msra.mxu0 0.0
  %2015 = vmatprep.subr.mxu0 0.0
  %2016 = vmatpush1.msra.mxu0 0.0
  %2017 = vmatprep.subr.mxu0 0.0
  %2018 = vmatpush1.msra.mxu0 0.0
  %2019 = vmatprep.subr.mxu0 0.0
  %2020 = vmatpush1.msra.mxu0 0.0
  %2021 = vmatprep.subr.mxu0 0.0
  %2022 = vmatpush1.msra.mxu0 0.0
  %2023 = vmatprep.subr.mxu0 0.0
  %2024 = vmatpush1.msra.mxu0 0.0
  %2025 = vmatprep.subr.mxu0 0.0
  %2026 = vmatpush1.msra.mxu0 0.0
  %2027 = vmatprep.subr.mxu0 0.0
  %2028 = vmatpush1.msra.mxu0 0.0
  %2029 = vmatprep.subr.mxu0 0.0
  %2030 = vmatpush1.msra.mxu0 0.0
  %2031 = vmatprep.subr.mxu0 0.0
  %2032 = vmatpush1.msra.mxu0 0.0
  %2033 = vmatprep.subr.mxu0 0.0
  %2034 = vmatpush1.msra.mxu0 0.0
  %2035 = vmatprep.subr.mxu0 0.0
  %2036 = vmatpush1.msra.mxu0 0.0
  %2037 = vmatprep.subr.mxu0 0.0
  %2038 = vmatpush1.msra.mxu0 0.0
  %2039 = vmatprep.subr.mxu0 0.0
  %2040 = vmatpush1.msra.mxu0 0.0
  %2041 = vmatprep.subr.mxu0 0.0
  %2042 = vmatpush1.msra.mxu0 0.0
  %2043 = vmatprep.subr.mxu0 0.0
  %2044 = vmatpush1.msra.mxu0 0.0
  %2045 = vmatprep.subr.mxu0 0.0
  %2046 = vmatpush1.msra.mxu0 0.0
  %2047 = vmatprep.subr.mxu0 0.0
  %2048 = vmatpush1.msra.mxu0 0.0
  %2049 = vmatprep.subr.mxu0 0.0
  %2050 = vmatpush1.msra.mxu0 0.0
  %2051 = vmatprep.subr.mxu0 0.0
  %2052 = vmatpush1.msra.mxu0 0.0
  %2053 = vmatprep.subr.mxu0 0.0
  %2054 = vmatpush1.msra.mxu0 0.0
  %2055 = vmatprep.subr.mxu0 0.0
  %2056 = vmatpush1.msra.mxu0 0.0
  %2057 = vmatprep.subr.mxu0 0.0
  %2058 = vmatpush1.msra.mxu0 0.0
  %2059 = vmatprep.subr.mxu0 0.0
  %2060 = vmatpush1.msra.mxu0 0.0
  %2061 = vmatprep.subr.mxu0 0.0
  %2062 = vmatpush1.msra.mxu0 0.0
  %2063 = vmatprep.subr.mxu0 0.0
  %2064 = vmatpush1.msra.mxu0 0.0
  %2065 = vmatprep.subr.mxu0 0.0
  %2066 = vmatpush1.msra.mxu0 0.0
  %2067 = vmatprep.subr.mxu0 0.0
  %2068 = vmatpush1.msra.mxu0 0.0
  %2069 = vmatprep.mubr.f32.mxu0 0.0
  %2070 = vmatmul.mubr.f32.gmra.mrb[0].mxu0 %v1955
  %v2071 = vpop.f32.mrb[0].mxu0
  %v2072 = vadd.f32 0.0, %v2071
  %v2073 = vpop.f32.mrb[0].mxu0
  %2074 = vmatprep.mubr.f32.mxu0 0.0
  %2075 = vmatmul.mubr.f32.gmra.mrb[0].mxu0 %v1958
  %v2076 = vpop.f32.mrb[0].mxu0
  %v2077 = vadd.f32 0.0, %v2076
  %v2078 = vpop.f32.mrb[0].mxu0
  %2079 = vmatprep.mubr.f32.mxu0 0.0
  %2080 = vmatmul.mubr.f32.gmra.mrb[0].mxu0 %v1961
  %v2081 = vpop.f32.mrb[0].mxu0
  %v2082 = vadd.f32 0.0, %v2081
  %v2083 = vpop.f32.mrb[0].mxu0
  %2084 = vmatprep.mubr.f32.mxu0 0.0
  %2085 = vmatmul.mubr.f32.gmra.mrb[0].mxu0 %v1964
  %v2086 = vpop.f32.mrb[0].mxu0
  %v2087 = vadd.f32 0.0, %v2086
  %v2088 = vpop.f32.mrb[0].mxu0
  %2089 = vmatprep.mubr.f32.mxu0 0.0
  %2090 = vmatmul.mubr.f32.gmra.mrb[0].mxu0 %v1967
  %v2091 = vpop.f32.mrb[0].mxu0
  %v2092 = vadd.f32 0.0, %v2091
  %v2093 = vpop.f32.mrb[0].mxu0
  %2094 = vmatprep.mubr.f32.mxu0 0.0
  %2095 = vmatmul.mubr.f32.gmra.mrb[0].mxu0 %v1970
  %v2096 = vpop.f32.mrb[0].mxu0
  %v2097 = vadd.f32 0.0, %v2096
  %v2098 = vpop.f32.mrb[0].mxu0
  %2099 = vmatprep.mubr.f32.mxu0 0.0
  %2100 = vmatmul.mubr.f32.gmra.mrb[0].mxu0 %v1973
  %v2101 = vpop.f32.mrb[0].mxu0
  %v2102 = vadd.f32 0.0, %v2101
  %v2103 = vpop.f32.mrb[0].mxu0
  %2104 = vmatprep.mubr.f32.mxu0 0.0
  %2105 = vmatmul.mubr.f32.gmra.mrb[0].mxu0 %v1976
  %v2106 = vpop.f32.mrb[0].mxu0
  %v2107 = vadd.f32 0.0, %v2106
  %v2108 = vpop.f32.mrb[0].mxu0
  %2109 = vmatprep.mubr.f32.mxu0 0.0
  %2110 = vmatmul.mubr.f32.gmra.mrb[0].mxu0 %v1979
  %v2111 = vpop.f32.mrb[0].mxu0
  %v2112 = vadd.f32 0.0, %v2111
  %v2113 = vpop.f32.mrb[0].mxu0
  %2114 = vmatprep.mubr.f32.mxu0 0.0
  %2115 = vmatmul.mubr.f32.gmra.mrb[0].mxu0 %v1982
  %v2116 = vpop.f32.mrb[0].mxu0
  %v2117 = vadd.f32 0.0, %v2116
  %v2118 = vpop.f32.mrb[0].mxu0
  %2119 = vmatprep.mubr.f32.mxu0 0.0
  %2120 = vmatmul.mubr.f32.gmra.mrb[0].mxu0 %v1985
  %v2121 = vpop.f32.mrb[0].mxu0
  %v2122 = vadd.f32 0.0, %v2121
  %v2123 = vpop.f32.mrb[0].mxu0
  %2124 = vmatprep.mubr.f32.mxu0 0.0
  %2125 = vmatmul.mubr.f32.gmra.mrb[0].mxu0 %v1988
  %v2126 = vpop.f32.mrb[0].mxu0
  %v2127 = vadd.f32 0.0, %v2126
  %v2128 = vpop.f32.mrb[0].mxu0
  %2129 = vmatprep.mubr.f32.mxu0 0.0
  %2130 = vmatmul.mubr.f32.gmra.mrb[0].mxu0 %v1991
  %v2131 = vpop.f32.mrb[0].mxu0
  %v2132 = vadd.f32 0.0, %v2131
  %v2133 = vpop.f32.mrb[0].mxu0
  %2134 = vmatprep.mubr.f32.mxu0 0.0
  %2135 = vmatmul.mubr.f32.gmra.mrb[0].mxu0 %v1994
  %v2136 = vpop.f32.mrb[0].mxu0
  %v2137 = vadd.f32 0.0, %v2136
  %v2138 = vpop.f32.mrb[0].mxu0
  %2139 = vmatprep.mubr.f32.mxu0 0.0
  %2140 = vmatmul.mubr.f32.gmra.mrb[0].mxu0 %v1997
  %v2141 = vpop.f32.mrb[0].mxu0
  %v2142 = vadd.f32 0.0, %v2141
  %v2143 = vpop.f32.mrb[0].mxu0
  %2144 = vmatprep.mubr.f32.mxu0 0.0
  %2145 = vmatmul.mubr.f32.gmra.mrb[0].mxu0 %v2000
  %v2146 = vpop.f32.mrb[0].mxu0
  %v2147 = vadd.f32 0.0, %v2146
  %v2148 = vpop.f32.mrb[0].mxu0
  %2149 = vdwg.mxu0
  %v2150 = vadd.f32 %v1919, %v2072
  %v2151 = vadd.f32 %v1920, %v2077
  %v2152 = vadd.f32 %v1921, %v2082
  %v2153 = vadd.f32 %v1922, %v2087
  %v2154 = vadd.f32 %v1923, %v2092
  %v2155 = vadd.f32 %v1924, %v2097
  %v2156 = vadd.f32 %v1925, %v2102
  %v2157 = vadd.f32 %v1926, %v2107
  %v2158 = vadd.f32 %v1927, %v2112
  %v2159 = vadd.f32 %v1928, %v2117
  %v2160 = vadd.f32 %v1929, %v2122
  %v2161 = vadd.f32 %v1930, %v2127
  %v2162 = vadd.f32 %v1931, %v2132
  %v2163 = vadd.f32 %v1932, %v2137
  %v2164 = vadd.f32 %v1933, %v2142
  %v2165 = vadd.f32 %v1934, %v2147
  %v2166 = vld [vmem:[%s1704 + $0x1] sm:$0xff]
  %v2167 = vld [vmem:[%s1704 + $0x21] sm:$0xff]
  %v2168 = vld [vmem:[%s1704 + $0x41] sm:$0xff]
  %v2169 = vld [vmem:[%s1704 + $0x61] sm:$0xff]
  %v2170 = vld [vmem:[%s1704 + $0x81] sm:$0xff]
  %v2171 = vld [vmem:[%s1704 + $0xa1] sm:$0xff]
  %v2172 = vld [vmem:[%s1704 + $0xc1] sm:$0xff]
  %v2173 = vld [vmem:[%s1704 + $0xe1] sm:$0xff]
  %v2174 = vld [vmem:[%s1704 + $0x121] sm:$0xff]
  %v2175 = vld [vmem:[%s1704 + $0x141] sm:$0xff]
  %v2176 = vld [vmem:[%s1704 + $0x161] sm:$0xff]
  %v2177 = vld [vmem:[%s1704 + $0x181] sm:$0xff]
  %v2178 = vld [vmem:[%s1704 + $0x1a1] sm:$0xff]
  %v2179 = vld [vmem:[%s1704 + $0x1c1] sm:$0xff]
  %v2180 = vld [vmem:[%s1704 + $0x1e1] sm:$0xff]
  %v2181 = vld [vmem:[%s1704 + $0x201] sm:$0xff]
  %s2182 = scalar_lea.vmem %s1, 32
  %v2183 = vld [vmem:[%s2182] sm:$0xf]
  %v2185 = vsel %vm32, %v2166, 0
  %v2188 = vsel %vm32, %v2167, 0
  %v2191 = vsel %vm32, %v2168, 0
  %v2194 = vsel %vm32, %v2169, 0
  %v2197 = vsel %vm32, %v2170, 0
  %v2200 = vsel %vm32, %v2171, 0
  %v2203 = vsel %vm32, %v2172, 0
  %v2206 = vsel %vm32, %v2173, 0
  %v2209 = vsel %vm32, %v2174, 0
  %v2212 = vsel %vm32, %v2175, 0
  %v2215 = vsel %vm32, %v2176, 0
  %v2218 = vsel %vm32, %v2177, 0
  %v2221 = vsel %vm32, %v2178, 0
  %v2224 = vsel %vm32, %v2179, 0
  %v2227 = vsel %vm32, %v2180, 0
  %v2230 = vsel %vm32, %v2181, 0
  %v2233 = vsel %vm389, %v2183, 0
  %2235 = vmatprep.subr.mxu0 0.0
  %2236 = vmatpush1.msra.mxu0 %v2233
  %2237 = vmatprep.subr.mxu0 0.0
  %2238 = vmatpush1.msra.mxu0 0.0
  %2239 = vmatprep.subr.mxu0 0.0
  %2240 = vmatpush1.msra.mxu0 0.0
  %2241 = vmatprep.subr.mxu0 0.0
  %2242 = vmatpush1.msra.mxu0 0.0
  %2243 = vmatprep.subr.mxu0 0.0
  %2244 = vmatpush1.msra.mxu0 0.0
  %2245 = vmatprep.subr.mxu0 0.0
  %2246 = vmatpush1.msra.mxu0 0.0
  %2247 = vmatprep.subr.mxu0 0.0
  %2248 = vmatpush1.msra.mxu0 0.0
  %2249 = vmatprep.subr.mxu0 0.0
  %2250 = vmatpush1.msra.mxu0 0.0
  %2251 = vmatprep.subr.mxu0 0.0
  %2252 = vmatpush1.msra.mxu0 0.0
  %2253 = vmatprep.subr.mxu0 0.0
  %2254 = vmatpush1.msra.mxu0 0.0
  %2255 = vmatprep.subr.mxu0 0.0
  %2256 = vmatpush1.msra.mxu0 0.0
  %2257 = vmatprep.subr.mxu0 0.0
  %2258 = vmatpush1.msra.mxu0 0.0
  %2259 = vmatprep.subr.mxu0 0.0
  %2260 = vmatpush1.msra.mxu0 0.0
  %2261 = vmatprep.subr.mxu0 0.0
  %2262 = vmatpush1.msra.mxu0 0.0
  %2263 = vmatprep.subr.mxu0 0.0
  %2264 = vmatpush1.msra.mxu0 0.0
  %2265 = vmatprep.subr.mxu0 0.0
  %2266 = vmatpush1.msra.mxu0 0.0
  %2267 = vmatprep.subr.mxu0 0.0
  %2268 = vmatpush1.msra.mxu0 0.0
  %2269 = vmatprep.subr.mxu0 0.0
  %2270 = vmatpush1.msra.mxu0 0.0
  %2271 = vmatprep.subr.mxu0 0.0
  %2272 = vmatpush1.msra.mxu0 0.0
  %2273 = vmatprep.subr.mxu0 0.0
  %2274 = vmatpush1.msra.mxu0 0.0
  %2275 = vmatprep.subr.mxu0 0.0
  %2276 = vmatpush1.msra.mxu0 0.0
  %2277 = vmatprep.subr.mxu0 0.0
  %2278 = vmatpush1.msra.mxu0 0.0
  %2279 = vmatprep.subr.mxu0 0.0
  %2280 = vmatpush1.msra.mxu0 0.0
  %2281 = vmatprep.subr.mxu0 0.0
  %2282 = vmatpush1.msra.mxu0 0.0
  %2283 = vmatprep.subr.mxu0 0.0
  %2284 = vmatpush1.msra.mxu0 0.0
  %2285 = vmatprep.subr.mxu0 0.0
  %2286 = vmatpush1.msra.mxu0 0.0
  %2287 = vmatprep.subr.mxu0 0.0
  %2288 = vmatpush1.msra.mxu0 0.0
  %2289 = vmatprep.subr.mxu0 0.0
  %2290 = vmatpush1.msra.mxu0 0.0
  %2291 = vmatprep.subr.mxu0 0.0
  %2292 = vmatpush1.msra.mxu0 0.0
  %2293 = vmatprep.subr.mxu0 0.0
  %2294 = vmatpush1.msra.mxu0 0.0
  %2295 = vmatprep.subr.mxu0 0.0
  %2296 = vmatpush1.msra.mxu0 0.0
  %2297 = vmatprep.subr.mxu0 0.0
  %2298 = vmatpush1.msra.mxu0 0.0
  %2299 = vmatprep.mubr.f32.mxu0 0.0
  %2300 = vmatmul.mubr.f32.gmra.mrb[0].mxu0 %v2185
  %v2301 = vpop.f32.mrb[0].mxu0
  %v2302 = vadd.f32 0.0, %v2301
  %v2303 = vpop.f32.mrb[0].mxu0
  %2304 = vmatprep.mubr.f32.mxu0 0.0
  %2305 = vmatmul.mubr.f32.gmra.mrb[0].mxu0 %v2188
  %v2306 = vpop.f32.mrb[0].mxu0
  %v2307 = vadd.f32 0.0, %v2306
  %v2308 = vpop.f32.mrb[0].mxu0
  %2309 = vmatprep.mubr.f32.mxu0 0.0
  %2310 = vmatmul.mubr.f32.gmra.mrb[0].mxu0 %v2191
  %v2311 = vpop.f32.mrb[0].mxu0
  %v2312 = vadd.f32 0.0, %v2311
  %v2313 = vpop.f32.mrb[0].mxu0
  %2314 = vmatprep.mubr.f32.mxu0 0.0
  %2315 = vmatmul.mubr.f32.gmra.mrb[0].mxu0 %v2194
  %v2316 = vpop.f32.mrb[0].mxu0
  %v2317 = vadd.f32 0.0, %v2316
  %v2318 = vpop.f32.mrb[0].mxu0
  %2319 = vmatprep.mubr.f32.mxu0 0.0
  %2320 = vmatmul.mubr.f32.gmra.mrb[0].mxu0 %v2197
  %v2321 = vpop.f32.mrb[0].mxu0
  %v2322 = vadd.f32 0.0, %v2321
  %v2323 = vpop.f32.mrb[0].mxu0
  %2324 = vmatprep.mubr.f32.mxu0 0.0
  %2325 = vmatmul.mubr.f32.gmra.mrb[0].mxu0 %v2200
  %v2326 = vpop.f32.mrb[0].mxu0
  %v2327 = vadd.f32 0.0, %v2326
  %v2328 = vpop.f32.mrb[0].mxu0
  %2329 = vmatprep.mubr.f32.mxu0 0.0
  %2330 = vmatmul.mubr.f32.gmra.mrb[0].mxu0 %v2203
  %v2331 = vpop.f32.mrb[0].mxu0
  %v2332 = vadd.f32 0.0, %v2331
  %v2333 = vpop.f32.mrb[0].mxu0
  %2334 = vmatprep.mubr.f32.mxu0 0.0
  %2335 = vmatmul.mubr.f32.gmra.mrb[0].mxu0 %v2206
  %v2336 = vpop.f32.mrb[0].mxu0
  %v2337 = vadd.f32 0.0, %v2336
  %v2338 = vpop.f32.mrb[0].mxu0
  %2339 = vmatprep.mubr.f32.mxu0 0.0
  %2340 = vmatmul.mubr.f32.gmra.mrb[0].mxu0 %v2209
  %v2341 = vpop.f32.mrb[0].mxu0
  %v2342 = vadd.f32 0.0, %v2341
  %v2343 = vpop.f32.mrb[0].mxu0
  %2344 = vmatprep.mubr.f32.mxu0 0.0
  %2345 = vmatmul.mubr.f32.gmra.mrb[0].mxu0 %v2212
  %v2346 = vpop.f32.mrb[0].mxu0
  %v2347 = vadd.f32 0.0, %v2346
  %v2348 = vpop.f32.mrb[0].mxu0
  %2349 = vmatprep.mubr.f32.mxu0 0.0
  %2350 = vmatmul.mubr.f32.gmra.mrb[0].mxu0 %v2215
  %v2351 = vpop.f32.mrb[0].mxu0
  %v2352 = vadd.f32 0.0, %v2351
  %v2353 = vpop.f32.mrb[0].mxu0
  %2354 = vmatprep.mubr.f32.mxu0 0.0
  %2355 = vmatmul.mubr.f32.gmra.mrb[0].mxu0 %v2218
  %v2356 = vpop.f32.mrb[0].mxu0
  %v2357 = vadd.f32 0.0, %v2356
  %v2358 = vpop.f32.mrb[0].mxu0
  %2359 = vmatprep.mubr.f32.mxu0 0.0
  %2360 = vmatmul.mubr.f32.gmra.mrb[0].mxu0 %v2221
  %v2361 = vpop.f32.mrb[0].mxu0
  %v2362 = vadd.f32 0.0, %v2361
  %v2363 = vpop.f32.mrb[0].mxu0
  %2364 = vmatprep.mubr.f32.mxu0 0.0
  %2365 = vmatmul.mubr.f32.gmra.mrb[0].mxu0 %v2224
  %v2366 = vpop.f32.mrb[0].mxu0
  %v2367 = vadd.f32 0.0, %v2366
  %v2368 = vpop.f32.mrb[0].mxu0
  %2369 = vmatprep.mubr.f32.mxu0 0.0
  %2370 = vmatmul.mubr.f32.gmra.mrb[0].mxu0 %v2227
  %v2371 = vpop.f32.mrb[0].mxu0
  %v2372 = vadd.f32 0.0, %v2371
  %v2373 = vpop.f32.mrb[0].mxu0
  %2374 = vmatprep.mubr.f32.mxu0 0.0
  %2375 = vmatmul.mubr.f32.gmra.mrb[0].mxu0 %v2230
  %v2376 = vpop.f32.mrb[0].mxu0
  %v2377 = vadd.f32 0.0, %v2376
  %v2378 = vpop.f32.mrb[0].mxu0
  %2379 = vdwg.mxu0
  %v2380 = vadd.f32 %v2150, %v2302
  %v2381 = vadd.f32 %v2151, %v2307
  %v2382 = vadd.f32 %v2152, %v2312
  %v2383 = vadd.f32 %v2153, %v2317
  %v2384 = vadd.f32 %v2154, %v2322
  %v2385 = vadd.f32 %v2155, %v2327
  %v2386 = vadd.f32 %v2156, %v2332
  %v2387 = vadd.f32 %v2157, %v2337
  %v2388 = vadd.f32 %v2158, %v2342
  %v2389 = vadd.f32 %v2159, %v2347
  %v2390 = vadd.f32 %v2160, %v2352
  %v2391 = vadd.f32 %v2161, %v2357
  %v2392 = vadd.f32 %v2162, %v2362
  %v2393 = vadd.f32 %v2163, %v2367
  %v2394 = vadd.f32 %v2164, %v2372
  %v2395 = vadd.f32 %v2165, %v2377
  %2396 = vst.msk [vmem:[#allocation4] sm:$0xff] %vm32, 0.0
  %vm2397 = vcmask 25600
  %2398 = vst.msk [vmem:[#allocation4 + $0x8] sm:$0x3] %vm2397, 0.0
  %2399 = vst.msk [vmem:[#allocation4 + $0xa0] sm:$0xff] %vm32, 0.0
  %2400 = vst.msk [vmem:[#allocation4 + $0xa8] sm:$0x3] %vm2397, 0.0
  %s2401 = scalar_lea.vmem [#allocation4], 144
  %2402 = vst.msk [vmem:[%s2401] sm:$0xff] %vm32, 0.0
  %2403 = vst.msk [vmem:[%s2401 + $0x8] sm:$0x3] %vm2397, 0.0
  %2404 = vst.msk [vmem:[%s2401 + $0xa0] sm:$0xff] %vm32, 0.0
  %2405 = vst.msk [vmem:[%s2401 + $0xa8] sm:$0x3] %vm2397, 0.0
  %2406 = vst.msk [vmem:[#allocation4] sm:$0x1] %vm34, 0.0
  %2407 = vst.msk [vmem:[#allocation4 + $0x10] sm:$0x1] %vm34, 0.0
  %2408 = vst.msk [vmem:[#allocation4 + $0x20] sm:$0x1] %vm34, 0.0
  %2409 = vst.msk [vmem:[#allocation4 + $0x30] sm:$0x1] %vm34, 0.0
  %2410 = vst.msk [vmem:[#allocation4 + $0x40] sm:$0x1] %vm34, 0.0
  %2411 = vst.msk [vmem:[#allocation4 + $0x50] sm:$0x1] %vm34, 0.0
  %2412 = vst.msk [vmem:[#allocation4 + $0x60] sm:$0x1] %vm34, 0.0
  %2413 = vst.msk [vmem:[#allocation4 + $0x70] sm:$0x1] %vm34, 0.0
  %2414 = vst.msk [vmem:[#allocation4 + $0x80] sm:$0x1] %vm34, 0.0
  %2415 = vst.msk [vmem:[#allocation4 + $0x90] sm:$0x1] %vm34, 0.0
  %2416 = vst.msk [vmem:[#allocation4 + $0xa0] sm:$0x1] %vm34, 0.0
  %2417 = vst.msk [vmem:[#allocation4 + $0xb0] sm:$0x1] %vm34, 0.0
  %2418 = vst.msk [vmem:[#allocation4 + $0xc0] sm:$0x1] %vm34, 0.0
  %2419 = vst.msk [vmem:[#allocation4 + $0xd0] sm:$0x1] %vm34, 0.0
  %2420 = vst.msk [vmem:[#allocation4 + $0xe0] sm:$0x1] %vm34, 0.0
  %2421 = vst.msk [vmem:[#allocation4 + $0xf0] sm:$0x1] %vm34, 0.0
  %2422 = vst.msk [vmem:[#allocation4 + $0x100] sm:$0x1] %vm34, 0.0
  %2423 = vst.msk [vmem:[#allocation4 + $0x110] sm:$0x1] %vm34, 0.0
  %2424 = vst.msk [vmem:[#allocation4 + $0x120] sm:$0x1] %vm34, 0.0
  %2425 = vst.msk [vmem:[#allocation4 + $0x130] sm:$0x1] %vm34, 0.0
  %2426 = vst.msk [vmem:[#allocation4 + $0x9] sm:$0x1] %vm34, 0.0
  %2427 = vst.msk [vmem:[#allocation4 + $0x19] sm:$0x1] %vm34, 0.0
  %2428 = vst.msk [vmem:[#allocation4 + $0x29] sm:$0x1] %vm34, 0.0
  %2429 = vst.msk [vmem:[#allocation4 + $0x39] sm:$0x1] %vm34, 0.0
  %2430 = vst.msk [vmem:[#allocation4 + $0x49] sm:$0x1] %vm34, 0.0
  %2431 = vst.msk [vmem:[#allocation4 + $0x59] sm:$0x1] %vm34, 0.0
  %2432 = vst.msk [vmem:[#allocation4 + $0x69] sm:$0x1] %vm34, 0.0
  %2433 = vst.msk [vmem:[#allocation4 + $0x79] sm:$0x1] %vm34, 0.0
  %2434 = vst.msk [vmem:[#allocation4 + $0x89] sm:$0x1] %vm34, 0.0
  %2435 = vst.msk [vmem:[#allocation4 + $0x99] sm:$0x1] %vm34, 0.0
  %2436 = vst.msk [vmem:[#allocation4 + $0xa9] sm:$0x1] %vm34, 0.0
  %2437 = vst.msk [vmem:[#allocation4 + $0xb9] sm:$0x1] %vm34, 0.0
  %2438 = vst.msk [vmem:[#allocation4 + $0xc9] sm:$0x1] %vm34, 0.0
  %2439 = vst.msk [vmem:[#allocation4 + $0xd9] sm:$0x1] %vm34, 0.0
  %2440 = vst.msk [vmem:[#allocation4 + $0xe9] sm:$0x1] %vm34, 0.0
  %2441 = vst.msk [vmem:[#allocation4 + $0xf9] sm:$0x1] %vm34, 0.0
  %2442 = vst.msk [vmem:[#allocation4 + $0x109] sm:$0x1] %vm34, 0.0
  %2443 = vst.msk [vmem:[#allocation4 + $0x119] sm:$0x1] %vm34, 0.0
  %2444 = vst.msk [vmem:[#allocation4 + $0x129] sm:$0x1] %vm34, 0.0
  %2445 = vst.msk [vmem:[#allocation4 + $0x139] sm:$0x1] %vm34, 0.0
  %s2446 = scalar_lea.vmem [#allocation4], 16
  %2447 = vst.msk [vmem:[%s2446 + $0x1] sm:$0xff] %vm32, %v2380
  %2448 = vst.msk [vmem:[%s2446 + $0x11] sm:$0xff] %vm32, %v2381
  %2449 = vst.msk [vmem:[%s2446 + $0x21] sm:$0xff] %vm32, %v2382
  %2450 = vst.msk [vmem:[%s2446 + $0x31] sm:$0xff] %vm32, %v2383
  %2451 = vst.msk [vmem:[%s2446 + $0x41] sm:$0xff] %vm32, %v2384
  %2452 = vst.msk [vmem:[%s2446 + $0x51] sm:$0xff] %vm32, %v2385
  %2453 = vst.msk [vmem:[%s2446 + $0x61] sm:$0xff] %vm32, %v2386
  %2454 = vst.msk [vmem:[%s2446 + $0x71] sm:$0xff] %vm32, %v2387
  %2455 = vst.msk [vmem:[%s2446 + $0xa1] sm:$0xff] %vm32, %v2388
  %2456 = vst.msk [vmem:[%s2446 + $0xb1] sm:$0xff] %vm32, %v2389
  %2457 = vst.msk [vmem:[%s2446 + $0xc1] sm:$0xff] %vm32, %v2390
  %2458 = vst.msk [vmem:[%s2446 + $0xd1] sm:$0xff] %vm32, %v2391
  %2459 = vst.msk [vmem:[%s2446 + $0xe1] sm:$0xff] %vm32, %v2392
  %2460 = vst.msk [vmem:[%s2446 + $0xf1] sm:$0xff] %vm32, %v2393
  %2461 = vst.msk [vmem:[%s2446 + $0x101] sm:$0xff] %vm32, %v2394
  %2462 = vst.msk [vmem:[%s2446 + $0x111] sm:$0xff] %vm32, %v2395
  %v2463 = vld [vmem:[#allocation4] sm:$0xff]
  %v2464 = vld [vmem:[#allocation4 + $0x10] sm:$0xff]
  %v2465 = vld [vmem:[#allocation4 + $0x20] sm:$0xff]
  %v2466 = vld [vmem:[#allocation4 + $0x30] sm:$0xff]
  %v2467 = vld [vmem:[#allocation4 + $0x40] sm:$0xff]
  %v2468 = vld [vmem:[#allocation4 + $0x50] sm:$0xff]
  %v2469 = vld [vmem:[#allocation4 + $0x60] sm:$0xff]
  %v2470 = vld [vmem:[#allocation4 + $0x70] sm:$0xff]
  %v2471 = vld [vmem:[#allocation4 + $0xa0] sm:$0xff]
  %v2472 = vld [vmem:[#allocation4 + $0xb0] sm:$0xff]
  %v2473 = vld [vmem:[#allocation4 + $0xc0] sm:$0xff]
  %v2474 = vld [vmem:[#allocation4 + $0xd0] sm:$0xff]
  %v2475 = vld [vmem:[#allocation4 + $0xe0] sm:$0xff]
  %v2476 = vld [vmem:[#allocation4 + $0xf0] sm:$0xff]
  %v2477 = vld [vmem:[#allocation4 + $0x100] sm:$0xff]
  %v2478 = vld [vmem:[#allocation4 + $0x110] sm:$0xff]
  %v2479 = vld [vmem:[%s3] sm:$0xf]
  %v2480 = vld [vmem:[#allocation4 + $0x1] sm:$0xff]
  %v2481 = vld [vmem:[#allocation4 + $0x11] sm:$0xff]
  %v2482 = vld [vmem:[#allocation4 + $0x21] sm:$0xff]
  %v2483 = vld [vmem:[#allocation4 + $0x31] sm:$0xff]
  %v2484 = vld [vmem:[#allocation4 + $0x41] sm:$0xff]
  %v2485 = vld [vmem:[#allocation4 + $0x51] sm:$0xff]
  %v2486 = vld [vmem:[#allocation4 + $0x61] sm:$0xff]
  %v2487 = vld [vmem:[#allocation4 + $0x71] sm:$0xff]
  %v2488 = vld [vmem:[#allocation4 + $0xa1] sm:$0xff]
  %v2489 = vld [vmem:[#allocation4 + $0xb1] sm:$0xff]
  %v2490 = vld [vmem:[#allocation4 + $0xc1] sm:$0xff]
  %v2491 = vld [vmem:[#allocation4 + $0xd1] sm:$0xff]
  %v2492 = vld [vmem:[#allocation4 + $0xe1] sm:$0xff]
  %v2493 = vld [vmem:[#allocation4 + $0xf1] sm:$0xff]
  %v2494 = vld [vmem:[#allocation4 + $0x101] sm:$0xff]
  %v2495 = vld [vmem:[#allocation4 + $0x111] sm:$0xff]
  %s2496 = scalar_lea.vmem %s3, 4
  %v2497 = vld [vmem:[%s2496] sm:$0xf]
  %v2499 = vsel %vm32, %v2480, 0
  %v2502 = vsel %vm32, %v2481, 0
  %v2505 = vsel %vm32, %v2482, 0
  %v2508 = vsel %vm32, %v2483, 0
  %v2511 = vsel %vm32, %v2484, 0
  %v2514 = vsel %vm32, %v2485, 0
  %v2517 = vsel %vm32, %v2486, 0
  %v2520 = vsel %vm32, %v2487, 0
  %v2523 = vsel %vm32, %v2488, 0
  %v2526 = vsel %vm32, %v2489, 0
  %v2529 = vsel %vm32, %v2490, 0
  %v2532 = vsel %vm32, %v2491, 0
  %v2535 = vsel %vm32, %v2492, 0
  %v2538 = vsel %vm32, %v2493, 0
  %v2541 = vsel %vm32, %v2494, 0
  %v2544 = vsel %vm32, %v2495, 0
  %v2547 = vsel %vm389, %v2497, 0
  %2549 = vmatprep.subr.mxu0 0.0
  %2550 = vmatpush1.msra.mxu0 %v2547
  %2551 = vmatprep.subr.mxu0 0.0
  %2552 = vmatpush1.msra.mxu0 0.0
  %2553 = vmatprep.subr.mxu0 0.0
  %2554 = vmatpush1.msra.mxu0 0.0
  %2555 = vmatprep.subr.mxu0 0.0
  %2556 = vmatpush1.msra.mxu0 0.0
  %2557 = vmatprep.subr.mxu0 0.0
  %2558 = vmatpush1.msra.mxu0 0.0
  %2559 = vmatprep.subr.mxu0 0.0
  %2560 = vmatpush1.msra.mxu0 0.0
  %2561 = vmatprep.subr.mxu0 0.0
  %2562 = vmatpush1.msra.mxu0 0.0
  %2563 = vmatprep.subr.mxu0 0.0
  %2564 = vmatpush1.msra.mxu0 0.0
  %2565 = vmatprep.subr.mxu0 0.0
  %2566 = vmatpush1.msra.mxu0 0.0
  %2567 = vmatprep.subr.mxu0 0.0
  %2568 = vmatpush1.msra.mxu0 0.0
  %2569 = vmatprep.subr.mxu0 0.0
  %2570 = vmatpush1.msra.mxu0 0.0
  %2571 = vmatprep.subr.mxu0 0.0
  %2572 = vmatpush1.msra.mxu0 0.0
  %2573 = vmatprep.subr.mxu0 0.0
  %2574 = vmatpush1.msra.mxu0 0.0
  %2575 = vmatprep.subr.mxu0 0.0
  %2576 = vmatpush1.msra.mxu0 0.0
  %2577 = vmatprep.subr.mxu0 0.0
  %2578 = vmatpush1.msra.mxu0 0.0
  %2579 = vmatprep.subr.mxu0 0.0
  %2580 = vmatpush1.msra.mxu0 0.0
  %2581 = vmatprep.subr.mxu0 0.0
  %2582 = vmatpush1.msra.mxu0 0.0
  %2583 = vmatprep.subr.mxu0 0.0
  %2584 = vmatpush1.msra.mxu0 0.0
  %2585 = vmatprep.subr.mxu0 0.0
  %2586 = vmatpush1.msra.mxu0 0.0
  %2587 = vmatprep.subr.mxu0 0.0
  %2588 = vmatpush1.msra.mxu0 0.0
  %2589 = vmatprep.subr.mxu0 0.0
  %2590 = vmatpush1.msra.mxu0 0.0
  %2591 = vmatprep.subr.mxu0 0.0
  %2592 = vmatpush1.msra.mxu0 0.0
  %2593 = vmatprep.subr.mxu0 0.0
  %2594 = vmatpush1.msra.mxu0 0.0
  %2595 = vmatprep.subr.mxu0 0.0
  %2596 = vmatpush1.msra.mxu0 0.0
  %2597 = vmatprep.subr.mxu0 0.0
  %2598 = vmatpush1.msra.mxu0 0.0
  %2599 = vmatprep.subr.mxu0 0.0
  %2600 = vmatpush1.msra.mxu0 0.0
  %2601 = vmatprep.subr.mxu0 0.0
  %2602 = vmatpush1.msra.mxu0 0.0
  %2603 = vmatprep.subr.mxu0 0.0
  %2604 = vmatpush1.msra.mxu0 0.0
  %2605 = vmatprep.subr.mxu0 0.0
  %2606 = vmatpush1.msra.mxu0 0.0
  %2607 = vmatprep.subr.mxu0 0.0
  %2608 = vmatpush1.msra.mxu0 0.0
  %2609 = vmatprep.subr.mxu0 0.0
  %2610 = vmatpush1.msra.mxu0 0.0
  %2611 = vmatprep.subr.mxu0 0.0
  %2612 = vmatpush1.msra.mxu0 0.0
  %2613 = vmatprep.mubr.f32.mxu0 0.0
  %2614 = vmatmul.mubr.f32.gmra.mrb[0].mxu0 %v2499
  %v2615 = vpop.f32.mrb[0].mxu0
  %v2616 = vadd.f32 0.0, %v2615
  %v2617 = vpop.f32.mrb[0].mxu0
  %2618 = vmatprep.mubr.f32.mxu0 0.0
  %2619 = vmatmul.mubr.f32.gmra.mrb[0].mxu0 %v2502
  %v2620 = vpop.f32.mrb[0].mxu0
  %v2621 = vadd.f32 0.0, %v2620
  %v2622 = vpop.f32.mrb[0].mxu0
  %2623 = vmatprep.mubr.f32.mxu0 0.0
  %2624 = vmatmul.mubr.f32.gmra.mrb[0].mxu0 %v2505
  %v2625 = vpop.f32.mrb[0].mxu0
  %v2626 = vadd.f32 0.0, %v2625
  %v2627 = vpop.f32.mrb[0].mxu0
  %2628 = vmatprep.mubr.f32.mxu0 0.0
  %2629 = vmatmul.mubr.f32.gmra.mrb[0].mxu0 %v2508
  %v2630 = vpop.f32.mrb[0].mxu0
  %v2631 = vadd.f32 0.0, %v2630
  %v2632 = vpop.f32.mrb[0].mxu0
  %2633 = vmatprep.mubr.f32.mxu0 0.0
  %2634 = vmatmul.mubr.f32.gmra.mrb[0].mxu0 %v2511
  %v2635 = vpop.f32.mrb[0].mxu0
  %v2636 = vadd.f32 0.0, %v2635
  %v2637 = vpop.f32.mrb[0].mxu0
  %2638 = vmatprep.mubr.f32.mxu0 0.0
  %2639 = vmatmul.mubr.f32.gmra.mrb[0].mxu0 %v2514
  %v2640 = vpop.f32.mrb[0].mxu0
  %v2641 = vadd.f32 0.0, %v2640
  %v2642 = vpop.f32.mrb[0].mxu0
  %2643 = vmatprep.mubr.f32.mxu0 0.0
  %2644 = vmatmul.mubr.f32.gmra.mrb[0].mxu0 %v2517
  %v2645 = vpop.f32.mrb[0].mxu0
  %v2646 = vadd.f32 0.0, %v2645
  %v2647 = vpop.f32.mrb[0].mxu0
  %2648 = vmatprep.mubr.f32.mxu0 0.0
  %2649 = vmatmul.mubr.f32.gmra.mrb[0].mxu0 %v2520
  %v2650 = vpop.f32.mrb[0].mxu0
  %v2651 = vadd.f32 0.0, %v2650
  %v2652 = vpop.f32.mrb[0].mxu0
  %2653 = vmatprep.mubr.f32.mxu0 0.0
  %2654 = vmatmul.mubr.f32.gmra.mrb[0].mxu0 %v2523
  %v2655 = vpop.f32.mrb[0].mxu0
  %v2656 = vadd.f32 0.0, %v2655
  %v2657 = vpop.f32.mrb[0].mxu0
  %2658 = vmatprep.mubr.f32.mxu0 0.0
  %2659 = vmatmul.mubr.f32.gmra.mrb[0].mxu0 %v2526
  %v2660 = vpop.f32.mrb[0].mxu0
  %v2661 = vadd.f32 0.0, %v2660
  %v2662 = vpop.f32.mrb[0].mxu0
  %2663 = vmatprep.mubr.f32.mxu0 0.0
  %2664 = vmatmul.mubr.f32.gmra.mrb[0].mxu0 %v2529
  %v2665 = vpop.f32.mrb[0].mxu0
  %v2666 = vadd.f32 0.0, %v2665
  %v2667 = vpop.f32.mrb[0].mxu0
  %2668 = vmatprep.mubr.f32.mxu0 0.0
  %2669 = vmatmul.mubr.f32.gmra.mrb[0].mxu0 %v2532
  %v2670 = vpop.f32.mrb[0].mxu0
  %v2671 = vadd.f32 0.0, %v2670
  %v2672 = vpop.f32.mrb[0].mxu0
  %2673 = vmatprep.mubr.f32.mxu0 0.0
  %2674 = vmatmul.mubr.f32.gmra.mrb[0].mxu0 %v2535
  %v2675 = vpop.f32.mrb[0].mxu0
  %v2676 = vadd.f32 0.0, %v2675
  %v2677 = vpop.f32.mrb[0].mxu0
  %2678 = vmatprep.mubr.f32.mxu0 0.0
  %2679 = vmatmul.mubr.f32.gmra.mrb[0].mxu0 %v2538
  %v2680 = vpop.f32.mrb[0].mxu0
  %v2681 = vadd.f32 0.0, %v2680
  %v2682 = vpop.f32.mrb[0].mxu0
  %2683 = vmatprep.mubr.f32.mxu0 0.0
  %2684 = vmatmul.mubr.f32.gmra.mrb[0].mxu0 %v2541
  %v2685 = vpop.f32.mrb[0].mxu0
  %v2686 = vadd.f32 0.0, %v2685
  %v2687 = vpop.f32.mrb[0].mxu0
  %2688 = vmatprep.mubr.f32.mxu0 0.0
  %2689 = vmatmul.mubr.f32.gmra.mrb[0].mxu0 %v2544
  %v2690 = vpop.f32.mrb[0].mxu0
  %v2691 = vadd.f32 0.0, %v2690
  %v2692 = vpop.f32.mrb[0].mxu0
  %2693 = vdwg.mxu0
  %v2695 = vsel %vm32, %v2463, 0
  %v2698 = vsel %vm32, %v2464, 0
  %v2701 = vsel %vm32, %v2465, 0
  %v2704 = vsel %vm32, %v2466, 0
  %v2707 = vsel %vm32, %v2467, 0
  %v2710 = vsel %vm32, %v2468, 0
  %v2713 = vsel %vm32, %v2469, 0
  %v2716 = vsel %vm32, %v2470, 0
  %v2719 = vsel %vm32, %v2471, 0
  %v2722 = vsel %vm32, %v2472, 0
  %v2725 = vsel %vm32, %v2473, 0
  %v2728 = vsel %vm32, %v2474, 0
  %v2731 = vsel %vm32, %v2475, 0
  %v2734 = vsel %vm32, %v2476, 0
  %v2737 = vsel %vm32, %v2477, 0
  %v2740 = vsel %vm32, %v2478, 0
  %v2743 = vsel %vm389, %v2479, 0
  %2745 = vmatprep.subr.mxu0 0.0
  %2746 = vmatpush1.msra.mxu0 %v2743
  %2747 = vmatprep.subr.mxu0 0.0
  %2748 = vmatpush1.msra.mxu0 0.0
  %2749 = vmatprep.subr.mxu0 0.0
  %2750 = vmatpush1.msra.mxu0 0.0
  %2751 = vmatprep.subr.mxu0 0.0
  %2752 = vmatpush1.msra.mxu0 0.0
  %2753 = vmatprep.subr.mxu0 0.0
  %2754 = vmatpush1.msra.mxu0 0.0
  %2755 = vmatprep.subr.mxu0 0.0
  %2756 = vmatpush1.msra.mxu0 0.0
  %2757 = vmatprep.subr.mxu0 0.0
  %2758 = vmatpush1.msra.mxu0 0.0
  %2759 = vmatprep.subr.mxu0 0.0
  %2760 = vmatpush1.msra.mxu0 0.0
  %2761 = vmatprep.subr.mxu0 0.0
  %2762 = vmatpush1.msra.mxu0 0.0
  %2763 = vmatprep.subr.mxu0 0.0
  %2764 = vmatpush1.msra.mxu0 0.0
  %2765 = vmatprep.subr.mxu0 0.0
  %2766 = vmatpush1.msra.mxu0 0.0
  %2767 = vmatprep.subr.mxu0 0.0
  %2768 = vmatpush1.msra.mxu0 0.0
  %2769 = vmatprep.subr.mxu0 0.0
  %2770 = vmatpush1.msra.mxu0 0.0
  %2771 = vmatprep.subr.mxu0 0.0
  %2772 = vmatpush1.msra.mxu0 0.0
  %2773 = vmatprep.subr.mxu0 0.0
  %2774 = vmatpush1.msra.mxu0 0.0
  %2775 = vmatprep.subr.mxu0 0.0
  %2776 = vmatpush1.msra.mxu0 0.0
  %2777 = vmatprep.subr.mxu0 0.0
  %2778 = vmatpush1.msra.mxu0 0.0
  %2779 = vmatprep.subr.mxu0 0.0
  %2780 = vmatpush1.msra.mxu0 0.0
  %2781 = vmatprep.subr.mxu0 0.0
  %2782 = vmatpush1.msra.mxu0 0.0
  %2783 = vmatprep.subr.mxu0 0.0
  %2784 = vmatpush1.msra.mxu0 0.0
  %2785 = vmatprep.subr.mxu0 0.0
  %2786 = vmatpush1.msra.mxu0 0.0
  %2787 = vmatprep.subr.mxu0 0.0
  %2788 = vmatpush1.msra.mxu0 0.0
  %2789 = vmatprep.subr.mxu0 0.0
  %2790 = vmatpush1.msra.mxu0 0.0
  %2791 = vmatprep.subr.mxu0 0.0
  %2792 = vmatpush1.msra.mxu0 0.0
  %2793 = vmatprep.subr.mxu0 0.0
  %2794 = vmatpush1.msra.mxu0 0.0
  %2795 = vmatprep.subr.mxu0 0.0
  %2796 = vmatpush1.msra.mxu0 0.0
  %2797 = vmatprep.subr.mxu0 0.0
  %2798 = vmatpush1.msra.mxu0 0.0
  %2799 = vmatprep.subr.mxu0 0.0
  %2800 = vmatpush1.msra.mxu0 0.0
  %2801 = vmatprep.subr.mxu0 0.0
  %2802 = vmatpush1.msra.mxu0 0.0
  %2803 = vmatprep.subr.mxu0 0.0
  %2804 = vmatpush1.msra.mxu0 0.0
  %2805 = vmatprep.subr.mxu0 0.0
  %2806 = vmatpush1.msra.mxu0 0.0
  %2807 = vmatprep.subr.mxu0 0.0
  %2808 = vmatpush1.msra.mxu0 0.0
  %2809 = vmatprep.mubr.f32.mxu0 0.0
  %2810 = vmatmul.mubr.f32.gmra.mrb[0].mxu0 %v2695
  %v2811 = vpop.f32.mrb[0].mxu0
  %v2812 = vadd.f32 %v2616, %v2811
  %v2813 = vpop.f32.mrb[0].mxu0
  %2814 = vmatprep.mubr.f32.mxu0 0.0
  %2815 = vmatmul.mubr.f32.gmra.mrb[0].mxu0 %v2698
  %v2816 = vpop.f32.mrb[0].mxu0
  %v2817 = vadd.f32 %v2621, %v2816
  %v2818 = vpop.f32.mrb[0].mxu0
  %2819 = vmatprep.mubr.f32.mxu0 0.0
  %2820 = vmatmul.mubr.f32.gmra.mrb[0].mxu0 %v2701
  %v2821 = vpop.f32.mrb[0].mxu0
  %v2822 = vadd.f32 %v2626, %v2821
  %v2823 = vpop.f32.mrb[0].mxu0
  %2824 = vmatprep.mubr.f32.mxu0 0.0
  %2825 = vmatmul.mubr.f32.gmra.mrb[0].mxu0 %v2704
  %v2826 = vpop.f32.mrb[0].mxu0
  %v2827 = vadd.f32 %v2631, %v2826
  %v2828 = vpop.f32.mrb[0].mxu0
  %2829 = vmatprep.mubr.f32.mxu0 0.0
  %2830 = vmatmul.mubr.f32.gmra.mrb[0].mxu0 %v2707
  %v2831 = vpop.f32.mrb[0].mxu0
  %v2832 = vadd.f32 %v2636, %v2831
  %v2833 = vpop.f32.mrb[0].mxu0
  %2834 = vmatprep.mubr.f32.mxu0 0.0
  %2835 = vmatmul.mubr.f32.gmra.mrb[0].mxu0 %v2710
  %v2836 = vpop.f32.mrb[0].mxu0
  %v2837 = vadd.f32 %v2641, %v2836
  %v2838 = vpop.f32.mrb[0].mxu0
  %2839 = vmatprep.mubr.f32.mxu0 0.0
  %2840 = vmatmul.mubr.f32.gmra.mrb[0].mxu0 %v2713
  %v2841 = vpop.f32.mrb[0].mxu0
  %v2842 = vadd.f32 %v2646, %v2841
  %v2843 = vpop.f32.mrb[0].mxu0
  %2844 = vmatprep.mubr.f32.mxu0 0.0
  %2845 = vmatmul.mubr.f32.gmra.mrb[0].mxu0 %v2716
  %v2846 = vpop.f32.mrb[0].mxu0
  %v2847 = vadd.f32 %v2651, %v2846
  %v2848 = vpop.f32.mrb[0].mxu0
  %2849 = vmatprep.mubr.f32.mxu0 0.0
  %2850 = vmatmul.mubr.f32.gmra.mrb[0].mxu0 %v2719
  %v2851 = vpop.f32.mrb[0].mxu0
  %v2852 = vadd.f32 %v2656, %v2851
  %v2853 = vpop.f32.mrb[0].mxu0
  %2854 = vmatprep.mubr.f32.mxu0 0.0
  %2855 = vmatmul.mubr.f32.gmra.mrb[0].mxu0 %v2722
  %v2856 = vpop.f32.mrb[0].mxu0
  %v2857 = vadd.f32 %v2661, %v2856
  %v2858 = vpop.f32.mrb[0].mxu0
  %2859 = vmatprep.mubr.f32.mxu0 0.0
  %2860 = vmatmul.mubr.f32.gmra.mrb[0].mxu0 %v2725
  %v2861 = vpop.f32.mrb[0].mxu0
  %v2862 = vadd.f32 %v2666, %v2861
  %v2863 = vpop.f32.mrb[0].mxu0
  %2864 = vmatprep.mubr.f32.mxu0 0.0
  %2865 = vmatmul.mubr.f32.gmra.mrb[0].mxu0 %v2728
  %v2866 = vpop.f32.mrb[0].mxu0
  %v2867 = vadd.f32 %v2671, %v2866
  %v2868 = vpop.f32.mrb[0].mxu0
  %2869 = vmatprep.mubr.f32.mxu0 0.0
  %2870 = vmatmul.mubr.f32.gmra.mrb[0].mxu0 %v2731
  %v2871 = vpop.f32.mrb[0].mxu0
  %v2872 = vadd.f32 %v2676, %v2871
  %v2873 = vpop.f32.mrb[0].mxu0
  %2874 = vmatprep.mubr.f32.mxu0 0.0
  %2875 = vmatmul.mubr.f32.gmra.mrb[0].mxu0 %v2734
  %v2876 = vpop.f32.mrb[0].mxu0
  %v2877 = vadd.f32 %v2681, %v2876
  %v2878 = vpop.f32.mrb[0].mxu0
  %2879 = vmatprep.mubr.f32.mxu0 0.0
  %2880 = vmatmul.mubr.f32.gmra.mrb[0].mxu0 %v2737
  %v2881 = vpop.f32.mrb[0].mxu0
  %v2882 = vadd.f32 %v2686, %v2881
  %v2883 = vpop.f32.mrb[0].mxu0
  %2884 = vmatprep.mubr.f32.mxu0 0.0
  %2885 = vmatmul.mubr.f32.gmra.mrb[0].mxu0 %v2740
  %v2886 = vpop.f32.mrb[0].mxu0
  %v2887 = vadd.f32 %v2691, %v2886
  %v2888 = vpop.f32.mrb[0].mxu0
  %2889 = vdwg.mxu0
  %v2890 = vld [vmem:[#allocation4 + $0x2] sm:$0xff]
  %v2891 = vld [vmem:[#allocation4 + $0x12] sm:$0xff]
  %v2892 = vld [vmem:[#allocation4 + $0x22] sm:$0xff]
  %v2893 = vld [vmem:[#allocation4 + $0x32] sm:$0xff]
  %v2894 = vld [vmem:[#allocation4 + $0x42] sm:$0xff]
  %v2895 = vld [vmem:[#allocation4 + $0x52] sm:$0xff]
  %v2896 = vld [vmem:[#allocation4 + $0x62] sm:$0xff]
  %v2897 = vld [vmem:[#allocation4 + $0x72] sm:$0xff]
  %v2898 = vld [vmem:[#allocation4 + $0xa2] sm:$0xff]
  %v2899 = vld [vmem:[#allocation4 + $0xb2] sm:$0xff]
  %v2900 = vld [vmem:[#allocation4 + $0xc2] sm:$0xff]
  %v2901 = vld [vmem:[#allocation4 + $0xd2] sm:$0xff]
  %v2902 = vld [vmem:[#allocation4 + $0xe2] sm:$0xff]
  %v2903 = vld [vmem:[#allocation4 + $0xf2] sm:$0xff]
  %v2904 = vld [vmem:[#allocation4 + $0x102] sm:$0xff]
  %v2905 = vld [vmem:[#allocation4 + $0x112] sm:$0xff]
  %s2906 = scalar_lea.vmem %s3, 8
  %v2907 = vld [vmem:[%s2906] sm:$0xf]
  %v2909 = vsel %vm32, %v2890, 0
  %v2912 = vsel %vm32, %v2891, 0
  %v2915 = vsel %vm32, %v2892, 0
  %v2918 = vsel %vm32, %v2893, 0
  %v2921 = vsel %vm32, %v2894, 0
  %v2924 = vsel %vm32, %v2895, 0
  %v2927 = vsel %vm32, %v2896, 0
  %v2930 = vsel %vm32, %v2897, 0
  %v2933 = vsel %vm32, %v2898, 0
  %v2936 = vsel %vm32, %v2899, 0
  %v2939 = vsel %vm32, %v2900, 0
  %v2942 = vsel %vm32, %v2901, 0
  %v2945 = vsel %vm32, %v2902, 0
  %v2948 = vsel %vm32, %v2903, 0
  %v2951 = vsel %vm32, %v2904, 0
  %v2954 = vsel %vm32, %v2905, 0
  %v2957 = vsel %vm389, %v2907, 0
  %2959 = vmatprep.subr.mxu0 0.0
  %2960 = vmatpush1.msra.mxu0 %v2957
  %2961 = vmatprep.subr.mxu0 0.0
  %2962 = vmatpush1.msra.mxu0 0.0
  %2963 = vmatprep.subr.mxu0 0.0
  %2964 = vmatpush1.msra.mxu0 0.0
  %2965 = vmatprep.subr.mxu0 0.0
  %2966 = vmatpush1.msra.mxu0 0.0
  %2967 = vmatprep.subr.mxu0 0.0
  %2968 = vmatpush1.msra.mxu0 0.0
  %2969 = vmatprep.subr.mxu0 0.0
  %2970 = vmatpush1.msra.mxu0 0.0
  %2971 = vmatprep.subr.mxu0 0.0
  %2972 = vmatpush1.msra.mxu0 0.0
  %2973 = vmatprep.subr.mxu0 0.0
  %2974 = vmatpush1.msra.mxu0 0.0
  %2975 = vmatprep.subr.mxu0 0.0
  %2976 = vmatpush1.msra.mxu0 0.0
  %2977 = vmatprep.subr.mxu0 0.0
  %2978 = vmatpush1.msra.mxu0 0.0
  %2979 = vmatprep.subr.mxu0 0.0
  %2980 = vmatpush1.msra.mxu0 0.0
  %2981 = vmatprep.subr.mxu0 0.0
  %2982 = vmatpush1.msra.mxu0 0.0
  %2983 = vmatprep.subr.mxu0 0.0
  %2984 = vmatpush1.msra.mxu0 0.0
  %2985 = vmatprep.subr.mxu0 0.0
  %2986 = vmatpush1.msra.mxu0 0.0
  %2987 = vmatprep.subr.mxu0 0.0
  %2988 = vmatpush1.msra.mxu0 0.0
  %2989 = vmatprep.subr.mxu0 0.0
  %2990 = vmatpush1.msra.mxu0 0.0
  %2991 = vmatprep.subr.mxu0 0.0
  %2992 = vmatpush1.msra.mxu0 0.0
  %2993 = vmatprep.subr.mxu0 0.0
  %2994 = vmatpush1.msra.mxu0 0.0
  %2995 = vmatprep.subr.mxu0 0.0
  %2996 = vmatpush1.msra.mxu0 0.0
  %2997 = vmatprep.subr.mxu0 0.0
  %2998 = vmatpush1.msra.mxu0 0.0
  %2999 = vmatprep.subr.mxu0 0.0
  %3000 = vmatpush1.msra.mxu0 0.0
  %3001 = vmatprep.subr.mxu0 0.0
  %3002 = vmatpush1.msra.mxu0 0.0
  %3003 = vmatprep.subr.mxu0 0.0
  %3004 = vmatpush1.msra.mxu0 0.0
  %3005 = vmatprep.subr.mxu0 0.0
  %3006 = vmatpush1.msra.mxu0 0.0
  %3007 = vmatprep.subr.mxu0 0.0
  %3008 = vmatpush1.msra.mxu0 0.0
  %3009 = vmatprep.subr.mxu0 0.0
  %3010 = vmatpush1.msra.mxu0 0.0
  %3011 = vmatprep.subr.mxu0 0.0
  %3012 = vmatpush1.msra.mxu0 0.0
  %3013 = vmatprep.subr.mxu0 0.0
  %3014 = vmatpush1.msra.mxu0 0.0
  %3015 = vmatprep.subr.mxu0 0.0
  %3016 = vmatpush1.msra.mxu0 0.0
  %3017 = vmatprep.subr.mxu0 0.0
  %3018 = vmatpush1.msra.mxu0 0.0
  %3019 = vmatprep.subr.mxu0 0.0
  %3020 = vmatpush1.msra.mxu0 0.0
  %3021 = vmatprep.subr.mxu0 0.0
  %3022 = vmatpush1.msra.mxu0 0.0
  %3023 = vmatprep.mubr.f32.mxu0 0.0
  %3024 = vmatmul.mubr.f32.gmra.mrb[0].mxu0 %v2909
  %v3025 = vpop.f32.mrb[0].mxu0
  %v3026 = vadd.f32 0.0, %v3025
  %v3027 = vpop.f32.mrb[0].mxu0
  %3028 = vmatprep.mubr.f32.mxu0 0.0
  %3029 = vmatmul.mubr.f32.gmra.mrb[0].mxu0 %v2912
  %v3030 = vpop.f32.mrb[0].mxu0
  %v3031 = vadd.f32 0.0, %v3030
  %v3032 = vpop.f32.mrb[0].mxu0
  %3033 = vmatprep.mubr.f32.mxu0 0.0
  %3034 = vmatmul.mubr.f32.gmra.mrb[0].mxu0 %v2915
  %v3035 = vpop.f32.mrb[0].mxu0
  %v3036 = vadd.f32 0.0, %v3035
  %v3037 = vpop.f32.mrb[0].mxu0
  %3038 = vmatprep.mubr.f32.mxu0 0.0
  %3039 = vmatmul.mubr.f32.gmra.mrb[0].mxu0 %v2918
  %v3040 = vpop.f32.mrb[0].mxu0
  %v3041 = vadd.f32 0.0, %v3040
  %v3042 = vpop.f32.mrb[0].mxu0
  %3043 = vmatprep.mubr.f32.mxu0 0.0
  %3044 = vmatmul.mubr.f32.gmra.mrb[0].mxu0 %v2921
  %v3045 = vpop.f32.mrb[0].mxu0
  %v3046 = vadd.f32 0.0, %v3045
  %v3047 = vpop.f32.mrb[0].mxu0
  %3048 = vmatprep.mubr.f32.mxu0 0.0
  %3049 = vmatmul.mubr.f32.gmra.mrb[0].mxu0 %v2924
  %v3050 = vpop.f32.mrb[0].mxu0
  %v3051 = vadd.f32 0.0, %v3050
  %v3052 = vpop.f32.mrb[0].mxu0
  %3053 = vmatprep.mubr.f32.mxu0 0.0
  %3054 = vmatmul.mubr.f32.gmra.mrb[0].mxu0 %v2927
  %v3055 = vpop.f32.mrb[0].mxu0
  %v3056 = vadd.f32 0.0, %v3055
  %v3057 = vpop.f32.mrb[0].mxu0
  %3058 = vmatprep.mubr.f32.mxu0 0.0
  %3059 = vmatmul.mubr.f32.gmra.mrb[0].mxu0 %v2930
  %v3060 = vpop.f32.mrb[0].mxu0
  %v3061 = vadd.f32 0.0, %v3060
  %v3062 = vpop.f32.mrb[0].mxu0
  %3063 = vmatprep.mubr.f32.mxu0 0.0
  %3064 = vmatmul.mubr.f32.gmra.mrb[0].mxu0 %v2933
  %v3065 = vpop.f32.mrb[0].mxu0
  %v3066 = vadd.f32 0.0, %v3065
  %v3067 = vpop.f32.mrb[0].mxu0
  %3068 = vmatprep.mubr.f32.mxu0 0.0
  %3069 = vmatmul.mubr.f32.gmra.mrb[0].mxu0 %v2936
  %v3070 = vpop.f32.mrb[0].mxu0
  %v3071 = vadd.f32 0.0, %v3070
  %v3072 = vpop.f32.mrb[0].mxu0
  %3073 = vmatprep.mubr.f32.mxu0 0.0
  %3074 = vmatmul.mubr.f32.gmra.mrb[0].mxu0 %v2939
  %v3075 = vpop.f32.mrb[0].mxu0
  %v3076 = vadd.f32 0.0, %v3075
  %v3077 = vpop.f32.mrb[0].mxu0
  %3078 = vmatprep.mubr.f32.mxu0 0.0
  %3079 = vmatmul.mubr.f32.gmra.mrb[0].mxu0 %v2942
  %v3080 = vpop.f32.mrb[0].mxu0
  %v3081 = vadd.f32 0.0, %v3080
  %v3082 = vpop.f32.mrb[0].mxu0
  %3083 = vmatprep.mubr.f32.mxu0 0.0
  %3084 = vmatmul.mubr.f32.gmra.mrb[0].mxu0 %v2945
  %v3085 = vpop.f32.mrb[0].mxu0
  %v3086 = vadd.f32 0.0, %v3085
  %v3087 = vpop.f32.mrb[0].mxu0
  %3088 = vmatprep.mubr.f32.mxu0 0.0
  %3089 = vmatmul.mubr.f32.gmra.mrb[0].mxu0 %v2948
  %v3090 = vpop.f32.mrb[0].mxu0
  %v3091 = vadd.f32 0.0, %v3090
  %v3092 = vpop.f32.mrb[0].mxu0
  %3093 = vmatprep.mubr.f32.mxu0 0.0
  %3094 = vmatmul.mubr.f32.gmra.mrb[0].mxu0 %v2951
  %v3095 = vpop.f32.mrb[0].mxu0
  %v3096 = vadd.f32 0.0, %v3095
  %v3097 = vpop.f32.mrb[0].mxu0
  %3098 = vmatprep.mubr.f32.mxu0 0.0
  %3099 = vmatmul.mubr.f32.gmra.mrb[0].mxu0 %v2954
  %v3100 = vpop.f32.mrb[0].mxu0
  %v3101 = vadd.f32 0.0, %v3100
  %v3102 = vpop.f32.mrb[0].mxu0
  %3103 = vdwg.mxu0
  %v3104 = vadd.f32 %v2812, %v3026
  %v3105 = vadd.f32 %v2817, %v3031
  %v3106 = vadd.f32 %v2822, %v3036
  %v3107 = vadd.f32 %v2827, %v3041
  %v3108 = vadd.f32 %v2832, %v3046
  %v3109 = vadd.f32 %v2837, %v3051
  %v3110 = vadd.f32 %v2842, %v3056
  %v3111 = vadd.f32 %v2847, %v3061
  %v3112 = vadd.f32 %v2852, %v3066
  %v3113 = vadd.f32 %v2857, %v3071
  %v3114 = vadd.f32 %v2862, %v3076
  %v3115 = vadd.f32 %v2867, %v3081
  %v3116 = vadd.f32 %v2872, %v3086
  %v3117 = vadd.f32 %v2877, %v3091
  %v3118 = vadd.f32 %v2882, %v3096
  %v3119 = vadd.f32 %v2887, %v3101
  %v3120 = vld [vmem:[%s2446] sm:$0xff]
  %v3121 = vld [vmem:[%s2446 + $0x10] sm:$0xff]
  %v3122 = vld [vmem:[%s2446 + $0x20] sm:$0xff]
  %v3123 = vld [vmem:[%s2446 + $0x30] sm:$0xff]
  %v3124 = vld [vmem:[%s2446 + $0x40] sm:$0xff]
  %v3125 = vld [vmem:[%s2446 + $0x50] sm:$0xff]
  %v3126 = vld [vmem:[%s2446 + $0x60] sm:$0xff]
  %v3127 = vld [vmem:[%s2446 + $0x70] sm:$0xff]
  %v3128 = vld [vmem:[%s2446 + $0xa0] sm:$0xff]
  %v3129 = vld [vmem:[%s2446 + $0xb0] sm:$0xff]
  %v3130 = vld [vmem:[%s2446 + $0xc0] sm:$0xff]
  %v3131 = vld [vmem:[%s2446 + $0xd0] sm:$0xff]
  %v3132 = vld [vmem:[%s2446 + $0xe0] sm:$0xff]
  %v3133 = vld [vmem:[%s2446 + $0xf0] sm:$0xff]
  %v3134 = vld [vmem:[%s2446 + $0x100] sm:$0xff]
  %v3135 = vld [vmem:[%s2446 + $0x110] sm:$0xff]
  %s3136 = scalar_lea.vmem %s3, 12
  %v3137 = vld [vmem:[%s3136] sm:$0xf]
  %v3139 = vsel %vm32, %v3120, 0
  %v3142 = vsel %vm32, %v3121, 0
  %v3145 = vsel %vm32, %v3122, 0
  %v3148 = vsel %vm32, %v3123, 0
  %v3151 = vsel %vm32, %v3124, 0
  %v3154 = vsel %vm32, %v3125, 0
  %v3157 = vsel %vm32, %v3126, 0
  %v3160 = vsel %vm32, %v3127, 0
  %v3163 = vsel %vm32, %v3128, 0
  %v3166 = vsel %vm32, %v3129, 0
  %v3169 = vsel %vm32, %v3130, 0
  %v3172 = vsel %vm32, %v3131, 0
  %v3175 = vsel %vm32, %v3132, 0
  %v3178 = vsel %vm32, %v3133, 0
  %v3181 = vsel %vm32, %v3134, 0
  %v3184 = vsel %vm32, %v3135, 0
  %v3187 = vsel %vm389, %v3137, 0
  %3189 = vmatprep.subr.mxu0 0.0
  %3190 = vmatpush1.msra.mxu0 %v3187
  %3191 = vmatprep.subr.mxu0 0.0
  %3192 = vmatpush1.msra.mxu0 0.0
  %3193 = vmatprep.subr.mxu0 0.0
  %3194 = vmatpush1.msra.mxu0 0.0
  %3195 = vmatprep.subr.mxu0 0.0
  %3196 = vmatpush1.msra.mxu0 0.0
  %3197 = vmatprep.subr.mxu0 0.0
  %3198 = vmatpush1.msra.mxu0 0.0
  %3199 = vmatprep.subr.mxu0 0.0
  %3200 = vmatpush1.msra.mxu0 0.0
  %3201 = vmatprep.subr.mxu0 0.0
  %3202 = vmatpush1.msra.mxu0 0.0
  %3203 = vmatprep.subr.mxu0 0.0
  %3204 = vmatpush1.msra.mxu0 0.0
  %3205 = vmatprep.subr.mxu0 0.0
  %3206 = vmatpush1.msra.mxu0 0.0
  %3207 = vmatprep.subr.mxu0 0.0
  %3208 = vmatpush1.msra.mxu0 0.0
  %3209 = vmatprep.subr.mxu0 0.0
  %3210 = vmatpush1.msra.mxu0 0.0
  %3211 = vmatprep.subr.mxu0 0.0
  %3212 = vmatpush1.msra.mxu0 0.0
  %3213 = vmatprep.subr.mxu0 0.0
  %3214 = vmatpush1.msra.mxu0 0.0
  %3215 = vmatprep.subr.mxu0 0.0
  %3216 = vmatpush1.msra.mxu0 0.0
  %3217 = vmatprep.subr.mxu0 0.0
  %3218 = vmatpush1.msra.mxu0 0.0
  %3219 = vmatprep.subr.mxu0 0.0
  %3220 = vmatpush1.msra.mxu0 0.0
  %3221 = vmatprep.subr.mxu0 0.0
  %3222 = vmatpush1.msra.mxu0 0.0
  %3223 = vmatprep.subr.mxu0 0.0
  %3224 = vmatpush1.msra.mxu0 0.0
  %3225 = vmatprep.subr.mxu0 0.0
  %3226 = vmatpush1.msra.mxu0 0.0
  %3227 = vmatprep.subr.mxu0 0.0
  %3228 = vmatpush1.msra.mxu0 0.0
  %3229 = vmatprep.subr.mxu0 0.0
  %3230 = vmatpush1.msra.mxu0 0.0
  %3231 = vmatprep.subr.mxu0 0.0
  %3232 = vmatpush1.msra.mxu0 0.0
  %3233 = vmatprep.subr.mxu0 0.0
  %3234 = vmatpush1.msra.mxu0 0.0
  %3235 = vmatprep.subr.mxu0 0.0
  %3236 = vmatpush1.msra.mxu0 0.0
  %3237 = vmatprep.subr.mxu0 0.0
  %3238 = vmatpush1.msra.mxu0 0.0
  %3239 = vmatprep.subr.mxu0 0.0
  %3240 = vmatpush1.msra.mxu0 0.0
  %3241 = vmatprep.subr.mxu0 0.0
  %3242 = vmatpush1.msra.mxu0 0.0
  %3243 = vmatprep.subr.mxu0 0.0
  %3244 = vmatpush1.msra.mxu0 0.0
  %3245 = vmatprep.subr.mxu0 0.0
  %3246 = vmatpush1.msra.mxu0 0.0
  %3247 = vmatprep.subr.mxu0 0.0
  %3248 = vmatpush1.msra.mxu0 0.0
  %3249 = vmatprep.subr.mxu0 0.0
  %3250 = vmatpush1.msra.mxu0 0.0
  %3251 = vmatprep.subr.mxu0 0.0
  %3252 = vmatpush1.msra.mxu0 0.0
  %3253 = vmatprep.mubr.f32.mxu0 0.0
  %3254 = vmatmul.mubr.f32.gmra.mrb[0].mxu0 %v3139
  %v3255 = vpop.f32.mrb[0].mxu0
  %v3256 = vadd.f32 0.0, %v3255
  %v3257 = vpop.f32.mrb[0].mxu0
  %3258 = vmatprep.mubr.f32.mxu0 0.0
  %3259 = vmatmul.mubr.f32.gmra.mrb[0].mxu0 %v3142
  %v3260 = vpop.f32.mrb[0].mxu0
  %v3261 = vadd.f32 0.0, %v3260
  %v3262 = vpop.f32.mrb[0].mxu0
  %3263 = vmatprep.mubr.f32.mxu0 0.0
  %3264 = vmatmul.mubr.f32.gmra.mrb[0].mxu0 %v3145
  %v3265 = vpop.f32.mrb[0].mxu0
  %v3266 = vadd.f32 0.0, %v3265
  %v3267 = vpop.f32.mrb[0].mxu0
  %3268 = vmatprep.mubr.f32.mxu0 0.0
  %3269 = vmatmul.mubr.f32.gmra.mrb[0].mxu0 %v3148
  %v3270 = vpop.f32.mrb[0].mxu0
  %v3271 = vadd.f32 0.0, %v3270
  %v3272 = vpop.f32.mrb[0].mxu0
  %3273 = vmatprep.mubr.f32.mxu0 0.0
  %3274 = vmatmul.mubr.f32.gmra.mrb[0].mxu0 %v3151
  %v3275 = vpop.f32.mrb[0].mxu0
  %v3276 = vadd.f32 0.0, %v3275
  %v3277 = vpop.f32.mrb[0].mxu0
  %3278 = vmatprep.mubr.f32.mxu0 0.0
  %3279 = vmatmul.mubr.f32.gmra.mrb[0].mxu0 %v3154
  %v3280 = vpop.f32.mrb[0].mxu0
  %v3281 = vadd.f32 0.0, %v3280
  %v3282 = vpop.f32.mrb[0].mxu0
  %3283 = vmatprep.mubr.f32.mxu0 0.0
  %3284 = vmatmul.mubr.f32.gmra.mrb[0].mxu0 %v3157
  %v3285 = vpop.f32.mrb[0].mxu0
  %v3286 = vadd.f32 0.0, %v3285
  %v3287 = vpop.f32.mrb[0].mxu0
  %3288 = vmatprep.mubr.f32.mxu0 0.0
  %3289 = vmatmul.mubr.f32.gmra.mrb[0].mxu0 %v3160
  %v3290 = vpop.f32.mrb[0].mxu0
  %v3291 = vadd.f32 0.0, %v3290
  %v3292 = vpop.f32.mrb[0].mxu0
  %3293 = vmatprep.mubr.f32.mxu0 0.0
  %3294 = vmatmul.mubr.f32.gmra.mrb[0].mxu0 %v3163
  %v3295 = vpop.f32.mrb[0].mxu0
  %v3296 = vadd.f32 0.0, %v3295
  %v3297 = vpop.f32.mrb[0].mxu0
  %3298 = vmatprep.mubr.f32.mxu0 0.0
  %3299 = vmatmul.mubr.f32.gmra.mrb[0].mxu0 %v3166
  %v3300 = vpop.f32.mrb[0].mxu0
  %v3301 = vadd.f32 0.0, %v3300
  %v3302 = vpop.f32.mrb[0].mxu0
  %3303 = vmatprep.mubr.f32.mxu0 0.0
  %3304 = vmatmul.mubr.f32.gmra.mrb[0].mxu0 %v3169
  %v3305 = vpop.f32.mrb[0].mxu0
  %v3306 = vadd.f32 0.0, %v3305
  %v3307 = vpop.f32.mrb[0].mxu0
  %3308 = vmatprep.mubr.f32.mxu0 0.0
  %3309 = vmatmul.mubr.f32.gmra.mrb[0].mxu0 %v3172
  %v3310 = vpop.f32.mrb[0].mxu0
  %v3311 = vadd.f32 0.0, %v3310
  %v3312 = vpop.f32.mrb[0].mxu0
  %3313 = vmatprep.mubr.f32.mxu0 0.0
  %3314 = vmatmul.mubr.f32.gmra.mrb[0].mxu0 %v3175
  %v3315 = vpop.f32.mrb[0].mxu0
  %v3316 = vadd.f32 0.0, %v3315
  %v3317 = vpop.f32.mrb[0].mxu0
  %3318 = vmatprep.mubr.f32.mxu0 0.0
  %3319 = vmatmul.mubr.f32.gmra.mrb[0].mxu0 %v3178
  %v3320 = vpop.f32.mrb[0].mxu0
  %v3321 = vadd.f32 0.0, %v3320
  %v3322 = vpop.f32.mrb[0].mxu0
  %3323 = vmatprep.mubr.f32.mxu0 0.0
  %3324 = vmatmul.mubr.f32.gmra.mrb[0].mxu0 %v3181
  %v3325 = vpop.f32.mrb[0].mxu0
  %v3326 = vadd.f32 0.0, %v3325
  %v3327 = vpop.f32.mrb[0].mxu0
  %3328 = vmatprep.mubr.f32.mxu0 0.0
  %3329 = vmatmul.mubr.f32.gmra.mrb[0].mxu0 %v3184
  %v3330 = vpop.f32.mrb[0].mxu0
  %v3331 = vadd.f32 0.0, %v3330
  %v3332 = vpop.f32.mrb[0].mxu0
  %3333 = vdwg.mxu0
  %v3334 = vadd.f32 %v3104, %v3256
  %v3335 = vadd.f32 %v3105, %v3261
  %v3336 = vadd.f32 %v3106, %v3266
  %v3337 = vadd.f32 %v3107, %v3271
  %v3338 = vadd.f32 %v3108, %v3276
  %v3339 = vadd.f32 %v3109, %v3281
  %v3340 = vadd.f32 %v3110, %v3286
  %v3341 = vadd.f32 %v3111, %v3291
  %v3342 = vadd.f32 %v3112, %v3296
  %v3343 = vadd.f32 %v3113, %v3301
  %v3344 = vadd.f32 %v3114, %v3306
  %v3345 = vadd.f32 %v3115, %v3311
  %v3346 = vadd.f32 %v3116, %v3316
  %v3347 = vadd.f32 %v3117, %v3321
  %v3348 = vadd.f32 %v3118, %v3326
  %v3349 = vadd.f32 %v3119, %v3331
  %v3350 = vld [vmem:[%s2446 + $0x1] sm:$0xff]
  %v3351 = vld [vmem:[%s2446 + $0x11] sm:$0xff]
  %v3352 = vld [vmem:[%s2446 + $0x21] sm:$0xff]
  %v3353 = vld [vmem:[%s2446 + $0x31] sm:$0xff]
  %v3354 = vld [vmem:[%s2446 + $0x41] sm:$0xff]
  %v3355 = vld [vmem:[%s2446 + $0x51] sm:$0xff]
  %v3356 = vld [vmem:[%s2446 + $0x61] sm:$0xff]
  %v3357 = vld [vmem:[%s2446 + $0x71] sm:$0xff]
  %v3358 = vld [vmem:[%s2446 + $0xa1] sm:$0xff]
  %v3359 = vld [vmem:[%s2446 + $0xb1] sm:$0xff]
  %v3360 = vld [vmem:[%s2446 + $0xc1] sm:$0xff]
  %v3361 = vld [vmem:[%s2446 + $0xd1] sm:$0xff]
  %v3362 = vld [vmem:[%s2446 + $0xe1] sm:$0xff]
  %v3363 = vld [vmem:[%s2446 + $0xf1] sm:$0xff]
  %v3364 = vld [vmem:[%s2446 + $0x101] sm:$0xff]
  %v3365 = vld [vmem:[%s2446 + $0x111] sm:$0xff]
  %s3366 = scalar_lea.vmem %s3, 16
  %v3367 = vld [vmem:[%s3366] sm:$0xf]
  %v3369 = vsel %vm32, %v3350, 0
  %v3372 = vsel %vm32, %v3351, 0
  %v3375 = vsel %vm32, %v3352, 0
  %v3378 = vsel %vm32, %v3353, 0
  %v3381 = vsel %vm32, %v3354, 0
  %v3384 = vsel %vm32, %v3355, 0
  %v3387 = vsel %vm32, %v3356, 0
  %v3390 = vsel %vm32, %v3357, 0
  %v3393 = vsel %vm32, %v3358, 0
  %v3396 = vsel %vm32, %v3359, 0
  %v3399 = vsel %vm32, %v3360, 0
  %v3402 = vsel %vm32, %v3361, 0
  %v3405 = vsel %vm32, %v3362, 0
  %v3408 = vsel %vm32, %v3363, 0
  %v3411 = vsel %vm32, %v3364, 0
  %v3414 = vsel %vm32, %v3365, 0
  %v3417 = vsel %vm389, %v3367, 0
  %3419 = vmatprep.subr.mxu0 0.0
  %3420 = vmatpush1.msra.mxu0 %v3417
  %3421 = vmatprep.subr.mxu0 0.0
  %3422 = vmatpush1.msra.mxu0 0.0
  %3423 = vmatprep.subr.mxu0 0.0
  %3424 = vmatpush1.msra.mxu0 0.0
  %3425 = vmatprep.subr.mxu0 0.0
  %3426 = vmatpush1.msra.mxu0 0.0
  %3427 = vmatprep.subr.mxu0 0.0
  %3428 = vmatpush1.msra.mxu0 0.0
  %3429 = vmatprep.subr.mxu0 0.0
  %3430 = vmatpush1.msra.mxu0 0.0
  %3431 = vmatprep.subr.mxu0 0.0
  %3432 = vmatpush1.msra.mxu0 0.0
  %3433 = vmatprep.subr.mxu0 0.0
  %3434 = vmatpush1.msra.mxu0 0.0
  %3435 = vmatprep.subr.mxu0 0.0
  %3436 = vmatpush1.msra.mxu0 0.0
  %3437 = vmatprep.subr.mxu0 0.0
  %3438 = vmatpush1.msra.mxu0 0.0
  %3439 = vmatprep.subr.mxu0 0.0
  %3440 = vmatpush1.msra.mxu0 0.0
  %3441 = vmatprep.subr.mxu0 0.0
  %3442 = vmatpush1.msra.mxu0 0.0
  %3443 = vmatprep.subr.mxu0 0.0
  %3444 = vmatpush1.msra.mxu0 0.0
  %3445 = vmatprep.subr.mxu0 0.0
  %3446 = vmatpush1.msra.mxu0 0.0
  %3447 = vmatprep.subr.mxu0 0.0
  %3448 = vmatpush1.msra.mxu0 0.0
  %3449 = vmatprep.subr.mxu0 0.0
  %3450 = vmatpush1.msra.mxu0 0.0
  %3451 = vmatprep.subr.mxu0 0.0
  %3452 = vmatpush1.msra.mxu0 0.0
  %3453 = vmatprep.subr.mxu0 0.0
  %3454 = vmatpush1.msra.mxu0 0.0
  %3455 = vmatprep.subr.mxu0 0.0
  %3456 = vmatpush1.msra.mxu0 0.0
  %3457 = vmatprep.subr.mxu0 0.0
  %3458 = vmatpush1.msra.mxu0 0.0
  %3459 = vmatprep.subr.mxu0 0.0
  %3460 = vmatpush1.msra.mxu0 0.0
  %3461 = vmatprep.subr.mxu0 0.0
  %3462 = vmatpush1.msra.mxu0 0.0
  %3463 = vmatprep.subr.mxu0 0.0
  %3464 = vmatpush1.msra.mxu0 0.0
  %3465 = vmatprep.subr.mxu0 0.0
  %3466 = vmatpush1.msra.mxu0 0.0
  %3467 = vmatprep.subr.mxu0 0.0
  %3468 = vmatpush1.msra.mxu0 0.0
  %3469 = vmatprep.subr.mxu0 0.0
  %3470 = vmatpush1.msra.mxu0 0.0
  %3471 = vmatprep.subr.mxu0 0.0
  %3472 = vmatpush1.msra.mxu0 0.0
  %3473 = vmatprep.subr.mxu0 0.0
  %3474 = vmatpush1.msra.mxu0 0.0
  %3475 = vmatprep.subr.mxu0 0.0
  %3476 = vmatpush1.msra.mxu0 0.0
  %3477 = vmatprep.subr.mxu0 0.0
  %3478 = vmatpush1.msra.mxu0 0.0
  %3479 = vmatprep.subr.mxu0 0.0
  %3480 = vmatpush1.msra.mxu0 0.0
  %3481 = vmatprep.subr.mxu0 0.0
  %3482 = vmatpush1.msra.mxu0 0.0
  %3483 = vmatprep.mubr.f32.mxu0 0.0
  %3484 = vmatmul.mubr.f32.gmra.mrb[0].mxu0 %v3369
  %v3485 = vpop.f32.mrb[0].mxu0
  %v3486 = vadd.f32 0.0, %v3485
  %v3487 = vpop.f32.mrb[0].mxu0
  %3488 = vmatprep.mubr.f32.mxu0 0.0
  %3489 = vmatmul.mubr.f32.gmra.mrb[0].mxu0 %v3372
  %v3490 = vpop.f32.mrb[0].mxu0
  %v3491 = vadd.f32 0.0, %v3490
  %v3492 = vpop.f32.mrb[0].mxu0
  %3493 = vmatprep.mubr.f32.mxu0 0.0
  %3494 = vmatmul.mubr.f32.gmra.mrb[0].mxu0 %v3375
  %v3495 = vpop.f32.mrb[0].mxu0
  %v3496 = vadd.f32 0.0, %v3495
  %v3497 = vpop.f32.mrb[0].mxu0
  %3498 = vmatprep.mubr.f32.mxu0 0.0
  %3499 = vmatmul.mubr.f32.gmra.mrb[0].mxu0 %v3378
  %v3500 = vpop.f32.mrb[0].mxu0
  %v3501 = vadd.f32 0.0, %v3500
  %v3502 = vpop.f32.mrb[0].mxu0
  %3503 = vmatprep.mubr.f32.mxu0 0.0
  %3504 = vmatmul.mubr.f32.gmra.mrb[0].mxu0 %v3381
  %v3505 = vpop.f32.mrb[0].mxu0
  %v3506 = vadd.f32 0.0, %v3505
  %v3507 = vpop.f32.mrb[0].mxu0
  %3508 = vmatprep.mubr.f32.mxu0 0.0
  %3509 = vmatmul.mubr.f32.gmra.mrb[0].mxu0 %v3384
  %v3510 = vpop.f32.mrb[0].mxu0
  %v3511 = vadd.f32 0.0, %v3510
  %v3512 = vpop.f32.mrb[0].mxu0
  %3513 = vmatprep.mubr.f32.mxu0 0.0
  %3514 = vmatmul.mubr.f32.gmra.mrb[0].mxu0 %v3387
  %v3515 = vpop.f32.mrb[0].mxu0
  %v3516 = vadd.f32 0.0, %v3515
  %v3517 = vpop.f32.mrb[0].mxu0
  %3518 = vmatprep.mubr.f32.mxu0 0.0
  %3519 = vmatmul.mubr.f32.gmra.mrb[0].mxu0 %v3390
  %v3520 = vpop.f32.mrb[0].mxu0
  %v3521 = vadd.f32 0.0, %v3520
  %v3522 = vpop.f32.mrb[0].mxu0
  %3523 = vmatprep.mubr.f32.mxu0 0.0
  %3524 = vmatmul.mubr.f32.gmra.mrb[0].mxu0 %v3393
  %v3525 = vpop.f32.mrb[0].mxu0
  %v3526 = vadd.f32 0.0, %v3525
  %v3527 = vpop.f32.mrb[0].mxu0
  %3528 = vmatprep.mubr.f32.mxu0 0.0
  %3529 = vmatmul.mubr.f32.gmra.mrb[0].mxu0 %v3396
  %v3530 = vpop.f32.mrb[0].mxu0
  %v3531 = vadd.f32 0.0, %v3530
  %v3532 = vpop.f32.mrb[0].mxu0
  %3533 = vmatprep.mubr.f32.mxu0 0.0
  %3534 = vmatmul.mubr.f32.gmra.mrb[0].mxu0 %v3399
  %v3535 = vpop.f32.mrb[0].mxu0
  %v3536 = vadd.f32 0.0, %v3535
  %v3537 = vpop.f32.mrb[0].mxu0
  %3538 = vmatprep.mubr.f32.mxu0 0.0
  %3539 = vmatmul.mubr.f32.gmra.mrb[0].mxu0 %v3402
  %v3540 = vpop.f32.mrb[0].mxu0
  %v3541 = vadd.f32 0.0, %v3540
  %v3542 = vpop.f32.mrb[0].mxu0
  %3543 = vmatprep.mubr.f32.mxu0 0.0
  %3544 = vmatmul.mubr.f32.gmra.mrb[0].mxu0 %v3405
  %v3545 = vpop.f32.mrb[0].mxu0
  %v3546 = vadd.f32 0.0, %v3545
  %v3547 = vpop.f32.mrb[0].mxu0
  %3548 = vmatprep.mubr.f32.mxu0 0.0
  %3549 = vmatmul.mubr.f32.gmra.mrb[0].mxu0 %v3408
  %v3550 = vpop.f32.mrb[0].mxu0
  %v3551 = vadd.f32 0.0, %v3550
  %v3552 = vpop.f32.mrb[0].mxu0
  %3553 = vmatprep.mubr.f32.mxu0 0.0
  %3554 = vmatmul.mubr.f32.gmra.mrb[0].mxu0 %v3411
  %v3555 = vpop.f32.mrb[0].mxu0
  %v3556 = vadd.f32 0.0, %v3555
  %v3557 = vpop.f32.mrb[0].mxu0
  %3558 = vmatprep.mubr.f32.mxu0 0.0
  %3559 = vmatmul.mubr.f32.gmra.mrb[0].mxu0 %v3414
  %v3560 = vpop.f32.mrb[0].mxu0
  %v3561 = vadd.f32 0.0, %v3560
  %v3562 = vpop.f32.mrb[0].mxu0
  %3563 = vdwg.mxu0
  %v3564 = vadd.f32 %v3334, %v3486
  %v3565 = vadd.f32 %v3335, %v3491
  %v3566 = vadd.f32 %v3336, %v3496
  %v3567 = vadd.f32 %v3337, %v3501
  %v3568 = vadd.f32 %v3338, %v3506
  %v3569 = vadd.f32 %v3339, %v3511
  %v3570 = vadd.f32 %v3340, %v3516
  %v3571 = vadd.f32 %v3341, %v3521
  %v3572 = vadd.f32 %v3342, %v3526
  %v3573 = vadd.f32 %v3343, %v3531
  %v3574 = vadd.f32 %v3344, %v3536
  %v3575 = vadd.f32 %v3345, %v3541
  %v3576 = vadd.f32 %v3346, %v3546
  %v3577 = vadd.f32 %v3347, %v3551
  %v3578 = vadd.f32 %v3348, %v3556
  %v3579 = vadd.f32 %v3349, %v3561
  %v3580 = vld [vmem:[%s2446 + $0x2] sm:$0xff]
  %v3581 = vld [vmem:[%s2446 + $0x12] sm:$0xff]
  %v3582 = vld [vmem:[%s2446 + $0x22] sm:$0xff]
  %v3583 = vld [vmem:[%s2446 + $0x32] sm:$0xff]
  %v3584 = vld [vmem:[%s2446 + $0x42] sm:$0xff]
  %v3585 = vld [vmem:[%s2446 + $0x52] sm:$0xff]
  %v3586 = vld [vmem:[%s2446 + $0x62] sm:$0xff]
  %v3587 = vld [vmem:[%s2446 + $0x72] sm:$0xff]
  %v3588 = vld [vmem:[%s2446 + $0xa2] sm:$0xff]
  %v3589 = vld [vmem:[%s2446 + $0xb2] sm:$0xff]
  %v3590 = vld [vmem:[%s2446 + $0xc2] sm:$0xff]
  %v3591 = vld [vmem:[%s2446 + $0xd2] sm:$0xff]
  %v3592 = vld [vmem:[%s2446 + $0xe2] sm:$0xff]
  %v3593 = vld [vmem:[%s2446 + $0xf2] sm:$0xff]
  %v3594 = vld [vmem:[%s2446 + $0x102] sm:$0xff]
  %v3595 = vld [vmem:[%s2446 + $0x112] sm:$0xff]
  %s3596 = scalar_lea.vmem %s3, 20
  %v3597 = vld [vmem:[%s3596] sm:$0xf]
  %v3599 = vsel %vm32, %v3580, 0
  %v3602 = vsel %vm32, %v3581, 0
  %v3605 = vsel %vm32, %v3582, 0
  %v3608 = vsel %vm32, %v3583, 0
  %v3611 = vsel %vm32, %v3584, 0
  %v3614 = vsel %vm32, %v3585, 0
  %v3617 = vsel %vm32, %v3586, 0
  %v3620 = vsel %vm32, %v3587, 0
  %v3623 = vsel %vm32, %v3588, 0
  %v3626 = vsel %vm32, %v3589, 0
  %v3629 = vsel %vm32, %v3590, 0
  %v3632 = vsel %vm32, %v3591, 0
  %v3635 = vsel %vm32, %v3592, 0
  %v3638 = vsel %vm32, %v3593, 0
  %v3641 = vsel %vm32, %v3594, 0
  %v3644 = vsel %vm32, %v3595, 0
  %v3647 = vsel %vm389, %v3597, 0
  %3649 = vmatprep.subr.mxu0 0.0
  %3650 = vmatpush1.msra.mxu0 %v3647
  %3651 = vmatprep.subr.mxu0 0.0
  %3652 = vmatpush1.msra.mxu0 0.0
  %3653 = vmatprep.subr.mxu0 0.0
  %3654 = vmatpush1.msra.mxu0 0.0
  %3655 = vmatprep.subr.mxu0 0.0
  %3656 = vmatpush1.msra.mxu0 0.0
  %3657 = vmatprep.subr.mxu0 0.0
  %3658 = vmatpush1.msra.mxu0 0.0
  %3659 = vmatprep.subr.mxu0 0.0
  %3660 = vmatpush1.msra.mxu0 0.0
  %3661 = vmatprep.subr.mxu0 0.0
  %3662 = vmatpush1.msra.mxu0 0.0
  %3663 = vmatprep.subr.mxu0 0.0
  %3664 = vmatpush1.msra.mxu0 0.0
  %3665 = vmatprep.subr.mxu0 0.0
  %3666 = vmatpush1.msra.mxu0 0.0
  %3667 = vmatprep.subr.mxu0 0.0
  %3668 = vmatpush1.msra.mxu0 0.0
  %3669 = vmatprep.subr.mxu0 0.0
  %3670 = vmatpush1.msra.mxu0 0.0
  %3671 = vmatprep.subr.mxu0 0.0
  %3672 = vmatpush1.msra.mxu0 0.0
  %3673 = vmatprep.subr.mxu0 0.0
  %3674 = vmatpush1.msra.mxu0 0.0
  %3675 = vmatprep.subr.mxu0 0.0
  %3676 = vmatpush1.msra.mxu0 0.0
  %3677 = vmatprep.subr.mxu0 0.0
  %3678 = vmatpush1.msra.mxu0 0.0
  %3679 = vmatprep.subr.mxu0 0.0
  %3680 = vmatpush1.msra.mxu0 0.0
  %3681 = vmatprep.subr.mxu0 0.0
  %3682 = vmatpush1.msra.mxu0 0.0
  %3683 = vmatprep.subr.mxu0 0.0
  %3684 = vmatpush1.msra.mxu0 0.0
  %3685 = vmatprep.subr.mxu0 0.0
  %3686 = vmatpush1.msra.mxu0 0.0
  %3687 = vmatprep.subr.mxu0 0.0
  %3688 = vmatpush1.msra.mxu0 0.0
  %3689 = vmatprep.subr.mxu0 0.0
  %3690 = vmatpush1.msra.mxu0 0.0
  %3691 = vmatprep.subr.mxu0 0.0
  %3692 = vmatpush1.msra.mxu0 0.0
  %3693 = vmatprep.subr.mxu0 0.0
  %3694 = vmatpush1.msra.mxu0 0.0
  %3695 = vmatprep.subr.mxu0 0.0
  %3696 = vmatpush1.msra.mxu0 0.0
  %3697 = vmatprep.subr.mxu0 0.0
  %3698 = vmatpush1.msra.mxu0 0.0
  %3699 = vmatprep.subr.mxu0 0.0
  %3700 = vmatpush1.msra.mxu0 0.0
  %3701 = vmatprep.subr.mxu0 0.0
  %3702 = vmatpush1.msra.mxu0 0.0
  %3703 = vmatprep.subr.mxu0 0.0
  %3704 = vmatpush1.msra.mxu0 0.0
  %3705 = vmatprep.subr.mxu0 0.0
  %3706 = vmatpush1.msra.mxu0 0.0
  %3707 = vmatprep.subr.mxu0 0.0
  %3708 = vmatpush1.msra.mxu0 0.0
  %3709 = vmatprep.subr.mxu0 0.0
  %3710 = vmatpush1.msra.mxu0 0.0
  %3711 = vmatprep.subr.mxu0 0.0
  %3712 = vmatpush1.msra.mxu0 0.0
  %3713 = vmatprep.mubr.f32.mxu0 0.0
  %3714 = vmatmul.mubr.f32.gmra.mrb[0].mxu0 %v3599
  %v3715 = vpop.f32.mrb[0].mxu0
  %v3716 = vadd.f32 0.0, %v3715
  %v3717 = vpop.f32.mrb[0].mxu0
  %3718 = vmatprep.mubr.f32.mxu0 0.0
  %3719 = vmatmul.mubr.f32.gmra.mrb[0].mxu0 %v3602
  %v3720 = vpop.f32.mrb[0].mxu0
  %v3721 = vadd.f32 0.0, %v3720
  %v3722 = vpop.f32.mrb[0].mxu0
  %3723 = vmatprep.mubr.f32.mxu0 0.0
  %3724 = vmatmul.mubr.f32.gmra.mrb[0].mxu0 %v3605
  %v3725 = vpop.f32.mrb[0].mxu0
  %v3726 = vadd.f32 0.0, %v3725
  %v3727 = vpop.f32.mrb[0].mxu0
  %3728 = vmatprep.mubr.f32.mxu0 0.0
  %3729 = vmatmul.mubr.f32.gmra.mrb[0].mxu0 %v3608
  %v3730 = vpop.f32.mrb[0].mxu0
  %v3731 = vadd.f32 0.0, %v3730
  %v3732 = vpop.f32.mrb[0].mxu0
  %3733 = vmatprep.mubr.f32.mxu0 0.0
  %3734 = vmatmul.mubr.f32.gmra.mrb[0].mxu0 %v3611
  %v3735 = vpop.f32.mrb[0].mxu0
  %v3736 = vadd.f32 0.0, %v3735
  %v3737 = vpop.f32.mrb[0].mxu0
  %3738 = vmatprep.mubr.f32.mxu0 0.0
  %3739 = vmatmul.mubr.f32.gmra.mrb[0].mxu0 %v3614
  %v3740 = vpop.f32.mrb[0].mxu0
  %v3741 = vadd.f32 0.0, %v3740
  %v3742 = vpop.f32.mrb[0].mxu0
  %3743 = vmatprep.mubr.f32.mxu0 0.0
  %3744 = vmatmul.mubr.f32.gmra.mrb[0].mxu0 %v3617
  %v3745 = vpop.f32.mrb[0].mxu0
  %v3746 = vadd.f32 0.0, %v3745
  %v3747 = vpop.f32.mrb[0].mxu0
  %3748 = vmatprep.mubr.f32.mxu0 0.0
  %3749 = vmatmul.mubr.f32.gmra.mrb[0].mxu0 %v3620
  %v3750 = vpop.f32.mrb[0].mxu0
  %v3751 = vadd.f32 0.0, %v3750
  %v3752 = vpop.f32.mrb[0].mxu0
  %3753 = vmatprep.mubr.f32.mxu0 0.0
  %3754 = vmatmul.mubr.f32.gmra.mrb[0].mxu0 %v3623
  %v3755 = vpop.f32.mrb[0].mxu0
  %v3756 = vadd.f32 0.0, %v3755
  %v3757 = vpop.f32.mrb[0].mxu0
  %3758 = vmatprep.mubr.f32.mxu0 0.0
  %3759 = vmatmul.mubr.f32.gmra.mrb[0].mxu0 %v3626
  %v3760 = vpop.f32.mrb[0].mxu0
  %v3761 = vadd.f32 0.0, %v3760
  %v3762 = vpop.f32.mrb[0].mxu0
  %3763 = vmatprep.mubr.f32.mxu0 0.0
  %3764 = vmatmul.mubr.f32.gmra.mrb[0].mxu0 %v3629
  %v3765 = vpop.f32.mrb[0].mxu0
  %v3766 = vadd.f32 0.0, %v3765
  %v3767 = vpop.f32.mrb[0].mxu0
  %3768 = vmatprep.mubr.f32.mxu0 0.0
  %3769 = vmatmul.mubr.f32.gmra.mrb[0].mxu0 %v3632
  %v3770 = vpop.f32.mrb[0].mxu0
  %v3771 = vadd.f32 0.0, %v3770
  %v3772 = vpop.f32.mrb[0].mxu0
  %3773 = vmatprep.mubr.f32.mxu0 0.0
  %3774 = vmatmul.mubr.f32.gmra.mrb[0].mxu0 %v3635
  %v3775 = vpop.f32.mrb[0].mxu0
  %v3776 = vadd.f32 0.0, %v3775
  %v3777 = vpop.f32.mrb[0].mxu0
  %3778 = vmatprep.mubr.f32.mxu0 0.0
  %3779 = vmatmul.mubr.f32.gmra.mrb[0].mxu0 %v3638
  %v3780 = vpop.f32.mrb[0].mxu0
  %v3781 = vadd.f32 0.0, %v3780
  %v3782 = vpop.f32.mrb[0].mxu0
  %3783 = vmatprep.mubr.f32.mxu0 0.0
  %3784 = vmatmul.mubr.f32.gmra.mrb[0].mxu0 %v3641
  %v3785 = vpop.f32.mrb[0].mxu0
  %v3786 = vadd.f32 0.0, %v3785
  %v3787 = vpop.f32.mrb[0].mxu0
  %3788 = vmatprep.mubr.f32.mxu0 0.0
  %3789 = vmatmul.mubr.f32.gmra.mrb[0].mxu0 %v3644
  %v3790 = vpop.f32.mrb[0].mxu0
  %v3791 = vadd.f32 0.0, %v3790
  %v3792 = vpop.f32.mrb[0].mxu0
  %3793 = vdwg.mxu0
  %v3794 = vadd.f32 %v3564, %v3716
  %v3795 = vadd.f32 %v3565, %v3721
  %v3796 = vadd.f32 %v3566, %v3726
  %v3797 = vadd.f32 %v3567, %v3731
  %v3798 = vadd.f32 %v3568, %v3736
  %v3799 = vadd.f32 %v3569, %v3741
  %v3800 = vadd.f32 %v3570, %v3746
  %v3801 = vadd.f32 %v3571, %v3751
  %v3802 = vadd.f32 %v3572, %v3756
  %v3803 = vadd.f32 %v3573, %v3761
  %v3804 = vadd.f32 %v3574, %v3766
  %v3805 = vadd.f32 %v3575, %v3771
  %v3806 = vadd.f32 %v3576, %v3776
  %v3807 = vadd.f32 %v3577, %v3781
  %v3808 = vadd.f32 %v3578, %v3786
  %v3809 = vadd.f32 %v3579, %v3791
  %s3810 = scalar_lea.vmem [#allocation4], 32
  %v3811 = vld [vmem:[%s3810] sm:$0xff]
  %v3812 = vld [vmem:[%s3810 + $0x10] sm:$0xff]
  %v3813 = vld [vmem:[%s3810 + $0x20] sm:$0xff]
  %v3814 = vld [vmem:[%s3810 + $0x30] sm:$0xff]
  %v3815 = vld [vmem:[%s3810 + $0x40] sm:$0xff]
  %v3816 = vld [vmem:[%s3810 + $0x50] sm:$0xff]
  %v3817 = vld [vmem:[%s3810 + $0x60] sm:$0xff]
  %v3818 = vld [vmem:[%s3810 + $0x70] sm:$0xff]
  %v3819 = vld [vmem:[%s3810 + $0xa0] sm:$0xff]
  %v3820 = vld [vmem:[%s3810 + $0xb0] sm:$0xff]
  %v3821 = vld [vmem:[%s3810 + $0xc0] sm:$0xff]
  %v3822 = vld [vmem:[%s3810 + $0xd0] sm:$0xff]
  %v3823 = vld [vmem:[%s3810 + $0xe0] sm:$0xff]
  %v3824 = vld [vmem:[%s3810 + $0xf0] sm:$0xff]
  %v3825 = vld [vmem:[%s3810 + $0x100] sm:$0xff]
  %v3826 = vld [vmem:[%s3810 + $0x110] sm:$0xff]
  %s3827 = scalar_lea.vmem %s3, 24
  %v3828 = vld [vmem:[%s3827] sm:$0xf]
  %v3830 = vsel %vm32, %v3811, 0
  %v3833 = vsel %vm32, %v3812, 0
  %v3836 = vsel %vm32, %v3813, 0
  %v3839 = vsel %vm32, %v3814, 0
  %v3842 = vsel %vm32, %v3815, 0
  %v3845 = vsel %vm32, %v3816, 0
  %v3848 = vsel %vm32, %v3817, 0
  %v3851 = vsel %vm32, %v3818, 0
  %v3854 = vsel %vm32, %v3819, 0
  %v3857 = vsel %vm32, %v3820, 0
  %v3860 = vsel %vm32, %v3821, 0
  %v3863 = vsel %vm32, %v3822, 0
  %v3866 = vsel %vm32, %v3823, 0
  %v3869 = vsel %vm32, %v3824, 0
  %v3872 = vsel %vm32, %v3825, 0
  %v3875 = vsel %vm32, %v3826, 0
  %v3878 = vsel %vm389, %v3828, 0
  %3880 = vmatprep.subr.mxu0 0.0
  %3881 = vmatpush1.msra.mxu0 %v3878
  %3882 = vmatprep.subr.mxu0 0.0
  %3883 = vmatpush1.msra.mxu0 0.0
  %3884 = vmatprep.subr.mxu0 0.0
  %3885 = vmatpush1.msra.mxu0 0.0
  %3886 = vmatprep.subr.mxu0 0.0
  %3887 = vmatpush1.msra.mxu0 0.0
  %3888 = vmatprep.subr.mxu0 0.0
  %3889 = vmatpush1.msra.mxu0 0.0
  %3890 = vmatprep.subr.mxu0 0.0
  %3891 = vmatpush1.msra.mxu0 0.0
  %3892 = vmatprep.subr.mxu0 0.0
  %3893 = vmatpush1.msra.mxu0 0.0
  %3894 = vmatprep.subr.mxu0 0.0
  %3895 = vmatpush1.msra.mxu0 0.0
  %3896 = vmatprep.subr.mxu0 0.0
  %3897 = vmatpush1.msra.mxu0 0.0
  %3898 = vmatprep.subr.mxu0 0.0
  %3899 = vmatpush1.msra.mxu0 0.0
  %3900 = vmatprep.subr.mxu0 0.0
  %3901 = vmatpush1.msra.mxu0 0.0
  %3902 = vmatprep.subr.mxu0 0.0
  %3903 = vmatpush1.msra.mxu0 0.0
  %3904 = vmatprep.subr.mxu0 0.0
  %3905 = vmatpush1.msra.mxu0 0.0
  %3906 = vmatprep.subr.mxu0 0.0
  %3907 = vmatpush1.msra.mxu0 0.0
  %3908 = vmatprep.subr.mxu0 0.0
  %3909 = vmatpush1.msra.mxu0 0.0
  %3910 = vmatprep.subr.mxu0 0.0
  %3911 = vmatpush1.msra.mxu0 0.0
  %3912 = vmatprep.subr.mxu0 0.0
  %3913 = vmatpush1.msra.mxu0 0.0
  %3914 = vmatprep.subr.mxu0 0.0
  %3915 = vmatpush1.msra.mxu0 0.0
  %3916 = vmatprep.subr.mxu0 0.0
  %3917 = vmatpush1.msra.mxu0 0.0
  %3918 = vmatprep.subr.mxu0 0.0
  %3919 = vmatpush1.msra.mxu0 0.0
  %3920 = vmatprep.subr.mxu0 0.0
  %3921 = vmatpush1.msra.mxu0 0.0
  %3922 = vmatprep.subr.mxu0 0.0
  %3923 = vmatpush1.msra.mxu0 0.0
  %3924 = vmatprep.subr.mxu0 0.0
  %3925 = vmatpush1.msra.mxu0 0.0
  %3926 = vmatprep.subr.mxu0 0.0
  %3927 = vmatpush1.msra.mxu0 0.0
  %3928 = vmatprep.subr.mxu0 0.0
  %3929 = vmatpush1.msra.mxu0 0.0
  %3930 = vmatprep.subr.mxu0 0.0
  %3931 = vmatpush1.msra.mxu0 0.0
  %3932 = vmatprep.subr.mxu0 0.0
  %3933 = vmatpush1.msra.mxu0 0.0
  %3934 = vmatprep.subr.mxu0 0.0
  %3935 = vmatpush1.msra.mxu0 0.0
  %3936 = vmatprep.subr.mxu0 0.0
  %3937 = vmatpush1.msra.mxu0 0.0
  %3938 = vmatprep.subr.mxu0 0.0
  %3939 = vmatpush1.msra.mxu0 0.0
  %3940 = vmatprep.subr.mxu0 0.0
  %3941 = vmatpush1.msra.mxu0 0.0
  %3942 = vmatprep.subr.mxu0 0.0
  %3943 = vmatpush1.msra.mxu0 0.0
  %3944 = vmatprep.mubr.f32.mxu0 0.0
  %3945 = vmatmul.mubr.f32.gmra.mrb[0].mxu0 %v3830
  %v3946 = vpop.f32.mrb[0].mxu0
  %v3947 = vadd.f32 0.0, %v3946
  %v3948 = vpop.f32.mrb[0].mxu0
  %3949 = vmatprep.mubr.f32.mxu0 0.0
  %3950 = vmatmul.mubr.f32.gmra.mrb[0].mxu0 %v3833
  %v3951 = vpop.f32.mrb[0].mxu0
  %v3952 = vadd.f32 0.0, %v3951
  %v3953 = vpop.f32.mrb[0].mxu0
  %3954 = vmatprep.mubr.f32.mxu0 0.0
  %3955 = vmatmul.mubr.f32.gmra.mrb[0].mxu0 %v3836
  %v3956 = vpop.f32.mrb[0].mxu0
  %v3957 = vadd.f32 0.0, %v3956
  %v3958 = vpop.f32.mrb[0].mxu0
  %3959 = vmatprep.mubr.f32.mxu0 0.0
  %3960 = vmatmul.mubr.f32.gmra.mrb[0].mxu0 %v3839
  %v3961 = vpop.f32.mrb[0].mxu0
  %v3962 = vadd.f32 0.0, %v3961
  %v3963 = vpop.f32.mrb[0].mxu0
  %3964 = vmatprep.mubr.f32.mxu0 0.0
  %3965 = vmatmul.mubr.f32.gmra.mrb[0].mxu0 %v3842
  %v3966 = vpop.f32.mrb[0].mxu0
  %v3967 = vadd.f32 0.0, %v3966
  %v3968 = vpop.f32.mrb[0].mxu0
  %3969 = vmatprep.mubr.f32.mxu0 0.0
  %3970 = vmatmul.mubr.f32.gmra.mrb[0].mxu0 %v3845
  %v3971 = vpop.f32.mrb[0].mxu0
  %v3972 = vadd.f32 0.0, %v3971
  %v3973 = vpop.f32.mrb[0].mxu0
  %3974 = vmatprep.mubr.f32.mxu0 0.0
  %3975 = vmatmul.mubr.f32.gmra.mrb[0].mxu0 %v3848
  %v3976 = vpop.f32.mrb[0].mxu0
  %v3977 = vadd.f32 0.0, %v3976
  %v3978 = vpop.f32.mrb[0].mxu0
  %3979 = vmatprep.mubr.f32.mxu0 0.0
  %3980 = vmatmul.mubr.f32.gmra.mrb[0].mxu0 %v3851
  %v3981 = vpop.f32.mrb[0].mxu0
  %v3982 = vadd.f32 0.0, %v3981
  %v3983 = vpop.f32.mrb[0].mxu0
  %3984 = vmatprep.mubr.f32.mxu0 0.0
  %3985 = vmatmul.mubr.f32.gmra.mrb[0].mxu0 %v3854
  %v3986 = vpop.f32.mrb[0].mxu0
  %v3987 = vadd.f32 0.0, %v3986
  %v3988 = vpop.f32.mrb[0].mxu0
  %3989 = vmatprep.mubr.f32.mxu0 0.0
  %3990 = vmatmul.mubr.f32.gmra.mrb[0].mxu0 %v3857
  %v3991 = vpop.f32.mrb[0].mxu0
  %v3992 = vadd.f32 0.0, %v3991
  %v3993 = vpop.f32.mrb[0].mxu0
  %3994 = vmatprep.mubr.f32.mxu0 0.0
  %3995 = vmatmul.mubr.f32.gmra.mrb[0].mxu0 %v3860
  %v3996 = vpop.f32.mrb[0].mxu0
  %v3997 = vadd.f32 0.0, %v3996
  %v3998 = vpop.f32.mrb[0].mxu0
  %3999 = vmatprep.mubr.f32.mxu0 0.0
  %4000 = vmatmul.mubr.f32.gmra.mrb[0].mxu0 %v3863
  %v4001 = vpop.f32.mrb[0].mxu0
  %v4002 = vadd.f32 0.0, %v4001
  %v4003 = vpop.f32.mrb[0].mxu0
  %4004 = vmatprep.mubr.f32.mxu0 0.0
  %4005 = vmatmul.mubr.f32.gmra.mrb[0].mxu0 %v3866
  %v4006 = vpop.f32.mrb[0].mxu0
  %v4007 = vadd.f32 0.0, %v4006
  %v4008 = vpop.f32.mrb[0].mxu0
  %4009 = vmatprep.mubr.f32.mxu0 0.0
  %4010 = vmatmul.mubr.f32.gmra.mrb[0].mxu0 %v3869
  %v4011 = vpop.f32.mrb[0].mxu0
  %v4012 = vadd.f32 0.0, %v4011
  %v4013 = vpop.f32.mrb[0].mxu0
  %4014 = vmatprep.mubr.f32.mxu0 0.0
  %4015 = vmatmul.mubr.f32.gmra.mrb[0].mxu0 %v3872
  %v4016 = vpop.f32.mrb[0].mxu0
  %v4017 = vadd.f32 0.0, %v4016
  %v4018 = vpop.f32.mrb[0].mxu0
  %4019 = vmatprep.mubr.f32.mxu0 0.0
  %4020 = vmatmul.mubr.f32.gmra.mrb[0].mxu0 %v3875
  %v4021 = vpop.f32.mrb[0].mxu0
  %v4022 = vadd.f32 0.0, %v4021
  %v4023 = vpop.f32.mrb[0].mxu0
  %4024 = vdwg.mxu0
  %v4025 = vadd.f32 %v3794, %v3947
  %v4026 = vadd.f32 %v3795, %v3952
  %v4027 = vadd.f32 %v3796, %v3957
  %v4028 = vadd.f32 %v3797, %v3962
  %v4029 = vadd.f32 %v3798, %v3967
  %v4030 = vadd.f32 %v3799, %v3972
  %v4031 = vadd.f32 %v3800, %v3977
  %v4032 = vadd.f32 %v3801, %v3982
  %v4033 = vadd.f32 %v3802, %v3987
  %v4034 = vadd.f32 %v3803, %v3992
  %v4035 = vadd.f32 %v3804, %v3997
  %v4036 = vadd.f32 %v3805, %v4002
  %v4037 = vadd.f32 %v3806, %v4007
  %v4038 = vadd.f32 %v3807, %v4012
  %v4039 = vadd.f32 %v3808, %v4017
  %v4040 = vadd.f32 %v3809, %v4022
  %v4041 = vld [vmem:[%s3810 + $0x1] sm:$0xff]
  %v4042 = vld [vmem:[%s3810 + $0x11] sm:$0xff]
  %v4043 = vld [vmem:[%s3810 + $0x21] sm:$0xff]
  %v4044 = vld [vmem:[%s3810 + $0x31] sm:$0xff]
  %v4045 = vld [vmem:[%s3810 + $0x41] sm:$0xff]
  %v4046 = vld [vmem:[%s3810 + $0x51] sm:$0xff]
  %v4047 = vld [vmem:[%s3810 + $0x61] sm:$0xff]
  %v4048 = vld [vmem:[%s3810 + $0x71] sm:$0xff]
  %v4049 = vld [vmem:[%s3810 + $0xa1] sm:$0xff]
  %v4050 = vld [vmem:[%s3810 + $0xb1] sm:$0xff]
  %v4051 = vld [vmem:[%s3810 + $0xc1] sm:$0xff]
  %v4052 = vld [vmem:[%s3810 + $0xd1] sm:$0xff]
  %v4053 = vld [vmem:[%s3810 + $0xe1] sm:$0xff]
  %v4054 = vld [vmem:[%s3810 + $0xf1] sm:$0xff]
  %v4055 = vld [vmem:[%s3810 + $0x101] sm:$0xff]
  %v4056 = vld [vmem:[%s3810 + $0x111] sm:$0xff]
  %s4057 = scalar_lea.vmem %s3, 28
  %v4058 = vld [vmem:[%s4057] sm:$0xf]
  %v4060 = vsel %vm32, %v4041, 0
  %v4063 = vsel %vm32, %v4042, 0
  %v4066 = vsel %vm32, %v4043, 0
  %v4069 = vsel %vm32, %v4044, 0
  %v4072 = vsel %vm32, %v4045, 0
  %v4075 = vsel %vm32, %v4046, 0
  %v4078 = vsel %vm32, %v4047, 0
  %v4081 = vsel %vm32, %v4048, 0
  %v4084 = vsel %vm32, %v4049, 0
  %v4087 = vsel %vm32, %v4050, 0
  %v4090 = vsel %vm32, %v4051, 0
  %v4093 = vsel %vm32, %v4052, 0
  %v4096 = vsel %vm32, %v4053, 0
  %v4099 = vsel %vm32, %v4054, 0
  %v4102 = vsel %vm32, %v4055, 0
  %v4105 = vsel %vm32, %v4056, 0
  %v4108 = vsel %vm389, %v4058, 0
  %4110 = vmatprep.subr.mxu0 0.0
  %4111 = vmatpush1.msra.mxu0 %v4108
  %4112 = vmatprep.subr.mxu0 0.0
  %4113 = vmatpush1.msra.mxu0 0.0
  %4114 = vmatprep.subr.mxu0 0.0
  %4115 = vmatpush1.msra.mxu0 0.0
  %4116 = vmatprep.subr.mxu0 0.0
  %4117 = vmatpush1.msra.mxu0 0.0
  %4118 = vmatprep.subr.mxu0 0.0
  %4119 = vmatpush1.msra.mxu0 0.0
  %4120 = vmatprep.subr.mxu0 0.0
  %4121 = vmatpush1.msra.mxu0 0.0
  %4122 = vmatprep.subr.mxu0 0.0
  %4123 = vmatpush1.msra.mxu0 0.0
  %4124 = vmatprep.subr.mxu0 0.0
  %4125 = vmatpush1.msra.mxu0 0.0
  %4126 = vmatprep.subr.mxu0 0.0
  %4127 = vmatpush1.msra.mxu0 0.0
  %4128 = vmatprep.subr.mxu0 0.0
  %4129 = vmatpush1.msra.mxu0 0.0
  %4130 = vmatprep.subr.mxu0 0.0
  %4131 = vmatpush1.msra.mxu0 0.0
  %4132 = vmatprep.subr.mxu0 0.0
  %4133 = vmatpush1.msra.mxu0 0.0
  %4134 = vmatprep.subr.mxu0 0.0
  %4135 = vmatpush1.msra.mxu0 0.0
  %4136 = vmatprep.subr.mxu0 0.0
  %4137 = vmatpush1.msra.mxu0 0.0
  %4138 = vmatprep.subr.mxu0 0.0
  %4139 = vmatpush1.msra.mxu0 0.0
  %4140 = vmatprep.subr.mxu0 0.0
  %4141 = vmatpush1.msra.mxu0 0.0
  %4142 = vmatprep.subr.mxu0 0.0
  %4143 = vmatpush1.msra.mxu0 0.0
  %4144 = vmatprep.subr.mxu0 0.0
  %4145 = vmatpush1.msra.mxu0 0.0
  %4146 = vmatprep.subr.mxu0 0.0
  %4147 = vmatpush1.msra.mxu0 0.0
  %4148 = vmatprep.subr.mxu0 0.0
  %4149 = vmatpush1.msra.mxu0 0.0
  %4150 = vmatprep.subr.mxu0 0.0
  %4151 = vmatpush1.msra.mxu0 0.0
  %4152 = vmatprep.subr.mxu0 0.0
  %4153 = vmatpush1.msra.mxu0 0.0
  %4154 = vmatprep.subr.mxu0 0.0
  %4155 = vmatpush1.msra.mxu0 0.0
  %4156 = vmatprep.subr.mxu0 0.0
  %4157 = vmatpush1.msra.mxu0 0.0
  %4158 = vmatprep.subr.mxu0 0.0
  %4159 = vmatpush1.msra.mxu0 0.0
  %4160 = vmatprep.subr.mxu0 0.0
  %4161 = vmatpush1.msra.mxu0 0.0
  %4162 = vmatprep.subr.mxu0 0.0
  %4163 = vmatpush1.msra.mxu0 0.0
  %4164 = vmatprep.subr.mxu0 0.0
  %4165 = vmatpush1.msra.mxu0 0.0
  %4166 = vmatprep.subr.mxu0 0.0
  %4167 = vmatpush1.msra.mxu0 0.0
  %4168 = vmatprep.subr.mxu0 0.0
  %4169 = vmatpush1.msra.mxu0 0.0
  %4170 = vmatprep.subr.mxu0 0.0
  %4171 = vmatpush1.msra.mxu0 0.0
  %4172 = vmatprep.subr.mxu0 0.0
  %4173 = vmatpush1.msra.mxu0 0.0
  %4174 = vmatprep.mubr.f32.mxu0 0.0
  %4175 = vmatmul.mubr.f32.gmra.mrb[0].mxu0 %v4060
  %v4176 = vpop.f32.mrb[0].mxu0
  %v4177 = vadd.f32 0.0, %v4176
  %v4178 = vpop.f32.mrb[0].mxu0
  %4179 = vmatprep.mubr.f32.mxu0 0.0
  %4180 = vmatmul.mubr.f32.gmra.mrb[0].mxu0 %v4063
  %v4181 = vpop.f32.mrb[0].mxu0
  %v4182 = vadd.f32 0.0, %v4181
  %v4183 = vpop.f32.mrb[0].mxu0
  %4184 = vmatprep.mubr.f32.mxu0 0.0
  %4185 = vmatmul.mubr.f32.gmra.mrb[0].mxu0 %v4066
  %v4186 = vpop.f32.mrb[0].mxu0
  %v4187 = vadd.f32 0.0, %v4186
  %v4188 = vpop.f32.mrb[0].mxu0
  %4189 = vmatprep.mubr.f32.mxu0 0.0
  %4190 = vmatmul.mubr.f32.gmra.mrb[0].mxu0 %v4069
  %v4191 = vpop.f32.mrb[0].mxu0
  %v4192 = vadd.f32 0.0, %v4191
  %v4193 = vpop.f32.mrb[0].mxu0
  %4194 = vmatprep.mubr.f32.mxu0 0.0
  %4195 = vmatmul.mubr.f32.gmra.mrb[0].mxu0 %v4072
  %v4196 = vpop.f32.mrb[0].mxu0
  %v4197 = vadd.f32 0.0, %v4196
  %v4198 = vpop.f32.mrb[0].mxu0
  %4199 = vmatprep.mubr.f32.mxu0 0.0
  %4200 = vmatmul.mubr.f32.gmra.mrb[0].mxu0 %v4075
  %v4201 = vpop.f32.mrb[0].mxu0
  %v4202 = vadd.f32 0.0, %v4201
  %v4203 = vpop.f32.mrb[0].mxu0
  %4204 = vmatprep.mubr.f32.mxu0 0.0
  %4205 = vmatmul.mubr.f32.gmra.mrb[0].mxu0 %v4078
  %v4206 = vpop.f32.mrb[0].mxu0
  %v4207 = vadd.f32 0.0, %v4206
  %v4208 = vpop.f32.mrb[0].mxu0
  %4209 = vmatprep.mubr.f32.mxu0 0.0
  %4210 = vmatmul.mubr.f32.gmra.mrb[0].mxu0 %v4081
  %v4211 = vpop.f32.mrb[0].mxu0
  %v4212 = vadd.f32 0.0, %v4211
  %v4213 = vpop.f32.mrb[0].mxu0
  %4214 = vmatprep.mubr.f32.mxu0 0.0
  %4215 = vmatmul.mubr.f32.gmra.mrb[0].mxu0 %v4084
  %v4216 = vpop.f32.mrb[0].mxu0
  %v4217 = vadd.f32 0.0, %v4216
  %v4218 = vpop.f32.mrb[0].mxu0
  %4219 = vmatprep.mubr.f32.mxu0 0.0
  %4220 = vmatmul.mubr.f32.gmra.mrb[0].mxu0 %v4087
  %v4221 = vpop.f32.mrb[0].mxu0
  %v4222 = vadd.f32 0.0, %v4221
  %v4223 = vpop.f32.mrb[0].mxu0
  %4224 = vmatprep.mubr.f32.mxu0 0.0
  %4225 = vmatmul.mubr.f32.gmra.mrb[0].mxu0 %v4090
  %v4226 = vpop.f32.mrb[0].mxu0
  %v4227 = vadd.f32 0.0, %v4226
  %v4228 = vpop.f32.mrb[0].mxu0
  %4229 = vmatprep.mubr.f32.mxu0 0.0
  %4230 = vmatmul.mubr.f32.gmra.mrb[0].mxu0 %v4093
  %v4231 = vpop.f32.mrb[0].mxu0
  %v4232 = vadd.f32 0.0, %v4231
  %v4233 = vpop.f32.mrb[0].mxu0
  %4234 = vmatprep.mubr.f32.mxu0 0.0
  %4235 = vmatmul.mubr.f32.gmra.mrb[0].mxu0 %v4096
  %v4236 = vpop.f32.mrb[0].mxu0
  %v4237 = vadd.f32 0.0, %v4236
  %v4238 = vpop.f32.mrb[0].mxu0
  %4239 = vmatprep.mubr.f32.mxu0 0.0
  %4240 = vmatmul.mubr.f32.gmra.mrb[0].mxu0 %v4099
  %v4241 = vpop.f32.mrb[0].mxu0
  %v4242 = vadd.f32 0.0, %v4241
  %v4243 = vpop.f32.mrb[0].mxu0
  %4244 = vmatprep.mubr.f32.mxu0 0.0
  %4245 = vmatmul.mubr.f32.gmra.mrb[0].mxu0 %v4102
  %v4246 = vpop.f32.mrb[0].mxu0
  %v4247 = vadd.f32 0.0, %v4246
  %v4248 = vpop.f32.mrb[0].mxu0
  %4249 = vmatprep.mubr.f32.mxu0 0.0
  %4250 = vmatmul.mubr.f32.gmra.mrb[0].mxu0 %v4105
  %v4251 = vpop.f32.mrb[0].mxu0
  %v4252 = vadd.f32 0.0, %v4251
  %v4253 = vpop.f32.mrb[0].mxu0
  %4254 = vdwg.mxu0
  %v4255 = vadd.f32 %v4025, %v4177
  %v4256 = vadd.f32 %v4026, %v4182
  %v4257 = vadd.f32 %v4027, %v4187
  %v4258 = vadd.f32 %v4028, %v4192
  %v4259 = vadd.f32 %v4029, %v4197
  %v4260 = vadd.f32 %v4030, %v4202
  %v4261 = vadd.f32 %v4031, %v4207
  %v4262 = vadd.f32 %v4032, %v4212
  %v4263 = vadd.f32 %v4033, %v4217
  %v4264 = vadd.f32 %v4034, %v4222
  %v4265 = vadd.f32 %v4035, %v4227
  %v4266 = vadd.f32 %v4036, %v4232
  %v4267 = vadd.f32 %v4037, %v4237
  %v4268 = vadd.f32 %v4038, %v4242
  %v4269 = vadd.f32 %v4039, %v4247
  %v4270 = vadd.f32 %v4040, %v4252
  %v4271 = vld [vmem:[%s3810 + $0x2] sm:$0xff]
  %v4272 = vld [vmem:[%s3810 + $0x12] sm:$0xff]
  %v4273 = vld [vmem:[%s3810 + $0x22] sm:$0xff]
  %v4274 = vld [vmem:[%s3810 + $0x32] sm:$0xff]
  %v4275 = vld [vmem:[%s3810 + $0x42] sm:$0xff]
  %v4276 = vld [vmem:[%s3810 + $0x52] sm:$0xff]
  %v4277 = vld [vmem:[%s3810 + $0x62] sm:$0xff]
  %v4278 = vld [vmem:[%s3810 + $0x72] sm:$0xff]
  %v4279 = vld [vmem:[%s3810 + $0xa2] sm:$0xff]
  %v4280 = vld [vmem:[%s3810 + $0xb2] sm:$0xff]
  %v4281 = vld [vmem:[%s3810 + $0xc2] sm:$0xff]
  %v4282 = vld [vmem:[%s3810 + $0xd2] sm:$0xff]
  %v4283 = vld [vmem:[%s3810 + $0xe2] sm:$0xff]
  %v4284 = vld [vmem:[%s3810 + $0xf2] sm:$0xff]
  %v4285 = vld [vmem:[%s3810 + $0x102] sm:$0xff]
  %v4286 = vld [vmem:[%s3810 + $0x112] sm:$0xff]
  %s4287 = scalar_lea.vmem %s3, 32
  %v4288 = vld [vmem:[%s4287] sm:$0xf]
  %v4290 = vsel %vm32, %v4271, 0
  %v4293 = vsel %vm32, %v4272, 0
  %v4296 = vsel %vm32, %v4273, 0
  %v4299 = vsel %vm32, %v4274, 0
  %v4302 = vsel %vm32, %v4275, 0
  %v4305 = vsel %vm32, %v4276, 0
  %v4308 = vsel %vm32, %v4277, 0
  %v4311 = vsel %vm32, %v4278, 0
  %v4314 = vsel %vm32, %v4279, 0
  %v4317 = vsel %vm32, %v4280, 0
  %v4320 = vsel %vm32, %v4281, 0
  %v4323 = vsel %vm32, %v4282, 0
  %v4326 = vsel %vm32, %v4283, 0
  %v4329 = vsel %vm32, %v4284, 0
  %v4332 = vsel %vm32, %v4285, 0
  %v4335 = vsel %vm32, %v4286, 0
  %v4338 = vsel %vm389, %v4288, 0
  %4340 = vmatprep.subr.mxu0 0.0
  %4341 = vmatpush1.msra.mxu0 %v4338
  %4342 = vmatprep.subr.mxu0 0.0
  %4343 = vmatpush1.msra.mxu0 0.0
  %4344 = vmatprep.subr.mxu0 0.0
  %4345 = vmatpush1.msra.mxu0 0.0
  %4346 = vmatprep.subr.mxu0 0.0
  %4347 = vmatpush1.msra.mxu0 0.0
  %4348 = vmatprep.subr.mxu0 0.0
  %4349 = vmatpush1.msra.mxu0 0.0
  %4350 = vmatprep.subr.mxu0 0.0
  %4351 = vmatpush1.msra.mxu0 0.0
  %4352 = vmatprep.subr.mxu0 0.0
  %4353 = vmatpush1.msra.mxu0 0.0
  %4354 = vmatprep.subr.mxu0 0.0
  %4355 = vmatpush1.msra.mxu0 0.0
  %4356 = vmatprep.subr.mxu0 0.0
  %4357 = vmatpush1.msra.mxu0 0.0
  %4358 = vmatprep.subr.mxu0 0.0
  %4359 = vmatpush1.msra.mxu0 0.0
  %4360 = vmatprep.subr.mxu0 0.0
  %4361 = vmatpush1.msra.mxu0 0.0
  %4362 = vmatprep.subr.mxu0 0.0
  %4363 = vmatpush1.msra.mxu0 0.0
  %4364 = vmatprep.subr.mxu0 0.0
  %4365 = vmatpush1.msra.mxu0 0.0
  %4366 = vmatprep.subr.mxu0 0.0
  %4367 = vmatpush1.msra.mxu0 0.0
  %4368 = vmatprep.subr.mxu0 0.0
  %4369 = vmatpush1.msra.mxu0 0.0
  %4370 = vmatprep.subr.mxu0 0.0
  %4371 = vmatpush1.msra.mxu0 0.0
  %4372 = vmatprep.subr.mxu0 0.0
  %4373 = vmatpush1.msra.mxu0 0.0
  %4374 = vmatprep.subr.mxu0 0.0
  %4375 = vmatpush1.msra.mxu0 0.0
  %4376 = vmatprep.subr.mxu0 0.0
  %4377 = vmatpush1.msra.mxu0 0.0
  %4378 = vmatprep.subr.mxu0 0.0
  %4379 = vmatpush1.msra.mxu0 0.0
  %4380 = vmatprep.subr.mxu0 0.0
  %4381 = vmatpush1.msra.mxu0 0.0
  %4382 = vmatprep.subr.mxu0 0.0
  %4383 = vmatpush1.msra.mxu0 0.0
  %4384 = vmatprep.subr.mxu0 0.0
  %4385 = vmatpush1.msra.mxu0 0.0
  %4386 = vmatprep.subr.mxu0 0.0
  %4387 = vmatpush1.msra.mxu0 0.0
  %4388 = vmatprep.subr.mxu0 0.0
  %4389 = vmatpush1.msra.mxu0 0.0
  %4390 = vmatprep.subr.mxu0 0.0
  %4391 = vmatpush1.msra.mxu0 0.0
  %4392 = vmatprep.subr.mxu0 0.0
  %4393 = vmatpush1.msra.mxu0 0.0
  %4394 = vmatprep.subr.mxu0 0.0
  %4395 = vmatpush1.msra.mxu0 0.0
  %4396 = vmatprep.subr.mxu0 0.0
  %4397 = vmatpush1.msra.mxu0 0.0
  %4398 = vmatprep.subr.mxu0 0.0
  %4399 = vmatpush1.msra.mxu0 0.0
  %4400 = vmatprep.subr.mxu0 0.0
  %4401 = vmatpush1.msra.mxu0 0.0
  %4402 = vmatprep.subr.mxu0 0.0
  %4403 = vmatpush1.msra.mxu0 0.0
  %4404 = vmatprep.mubr.f32.mxu0 0.0
  %4405 = vmatmul.mubr.f32.gmra.mrb[0].mxu0 %v4290
  %v4406 = vpop.f32.mrb[0].mxu0
  %v4407 = vadd.f32 0.0, %v4406
  %v4408 = vpop.f32.mrb[0].mxu0
  %4409 = vmatprep.mubr.f32.mxu0 0.0
  %4410 = vmatmul.mubr.f32.gmra.mrb[0].mxu0 %v4293
  %v4411 = vpop.f32.mrb[0].mxu0
  %v4412 = vadd.f32 0.0, %v4411
  %v4413 = vpop.f32.mrb[0].mxu0
  %4414 = vmatprep.mubr.f32.mxu0 0.0
  %4415 = vmatmul.mubr.f32.gmra.mrb[0].mxu0 %v4296
  %v4416 = vpop.f32.mrb[0].mxu0
  %v4417 = vadd.f32 0.0, %v4416
  %v4418 = vpop.f32.mrb[0].mxu0
  %4419 = vmatprep.mubr.f32.mxu0 0.0
  %4420 = vmatmul.mubr.f32.gmra.mrb[0].mxu0 %v4299
  %v4421 = vpop.f32.mrb[0].mxu0
  %v4422 = vadd.f32 0.0, %v4421
  %v4423 = vpop.f32.mrb[0].mxu0
  %4424 = vmatprep.mubr.f32.mxu0 0.0
  %4425 = vmatmul.mubr.f32.gmra.mrb[0].mxu0 %v4302
  %v4426 = vpop.f32.mrb[0].mxu0
  %v4427 = vadd.f32 0.0, %v4426
  %v4428 = vpop.f32.mrb[0].mxu0
  %4429 = vmatprep.mubr.f32.mxu0 0.0
  %4430 = vmatmul.mubr.f32.gmra.mrb[0].mxu0 %v4305
  %v4431 = vpop.f32.mrb[0].mxu0
  %v4432 = vadd.f32 0.0, %v4431
  %v4433 = vpop.f32.mrb[0].mxu0
  %4434 = vmatprep.mubr.f32.mxu0 0.0
  %4435 = vmatmul.mubr.f32.gmra.mrb[0].mxu0 %v4308
  %v4436 = vpop.f32.mrb[0].mxu0
  %v4437 = vadd.f32 0.0, %v4436
  %v4438 = vpop.f32.mrb[0].mxu0
  %4439 = vmatprep.mubr.f32.mxu0 0.0
  %4440 = vmatmul.mubr.f32.gmra.mrb[0].mxu0 %v4311
  %v4441 = vpop.f32.mrb[0].mxu0
  %v4442 = vadd.f32 0.0, %v4441
  %v4443 = vpop.f32.mrb[0].mxu0
  %4444 = vmatprep.mubr.f32.mxu0 0.0
  %4445 = vmatmul.mubr.f32.gmra.mrb[0].mxu0 %v4314
  %v4446 = vpop.f32.mrb[0].mxu0
  %v4447 = vadd.f32 0.0, %v4446
  %v4448 = vpop.f32.mrb[0].mxu0
  %4449 = vmatprep.mubr.f32.mxu0 0.0
  %4450 = vmatmul.mubr.f32.gmra.mrb[0].mxu0 %v4317
  %v4451 = vpop.f32.mrb[0].mxu0
  %v4452 = vadd.f32 0.0, %v4451
  %v4453 = vpop.f32.mrb[0].mxu0
  %4454 = vmatprep.mubr.f32.mxu0 0.0
  %4455 = vmatmul.mubr.f32.gmra.mrb[0].mxu0 %v4320
  %v4456 = vpop.f32.mrb[0].mxu0
  %v4457 = vadd.f32 0.0, %v4456
  %v4458 = vpop.f32.mrb[0].mxu0
  %4459 = vmatprep.mubr.f32.mxu0 0.0
  %4460 = vmatmul.mubr.f32.gmra.mrb[0].mxu0 %v4323
  %v4461 = vpop.f32.mrb[0].mxu0
  %v4462 = vadd.f32 0.0, %v4461
  %v4463 = vpop.f32.mrb[0].mxu0
  %4464 = vmatprep.mubr.f32.mxu0 0.0
  %4465 = vmatmul.mubr.f32.gmra.mrb[0].mxu0 %v4326
  %v4466 = vpop.f32.mrb[0].mxu0
  %v4467 = vadd.f32 0.0, %v4466
  %v4468 = vpop.f32.mrb[0].mxu0
  %4469 = vmatprep.mubr.f32.mxu0 0.0
  %4470 = vmatmul.mubr.f32.gmra.mrb[0].mxu0 %v4329
  %v4471 = vpop.f32.mrb[0].mxu0
  %v4472 = vadd.f32 0.0, %v4471
  %v4473 = vpop.f32.mrb[0].mxu0
  %4474 = vmatprep.mubr.f32.mxu0 0.0
  %4475 = vmatmul.mubr.f32.gmra.mrb[0].mxu0 %v4332
  %v4476 = vpop.f32.mrb[0].mxu0
  %v4477 = vadd.f32 0.0, %v4476
  %v4478 = vpop.f32.mrb[0].mxu0
  %4479 = vmatprep.mubr.f32.mxu0 0.0
  %4480 = vmatmul.mubr.f32.gmra.mrb[0].mxu0 %v4335
  %v4481 = vpop.f32.mrb[0].mxu0
  %v4482 = vadd.f32 0.0, %v4481
  %v4483 = vpop.f32.mrb[0].mxu0
  %4484 = vdwg.mxu0
  %v4485 = vadd.f32 %v4255, %v4407
  %v4486 = vadd.f32 %v4256, %v4412
  %v4487 = vadd.f32 %v4257, %v4417
  %v4488 = vadd.f32 %v4258, %v4422
  %v4489 = vadd.f32 %v4259, %v4427
  %v4490 = vadd.f32 %v4260, %v4432
  %v4491 = vadd.f32 %v4261, %v4437
  %v4492 = vadd.f32 %v4262, %v4442
  %v4493 = vadd.f32 %v4263, %v4447
  %v4494 = vadd.f32 %v4264, %v4452
  %v4495 = vadd.f32 %v4265, %v4457
  %v4496 = vadd.f32 %v4266, %v4462
  %v4497 = vadd.f32 %v4267, %v4467
  %v4498 = vadd.f32 %v4268, %v4472
  %v4499 = vadd.f32 %v4269, %v4477
  %v4500 = vadd.f32 %v4270, %v4482
  %v4501 = vld [vmem:[%s4] sm:$0x1]
  %v4503 = vlaneseq
  %v4504 = vshrl.u32 %v4503, 7
  %v4505 = vsub.s32 0, %v4504
  %v4506 = vrot.slane %v4501, %v4505
  %v4508 = vmul.f32 %v4485, %v4506
  %v4509 = vmul.f32 %v4486, %v4506
  %v4510 = vmul.f32 %v4487, %v4506
  %v4511 = vmul.f32 %v4488, %v4506
  %v4512 = vmul.f32 %v4489, %v4506
  %v4513 = vmul.f32 %v4490, %v4506
  %v4514 = vmul.f32 %v4491, %v4506
  %v4515 = vmul.f32 %v4492, %v4506
  %v4516 = vmul.f32 %v4493, %v4506
  %v4517 = vmul.f32 %v4494, %v4506
  %v4518 = vmul.f32 %v4495, %v4506
  %v4519 = vmul.f32 %v4496, %v4506
  %v4520 = vmul.f32 %v4497, %v4506
  %v4521 = vmul.f32 %v4498, %v4506
  %v4522 = vmul.f32 %v4499, %v4506
  %v4523 = vmul.f32 %v4500, %v4506
  %v4524 = vld [vmem:[%s5] sm:$0x1]
  %v4526 = vlaneseq
  %v4527 = vshrl.u32 %v4526, 7
  %v4528 = vsub.s32 0, %v4527
  %v4529 = vrot.slane %v4524, %v4528
  %v4531 = vadd.f32 %v4508, %v4529
  %v4532 = vadd.f32 %v4509, %v4529
  %v4533 = vadd.f32 %v4510, %v4529
  %v4534 = vadd.f32 %v4511, %v4529
  %v4535 = vadd.f32 %v4512, %v4529
  %v4536 = vadd.f32 %v4513, %v4529
  %v4537 = vadd.f32 %v4514, %v4529
  %v4538 = vadd.f32 %v4515, %v4529
  %v4539 = vadd.f32 %v4516, %v4529
  %v4540 = vadd.f32 %v4517, %v4529
  %v4541 = vadd.f32 %v4518, %v4529
  %v4542 = vadd.f32 %v4519, %v4529
  %v4543 = vadd.f32 %v4520, %v4529
  %v4544 = vadd.f32 %v4521, %v4529
  %v4545 = vadd.f32 %v4522, %v4529
  %v4546 = vadd.f32 %v4523, %v4529
  %v4547 = vmax.f32 %v4531, 0.0
  %v4548 = vmax.f32 %v4532, 0.0
  %v4549 = vmax.f32 %v4533, 0.0
  %v4550 = vmax.f32 %v4534, 0.0
  %v4551 = vmax.f32 %v4535, 0.0
  %v4552 = vmax.f32 %v4536, 0.0
  %v4553 = vmax.f32 %v4537, 0.0
  %v4554 = vmax.f32 %v4538, 0.0
  %v4555 = vmax.f32 %v4539, 0.0
  %v4556 = vmax.f32 %v4540, 0.0
  %v4557 = vmax.f32 %v4541, 0.0
  %v4558 = vmax.f32 %v4542, 0.0
  %v4559 = vmax.f32 %v4543, 0.0
  %v4560 = vmax.f32 %v4544, 0.0
  %v4561 = vmax.f32 %v4545, 0.0
  %v4562 = vmax.f32 %v4546, 0.0
  %vm4563 = vcmask 64512
  %4564 = vst.msk [vmem:[#allocation5] sm:$0xff] %vm4563, 0.0
  %vm4565 = vcmask 58368
  %4566 = vst.msk [vmem:[#allocation5 + $0x8] sm:$0x3] %vm4565, 0.0
  %4567 = vst.msk [vmem:[#allocation5 + $0xa0] sm:$0xff] %vm4563, 0.0
  %4568 = vst.msk [vmem:[#allocation5 + $0xa8] sm:$0x3] %vm4565, 0.0
  %s4569 = scalar_lea.vmem [#allocation5], 144
  %4570 = vst.msk [vmem:[%s4569] sm:$0xff] %vm4563, 0.0
  %4571 = vst.msk [vmem:[%s4569 + $0x8] sm:$0x3] %vm4565, 0.0
  %4572 = vst.msk [vmem:[%s4569 + $0xa0] sm:$0xff] %vm4563, 0.0
  %4573 = vst.msk [vmem:[%s4569 + $0xa8] sm:$0x3] %vm4565, 0.0
  %vm4574 = vcmask 57344
  %4575 = vst.msk [vmem:[#allocation5] sm:$0x1] %vm4574, 0.0
  %4576 = vst.msk [vmem:[#allocation5 + $0x10] sm:$0x1] %vm4574, 0.0
  %4577 = vst.msk [vmem:[#allocation5 + $0x20] sm:$0x1] %vm4574, 0.0
  %4578 = vst.msk [vmem:[#allocation5 + $0x30] sm:$0x1] %vm4574, 0.0
  %4579 = vst.msk [vmem:[#allocation5 + $0x40] sm:$0x1] %vm4574, 0.0
  %4580 = vst.msk [vmem:[#allocation5 + $0x50] sm:$0x1] %vm4574, 0.0
  %4581 = vst.msk [vmem:[#allocation5 + $0x60] sm:$0x1] %vm4574, 0.0
  %4582 = vst.msk [vmem:[#allocation5 + $0x70] sm:$0x1] %vm4574, 0.0
  %4583 = vst.msk [vmem:[#allocation5 + $0x80] sm:$0x1] %vm4574, 0.0
  %4584 = vst.msk [vmem:[#allocation5 + $0x90] sm:$0x1] %vm4574, 0.0
  %4585 = vst.msk [vmem:[#allocation5 + $0xa0] sm:$0x1] %vm4574, 0.0
  %4586 = vst.msk [vmem:[#allocation5 + $0xb0] sm:$0x1] %vm4574, 0.0
  %4587 = vst.msk [vmem:[#allocation5 + $0xc0] sm:$0x1] %vm4574, 0.0
  %4588 = vst.msk [vmem:[#allocation5 + $0xd0] sm:$0x1] %vm4574, 0.0
  %4589 = vst.msk [vmem:[#allocation5 + $0xe0] sm:$0x1] %vm4574, 0.0
  %4590 = vst.msk [vmem:[#allocation5 + $0xf0] sm:$0x1] %vm4574, 0.0
  %4591 = vst.msk [vmem:[#allocation5 + $0x100] sm:$0x1] %vm4574, 0.0
  %4592 = vst.msk [vmem:[#allocation5 + $0x110] sm:$0x1] %vm4574, 0.0
  %4593 = vst.msk [vmem:[#allocation5 + $0x120] sm:$0x1] %vm4574, 0.0
  %4594 = vst.msk [vmem:[#allocation5 + $0x130] sm:$0x1] %vm4574, 0.0
  %4595 = vst.msk [vmem:[#allocation5 + $0x9] sm:$0x1] %vm4574, 0.0
  %4596 = vst.msk [vmem:[#allocation5 + $0x19] sm:$0x1] %vm4574, 0.0
  %4597 = vst.msk [vmem:[#allocation5 + $0x29] sm:$0x1] %vm4574, 0.0
  %4598 = vst.msk [vmem:[#allocation5 + $0x39] sm:$0x1] %vm4574, 0.0
  %4599 = vst.msk [vmem:[#allocation5 + $0x49] sm:$0x1] %vm4574, 0.0
  %4600 = vst.msk [vmem:[#allocation5 + $0x59] sm:$0x1] %vm4574, 0.0
  %4601 = vst.msk [vmem:[#allocation5 + $0x69] sm:$0x1] %vm4574, 0.0
  %4602 = vst.msk [vmem:[#allocation5 + $0x79] sm:$0x1] %vm4574, 0.0
  %4603 = vst.msk [vmem:[#allocation5 + $0x89] sm:$0x1] %vm4574, 0.0
  %4604 = vst.msk [vmem:[#allocation5 + $0x99] sm:$0x1] %vm4574, 0.0
  %4605 = vst.msk [vmem:[#allocation5 + $0xa9] sm:$0x1] %vm4574, 0.0
  %4606 = vst.msk [vmem:[#allocation5 + $0xb9] sm:$0x1] %vm4574, 0.0
  %4607 = vst.msk [vmem:[#allocation5 + $0xc9] sm:$0x1] %vm4574, 0.0
  %4608 = vst.msk [vmem:[#allocation5 + $0xd9] sm:$0x1] %vm4574, 0.0
  %4609 = vst.msk [vmem:[#allocation5 + $0xe9] sm:$0x1] %vm4574, 0.0
  %4610 = vst.msk [vmem:[#allocation5 + $0xf9] sm:$0x1] %vm4574, 0.0
  %4611 = vst.msk [vmem:[#allocation5 + $0x109] sm:$0x1] %vm4574, 0.0
  %4612 = vst.msk [vmem:[#allocation5 + $0x119] sm:$0x1] %vm4574, 0.0
  %4613 = vst.msk [vmem:[#allocation5 + $0x129] sm:$0x1] %vm4574, 0.0
  %4614 = vst.msk [vmem:[#allocation5 + $0x139] sm:$0x1] %vm4574, 0.0
  %s4615 = scalar_lea.vmem [#allocation5], 16
  %4616 = vst.msk [vmem:[%s4615 + $0x1] sm:$0xff] %vm4563, %v4547
  %4617 = vst.msk [vmem:[%s4615 + $0x11] sm:$0xff] %vm4563, %v4548
  %4618 = vst.msk [vmem:[%s4615 + $0x21] sm:$0xff] %vm4563, %v4549
  %4619 = vst.msk [vmem:[%s4615 + $0x31] sm:$0xff] %vm4563, %v4550
  %4620 = vst.msk [vmem:[%s4615 + $0x41] sm:$0xff] %vm4563, %v4551
  %4621 = vst.msk [vmem:[%s4615 + $0x51] sm:$0xff] %vm4563, %v4552
  %4622 = vst.msk [vmem:[%s4615 + $0x61] sm:$0xff] %vm4563, %v4553
  %4623 = vst.msk [vmem:[%s4615 + $0x71] sm:$0xff] %vm4563, %v4554
  %4624 = vst.msk [vmem:[%s4615 + $0xa1] sm:$0xff] %vm4563, %v4555
  %4625 = vst.msk [vmem:[%s4615 + $0xb1] sm:$0xff] %vm4563, %v4556
  %4626 = vst.msk [vmem:[%s4615 + $0xc1] sm:$0xff] %vm4563, %v4557
  %4627 = vst.msk [vmem:[%s4615 + $0xd1] sm:$0xff] %vm4563, %v4558
  %4628 = vst.msk [vmem:[%s4615 + $0xe1] sm:$0xff] %vm4563, %v4559
  %4629 = vst.msk [vmem:[%s4615 + $0xf1] sm:$0xff] %vm4563, %v4560
  %4630 = vst.msk [vmem:[%s4615 + $0x101] sm:$0xff] %vm4563, %v4561
  %4631 = vst.msk [vmem:[%s4615 + $0x111] sm:$0xff] %vm4563, %v4562
  %v4632 = vld [vmem:[#allocation5] sm:$0xff]
  %v4633 = vld [vmem:[#allocation5 + $0x10] sm:$0xff]
  %v4634 = vld [vmem:[#allocation5 + $0x20] sm:$0xff]
  %v4635 = vld [vmem:[#allocation5 + $0x30] sm:$0xff]
  %v4636 = vld [vmem:[#allocation5 + $0x40] sm:$0xff]
  %v4637 = vld [vmem:[#allocation5 + $0x50] sm:$0xff]
  %v4638 = vld [vmem:[#allocation5 + $0x60] sm:$0xff]
  %v4639 = vld [vmem:[#allocation5 + $0x70] sm:$0xff]
  %v4640 = vld [vmem:[#allocation5 + $0xa0] sm:$0xff]
  %v4641 = vld [vmem:[#allocation5 + $0xb0] sm:$0xff]
  %v4642 = vld [vmem:[#allocation5 + $0xc0] sm:$0xff]
  %v4643 = vld [vmem:[#allocation5 + $0xd0] sm:$0xff]
  %v4644 = vld [vmem:[#allocation5 + $0xe0] sm:$0xff]
  %v4645 = vld [vmem:[#allocation5 + $0xf0] sm:$0xff]
  %v4646 = vld [vmem:[#allocation5 + $0x100] sm:$0xff]
  %v4647 = vld [vmem:[#allocation5 + $0x110] sm:$0xff]
  %v4648 = vld [vmem:[%s6] sm:$0xff]
  %v4649 = vld [vmem:[#allocation5 + $0x1] sm:$0xff]
  %v4650 = vld [vmem:[#allocation5 + $0x11] sm:$0xff]
  %v4651 = vld [vmem:[#allocation5 + $0x21] sm:$0xff]
  %v4652 = vld [vmem:[#allocation5 + $0x31] sm:$0xff]
  %v4653 = vld [vmem:[#allocation5 + $0x41] sm:$0xff]
  %v4654 = vld [vmem:[#allocation5 + $0x51] sm:$0xff]
  %v4655 = vld [vmem:[#allocation5 + $0x61] sm:$0xff]
  %v4656 = vld [vmem:[#allocation5 + $0x71] sm:$0xff]
  %v4657 = vld [vmem:[#allocation5 + $0xa1] sm:$0xff]
  %v4658 = vld [vmem:[#allocation5 + $0xb1] sm:$0xff]
  %v4659 = vld [vmem:[#allocation5 + $0xc1] sm:$0xff]
  %v4660 = vld [vmem:[#allocation5 + $0xd1] sm:$0xff]
  %v4661 = vld [vmem:[#allocation5 + $0xe1] sm:$0xff]
  %v4662 = vld [vmem:[#allocation5 + $0xf1] sm:$0xff]
  %v4663 = vld [vmem:[#allocation5 + $0x101] sm:$0xff]
  %v4664 = vld [vmem:[#allocation5 + $0x111] sm:$0xff]
  %s4665 = scalar_lea.vmem %s6, 8
  %v4666 = vld [vmem:[%s4665] sm:$0xff]
  %v4668 = vsel %vm4563, %v4666, 0
  %v4671 = vsel %vm4563, %v4649, 0
  %v4674 = vsel %vm4563, %v4650, 0
  %v4677 = vsel %vm4563, %v4651, 0
  %v4680 = vsel %vm4563, %v4652, 0
  %v4683 = vsel %vm4563, %v4653, 0
  %v4686 = vsel %vm4563, %v4654, 0
  %v4689 = vsel %vm4563, %v4655, 0
  %v4692 = vsel %vm4563, %v4656, 0
  %v4695 = vsel %vm4563, %v4657, 0
  %v4698 = vsel %vm4563, %v4658, 0
  %v4701 = vsel %vm4563, %v4659, 0
  %v4704 = vsel %vm4563, %v4660, 0
  %v4707 = vsel %vm4563, %v4661, 0
  %v4710 = vsel %vm4563, %v4662, 0
  %v4713 = vsel %vm4563, %v4663, 0
  %v4716 = vsel %vm4563, %v4664, 0
  %4718 = vmatprep.subr.mxu0 0.0
  %4719 = vmatpush1.xpose.msra.mxu0 %v4671
  %4720 = vmatprep.subr.mxu0 0.0
  %4721 = vmatpush1.xpose.msra.mxu0 %v4674
  %4722 = vmatprep.subr.mxu0 0.0
  %4723 = vmatpush1.xpose.msra.mxu0 %v4677
  %4724 = vmatprep.subr.mxu0 0.0
  %4725 = vmatpush1.xpose.msra.mxu0 %v4680
  %4726 = vmatprep.subr.mxu0 0.0
  %4727 = vmatpush1.xpose.msra.mxu0 %v4683
  %4728 = vmatprep.subr.mxu0 0.0
  %4729 = vmatpush1.xpose.msra.mxu0 %v4686
  %4730 = vmatprep.subr.mxu0 0.0
  %4731 = vmatpush1.xpose.msra.mxu0 %v4689
  %4732 = vmatprep.subr.mxu0 0.0
  %4733 = vmatpush1.xpose.msra.mxu0 %v4692
  %4734 = vmatprep.subr.mxu0 0.0
  %4735 = vmatpush1.xpose.msra.mxu0 %v4695
  %4736 = vmatprep.subr.mxu0 0.0
  %4737 = vmatpush1.xpose.msra.mxu0 %v4698
  %4738 = vmatprep.subr.mxu0 0.0
  %4739 = vmatpush1.xpose.msra.mxu0 %v4701
  %4740 = vmatprep.subr.mxu0 0.0
  %4741 = vmatpush1.xpose.msra.mxu0 %v4704
  %4742 = vmatprep.subr.mxu0 0.0
  %4743 = vmatpush1.xpose.msra.mxu0 %v4707
  %4744 = vmatprep.subr.mxu0 0.0
  %4745 = vmatpush1.xpose.msra.mxu0 %v4710
  %4746 = vmatprep.subr.mxu0 0.0
  %4747 = vmatpush1.xpose.msra.mxu0 %v4713
  %4748 = vmatprep.subr.mxu0 0.0
  %4749 = vmatpush1.xpose.msra.mxu0 %v4716
  %4750 = vmatprep.subr.mxu0 0.0
  %4751 = vmatpush1.xpose.msra.mxu0 0.0
  %4752 = vmatprep.subr.mxu0 0.0
  %4753 = vmatpush1.xpose.msra.mxu0 0.0
  %4754 = vmatprep.subr.mxu0 0.0
  %4755 = vmatpush1.xpose.msra.mxu0 0.0
  %4756 = vmatprep.subr.mxu0 0.0
  %4757 = vmatpush1.xpose.msra.mxu0 0.0
  %4758 = vmatprep.subr.mxu0 0.0
  %4759 = vmatpush1.xpose.msra.mxu0 0.0
  %4760 = vmatprep.subr.mxu0 0.0
  %4761 = vmatpush1.xpose.msra.mxu0 0.0
  %4762 = vmatprep.subr.mxu0 0.0
  %4763 = vmatpush1.xpose.msra.mxu0 0.0
  %4764 = vmatprep.subr.mxu0 0.0
  %4765 = vmatpush1.xpose.msra.mxu0 0.0
  %4766 = vmatprep.subr.mxu0 0.0
  %4767 = vmatpush1.xpose.msra.mxu0 0.0
  %4768 = vmatprep.subr.mxu0 0.0
  %4769 = vmatpush1.xpose.msra.mxu0 0.0
  %4770 = vmatprep.subr.mxu0 0.0
  %4771 = vmatpush1.xpose.msra.mxu0 0.0
  %4772 = vmatprep.subr.mxu0 0.0
  %4773 = vmatpush1.xpose.msra.mxu0 0.0
  %4774 = vmatprep.subr.mxu0 0.0
  %4775 = vmatpush1.xpose.msra.mxu0 0.0
  %4776 = vmatprep.subr.mxu0 0.0
  %4777 = vmatpush1.xpose.msra.mxu0 0.0
  %4778 = vmatprep.subr.mxu0 0.0
  %4779 = vmatpush1.xpose.msra.mxu0 0.0
  %4780 = vmatprep.subr.mxu0 0.0
  %4781 = vmatpush1.xpose.msra.mxu0 0.0
  %4782 = vmatprep.mubr.f32.mxu0 0.0
  %4783 = vmatmul.mubr.f32.gmra.mrb[0].mxu0 %v4668
  %v4784 = vpop.f32.mrb[0].mxu0
  %v4785 = vadd.f32 0.0, %v4784
  %v4786 = vpop.f32.mrb[0].mxu0
  %4787 = vdwg.mxu0
  %v4789 = vsel %vm4563, %v4648, 0
  %v4792 = vsel %vm4563, %v4632, 0
  %v4795 = vsel %vm4563, %v4633, 0
  %v4798 = vsel %vm4563, %v4634, 0
  %v4801 = vsel %vm4563, %v4635, 0
  %v4804 = vsel %vm4563, %v4636, 0
  %v4807 = vsel %vm4563, %v4637, 0
  %v4810 = vsel %vm4563, %v4638, 0
  %v4813 = vsel %vm4563, %v4639, 0
  %v4816 = vsel %vm4563, %v4640, 0
  %v4819 = vsel %vm4563, %v4641, 0
  %v4822 = vsel %vm4563, %v4642, 0
  %v4825 = vsel %vm4563, %v4643, 0
  %v4828 = vsel %vm4563, %v4644, 0
  %v4831 = vsel %vm4563, %v4645, 0
  %v4834 = vsel %vm4563, %v4646, 0
  %v4837 = vsel %vm4563, %v4647, 0
  %4839 = vmatprep.subr.mxu0 0.0
  %4840 = vmatpush1.xpose.msra.mxu0 %v4792
  %4841 = vmatprep.subr.mxu0 0.0
  %4842 = vmatpush1.xpose.msra.mxu0 %v4795
  %4843 = vmatprep.subr.mxu0 0.0
  %4844 = vmatpush1.xpose.msra.mxu0 %v4798
  %4845 = vmatprep.subr.mxu0 0.0
  %4846 = vmatpush1.xpose.msra.mxu0 %v4801
  %4847 = vmatprep.subr.mxu0 0.0
  %4848 = vmatpush1.xpose.msra.mxu0 %v4804
  %4849 = vmatprep.subr.mxu0 0.0
  %4850 = vmatpush1.xpose.msra.mxu0 %v4807
  %4851 = vmatprep.subr.mxu0 0.0
  %4852 = vmatpush1.xpose.msra.mxu0 %v4810
  %4853 = vmatprep.subr.mxu0 0.0
  %4854 = vmatpush1.xpose.msra.mxu0 %v4813
  %4855 = vmatprep.subr.mxu0 0.0
  %4856 = vmatpush1.xpose.msra.mxu0 %v4816
  %4857 = vmatprep.subr.mxu0 0.0
  %4858 = vmatpush1.xpose.msra.mxu0 %v4819
  %4859 = vmatprep.subr.mxu0 0.0
  %4860 = vmatpush1.xpose.msra.mxu0 %v4822
  %4861 = vmatprep.subr.mxu0 0.0
  %4862 = vmatpush1.xpose.msra.mxu0 %v4825
  %4863 = vmatprep.subr.mxu0 0.0
  %4864 = vmatpush1.xpose.msra.mxu0 %v4828
  %4865 = vmatprep.subr.mxu0 0.0
  %4866 = vmatpush1.xpose.msra.mxu0 %v4831
  %4867 = vmatprep.subr.mxu0 0.0
  %4868 = vmatpush1.xpose.msra.mxu0 %v4834
  %4869 = vmatprep.subr.mxu0 0.0
  %4870 = vmatpush1.xpose.msra.mxu0 %v4837
  %4871 = vmatprep.subr.mxu0 0.0
  %4872 = vmatpush1.xpose.msra.mxu0 0.0
  %4873 = vmatprep.subr.mxu0 0.0
  %4874 = vmatpush1.xpose.msra.mxu0 0.0
  %4875 = vmatprep.subr.mxu0 0.0
  %4876 = vmatpush1.xpose.msra.mxu0 0.0
  %4877 = vmatprep.subr.mxu0 0.0
  %4878 = vmatpush1.xpose.msra.mxu0 0.0
  %4879 = vmatprep.subr.mxu0 0.0
  %4880 = vmatpush1.xpose.msra.mxu0 0.0
  %4881 = vmatprep.subr.mxu0 0.0
  %4882 = vmatpush1.xpose.msra.mxu0 0.0
  %4883 = vmatprep.subr.mxu0 0.0
  %4884 = vmatpush1.xpose.msra.mxu0 0.0
  %4885 = vmatprep.subr.mxu0 0.0
  %4886 = vmatpush1.xpose.msra.mxu0 0.0
  %4887 = vmatprep.subr.mxu0 0.0
  %4888 = vmatpush1.xpose.msra.mxu0 0.0
  %4889 = vmatprep.subr.mxu0 0.0
  %4890 = vmatpush1.xpose.msra.mxu0 0.0
  %4891 = vmatprep.subr.mxu0 0.0
  %4892 = vmatpush1.xpose.msra.mxu0 0.0
  %4893 = vmatprep.subr.mxu0 0.0
  %4894 = vmatpush1.xpose.msra.mxu0 0.0
  %4895 = vmatprep.subr.mxu0 0.0
  %4896 = vmatpush1.xpose.msra.mxu0 0.0
  %4897 = vmatprep.subr.mxu0 0.0
  %4898 = vmatpush1.xpose.msra.mxu0 0.0
  %4899 = vmatprep.subr.mxu0 0.0
  %4900 = vmatpush1.xpose.msra.mxu0 0.0
  %4901 = vmatprep.subr.mxu0 0.0
  %4902 = vmatpush1.xpose.msra.mxu0 0.0
  %4903 = vmatprep.mubr.f32.mxu0 0.0
  %4904 = vmatmul.mubr.f32.gmra.mrb[0].mxu0 %v4789
  %v4905 = vpop.f32.mrb[0].mxu0
  %v4906 = vadd.f32 %v4785, %v4905
  %v4907 = vpop.f32.mrb[0].mxu0
  %4908 = vdwg.mxu0
  %v4909 = vld [vmem:[#allocation5 + $0x2] sm:$0xff]
  %v4910 = vld [vmem:[#allocation5 + $0x12] sm:$0xff]
  %v4911 = vld [vmem:[#allocation5 + $0x22] sm:$0xff]
  %v4912 = vld [vmem:[#allocation5 + $0x32] sm:$0xff]
  %v4913 = vld [vmem:[#allocation5 + $0x42] sm:$0xff]
  %v4914 = vld [vmem:[#allocation5 + $0x52] sm:$0xff]
  %v4915 = vld [vmem:[#allocation5 + $0x62] sm:$0xff]
  %v4916 = vld [vmem:[#allocation5 + $0x72] sm:$0xff]
  %v4917 = vld [vmem:[#allocation5 + $0xa2] sm:$0xff]
  %v4918 = vld [vmem:[#allocation5 + $0xb2] sm:$0xff]
  %v4919 = vld [vmem:[#allocation5 + $0xc2] sm:$0xff]
  %v4920 = vld [vmem:[#allocation5 + $0xd2] sm:$0xff]
  %v4921 = vld [vmem:[#allocation5 + $0xe2] sm:$0xff]
  %v4922 = vld [vmem:[#allocation5 + $0xf2] sm:$0xff]
  %v4923 = vld [vmem:[#allocation5 + $0x102] sm:$0xff]
  %v4924 = vld [vmem:[#allocation5 + $0x112] sm:$0xff]
  %s4925 = scalar_lea.vmem %s6, 16
  %v4926 = vld [vmem:[%s4925] sm:$0xff]
  %v4928 = vsel %vm4563, %v4926, 0
  %v4931 = vsel %vm4563, %v4909, 0
  %v4934 = vsel %vm4563, %v4910, 0
  %v4937 = vsel %vm4563, %v4911, 0
  %v4940 = vsel %vm4563, %v4912, 0
  %v4943 = vsel %vm4563, %v4913, 0
  %v4946 = vsel %vm4563, %v4914, 0
  %v4949 = vsel %vm4563, %v4915, 0
  %v4952 = vsel %vm4563, %v4916, 0
  %v4955 = vsel %vm4563, %v4917, 0
  %v4958 = vsel %vm4563, %v4918, 0
  %v4961 = vsel %vm4563, %v4919, 0
  %v4964 = vsel %vm4563, %v4920, 0
  %v4967 = vsel %vm4563, %v4921, 0
  %v4970 = vsel %vm4563, %v4922, 0
  %v4973 = vsel %vm4563, %v4923, 0
  %v4976 = vsel %vm4563, %v4924, 0
  %4978 = vmatprep.subr.mxu0 0.0
  %4979 = vmatpush1.xpose.msra.mxu0 %v4931
  %4980 = vmatprep.subr.mxu0 0.0
  %4981 = vmatpush1.xpose.msra.mxu0 %v4934
  %4982 = vmatprep.subr.mxu0 0.0
  %4983 = vmatpush1.xpose.msra.mxu0 %v4937
  %4984 = vmatprep.subr.mxu0 0.0
  %4985 = vmatpush1.xpose.msra.mxu0 %v4940
  %4986 = vmatprep.subr.mxu0 0.0
  %4987 = vmatpush1.xpose.msra.mxu0 %v4943
  %4988 = vmatprep.subr.mxu0 0.0
  %4989 = vmatpush1.xpose.msra.mxu0 %v4946
  %4990 = vmatprep.subr.mxu0 0.0
  %4991 = vmatpush1.xpose.msra.mxu0 %v4949
  %4992 = vmatprep.subr.mxu0 0.0
  %4993 = vmatpush1.xpose.msra.mxu0 %v4952
  %4994 = vmatprep.subr.mxu0 0.0
  %4995 = vmatpush1.xpose.msra.mxu0 %v4955
  %4996 = vmatprep.subr.mxu0 0.0
  %4997 = vmatpush1.xpose.msra.mxu0 %v4958
  %4998 = vmatprep.subr.mxu0 0.0
  %4999 = vmatpush1.xpose.msra.mxu0 %v4961
  %5000 = vmatprep.subr.mxu0 0.0
  %5001 = vmatpush1.xpose.msra.mxu0 %v4964
  %5002 = vmatprep.subr.mxu0 0.0
  %5003 = vmatpush1.xpose.msra.mxu0 %v4967
  %5004 = vmatprep.subr.mxu0 0.0
  %5005 = vmatpush1.xpose.msra.mxu0 %v4970
  %5006 = vmatprep.subr.mxu0 0.0
  %5007 = vmatpush1.xpose.msra.mxu0 %v4973
  %5008 = vmatprep.subr.mxu0 0.0
  %5009 = vmatpush1.xpose.msra.mxu0 %v4976
  %5010 = vmatprep.subr.mxu0 0.0
  %5011 = vmatpush1.xpose.msra.mxu0 0.0
  %5012 = vmatprep.subr.mxu0 0.0
  %5013 = vmatpush1.xpose.msra.mxu0 0.0
  %5014 = vmatprep.subr.mxu0 0.0
  %5015 = vmatpush1.xpose.msra.mxu0 0.0
  %5016 = vmatprep.subr.mxu0 0.0
  %5017 = vmatpush1.xpose.msra.mxu0 0.0
  %5018 = vmatprep.subr.mxu0 0.0
  %5019 = vmatpush1.xpose.msra.mxu0 0.0
  %5020 = vmatprep.subr.mxu0 0.0
  %5021 = vmatpush1.xpose.msra.mxu0 0.0
  %5022 = vmatprep.subr.mxu0 0.0
  %5023 = vmatpush1.xpose.msra.mxu0 0.0
  %5024 = vmatprep.subr.mxu0 0.0
  %5025 = vmatpush1.xpose.msra.mxu0 0.0
  %5026 = vmatprep.subr.mxu0 0.0
  %5027 = vmatpush1.xpose.msra.mxu0 0.0
  %5028 = vmatprep.subr.mxu0 0.0
  %5029 = vmatpush1.xpose.msra.mxu0 0.0
  %5030 = vmatprep.subr.mxu0 0.0
  %5031 = vmatpush1.xpose.msra.mxu0 0.0
  %5032 = vmatprep.subr.mxu0 0.0
  %5033 = vmatpush1.xpose.msra.mxu0 0.0
  %5034 = vmatprep.subr.mxu0 0.0
  %5035 = vmatpush1.xpose.msra.mxu0 0.0
  %5036 = vmatprep.subr.mxu0 0.0
  %5037 = vmatpush1.xpose.msra.mxu0 0.0
  %5038 = vmatprep.subr.mxu0 0.0
  %5039 = vmatpush1.xpose.msra.mxu0 0.0
  %5040 = vmatprep.subr.mxu0 0.0
  %5041 = vmatpush1.xpose.msra.mxu0 0.0
  %5042 = vmatprep.mubr.f32.mxu0 0.0
  %5043 = vmatmul.mubr.f32.gmra.mrb[0].mxu0 %v4928
  %v5044 = vpop.f32.mrb[0].mxu0
  %v5045 = vadd.f32 0.0, %v5044
  %v5046 = vpop.f32.mrb[0].mxu0
  %5047 = vdwg.mxu0
  %v5048 = vadd.f32 %v4906, %v5045
  %v5049 = vld [vmem:[%s4615] sm:$0xff]
  %v5050 = vld [vmem:[%s4615 + $0x10] sm:$0xff]
  %v5051 = vld [vmem:[%s4615 + $0x20] sm:$0xff]
  %v5052 = vld [vmem:[%s4615 + $0x30] sm:$0xff]
  %v5053 = vld [vmem:[%s4615 + $0x40] sm:$0xff]
  %v5054 = vld [vmem:[%s4615 + $0x50] sm:$0xff]
  %v5055 = vld [vmem:[%s4615 + $0x60] sm:$0xff]
  %v5056 = vld [vmem:[%s4615 + $0x70] sm:$0xff]
  %v5057 = vld [vmem:[%s4615 + $0xa0] sm:$0xff]
  %v5058 = vld [vmem:[%s4615 + $0xb0] sm:$0xff]
  %v5059 = vld [vmem:[%s4615 + $0xc0] sm:$0xff]
  %v5060 = vld [vmem:[%s4615 + $0xd0] sm:$0xff]
  %v5061 = vld [vmem:[%s4615 + $0xe0] sm:$0xff]
  %v5062 = vld [vmem:[%s4615 + $0xf0] sm:$0xff]
  %v5063 = vld [vmem:[%s4615 + $0x100] sm:$0xff]
  %v5064 = vld [vmem:[%s4615 + $0x110] sm:$0xff]
  %s5065 = scalar_lea.vmem %s6, 24
  %v5066 = vld [vmem:[%s5065] sm:$0xff]
  %v5068 = vsel %vm4563, %v5066, 0
  %v5071 = vsel %vm4563, %v5049, 0
  %v5074 = vsel %vm4563, %v5050, 0
  %v5077 = vsel %vm4563, %v5051, 0
  %v5080 = vsel %vm4563, %v5052, 0
  %v5083 = vsel %vm4563, %v5053, 0
  %v5086 = vsel %vm4563, %v5054, 0
  %v5089 = vsel %vm4563, %v5055, 0
  %v5092 = vsel %vm4563, %v5056, 0
  %v5095 = vsel %vm4563, %v5057, 0
  %v5098 = vsel %vm4563, %v5058, 0
  %v5101 = vsel %vm4563, %v5059, 0
  %v5104 = vsel %vm4563, %v5060, 0
  %v5107 = vsel %vm4563, %v5061, 0
  %v5110 = vsel %vm4563, %v5062, 0
  %v5113 = vsel %vm4563, %v5063, 0
  %v5116 = vsel %vm4563, %v5064, 0
  %5118 = vmatprep.subr.mxu0 0.0
  %5119 = vmatpush1.xpose.msra.mxu0 %v5071
  %5120 = vmatprep.subr.mxu0 0.0
  %5121 = vmatpush1.xpose.msra.mxu0 %v5074
  %5122 = vmatprep.subr.mxu0 0.0
  %5123 = vmatpush1.xpose.msra.mxu0 %v5077
  %5124 = vmatprep.subr.mxu0 0.0
  %5125 = vmatpush1.xpose.msra.mxu0 %v5080
  %5126 = vmatprep.subr.mxu0 0.0
  %5127 = vmatpush1.xpose.msra.mxu0 %v5083
  %5128 = vmatprep.subr.mxu0 0.0
  %5129 = vmatpush1.xpose.msra.mxu0 %v5086
  %5130 = vmatprep.subr.mxu0 0.0
  %5131 = vmatpush1.xpose.msra.mxu0 %v5089
  %5132 = vmatprep.subr.mxu0 0.0
  %5133 = vmatpush1.xpose.msra.mxu0 %v5092
  %5134 = vmatprep.subr.mxu0 0.0
  %5135 = vmatpush1.xpose.msra.mxu0 %v5095
  %5136 = vmatprep.subr.mxu0 0.0
  %5137 = vmatpush1.xpose.msra.mxu0 %v5098
  %5138 = vmatprep.subr.mxu0 0.0
  %5139 = vmatpush1.xpose.msra.mxu0 %v5101
  %5140 = vmatprep.subr.mxu0 0.0
  %5141 = vmatpush1.xpose.msra.mxu0 %v5104
  %5142 = vmatprep.subr.mxu0 0.0
  %5143 = vmatpush1.xpose.msra.mxu0 %v5107
  %5144 = vmatprep.subr.mxu0 0.0
  %5145 = vmatpush1.xpose.msra.mxu0 %v5110
  %5146 = vmatprep.subr.mxu0 0.0
  %5147 = vmatpush1.xpose.msra.mxu0 %v5113
  %5148 = vmatprep.subr.mxu0 0.0
  %5149 = vmatpush1.xpose.msra.mxu0 %v5116
  %5150 = vmatprep.subr.mxu0 0.0
  %5151 = vmatpush1.xpose.msra.mxu0 0.0
  %5152 = vmatprep.subr.mxu0 0.0
  %5153 = vmatpush1.xpose.msra.mxu0 0.0
  %5154 = vmatprep.subr.mxu0 0.0
  %5155 = vmatpush1.xpose.msra.mxu0 0.0
  %5156 = vmatprep.subr.mxu0 0.0
  %5157 = vmatpush1.xpose.msra.mxu0 0.0
  %5158 = vmatprep.subr.mxu0 0.0
  %5159 = vmatpush1.xpose.msra.mxu0 0.0
  %5160 = vmatprep.subr.mxu0 0.0
  %5161 = vmatpush1.xpose.msra.mxu0 0.0
  %5162 = vmatprep.subr.mxu0 0.0
  %5163 = vmatpush1.xpose.msra.mxu0 0.0
  %5164 = vmatprep.subr.mxu0 0.0
  %5165 = vmatpush1.xpose.msra.mxu0 0.0
  %5166 = vmatprep.subr.mxu0 0.0
  %5167 = vmatpush1.xpose.msra.mxu0 0.0
  %5168 = vmatprep.subr.mxu0 0.0
  %5169 = vmatpush1.xpose.msra.mxu0 0.0
  %5170 = vmatprep.subr.mxu0 0.0
  %5171 = vmatpush1.xpose.msra.mxu0 0.0
  %5172 = vmatprep.subr.mxu0 0.0
  %5173 = vmatpush1.xpose.msra.mxu0 0.0
  %5174 = vmatprep.subr.mxu0 0.0
  %5175 = vmatpush1.xpose.msra.mxu0 0.0
  %5176 = vmatprep.subr.mxu0 0.0
  %5177 = vmatpush1.xpose.msra.mxu0 0.0
  %5178 = vmatprep.subr.mxu0 0.0
  %5179 = vmatpush1.xpose.msra.mxu0 0.0
  %5180 = vmatprep.subr.mxu0 0.0
  %5181 = vmatpush1.xpose.msra.mxu0 0.0
  %5182 = vmatprep.mubr.f32.mxu0 0.0
  %5183 = vmatmul.mubr.f32.gmra.mrb[0].mxu0 %v5068
  %v5184 = vpop.f32.mrb[0].mxu0
  %v5185 = vadd.f32 0.0, %v5184
  %v5186 = vpop.f32.mrb[0].mxu0
  %5187 = vdwg.mxu0
  %v5188 = vadd.f32 %v5048, %v5185
  %v5189 = vld [vmem:[%s4615 + $0x1] sm:$0xff]
  %v5190 = vld [vmem:[%s4615 + $0x11] sm:$0xff]
  %v5191 = vld [vmem:[%s4615 + $0x21] sm:$0xff]
  %v5192 = vld [vmem:[%s4615 + $0x31] sm:$0xff]
  %v5193 = vld [vmem:[%s4615 + $0x41] sm:$0xff]
  %v5194 = vld [vmem:[%s4615 + $0x51] sm:$0xff]
  %v5195 = vld [vmem:[%s4615 + $0x61] sm:$0xff]
  %v5196 = vld [vmem:[%s4615 + $0x71] sm:$0xff]
  %v5197 = vld [vmem:[%s4615 + $0xa1] sm:$0xff]
  %v5198 = vld [vmem:[%s4615 + $0xb1] sm:$0xff]
  %v5199 = vld [vmem:[%s4615 + $0xc1] sm:$0xff]
  %v5200 = vld [vmem:[%s4615 + $0xd1] sm:$0xff]
  %v5201 = vld [vmem:[%s4615 + $0xe1] sm:$0xff]
  %v5202 = vld [vmem:[%s4615 + $0xf1] sm:$0xff]
  %v5203 = vld [vmem:[%s4615 + $0x101] sm:$0xff]
  %v5204 = vld [vmem:[%s4615 + $0x111] sm:$0xff]
  %s5205 = scalar_lea.vmem %s6, 32
  %v5206 = vld [vmem:[%s5205] sm:$0xff]
  %v5208 = vsel %vm4563, %v5206, 0
  %v5211 = vsel %vm4563, %v5189, 0
  %v5214 = vsel %vm4563, %v5190, 0
  %v5217 = vsel %vm4563, %v5191, 0
  %v5220 = vsel %vm4563, %v5192, 0
  %v5223 = vsel %vm4563, %v5193, 0
  %v5226 = vsel %vm4563, %v5194, 0
  %v5229 = vsel %vm4563, %v5195, 0
  %v5232 = vsel %vm4563, %v5196, 0
  %v5235 = vsel %vm4563, %v5197, 0
  %v5238 = vsel %vm4563, %v5198, 0
  %v5241 = vsel %vm4563, %v5199, 0
  %v5244 = vsel %vm4563, %v5200, 0
  %v5247 = vsel %vm4563, %v5201, 0
  %v5250 = vsel %vm4563, %v5202, 0
  %v5253 = vsel %vm4563, %v5203, 0
  %v5256 = vsel %vm4563, %v5204, 0
  %5258 = vmatprep.subr.mxu0 0.0
  %5259 = vmatpush1.xpose.msra.mxu0 %v5211
  %5260 = vmatprep.subr.mxu0 0.0
  %5261 = vmatpush1.xpose.msra.mxu0 %v5214
  %5262 = vmatprep.subr.mxu0 0.0
  %5263 = vmatpush1.xpose.msra.mxu0 %v5217
  %5264 = vmatprep.subr.mxu0 0.0
  %5265 = vmatpush1.xpose.msra.mxu0 %v5220
  %5266 = vmatprep.subr.mxu0 0.0
  %5267 = vmatpush1.xpose.msra.mxu0 %v5223
  %5268 = vmatprep.subr.mxu0 0.0
  %5269 = vmatpush1.xpose.msra.mxu0 %v5226
  %5270 = vmatprep.subr.mxu0 0.0
  %5271 = vmatpush1.xpose.msra.mxu0 %v5229
  %5272 = vmatprep.subr.mxu0 0.0
  %5273 = vmatpush1.xpose.msra.mxu0 %v5232
  %5274 = vmatprep.subr.mxu0 0.0
  %5275 = vmatpush1.xpose.msra.mxu0 %v5235
  %5276 = vmatprep.subr.mxu0 0.0
  %5277 = vmatpush1.xpose.msra.mxu0 %v5238
  %5278 = vmatprep.subr.mxu0 0.0
  %5279 = vmatpush1.xpose.msra.mxu0 %v5241
  %5280 = vmatprep.subr.mxu0 0.0
  %5281 = vmatpush1.xpose.msra.mxu0 %v5244
  %5282 = vmatprep.subr.mxu0 0.0
  %5283 = vmatpush1.xpose.msra.mxu0 %v5247
  %5284 = vmatprep.subr.mxu0 0.0
  %5285 = vmatpush1.xpose.msra.mxu0 %v5250
  %5286 = vmatprep.subr.mxu0 0.0
  %5287 = vmatpush1.xpose.msra.mxu0 %v5253
  %5288 = vmatprep.subr.mxu0 0.0
  %5289 = vmatpush1.xpose.msra.mxu0 %v5256
  %5290 = vmatprep.subr.mxu0 0.0
  %5291 = vmatpush1.xpose.msra.mxu0 0.0
  %5292 = vmatprep.subr.mxu0 0.0
  %5293 = vmatpush1.xpose.msra.mxu0 0.0
  %5294 = vmatprep.subr.mxu0 0.0
  %5295 = vmatpush1.xpose.msra.mxu0 0.0
  %5296 = vmatprep.subr.mxu0 0.0
  %5297 = vmatpush1.xpose.msra.mxu0 0.0
  %5298 = vmatprep.subr.mxu0 0.0
  %5299 = vmatpush1.xpose.msra.mxu0 0.0
  %5300 = vmatprep.subr.mxu0 0.0
  %5301 = vmatpush1.xpose.msra.mxu0 0.0
  %5302 = vmatprep.subr.mxu0 0.0
  %5303 = vmatpush1.xpose.msra.mxu0 0.0
  %5304 = vmatprep.subr.mxu0 0.0
  %5305 = vmatpush1.xpose.msra.mxu0 0.0
  %5306 = vmatprep.subr.mxu0 0.0
  %5307 = vmatpush1.xpose.msra.mxu0 0.0
  %5308 = vmatprep.subr.mxu0 0.0
  %5309 = vmatpush1.xpose.msra.mxu0 0.0
  %5310 = vmatprep.subr.mxu0 0.0
  %5311 = vmatpush1.xpose.msra.mxu0 0.0
  %5312 = vmatprep.subr.mxu0 0.0
  %5313 = vmatpush1.xpose.msra.mxu0 0.0
  %5314 = vmatprep.subr.mxu0 0.0
  %5315 = vmatpush1.xpose.msra.mxu0 0.0
  %5316 = vmatprep.subr.mxu0 0.0
  %5317 = vmatpush1.xpose.msra.mxu0 0.0
  %5318 = vmatprep.subr.mxu0 0.0
  %5319 = vmatpush1.xpose.msra.mxu0 0.0
  %5320 = vmatprep.subr.mxu0 0.0
  %5321 = vmatpush1.xpose.msra.mxu0 0.0
  %5322 = vmatprep.mubr.f32.mxu0 0.0
  %5323 = vmatmul.mubr.f32.gmra.mrb[0].mxu0 %v5208
  %v5324 = vpop.f32.mrb[0].mxu0
  %v5325 = vadd.f32 0.0, %v5324
  %v5326 = vpop.f32.mrb[0].mxu0
  %5327 = vdwg.mxu0
  %v5328 = vadd.f32 %v5188, %v5325
  %v5329 = vld [vmem:[%s4615 + $0x2] sm:$0xff]
  %v5330 = vld [vmem:[%s4615 + $0x12] sm:$0xff]
  %v5331 = vld [vmem:[%s4615 + $0x22] sm:$0xff]
  %v5332 = vld [vmem:[%s4615 + $0x32] sm:$0xff]
  %v5333 = vld [vmem:[%s4615 + $0x42] sm:$0xff]
  %v5334 = vld [vmem:[%s4615 + $0x52] sm:$0xff]
  %v5335 = vld [vmem:[%s4615 + $0x62] sm:$0xff]
  %v5336 = vld [vmem:[%s4615 + $0x72] sm:$0xff]
  %v5337 = vld [vmem:[%s4615 + $0xa2] sm:$0xff]
  %v5338 = vld [vmem:[%s4615 + $0xb2] sm:$0xff]
  %v5339 = vld [vmem:[%s4615 + $0xc2] sm:$0xff]
  %v5340 = vld [vmem:[%s4615 + $0xd2] sm:$0xff]
  %v5341 = vld [vmem:[%s4615 + $0xe2] sm:$0xff]
  %v5342 = vld [vmem:[%s4615 + $0xf2] sm:$0xff]
  %v5343 = vld [vmem:[%s4615 + $0x102] sm:$0xff]
  %v5344 = vld [vmem:[%s4615 + $0x112] sm:$0xff]
  %s5345 = scalar_lea.vmem %s6, 40
  %v5346 = vld [vmem:[%s5345] sm:$0xff]
  %v5348 = vsel %vm4563, %v5346, 0
  %v5351 = vsel %vm4563, %v5329, 0
  %v5354 = vsel %vm4563, %v5330, 0
  %v5357 = vsel %vm4563, %v5331, 0
  %v5360 = vsel %vm4563, %v5332, 0
  %v5363 = vsel %vm4563, %v5333, 0
  %v5366 = vsel %vm4563, %v5334, 0
  %v5369 = vsel %vm4563, %v5335, 0
  %v5372 = vsel %vm4563, %v5336, 0
  %v5375 = vsel %vm4563, %v5337, 0
  %v5378 = vsel %vm4563, %v5338, 0
  %v5381 = vsel %vm4563, %v5339, 0
  %v5384 = vsel %vm4563, %v5340, 0
  %v5387 = vsel %vm4563, %v5341, 0
  %v5390 = vsel %vm4563, %v5342, 0
  %v5393 = vsel %vm4563, %v5343, 0
  %v5396 = vsel %vm4563, %v5344, 0
  %5398 = vmatprep.subr.mxu0 0.0
  %5399 = vmatpush1.xpose.msra.mxu0 %v5351
  %5400 = vmatprep.subr.mxu0 0.0
  %5401 = vmatpush1.xpose.msra.mxu0 %v5354
  %5402 = vmatprep.subr.mxu0 0.0
  %5403 = vmatpush1.xpose.msra.mxu0 %v5357
  %5404 = vmatprep.subr.mxu0 0.0
  %5405 = vmatpush1.xpose.msra.mxu0 %v5360
  %5406 = vmatprep.subr.mxu0 0.0
  %5407 = vmatpush1.xpose.msra.mxu0 %v5363
  %5408 = vmatprep.subr.mxu0 0.0
  %5409 = vmatpush1.xpose.msra.mxu0 %v5366
  %5410 = vmatprep.subr.mxu0 0.0
  %5411 = vmatpush1.xpose.msra.mxu0 %v5369
  %5412 = vmatprep.subr.mxu0 0.0
  %5413 = vmatpush1.xpose.msra.mxu0 %v5372
  %5414 = vmatprep.subr.mxu0 0.0
  %5415 = vmatpush1.xpose.msra.mxu0 %v5375
  %5416 = vmatprep.subr.mxu0 0.0
  %5417 = vmatpush1.xpose.msra.mxu0 %v5378
  %5418 = vmatprep.subr.mxu0 0.0
  %5419 = vmatpush1.xpose.msra.mxu0 %v5381
  %5420 = vmatprep.subr.mxu0 0.0
  %5421 = vmatpush1.xpose.msra.mxu0 %v5384
  %5422 = vmatprep.subr.mxu0 0.0
  %5423 = vmatpush1.xpose.msra.mxu0 %v5387
  %5424 = vmatprep.subr.mxu0 0.0
  %5425 = vmatpush1.xpose.msra.mxu0 %v5390
  %5426 = vmatprep.subr.mxu0 0.0
  %5427 = vmatpush1.xpose.msra.mxu0 %v5393
  %5428 = vmatprep.subr.mxu0 0.0
  %5429 = vmatpush1.xpose.msra.mxu0 %v5396
  %5430 = vmatprep.subr.mxu0 0.0
  %5431 = vmatpush1.xpose.msra.mxu0 0.0
  %5432 = vmatprep.subr.mxu0 0.0
  %5433 = vmatpush1.xpose.msra.mxu0 0.0
  %5434 = vmatprep.subr.mxu0 0.0
  %5435 = vmatpush1.xpose.msra.mxu0 0.0
  %5436 = vmatprep.subr.mxu0 0.0
  %5437 = vmatpush1.xpose.msra.mxu0 0.0
  %5438 = vmatprep.subr.mxu0 0.0
  %5439 = vmatpush1.xpose.msra.mxu0 0.0
  %5440 = vmatprep.subr.mxu0 0.0
  %5441 = vmatpush1.xpose.msra.mxu0 0.0
  %5442 = vmatprep.subr.mxu0 0.0
  %5443 = vmatpush1.xpose.msra.mxu0 0.0
  %5444 = vmatprep.subr.mxu0 0.0
  %5445 = vmatpush1.xpose.msra.mxu0 0.0
  %5446 = vmatprep.subr.mxu0 0.0
  %5447 = vmatpush1.xpose.msra.mxu0 0.0
  %5448 = vmatprep.subr.mxu0 0.0
  %5449 = vmatpush1.xpose.msra.mxu0 0.0
  %5450 = vmatprep.subr.mxu0 0.0
  %5451 = vmatpush1.xpose.msra.mxu0 0.0
  %5452 = vmatprep.subr.mxu0 0.0
  %5453 = vmatpush1.xpose.msra.mxu0 0.0
  %5454 = vmatprep.subr.mxu0 0.0
  %5455 = vmatpush1.xpose.msra.mxu0 0.0
  %5456 = vmatprep.subr.mxu0 0.0
  %5457 = vmatpush1.xpose.msra.mxu0 0.0
  %5458 = vmatprep.subr.mxu0 0.0
  %5459 = vmatpush1.xpose.msra.mxu0 0.0
  %5460 = vmatprep.subr.mxu0 0.0
  %5461 = vmatpush1.xpose.msra.mxu0 0.0
  %5462 = vmatprep.mubr.f32.mxu0 0.0
  %5463 = vmatmul.mubr.f32.gmra.mrb[0].mxu0 %v5348
  %v5464 = vpop.f32.mrb[0].mxu0
  %v5465 = vadd.f32 0.0, %v5464
  %v5466 = vpop.f32.mrb[0].mxu0
  %5467 = vdwg.mxu0
  %v5468 = vadd.f32 %v5328, %v5465
  %s5469 = scalar_lea.vmem [#allocation5], 32
  %v5470 = vld [vmem:[%s5469] sm:$0xff]
  %v5471 = vld [vmem:[%s5469 + $0x10] sm:$0xff]
  %v5472 = vld [vmem:[%s5469 + $0x20] sm:$0xff]
  %v5473 = vld [vmem:[%s5469 + $0x30] sm:$0xff]
  %v5474 = vld [vmem:[%s5469 + $0x40] sm:$0xff]
  %v5475 = vld [vmem:[%s5469 + $0x50] sm:$0xff]
  %v5476 = vld [vmem:[%s5469 + $0x60] sm:$0xff]
  %v5477 = vld [vmem:[%s5469 + $0x70] sm:$0xff]
  %v5478 = vld [vmem:[%s5469 + $0xa0] sm:$0xff]
  %v5479 = vld [vmem:[%s5469 + $0xb0] sm:$0xff]
  %v5480 = vld [vmem:[%s5469 + $0xc0] sm:$0xff]
  %v5481 = vld [vmem:[%s5469 + $0xd0] sm:$0xff]
  %v5482 = vld [vmem:[%s5469 + $0xe0] sm:$0xff]
  %v5483 = vld [vmem:[%s5469 + $0xf0] sm:$0xff]
  %v5484 = vld [vmem:[%s5469 + $0x100] sm:$0xff]
  %v5485 = vld [vmem:[%s5469 + $0x110] sm:$0xff]
  %s5486 = scalar_lea.vmem %s6, 48
  %v5487 = vld [vmem:[%s5486] sm:$0xff]
  %v5489 = vsel %vm4563, %v5487, 0
  %v5492 = vsel %vm4563, %v5470, 0
  %v5495 = vsel %vm4563, %v5471, 0
  %v5498 = vsel %vm4563, %v5472, 0
  %v5501 = vsel %vm4563, %v5473, 0
  %v5504 = vsel %vm4563, %v5474, 0
  %v5507 = vsel %vm4563, %v5475, 0
  %v5510 = vsel %vm4563, %v5476, 0
  %v5513 = vsel %vm4563, %v5477, 0
  %v5516 = vsel %vm4563, %v5478, 0
  %v5519 = vsel %vm4563, %v5479, 0
  %v5522 = vsel %vm4563, %v5480, 0
  %v5525 = vsel %vm4563, %v5481, 0
  %v5528 = vsel %vm4563, %v5482, 0
  %v5531 = vsel %vm4563, %v5483, 0
  %v5534 = vsel %vm4563, %v5484, 0
  %v5537 = vsel %vm4563, %v5485, 0
  %5539 = vmatprep.subr.mxu0 0.0
  %5540 = vmatpush1.xpose.msra.mxu0 %v5492
  %5541 = vmatprep.subr.mxu0 0.0
  %5542 = vmatpush1.xpose.msra.mxu0 %v5495
  %5543 = vmatprep.subr.mxu0 0.0
  %5544 = vmatpush1.xpose.msra.mxu0 %v5498
  %5545 = vmatprep.subr.mxu0 0.0
  %5546 = vmatpush1.xpose.msra.mxu0 %v5501
  %5547 = vmatprep.subr.mxu0 0.0
  %5548 = vmatpush1.xpose.msra.mxu0 %v5504
  %5549 = vmatprep.subr.mxu0 0.0
  %5550 = vmatpush1.xpose.msra.mxu0 %v5507
  %5551 = vmatprep.subr.mxu0 0.0
  %5552 = vmatpush1.xpose.msra.mxu0 %v5510
  %5553 = vmatprep.subr.mxu0 0.0
  %5554 = vmatpush1.xpose.msra.mxu0 %v5513
  %5555 = vmatprep.subr.mxu0 0.0
  %5556 = vmatpush1.xpose.msra.mxu0 %v5516
  %5557 = vmatprep.subr.mxu0 0.0
  %5558 = vmatpush1.xpose.msra.mxu0 %v5519
  %5559 = vmatprep.subr.mxu0 0.0
  %5560 = vmatpush1.xpose.msra.mxu0 %v5522
  %5561 = vmatprep.subr.mxu0 0.0
  %5562 = vmatpush1.xpose.msra.mxu0 %v5525
  %5563 = vmatprep.subr.mxu0 0.0
  %5564 = vmatpush1.xpose.msra.mxu0 %v5528
  %5565 = vmatprep.subr.mxu0 0.0
  %5566 = vmatpush1.xpose.msra.mxu0 %v5531
  %5567 = vmatprep.subr.mxu0 0.0
  %5568 = vmatpush1.xpose.msra.mxu0 %v5534
  %5569 = vmatprep.subr.mxu0 0.0
  %5570 = vmatpush1.xpose.msra.mxu0 %v5537
  %5571 = vmatprep.subr.mxu0 0.0
  %5572 = vmatpush1.xpose.msra.mxu0 0.0
  %5573 = vmatprep.subr.mxu0 0.0
  %5574 = vmatpush1.xpose.msra.mxu0 0.0
  %5575 = vmatprep.subr.mxu0 0.0
  %5576 = vmatpush1.xpose.msra.mxu0 0.0
  %5577 = vmatprep.subr.mxu0 0.0
  %5578 = vmatpush1.xpose.msra.mxu0 0.0
  %5579 = vmatprep.subr.mxu0 0.0
  %5580 = vmatpush1.xpose.msra.mxu0 0.0
  %5581 = vmatprep.subr.mxu0 0.0
  %5582 = vmatpush1.xpose.msra.mxu0 0.0
  %5583 = vmatprep.subr.mxu0 0.0
  %5584 = vmatpush1.xpose.msra.mxu0 0.0
  %5585 = vmatprep.subr.mxu0 0.0
  %5586 = vmatpush1.xpose.msra.mxu0 0.0
  %5587 = vmatprep.subr.mxu0 0.0
  %5588 = vmatpush1.xpose.msra.mxu0 0.0
  %5589 = vmatprep.subr.mxu0 0.0
  %5590 = vmatpush1.xpose.msra.mxu0 0.0
  %5591 = vmatprep.subr.mxu0 0.0
  %5592 = vmatpush1.xpose.msra.mxu0 0.0
  %5593 = vmatprep.subr.mxu0 0.0
  %5594 = vmatpush1.xpose.msra.mxu0 0.0
  %5595 = vmatprep.subr.mxu0 0.0
  %5596 = vmatpush1.xpose.msra.mxu0 0.0
  %5597 = vmatprep.subr.mxu0 0.0
  %5598 = vmatpush1.xpose.msra.mxu0 0.0
  %5599 = vmatprep.subr.mxu0 0.0
  %5600 = vmatpush1.xpose.msra.mxu0 0.0
  %5601 = vmatprep.subr.mxu0 0.0
  %5602 = vmatpush1.xpose.msra.mxu0 0.0
  %5603 = vmatprep.mubr.f32.mxu0 0.0
  %5604 = vmatmul.mubr.f32.gmra.mrb[0].mxu0 %v5489
  %v5605 = vpop.f32.mrb[0].mxu0
  %v5606 = vadd.f32 0.0, %v5605
  %v5607 = vpop.f32.mrb[0].mxu0
  %5608 = vdwg.mxu0
  %v5609 = vadd.f32 %v5468, %v5606
  %v5610 = vld [vmem:[%s5469 + $0x1] sm:$0xff]
  %v5611 = vld [vmem:[%s5469 + $0x11] sm:$0xff]
  %v5612 = vld [vmem:[%s5469 + $0x21] sm:$0xff]
  %v5613 = vld [vmem:[%s5469 + $0x31] sm:$0xff]
  %v5614 = vld [vmem:[%s5469 + $0x41] sm:$0xff]
  %v5615 = vld [vmem:[%s5469 + $0x51] sm:$0xff]
  %v5616 = vld [vmem:[%s5469 + $0x61] sm:$0xff]
  %v5617 = vld [vmem:[%s5469 + $0x71] sm:$0xff]
  %v5618 = vld [vmem:[%s5469 + $0xa1] sm:$0xff]
  %v5619 = vld [vmem:[%s5469 + $0xb1] sm:$0xff]
  %v5620 = vld [vmem:[%s5469 + $0xc1] sm:$0xff]
  %v5621 = vld [vmem:[%s5469 + $0xd1] sm:$0xff]
  %v5622 = vld [vmem:[%s5469 + $0xe1] sm:$0xff]
  %v5623 = vld [vmem:[%s5469 + $0xf1] sm:$0xff]
  %v5624 = vld [vmem:[%s5469 + $0x101] sm:$0xff]
  %v5625 = vld [vmem:[%s5469 + $0x111] sm:$0xff]
  %s5626 = scalar_lea.vmem %s6, 56
  %v5627 = vld [vmem:[%s5626] sm:$0xff]
  %v5629 = vsel %vm4563, %v5627, 0
  %v5632 = vsel %vm4563, %v5610, 0
  %v5635 = vsel %vm4563, %v5611, 0
  %v5638 = vsel %vm4563, %v5612, 0
  %v5641 = vsel %vm4563, %v5613, 0
  %v5644 = vsel %vm4563, %v5614, 0
  %v5647 = vsel %vm4563, %v5615, 0
  %v5650 = vsel %vm4563, %v5616, 0
  %v5653 = vsel %vm4563, %v5617, 0
  %v5656 = vsel %vm4563, %v5618, 0
  %v5659 = vsel %vm4563, %v5619, 0
  %v5662 = vsel %vm4563, %v5620, 0
  %v5665 = vsel %vm4563, %v5621, 0
  %v5668 = vsel %vm4563, %v5622, 0
  %v5671 = vsel %vm4563, %v5623, 0
  %v5674 = vsel %vm4563, %v5624, 0
  %v5677 = vsel %vm4563, %v5625, 0
  %5679 = vmatprep.subr.mxu0 0.0
  %5680 = vmatpush1.xpose.msra.mxu0 %v5632
  %5681 = vmatprep.subr.mxu0 0.0
  %5682 = vmatpush1.xpose.msra.mxu0 %v5635
  %5683 = vmatprep.subr.mxu0 0.0
  %5684 = vmatpush1.xpose.msra.mxu0 %v5638
  %5685 = vmatprep.subr.mxu0 0.0
  %5686 = vmatpush1.xpose.msra.mxu0 %v5641
  %5687 = vmatprep.subr.mxu0 0.0
  %5688 = vmatpush1.xpose.msra.mxu0 %v5644
  %5689 = vmatprep.subr.mxu0 0.0
  %5690 = vmatpush1.xpose.msra.mxu0 %v5647
  %5691 = vmatprep.subr.mxu0 0.0
  %5692 = vmatpush1.xpose.msra.mxu0 %v5650
  %5693 = vmatprep.subr.mxu0 0.0
  %5694 = vmatpush1.xpose.msra.mxu0 %v5653
  %5695 = vmatprep.subr.mxu0 0.0
  %5696 = vmatpush1.xpose.msra.mxu0 %v5656
  %5697 = vmatprep.subr.mxu0 0.0
  %5698 = vmatpush1.xpose.msra.mxu0 %v5659
  %5699 = vmatprep.subr.mxu0 0.0
  %5700 = vmatpush1.xpose.msra.mxu0 %v5662
  %5701 = vmatprep.subr.mxu0 0.0
  %5702 = vmatpush1.xpose.msra.mxu0 %v5665
  %5703 = vmatprep.subr.mxu0 0.0
  %5704 = vmatpush1.xpose.msra.mxu0 %v5668
  %5705 = vmatprep.subr.mxu0 0.0
  %5706 = vmatpush1.xpose.msra.mxu0 %v5671
  %5707 = vmatprep.subr.mxu0 0.0
  %5708 = vmatpush1.xpose.msra.mxu0 %v5674
  %5709 = vmatprep.subr.mxu0 0.0
  %5710 = vmatpush1.xpose.msra.mxu0 %v5677
  %5711 = vmatprep.subr.mxu0 0.0
  %5712 = vmatpush1.xpose.msra.mxu0 0.0
  %5713 = vmatprep.subr.mxu0 0.0
  %5714 = vmatpush1.xpose.msra.mxu0 0.0
  %5715 = vmatprep.subr.mxu0 0.0
  %5716 = vmatpush1.xpose.msra.mxu0 0.0
  %5717 = vmatprep.subr.mxu0 0.0
  %5718 = vmatpush1.xpose.msra.mxu0 0.0
  %5719 = vmatprep.subr.mxu0 0.0
  %5720 = vmatpush1.xpose.msra.mxu0 0.0
  %5721 = vmatprep.subr.mxu0 0.0
  %5722 = vmatpush1.xpose.msra.mxu0 0.0
  %5723 = vmatprep.subr.mxu0 0.0
  %5724 = vmatpush1.xpose.msra.mxu0 0.0
  %5725 = vmatprep.subr.mxu0 0.0
  %5726 = vmatpush1.xpose.msra.mxu0 0.0
  %5727 = vmatprep.subr.mxu0 0.0
  %5728 = vmatpush1.xpose.msra.mxu0 0.0
  %5729 = vmatprep.subr.mxu0 0.0
  %5730 = vmatpush1.xpose.msra.mxu0 0.0
  %5731 = vmatprep.subr.mxu0 0.0
  %5732 = vmatpush1.xpose.msra.mxu0 0.0
  %5733 = vmatprep.subr.mxu0 0.0
  %5734 = vmatpush1.xpose.msra.mxu0 0.0
  %5735 = vmatprep.subr.mxu0 0.0
  %5736 = vmatpush1.xpose.msra.mxu0 0.0
  %5737 = vmatprep.subr.mxu0 0.0
  %5738 = vmatpush1.xpose.msra.mxu0 0.0
  %5739 = vmatprep.subr.mxu0 0.0
  %5740 = vmatpush1.xpose.msra.mxu0 0.0
  %5741 = vmatprep.subr.mxu0 0.0
  %5742 = vmatpush1.xpose.msra.mxu0 0.0
  %5743 = vmatprep.mubr.f32.mxu0 0.0
  %5744 = vmatmul.mubr.f32.gmra.mrb[0].mxu0 %v5629
  %v5745 = vpop.f32.mrb[0].mxu0
  %v5746 = vadd.f32 0.0, %v5745
  %v5747 = vpop.f32.mrb[0].mxu0
  %5748 = vdwg.mxu0
  %v5749 = vadd.f32 %v5609, %v5746
  %v5750 = vld [vmem:[%s5469 + $0x2] sm:$0xff]
  %v5751 = vld [vmem:[%s5469 + $0x12] sm:$0xff]
  %v5752 = vld [vmem:[%s5469 + $0x22] sm:$0xff]
  %v5753 = vld [vmem:[%s5469 + $0x32] sm:$0xff]
  %v5754 = vld [vmem:[%s5469 + $0x42] sm:$0xff]
  %v5755 = vld [vmem:[%s5469 + $0x52] sm:$0xff]
  %v5756 = vld [vmem:[%s5469 + $0x62] sm:$0xff]
  %v5757 = vld [vmem:[%s5469 + $0x72] sm:$0xff]
  %v5758 = vld [vmem:[%s5469 + $0xa2] sm:$0xff]
  %v5759 = vld [vmem:[%s5469 + $0xb2] sm:$0xff]
  %v5760 = vld [vmem:[%s5469 + $0xc2] sm:$0xff]
  %v5761 = vld [vmem:[%s5469 + $0xd2] sm:$0xff]
  %v5762 = vld [vmem:[%s5469 + $0xe2] sm:$0xff]
  %v5763 = vld [vmem:[%s5469 + $0xf2] sm:$0xff]
  %v5764 = vld [vmem:[%s5469 + $0x102] sm:$0xff]
  %v5765 = vld [vmem:[%s5469 + $0x112] sm:$0xff]
  %s5766 = scalar_lea.vmem %s6, 64
  %v5767 = vld [vmem:[%s5766] sm:$0xff]
  %v5769 = vsel %vm4563, %v5767, 0
  %v5772 = vsel %vm4563, %v5750, 0
  %v5775 = vsel %vm4563, %v5751, 0
  %v5778 = vsel %vm4563, %v5752, 0
  %v5781 = vsel %vm4563, %v5753, 0
  %v5784 = vsel %vm4563, %v5754, 0
  %v5787 = vsel %vm4563, %v5755, 0
  %v5790 = vsel %vm4563, %v5756, 0
  %v5793 = vsel %vm4563, %v5757, 0
  %v5796 = vsel %vm4563, %v5758, 0
  %v5799 = vsel %vm4563, %v5759, 0
  %v5802 = vsel %vm4563, %v5760, 0
  %v5805 = vsel %vm4563, %v5761, 0
  %v5808 = vsel %vm4563, %v5762, 0
  %v5811 = vsel %vm4563, %v5763, 0
  %v5814 = vsel %vm4563, %v5764, 0
  %v5817 = vsel %vm4563, %v5765, 0
  %5819 = vmatprep.subr.mxu0 0.0
  %5820 = vmatpush1.xpose.msra.mxu0 %v5772
  %5821 = vmatprep.subr.mxu0 0.0
  %5822 = vmatpush1.xpose.msra.mxu0 %v5775
  %5823 = vmatprep.subr.mxu0 0.0
  %5824 = vmatpush1.xpose.msra.mxu0 %v5778
  %5825 = vmatprep.subr.mxu0 0.0
  %5826 = vmatpush1.xpose.msra.mxu0 %v5781
  %5827 = vmatprep.subr.mxu0 0.0
  %5828 = vmatpush1.xpose.msra.mxu0 %v5784
  %5829 = vmatprep.subr.mxu0 0.0
  %5830 = vmatpush1.xpose.msra.mxu0 %v5787
  %5831 = vmatprep.subr.mxu0 0.0
  %5832 = vmatpush1.xpose.msra.mxu0 %v5790
  %5833 = vmatprep.subr.mxu0 0.0
  %5834 = vmatpush1.xpose.msra.mxu0 %v5793
  %5835 = vmatprep.subr.mxu0 0.0
  %5836 = vmatpush1.xpose.msra.mxu0 %v5796
  %5837 = vmatprep.subr.mxu0 0.0
  %5838 = vmatpush1.xpose.msra.mxu0 %v5799
  %5839 = vmatprep.subr.mxu0 0.0
  %5840 = vmatpush1.xpose.msra.mxu0 %v5802
  %5841 = vmatprep.subr.mxu0 0.0
  %5842 = vmatpush1.xpose.msra.mxu0 %v5805
  %5843 = vmatprep.subr.mxu0 0.0
  %5844 = vmatpush1.xpose.msra.mxu0 %v5808
  %5845 = vmatprep.subr.mxu0 0.0
  %5846 = vmatpush1.xpose.msra.mxu0 %v5811
  %5847 = vmatprep.subr.mxu0 0.0
  %5848 = vmatpush1.xpose.msra.mxu0 %v5814
  %5849 = vmatprep.subr.mxu0 0.0
  %5850 = vmatpush1.xpose.msra.mxu0 %v5817
  %5851 = vmatprep.subr.mxu0 0.0
  %5852 = vmatpush1.xpose.msra.mxu0 0.0
  %5853 = vmatprep.subr.mxu0 0.0
  %5854 = vmatpush1.xpose.msra.mxu0 0.0
  %5855 = vmatprep.subr.mxu0 0.0
  %5856 = vmatpush1.xpose.msra.mxu0 0.0
  %5857 = vmatprep.subr.mxu0 0.0
  %5858 = vmatpush1.xpose.msra.mxu0 0.0
  %5859 = vmatprep.subr.mxu0 0.0
  %5860 = vmatpush1.xpose.msra.mxu0 0.0
  %5861 = vmatprep.subr.mxu0 0.0
  %5862 = vmatpush1.xpose.msra.mxu0 0.0
  %5863 = vmatprep.subr.mxu0 0.0
  %5864 = vmatpush1.xpose.msra.mxu0 0.0
  %5865 = vmatprep.subr.mxu0 0.0
  %5866 = vmatpush1.xpose.msra.mxu0 0.0
  %5867 = vmatprep.subr.mxu0 0.0
  %5868 = vmatpush1.xpose.msra.mxu0 0.0
  %5869 = vmatprep.subr.mxu0 0.0
  %5870 = vmatpush1.xpose.msra.mxu0 0.0
  %5871 = vmatprep.subr.mxu0 0.0
  %5872 = vmatpush1.xpose.msra.mxu0 0.0
  %5873 = vmatprep.subr.mxu0 0.0
  %5874 = vmatpush1.xpose.msra.mxu0 0.0
  %5875 = vmatprep.subr.mxu0 0.0
  %5876 = vmatpush1.xpose.msra.mxu0 0.0
  %5877 = vmatprep.subr.mxu0 0.0
  %5878 = vmatpush1.xpose.msra.mxu0 0.0
  %5879 = vmatprep.subr.mxu0 0.0
  %5880 = vmatpush1.xpose.msra.mxu0 0.0
  %5881 = vmatprep.subr.mxu0 0.0
  %5882 = vmatpush1.xpose.msra.mxu0 0.0
  %5883 = vmatprep.mubr.f32.mxu0 0.0
  %5884 = vmatmul.mubr.f32.gmra.mrb[0].mxu0 %v5769
  %v5885 = vpop.f32.mrb[0].mxu0
  %v5886 = vadd.f32 0.0, %v5885
  %v5887 = vpop.f32.mrb[0].mxu0
  %5888 = vdwg.mxu0
  %v5889 = vadd.f32 %v5749, %v5886
  %v5890 = vld [vmem:[%s7] sm:$0xff]
  %5892 = vset.pattern.permute.xlu0 0
  %5893 = vperm.xlu0 %5892, %v5890
  %v5894 = vpop.permute.xlu0 %5893
  %v5896 = vmul.f32 %v5889, %v5894
  %v5897 = vld [vmem:[%s8] sm:$0xff]
  %5899 = vset.pattern.permute.xlu0 0
  %5900 = vperm.xlu0 %5899, %v5897
  %v5901 = vpop.permute.xlu0 %5900
  %v5903 = vadd.f32 %v5896, %v5901
  %v5904 = vmax.f32 %v5903, 0.0
  %5905 = vst [vmem:[%s9] sm:$0xff] %v5904
  // Predicated region
  $region38: #{down_forward.1} parent=0 // pred_check
    _
  $region39: #{down_forward.1} parent=0 // pred_check_branch
    %5907 = sbr.rel (0) target = $region41
  $region40: #{down_forward.1} parent=0 // pred_region
    _
  $region41: #{down_forward.1} parent=0 // pred_fallthru
    _
  // Predicated region
  $region42: #{down_forward.1} parent=0 // pred_check
    _
  $region43: #{down_forward.1} parent=0 // pred_check_branch
    %5909 = sbr.rel (0) target = $region45
  $region44: #{down_forward.1} parent=0 // pred_region
    _
  $region45: #{down_forward.1} parent=0 // pred_fallthru
    _

</llo_original>
